<compile_context>
chip_gen: v5e
topology: v5e:2x2
jax: 0.10.0
libtpu: 0.0.40
codegen_flags: <defaults>
</compile_context>

<pallas_src>
import jax
import jax.numpy as jnp
import numpy as np
from jax import lax
from jax.experimental import pallas as pl
from jax.experimental.pallas import tpu as pltpu

BN_EPS = 1e-5
LEAKY_SLOPE = 0.01
VMEM_LIMIT_BYTES = 48 * 1024 * 1024      # headroom below physical on v5e/v6e/v7x
MXU_DTYPE = jnp.float32                  # set jnp.bfloat16 on v6e/v7x for 2x MXU rate


# ---------------------------------------------------------------------------
# Decoder configuration (mirrors Decoder.__init__)
# ---------------------------------------------------------------------------
def decoder_config(final_size, base_num_features, input_channels,
                   kernel_size, final_conv_image_size, latent_size):
    size = final_size
    num_channels = input_channels
    up_blocks = []                       # (in_ch, out_ch) in constructor order
    while size > final_conv_image_size:
        # TODO(synk): odd-intermediate-size ConvTranspose2d adapter branch of
        # Decoder.__init__ not implemented (never constructed for power-of-two sizes).
        assert size % 2 == 0, "odd intermediate sizes not supported"
        in_ch = num_channels * 2 if num_channels > 1 else base_num_features
        up_blocks.append((in_ch, num_channels))
        num_channels = in_ch
        size //= 2
    return dict(head=(latent_size, num_channels, final_conv_image_size),
                up_blocks=list(reversed(up_blocks)),   # forward execution order
                kernel_size=kernel_size,
                out_channels=input_channels)


def init_params(key, cfg):
    K = cfg["kernel_size"]

    def nrm(k, shape, scale=0.1):
        return scale * jax.random.normal(k, shape, jnp.float32)

    n_blocks = len(cfg["up_blocks"])
    keys = iter(jax.random.split(key, 4 + 10 * n_blocks))
    lat, c0, kf = cfg["head"]
    params = {"head": {"w": nrm(next(keys), (lat, c0, kf, kf)),   # (in, out, kh, kw)
                       "b": nrm(next(keys), (c0,))}}
    blocks = []
    for cin, cout in cfg["up_blocks"]:
        cmid = cin // 2
        blocks.append({
            "w_skip": nrm(next(keys), (K, K, cin, cout)),         # HWIO
            "b_skip": nrm(next(keys), (cout,)),
            "w1": nrm(next(keys), (K, K, cin, cmid)),
            "b1": nrm(next(keys), (cmid,)),
            "w2": nrm(next(keys), (K, K, cmid, cout)),
            "b2": nrm(next(keys), (cout,)),
            "g1": 1.0 + nrm(next(keys), (cmid,), 0.05),
            "be1": nrm(next(keys), (cmid,), 0.05),
            "g2": 1.0 + nrm(next(keys), (cout,), 0.05),
            "be2": nrm(next(keys), (cout,), 0.05),
        })
    params["blocks"] = blocks
    cfin = cfg["out_channels"]
    params["out"] = {"w": nrm(next(keys), (cfin, cfin)),          # (in, out)
                     "b": nrm(next(keys), (cfin,))}
    return params


# ---------------------------------------------------------------------------
# Kernel 1: ConvTranspose2d on a 1x1 spatial input + LeakyReLU  (== matmul)
# ---------------------------------------------------------------------------
def _head_kernel(x_ref, w_ref, b_ref, o_ref):
    y = jnp.dot(x_ref[...], w_ref[...], preferred_element_type=jnp.float32)
    y = y + b_ref[...]
    o_ref[...] = jnp.where(y > 0.0, y, LEAKY_SLOPE * y)


def head_forward(x, w4, b):
    lat, c0, kf, _ = w4.shape
    n = x.shape[0]
    w = w4.reshape(lat, c0 * kf * kf)                       # lane-dense output
    b_full = jnp.repeat(b, kf * kf).reshape(1, c0 * kf * kf)
    out = pl.pallas_call(
        _head_kernel,
        out_shape=jax.ShapeDtypeStruct((n, c0 * kf * kf), jnp.float32),
        in_specs=[pl.BlockSpec(memory_space=pltpu.MemorySpace.VMEM)] * 3,
        out_specs=pl.BlockSpec(memory_space=pltpu.MemorySpace.VMEM),
        compiler_params=pltpu.CompilerParams(vmem_limit_bytes=VMEM_LIMIT_BYTES),
    )(x.astype(jnp.float32), w, b_full)
    return out.reshape(n, c0, kf, kf)                       # NCHW


# ---------------------------------------------------------------------------
# Kernel 2: fused UpSamplingResidualBlock (optionally + final 1x1 conv + Tanh)
# ---------------------------------------------------------------------------
def _make_block_kernel(N, OH, OW, Cin, Cmid, Cout, K, pad, fuse_out_head):
    M = N * OH * OW

    def elu(v):
        # exp(min(v,0)) - 1; expm1 would be marginally more accurate near 0 but
        # has no guaranteed Mosaic lowering -- difference is far below tolerance.
        return jnp.where(v > 0.0, v, jnp.exp(jnp.minimum(v, 0.0)) - 1.0)

    def bn_train(v, gamma, beta):
        # training-mode BatchNorm2d: biased batch stats over (N, H, W),
        # computed with a single sum / sum-of-squares pass.
        inv_m = 1.0 / float(M)
        s = jnp.sum(v, axis=0, keepdims=True)
        ss = jnp.sum(v * v, axis=0, keepdims=True)
        mean = s * inv_m
        var = ss * inv_m - mean * mean
        return (v - mean) * lax.rsqrt(var + BN_EPS) * gamma + beta

    def kernel(xpad_ref, wa_ref, ba_ref, w2_ref, b2_ref,
               g1_ref, be1_ref, g2_ref, be2_ref, *rest):
        if fuse_out_head:
            wo_ref, bo_ref, out_ref, ypad_ref = rest
        else:
            out_ref, ypad_ref = rest

        # ---- one im2col slab, ONE matmul for skip_conv + latent_conv1 -----
        lhs = jnp.concatenate(
            [xpad_ref[:, kh:kh + OH, kw:kw + OW, :].reshape(M, Cin)
             for kh in range(K) for kw in range(K)], axis=1)        # (M, KK*Cin)
        a = jnp.dot(lhs.astype(MXU_DTYPE), wa_ref[...].astype(MXU_DTYPE),
                    preferred_element_type=jnp.float32) + ba_ref[...]
        skip = a[:, :Cout]
        y1 = elu(bn_train(a[:, Cout:], g1_ref[...], be1_ref[...]))

        # ---- conv2: padded VMEM intermediate, one slab, one matmul --------
        ypad_ref[...] = jnp.zeros(ypad_ref.shape, jnp.float32)
        ypad_ref[:, pad:pad + OH, pad:pad + OW, :] = y1.reshape(N, OH, OW, Cmid)
        lhs2 = jnp.concatenate(
            [ypad_ref[:, kh:kh + OH, kw:kw + OW, :].reshape(M, Cmid)
             for kh in range(K) for kw in range(K)], axis=1)        # (M, KK*Cmid)
        y2 = jnp.dot(lhs2.astype(MXU_DTYPE), w2_ref[...].astype(MXU_DTYPE),
                     preferred_element_type=jnp.float32) + b2_ref[...]

        # ---- residual add + output BN + ELU (+ fused 1x1 conv + Tanh) -----
        out = elu(bn_train(skip + y2, g2_ref[...], be2_ref[...]))
        if fuse_out_head:
            out = jnp.tanh(jnp.dot(out, wo_ref[...],
                                   preferred_element_type=jnp.float32) + bo_ref[...])
        out_ref[...] = out

    return kernel


def upres_block_forward(x_nhwc, bp, K, out_head=None):
    """x_nhwc: (N, H, W, Cin) -> (N, 2H, 2W, Cout_or_Cfin)."""
    N, H, W, Cin = x_nhwc.shape
    Cout = bp["w_skip"].shape[-1]
    Cmid = bp["w1"].shape[-1]
    pad = K // 2
    OH, OW = 2 * H, 2 * W
    M = N * OH * OW
    KK = K * K

    # nearest-neighbour 2x upsample + zero pad: cheap XLA glue, no K*K replication.
    x_up = jnp.repeat(jnp.repeat(x_nhwc, 2, axis=1), 2, axis=2)
    x_pad = jnp.pad(x_up, ((0, 0), (pad, pad), (pad, pad), (0, 0))).astype(jnp.float32)

    # skip_conv and latent_conv1 share the im2col LHS -> concatenate their
    # weights so both convs come from a single MXU matmul.
    wa = jnp.concatenate([bp["w_skip"].reshape(KK * Cin, Cout),
                          bp["w1"].reshape(KK * Cin, Cmid)], axis=1)
    ba = jnp.concatenate([bp["b_skip"], bp["b1"]]).reshape(1, Cout + Cmid)
    w2 = bp["w2"].reshape(KK * Cmid, Cout)
    b2 = bp["b2"].reshape(1, Cout)
    g1 = bp["g1"].reshape(1, Cmid)
    be1 = bp["be1"].reshape(1, Cmid)
    g2 = bp["g2"].reshape(1, Cout)
    be2 = bp["be2"].reshape(1, Cout)

    fuse = out_head is not None
    Cfin = out_head[0].shape[-1] if fuse else Cout
    kernel = _make_block_kernel(N, OH, OW, Cin, Cmid, Cout, K, pad, fuse)

    args = [x_pad, wa, ba, w2, b2, g1, be1, g2, be2]
    if fuse:
        w_out, b_out = out_head
        args += [w_out.astype(jnp.float32), b_out.reshape(1, Cfin).astype(jnp.float32)]

    out = pl.pallas_call(
        kernel,
        out_shape=jax.ShapeDtypeStruct((M, Cfin), jnp.float32),
        in_specs=[pl.BlockSpec(memory_space=pltpu.MemorySpace.VMEM)] * len(args),
        out_specs=pl.BlockSpec(memory_space=pltpu.MemorySpace.VMEM),
        scratch_shapes=[
            pltpu.VMEM((N, OH + 2 * pad, OW + 2 * pad, Cmid), jnp.float32)
        ],
        compiler_params=pltpu.CompilerParams(vmem_limit_bytes=VMEM_LIMIT_BYTES),
    )(*args)
    return out.reshape(N, OH, OW, Cfin)


# ---------------------------------------------------------------------------
# Decoder forward
# ---------------------------------------------------------------------------
def decoder_forward(x_latent, params, cfg):
    K = cfg["kernel_size"]
    y = head_forward(x_latent, params["head"]["w"], params["head"]["b"])  # NCHW
    y = jnp.transpose(y, (0, 2, 3, 1))                                    # NHWC
    n_blocks = len(params["blocks"])
    for i, bp in enumerate(params["blocks"]):
        # fuse the out_layer (1x1 conv + Tanh) into the last residual block
        head = ((params["out"]["w"], params["out"]["b"])
                if i == n_blocks - 1 else None)
        y = upres_block_forward(y, bp, K, out_head=head)
    return jnp.transpose(y, (0, 3, 1, 2))                                 # NCHW


# ---------------------------------------------------------------------------
# Plain-JAX reference for correctness checking
# ---------------------------------------------------------------------------
def ref_decoder(x_latent, params, cfg):
    K = cfg["kernel_size"]
    pad = K // 2

    def conv(v, w, b):
        return lax.conv_general_dilated(
            v, w, (1, 1), [(pad, pad), (pad, pad)],
            dimension_numbers=("NHWC", "HWIO", "NHWC")) + b

    def bn(v, g, be):
        mean = v.mean(axis=(0, 1, 2))
        var = ((v - mean) ** 2).mean(axis=(0, 1, 2))
        return (v - mean) / jnp.sqrt(var + BN_EPS) * g + be

    def elu(v):
        return jnp.where(v > 0, v, jnp.expm1(v))

    # head: ConvTranspose2d on 1x1 input (stride 1, pad 0) + LeakyReLU
    y = jnp.einsum("nc,coij->noij", x_latent, params["head"]["w"])
    y = y + params["head"]["b"][None, :, None, None]
    y = jnp.where(y > 0, y, LEAKY_SLOPE * y)
    y = jnp.transpose(y, (0, 2, 3, 1))                    # NHWC

    for bp in params["blocks"]:
        v = jnp.repeat(jnp.repeat(y, 2, axis=1), 2, axis=2)
        skip = conv(v, bp["w_skip"], bp["b_skip"])
        t = elu(bn(conv(v, bp["w1"], bp["b1"]), bp["g1"], bp["be1"]))
        t = conv(t, bp["w2"], bp["b2"])
        y = elu(bn(skip + t, bp["g2"], bp["be2"]))

    y = jnp.tanh(jnp.einsum("nhwc,cd->nhwd", y, params["out"]["w"])
                 + params["out"]["b"])
    return jnp.transpose(y, (0, 3, 1, 2))                 # NCHW


# ---------------------------------------------------------------------------
if __name__ == "__main__":
    # Decoder(final_size=(16,16), base_num_features=8, input_channels=4,
    #         kernel_size=3, final_conv_image_size=4, latent_size=8)
    cfg = decoder_config(final_size=16, base_num_features=8, input_channels=4,
                         kernel_size=3, final_conv_image_size=4, latent_size=8)

    key = jax.random.PRNGKey(0)
    kx, kp = jax.random.split(key)
    x = jax.random.normal(kx, (2, cfg["head"][0]), jnp.float32)   # (N=2, latent=8)
    params = init_params(kp, cfg)

    decoder_fn = jax.jit(lambda z, p: decoder_forward(z, p, cfg))
    out = jax.block_until_ready(decoder_fn(x, params))
    assert out.shape == (2, cfg["out_channels"], 16, 16), out.shape

    ref = ref_decoder(x, params, cfg)
    np.testing.assert_allclose(np.asarray(out), np.asarray(ref),
                               rtol=1e-2, atol=1e-2)

    print("KERNEL_OK")
</pallas_src>

<mosaic_0001>
module attributes {stable_mosaic.version = 11 : i64} {
  func.func @_head_kernel(%arg0: memref<2x8xf32, #tpu.memory_space<vmem>>, %arg1: memref<8x256xf32, #tpu.memory_space<vmem>>, %arg2: memref<1x256xf32, #tpu.memory_space<vmem>>, %arg3: memref<2x256xf32, #tpu.memory_space<vmem>>) attributes {dimension_semantics = [], scalar_prefetch = 0 : i64, scratch_operands = 0 : i64, tpu.core_type = #tpu.core_type<tc>} {
    %c0 = arith.constant 0 : index
    %c0_0 = arith.constant 0 : index
    %0 = vector.load %arg0[%c0, %c0_0] : memref<2x8xf32, #tpu.memory_space<vmem>>, vector<2x8xf32>
    %c0_1 = arith.constant 0 : index
    %c0_2 = arith.constant 0 : index
    %1 = vector.load %arg1[%c0_1, %c0_2] : memref<8x256xf32, #tpu.memory_space<vmem>>, vector<8x256xf32>
    %cst = arith.constant dense<0.000000e+00> : vector<2x256xf32>
    %2 = tpu.matmul %0, %1, %cst {dimension_numbers = #tpu.dot_dimension_numbers<[1], [0], [0], [1], [0, 0, 1, 1], [], []>} : vector<2x8xf32>, vector<8x256xf32>, vector<2x256xf32> -> vector<2x256xf32>
    %c0_3 = arith.constant 0 : index
    %c0_4 = arith.constant 0 : index
    %3 = vector.load %arg2[%c0_3, %c0_4] : memref<1x256xf32, #tpu.memory_space<vmem>>, vector<1x256xf32>
    %4 = vector.broadcast %3 : vector<1x256xf32> to vector<2x256xf32>
    %5 = arith.addf %2, %4 : vector<2x256xf32>
    %cst_5 = arith.constant 0.000000e+00 : f32
    %6 = vector.broadcast %cst_5 : f32 to vector<2x256xf32>
    %7 = arith.cmpf ogt, %5, %6 : vector<2x256xf32>
    %cst_6 = arith.constant 0.00999999977 : f32
    %8 = vector.broadcast %cst_6 : f32 to vector<2x256xf32>
    %9 = arith.mulf %8, %5 : vector<2x256xf32>
    %10 = arith.select %7, %5, %9 : vector<2x256xi1>, vector<2x256xf32>
    %c0_7 = arith.constant 0 : index
    %c0_8 = arith.constant 0 : index
    %11 = vector.load %arg3[%c0_7, %c0_8] : memref<2x256xf32, #tpu.memory_space<vmem>>, vector<2x256xf32>
    tpu.vector_store %arg3[%c0_7, %c0_8], %10 {strides = array<i32>} : memref<2x256xf32, #tpu.memory_space<vmem>>, vector<2x256xf32>,
    return
  }
}

module attributes {stable_mosaic.version = 11 : i64} {
  func.func @kernel(%arg0: memref<2x10x10x16xf32, #tpu.memory_space<vmem>>, %arg1: memref<144x16xf32, #tpu.memory_space<vmem>>, %arg2: memref<1x16xf32, #tpu.memory_space<vmem>>, %arg3: memref<72x8xf32, #tpu.memory_space<vmem>>, %arg4: memref<1x8xf32, #tpu.memory_space<vmem>>, %arg5: memref<1x8xf32, #tpu.memory_space<vmem>>, %arg6: memref<1x8xf32, #tpu.memory_space<vmem>>, %arg7: memref<1x8xf32, #tpu.memory_space<vmem>>, %arg8: memref<1x8xf32, #tpu.memory_space<vmem>>, %arg9: memref<128x8xf32, #tpu.memory_space<vmem>>, %arg10: memref<2x10x10x8xf32, #tpu.memory_space<vmem>>) attributes {dimension_semantics = [], scalar_prefetch = 0 : i64, scratch_operands = 1 : i64, tpu.core_type = #tpu.core_type<tc>} {
    %c0 = arith.constant 0 : index
    %c0_0 = arith.constant 0 : index
    %c0_1 = arith.constant 0 : index
    %c0_2 = arith.constant 0 : index
    %0 = vector.load %arg0[%c0, %c0_0, %c0_1, %c0_2] : memref<2x10x10x16xf32, #tpu.memory_space<vmem>>, vector<2x8x8x16xf32>
    %1 = vector.shape_cast %0 : vector<2x8x8x16xf32> to vector<128x16xf32>
    %c0_3 = arith.constant 0 : index
    %c0_4 = arith.constant 0 : index
    %c1 = arith.constant 1 : index
    %c0_5 = arith.constant 0 : index
    %2 = vector.load %arg0[%c0_3, %c0_4, %c1, %c0_5] : memref<2x10x10x16xf32, #tpu.memory_space<vmem>>, vector<2x8x8x16xf32>
    %3 = vector.shape_cast %2 : vector<2x8x8x16xf32> to vector<128x16xf32>
    %c0_6 = arith.constant 0 : index
    %c0_7 = arith.constant 0 : index
    %c2 = arith.constant 2 : index
    %c0_8 = arith.constant 0 : index
    %4 = vector.load %arg0[%c0_6, %c0_7, %c2, %c0_8] : memref<2x10x10x16xf32, #tpu.memory_space<vmem>>, vector<2x8x8x16xf32>
    %5 = vector.shape_cast %4 : vector<2x8x8x16xf32> to vector<128x16xf32>
    %c0_9 = arith.constant 0 : index
    %c1_10 = arith.constant 1 : index
    %c0_11 = arith.constant 0 : index
    %c0_12 = arith.constant 0 : index
    %6 = vector.load %arg0[%c0_9, %c1_10, %c0_11, %c0_12] : memref<2x10x10x16xf32, #tpu.memory_space<vmem>>, vector<2x8x8x16xf32>
    %7 = vector.shape_cast %6 : vector<2x8x8x16xf32> to vector<128x16xf32>
    %c0_13 = arith.constant 0 : index
    %c1_14 = arith.constant 1 : index
    %c1_15 = arith.constant 1 : index
    %c0_16 = arith.constant 0 : index
    %8 = vector.load %arg0[%c0_13, %c1_14, %c1_15, %c0_16] : memref<2x10x10x16xf32, #tpu.memory_space<vmem>>, vector<2x8x8x16xf32>
    %9 = vector.shape_cast %8 : vector<2x8x8x16xf32> to vector<128x16xf32>
    %c0_17 = arith.constant 0 : index
    %c1_18 = arith.constant 1 : index
    %c2_19 = arith.constant 2 : index
    %c0_20 = arith.constant 0 : index
    %10 = vector.load %arg0[%c0_17, %c1_18, %c2_19, %c0_20] : memref<2x10x10x16xf32, #tpu.memory_space<vmem>>, vector<2x8x8x16xf32>
    %11 = vector.shape_cast %10 : vector<2x8x8x16xf32> to vector<128x16xf32>
    %c0_21 = arith.constant 0 : index
    %c2_22 = arith.constant 2 : index
    %c0_23 = arith.constant 0 : index
    %c0_24 = arith.constant 0 : index
    %12 = vector.load %arg0[%c0_21, %c2_22, %c0_23, %c0_24] : memref<2x10x10x16xf32, #tpu.memory_space<vmem>>, vector<2x8x8x16xf32>
    %13 = vector.shape_cast %12 : vector<2x8x8x16xf32> to vector<128x16xf32>
    %c0_25 = arith.constant 0 : index
    %c2_26 = arith.constant 2 : index
    %c1_27 = arith.constant 1 : index
    %c0_28 = arith.constant 0 : index
    %14 = vector.load %arg0[%c0_25, %c2_26, %c1_27, %c0_28] : memref<2x10x10x16xf32, #tpu.memory_space<vmem>>, vector<2x8x8x16xf32>
    %15 = vector.shape_cast %14 : vector<2x8x8x16xf32> to vector<128x16xf32>
    %c0_29 = arith.constant 0 : index
    %c2_30 = arith.constant 2 : index
    %c2_31 = arith.constant 2 : index
    %c0_32 = arith.constant 0 : index
    %16 = vector.load %arg0[%c0_29, %c2_30, %c2_31, %c0_32] : memref<2x10x10x16xf32, #tpu.memory_space<vmem>>, vector<2x8x8x16xf32>
    %17 = vector.shape_cast %16 : vector<2x8x8x16xf32> to vector<128x16xf32>
    %18 = tpu.concatenate %1, %3, %5, %7, %9, %11, %13, %15, %17 in 1 : vector<128x16xf32>, vector<128x16xf32>, vector<128x16xf32>, vector<128x16xf32>, vector<128x16xf32>, vector<128x16xf32>, vector<128x16xf32>, vector<128x16xf32>, vector<128x16xf32> -> vector<128x144xf32>
    %c0_33 = arith.constant 0 : index
    %c0_34 = arith.constant 0 : index
    %19 = vector.load %arg1[%c0_33, %c0_34] : memref<144x16xf32, #tpu.memory_space<vmem>>, vector<144x16xf32>
    %cst = arith.constant dense<0.000000e+00> : vector<128x16xf32>
    %20 = tpu.matmul %18, %19, %cst {dimension_numbers = #tpu.dot_dimension_numbers<[1], [0], [0], [1], [0, 0, 1, 1], [], []>} : vector<128x144xf32>, vector<144x16xf32>, vector<128x16xf32> -> vector<128x16xf32>
    %c0_35 = arith.constant 0 : index
    %c0_36 = arith.constant 0 : index
    %21 = vector.load %arg2[%c0_35, %c0_36] : memref<1x16xf32, #tpu.memory_space<vmem>>, vector<1x16xf32>
    %22 = vector.broadcast %21 : vector<1x16xf32> to vector<128x16xf32>
    %23 = arith.addf %20, %22 : vector<128x16xf32>
    %24 = vector.extract_strided_slice %23 {offsets = [0, 0], sizes = [128, 8], strides = [1, 1]} : vector<128x16xf32> to vector<128x8xf32>
    %25 = vector.extract_strided_slice %23 {offsets = [0, 8], sizes = [128, 8], strides = [1, 1]} : vector<128x16xf32> to vector<128x8xf32>
    %c0_37 = arith.constant 0 : index
    %c0_38 = arith.constant 0 : index
    %26 = vector.load %arg5[%c0_37, %c0_38] : memref<1x8xf32, #tpu.memory_space<vmem>>, vector<1x8xf32>
    %c0_39 = arith.constant 0 : index
    %c0_40 = arith.constant 0 : index
    %27 = vector.load %arg6[%c0_39, %c0_40] : memref<1x8xf32, #tpu.memory_space<vmem>>, vector<1x8xf32>
    %cst_41 = arith.constant dense<0.000000e+00> : vector<8xf32>
    %28 = vector.multi_reduction <add>, %25, %cst_41 [0] : vector<128x8xf32> to vector<8xf32>
    %29 = vector.shape_cast %28 : vector<8xf32> to vector<1x8xf32>
    %30 = arith.mulf %25, %25 : vector<128x8xf32>
    %cst_42 = arith.constant dense<0.000000e+00> : vector<8xf32>
    %31 = vector.multi_reduction <add>, %30, %cst_42 [0] : vector<128x8xf32> to vector<8xf32>
    %32 = vector.shape_cast %31 : vector<8xf32> to vector<1x8xf32>
    %cst_43 = arith.constant 7.812500e-03 : f32
    %33 = vector.broadcast %cst_43 : f32 to vector<1x8xf32>
    %34 = arith.mulf %29, %33 : vector<1x8xf32>
    %cst_44 = arith.constant 7.812500e-03 : f32
    %35 = vector.broadcast %cst_44 : f32 to vector<1x8xf32>
    %36 = arith.mulf %32, %35 : vector<1x8xf32>
    %37 = arith.mulf %34, %34 : vector<1x8xf32>
    %38 = arith.subf %36, %37 : vector<1x8xf32>
    %39 = vector.broadcast %34 : vector<1x8xf32> to vector<128x8xf32>
    %40 = arith.subf %25, %39 : vector<128x8xf32>
    %cst_45 = arith.constant 9.99999974E-6 : f32
    %41 = vector.broadcast %cst_45 : f32 to vector<1x8xf32>
    %42 = arith.addf %38, %41 : vector<1x8xf32>
    %43 = math.rsqrt %42 : vector<1x8xf32>
    %44 = vector.broadcast %43 : vector<1x8xf32> to vector<128x8xf32>
    %45 = arith.mulf %40, %44 : vector<128x8xf32>
    %46 = vector.broadcast %26 : vector<1x8xf32> to vector<128x8xf32>
    %47 = arith.mulf %45, %46 : vector<128x8xf32>
    %48 = vector.broadcast %27 : vector<1x8xf32> to vector<128x8xf32>
    %49 = arith.addf %47, %48 : vector<128x8xf32>
    %cst_46 = arith.constant 0.000000e+00 : f32
    %50 = vector.broadcast %cst_46 : f32 to vector<128x8xf32>
    %51 = arith.cmpf ogt, %49, %50 : vector<128x8xf32>
    %cst_47 = arith.constant 0.000000e+00 : f32
    %52 = vector.broadcast %cst_47 : f32 to vector<128x8xf32>
    %53 = arith.minimumf %49, %52 : vector<128x8xf32>
    %54 = math.exp %53 : vector<128x8xf32>
    %cst_48 = arith.constant 1.000000e+00 : f32
    %55 = vector.broadcast %cst_48 : f32 to vector<128x8xf32>
    %56 = arith.subf %54, %55 : vector<128x8xf32>
    %57 = arith.select %51, %49, %56 : vector<128x8xi1>, vector<128x8xf32>
    %cst_49 = arith.constant 0.000000e+00 : f32
    %58 = vector.broadcast %cst_49 : f32 to vector<2x10x10x8xf32>
    %c0_50 = arith.constant 0 : index
    %c0_51 = arith.constant 0 : index
    %c0_52 = arith.constant 0 : index
    %c0_53 = arith.constant 0 : index
    %59 = vector.load %arg10[%c0_50, %c0_51, %c0_52, %c0_53] : memref<2x10x10x8xf32, #tpu.memory_space<vmem>>, vector<2x10x10x8xf32>
    tpu.vector_store %arg10[%c0_50, %c0_51, %c0_52, %c0_53], %58 {strides = array<i32>} : memref<2x10x10x8xf32, #tpu.memory_space<vmem>>, vector<2x10x10x8xf32>,
    %60 = vector.shape_cast %57 : vector<128x8xf32> to vector<2x8x8x8xf32>
    %c0_54 = arith.constant 0 : index
    %c1_55 = arith.constant 1 : index
    %c1_56 = arith.constant 1 : index
    %c0_57 = arith.constant 0 : index
    %61 = vector.load %arg10[%c0_54, %c1_55, %c1_56, %c0_57] : memref<2x10x10x8xf32, #tpu.memory_space<vmem>>, vector<2x8x8x8xf32>
    tpu.vector_store %arg10[%c0_54, %c1_55, %c1_56, %c0_57], %60 {strides = array<i32>} : memref<2x10x10x8xf32, #tpu.memory_space<vmem>>, vector<2x8x8x8xf32>,
    %c0_58 = arith.constant 0 : index
    %c0_59 = arith.constant 0 : index
    %c0_60 = arith.constant 0 : index
    %c0_61 = arith.constant 0 : index
    %62 = vector.load %arg10[%c0_58, %c0_59, %c0_60, %c0_61] : memref<2x10x10x8xf32, #tpu.memory_space<vmem>>, vector<2x8x8x8xf32>
    %63 = vector.shape_cast %62 : vector<2x8x8x8xf32> to vector<128x8xf32>
    %c0_62 = arith.constant 0 : index
    %c0_63 = arith.constant 0 : index
    %c1_64 = arith.constant 1 : index
    %c0_65 = arith.constant 0 : index
    %64 = vector.load %arg10[%c0_62, %c0_63, %c1_64, %c0_65] : memref<2x10x10x8xf32, #tpu.memory_space<vmem>>, vector<2x8x8x8xf32>
    %65 = vector.shape_cast %64 : vector<2x8x8x8xf32> to vector<128x8xf32>
    %c0_66 = arith.constant 0 : index
    %c0_67 = arith.constant 0 : index
    %c2_68 = arith.constant 2 : index
    %c0_69 = arith.constant 0 : index
    %66 = vector.load %arg10[%c0_66, %c0_67, %c2_68, %c0_69] : memref<2x10x10x8xf32, #tpu.memory_space<vmem>>, vector<2x8x8x8xf32>
    %67 = vector.shape_cast %66 : vector<2x8x8x8xf32> to vector<128x8xf32>
    %c0_70 = arith.constant 0 : index
    %c1_71 = arith.constant 1 : index
    %c0_72 = arith.constant 0 : index
    %c0_73 = arith.constant 0 : index
    %68 = vector.load %arg10[%c0_70, %c1_71, %c0_72, %c0_73] : memref<2x10x10x8xf32, #tpu.memory_space<vmem>>, vector<2x8x8x8xf32>
    %69 = vector.shape_cast %68 : vector<2x8x8x8xf32> to vector<128x8xf32>
    %c0_74 = arith.constant 0 : index
    %c1_75 = arith.constant 1 : index
    %c1_76 = arith.constant 1 : index
    %c0_77 = arith.constant 0 : index
    %70 = vector.load %arg10[%c0_74, %c1_75, %c1_76, %c0_77] : memref<2x10x10x8xf32, #tpu.memory_space<vmem>>, vector<2x8x8x8xf32>
    %71 = vector.shape_cast %70 : vector<2x8x8x8xf32> to vector<128x8xf32>
    %c0_78 = arith.constant 0 : index
    %c1_79 = arith.constant 1 : index
    %c2_80 = arith.constant 2 : index
    %c0_81 = arith.constant 0 : index
    %72 = vector.load %arg10[%c0_78, %c1_79, %c2_80, %c0_81] : memref<2x10x10x8xf32, #tpu.memory_space<vmem>>, vector<2x8x8x8xf32>
    %73 = vector.shape_cast %72 : vector<2x8x8x8xf32> to vector<128x8xf32>
    %c0_82 = arith.constant 0 : index
    %c2_83 = arith.constant 2 : index
    %c0_84 = arith.constant 0 : index
    %c0_85 = arith.constant 0 : index
    %74 = vector.load %arg10[%c0_82, %c2_83, %c0_84, %c0_85] : memref<2x10x10x8xf32, #tpu.memory_space<vmem>>, vector<2x8x8x8xf32>
    %75 = vector.shape_cast %74 : vector<2x8x8x8xf32> to vector<128x8xf32>
    %c0_86 = arith.constant 0 : index
    %c2_87 = arith.constant 2 : index
    %c1_88 = arith.constant 1 : index
    %c0_89 = arith.constant 0 : index
    %76 = vector.load %arg10[%c0_86, %c2_87, %c1_88, %c0_89] : memref<2x10x10x8xf32, #tpu.memory_space<vmem>>, vector<2x8x8x8xf32>
    %77 = vector.shape_cast %76 : vector<2x8x8x8xf32> to vector<128x8xf32>
    %c0_90 = arith.constant 0 : index
    %c2_91 = arith.constant 2 : index
    %c2_92 = arith.constant 2 : index
    %c0_93 = arith.constant 0 : index
    %78 = vector.load %arg10[%c0_90, %c2_91, %c2_92, %c0_93] : memref<2x10x10x8xf32, #tpu.memory_space<vmem>>, vector<2x8x8x8xf32>
    %79 = vector.shape_cast %78 : vector<2x8x8x8xf32> to vector<128x8xf32>
    %80 = tpu.concatenate %63, %65, %67, %69, %71, %73, %75, %77, %79 in 1 : vector<128x8xf32>, vector<128x8xf32>, vector<128x8xf32>, vector<128x8xf32>, vector<128x8xf32>, vector<128x8xf32>, vector<128x8xf32>, vector<128x8xf32>, vector<128x8xf32> -> vector<128x72xf32>
    %c0_94 = arith.constant 0 : index
    %c0_95 = arith.constant 0 : index
    %81 = vector.load %arg3[%c0_94, %c0_95] : memref<72x8xf32, #tpu.memory_space<vmem>>, vector<72x8xf32>
    %cst_96 = arith.constant dense<0.000000e+00> : vector<128x8xf32>
    %82 = tpu.matmul %80, %81, %cst_96 {dimension_numbers = #tpu.dot_dimension_numbers<[1], [0], [0], [1], [0, 0, 1, 1], [], []>} : vector<128x72xf32>, vector<72x8xf32>, vector<128x8xf32> -> vector<128x8xf32>
    %c0_97 = arith.constant 0 : index
    %c0_98 = arith.constant 0 : index
    %83 = vector.load %arg4[%c0_97, %c0_98] : memref<1x8xf32, #tpu.memory_space<vmem>>, vector<1x8xf32>
    %84 = vector.broadcast %83 : vector<1x8xf32> to vector<128x8xf32>
    %85 = arith.addf %82, %84 : vector<128x8xf32>
    %86 = arith.addf %24, %85 : vector<128x8xf32>
    %c0_99 = arith.constant 0 : index
    %c0_100 = arith.constant 0 : index
    %87 = vector.load %arg7[%c0_99, %c0_100] : memref<1x8xf32, #tpu.memory_space<vmem>>, vector<1x8xf32>
    %c0_101 = arith.constant 0 : index
    %c0_102 = arith.constant 0 : index
    %88 = vector.load %arg8[%c0_101, %c0_102] : memref<1x8xf32, #tpu.memory_space<vmem>>, vector<1x8xf32>
    %cst_103 = arith.constant dense<0.000000e+00> : vector<8xf32>
    %89 = vector.multi_reduction <add>, %86, %cst_103 [0] : vector<128x8xf32> to vector<8xf32>
    %90 = vector.shape_cast %89 : vector<8xf32> to vector<1x8xf32>
    %91 = arith.mulf %86, %86 : vector<128x8xf32>
    %cst_104 = arith.constant dense<0.000000e+00> : vector<8xf32>
    %92 = vector.multi_reduction <add>, %91, %cst_104 [0] : vector<128x8xf32> to vector<8xf32>
    %93 = vector.shape_cast %92 : vector<8xf32> to vector<1x8xf32>
    %cst_105 = arith.constant 7.812500e-03 : f32
    %94 = vector.broadcast %cst_105 : f32 to vector<1x8xf32>
    %95 = arith.mulf %90, %94 : vector<1x8xf32>
    %cst_106 = arith.constant 7.812500e-03 : f32
    %96 = vector.broadcast %cst_106 : f32 to vector<1x8xf32>
    %97 = arith.mulf %93, %96 : vector<1x8xf32>
    %98 = arith.mulf %95, %95 : vector<1x8xf32>
    %99 = arith.subf %97, %98 : vector<1x8xf32>
    %100 = vector.broadcast %95 : vector<1x8xf32> to vector<128x8xf32>
    %101 = arith.subf %86, %100 : vector<128x8xf32>
    %cst_107 = arith.constant 9.99999974E-6 : f32
    %102 = vector.broadcast %cst_107 : f32 to vector<1x8xf32>
    %103 = arith.addf %99, %102 : vector<1x8xf32>
    %104 = math.rsqrt %103 : vector<1x8xf32>
    %105 = vector.broadcast %104 : vector<1x8xf32> to vector<128x8xf32>
    %106 = arith.mulf %101, %105 : vector<128x8xf32>
    %107 = vector.broadcast %87 : vector<1x8xf32> to vector<128x8xf32>
    %108 = arith.mulf %106, %107 : vector<128x8xf32>
    %109 = vector.broadcast %88 : vector<1x8xf32> to vector<128x8xf32>
    %110 = arith.addf %108, %109 : vector<128x8xf32>
    %cst_108 = arith.constant 0.000000e+00 : f32
    %111 = vector.broadcast %cst_108 : f32 to vector<128x8xf32>
    %112 = arith.cmpf ogt, %110, %111 : vector<128x8xf32>
    %cst_109 = arith.constant 0.000000e+00 : f32
    %113 = vector.broadcast %cst_109 : f32 to vector<128x8xf32>
    %114 = arith.minimumf %110, %113 : vector<128x8xf32>
    %115 = math.exp %114 : vector<128x8xf32>
    %cst_110 = arith.constant 1.000000e+00 : f32
    %116 = vector.broadcast %cst_110 : f32 to vector<128x8xf32>
    %117 = arith.subf %115, %116 : vector<128x8xf32>
    %118 = arith.select %112, %110, %117 : vector<128x8xi1>, vector<128x8xf32>
    %c0_111 = arith.constant 0 : index
    %c0_112 = arith.constant 0 : index
    %119 = vector.load %arg9[%c0_111, %c0_112] : memref<128x8xf32, #tpu.memory_space<vmem>>, vector<128x8xf32>
    tpu.vector_store %arg9[%c0_111, %c0_112], %118 {strides = array<i32>} : memref<128x8xf32, #tpu.memory_space<vmem>>, vector<128x8xf32>,
    return
  }
}

module attributes {stable_mosaic.version = 11 : i64} {
  func.func @kernel(%arg0: memref<2x18x18x8xf32, #tpu.memory_space<vmem>>, %arg1: memref<72x8xf32, #tpu.memory_space<vmem>>, %arg2: memref<1x8xf32, #tpu.memory_space<vmem>>, %arg3: memref<36x4xf32, #tpu.memory_space<vmem>>, %arg4: memref<1x4xf32, #tpu.memory_space<vmem>>, %arg5: memref<1x4xf32, #tpu.memory_space<vmem>>, %arg6: memref<1x4xf32, #tpu.memory_space<vmem>>, %arg7: memref<1x4xf32, #tpu.memory_space<vmem>>, %arg8: memref<1x4xf32, #tpu.memory_space<vmem>>, %arg9: memref<4x4xf32, #tpu.memory_space<vmem>>, %arg10: memref<1x4xf32, #tpu.memory_space<vmem>>, %arg11: memref<512x4xf32, #tpu.memory_space<vmem>>, %arg12: memref<2x18x18x4xf32, #tpu.memory_space<vmem>>) attributes {dimension_semantics = [], scalar_prefetch = 0 : i64, scratch_operands = 1 : i64, tpu.core_type = #tpu.core_type<tc>} {
    %c0 = arith.constant 0 : index
    %c0_0 = arith.constant 0 : index
    %c0_1 = arith.constant 0 : index
    %c0_2 = arith.constant 0 : index
    %0 = vector.load %arg0[%c0, %c0_0, %c0_1, %c0_2] : memref<2x18x18x8xf32, #tpu.memory_space<vmem>>, vector<2x16x16x8xf32>
    %1 = vector.shape_cast %0 : vector<2x16x16x8xf32> to vector<512x8xf32>
    %c0_3 = arith.constant 0 : index
    %c0_4 = arith.constant 0 : index
    %c1 = arith.constant 1 : index
    %c0_5 = arith.constant 0 : index
    %2 = vector.load %arg0[%c0_3, %c0_4, %c1, %c0_5] : memref<2x18x18x8xf32, #tpu.memory_space<vmem>>, vector<2x16x16x8xf32>
    %3 = vector.shape_cast %2 : vector<2x16x16x8xf32> to vector<512x8xf32>
    %c0_6 = arith.constant 0 : index
    %c0_7 = arith.constant 0 : index
    %c2 = arith.constant 2 : index
    %c0_8 = arith.constant 0 : index
    %4 = vector.load %arg0[%c0_6, %c0_7, %c2, %c0_8] : memref<2x18x18x8xf32, #tpu.memory_space<vmem>>, vector<2x16x16x8xf32>
    %5 = vector.shape_cast %4 : vector<2x16x16x8xf32> to vector<512x8xf32>
    %c0_9 = arith.constant 0 : index
    %c1_10 = arith.constant 1 : index
    %c0_11 = arith.constant 0 : index
    %c0_12 = arith.constant 0 : index
    %6 = vector.load %arg0[%c0_9, %c1_10, %c0_11, %c0_12] : memref<2x18x18x8xf32, #tpu.memory_space<vmem>>, vector<2x16x16x8xf32>
    %7 = vector.shape_cast %6 : vector<2x16x16x8xf32> to vector<512x8xf32>
    %c0_13 = arith.constant 0 : index
    %c1_14 = arith.constant 1 : index
    %c1_15 = arith.constant 1 : index
    %c0_16 = arith.constant 0 : index
    %8 = vector.load %arg0[%c0_13, %c1_14, %c1_15, %c0_16] : memref<2x18x18x8xf32, #tpu.memory_space<vmem>>, vector<2x16x16x8xf32>
    %9 = vector.shape_cast %8 : vector<2x16x16x8xf32> to vector<512x8xf32>
    %c0_17 = arith.constant 0 : index
    %c1_18 = arith.constant 1 : index
    %c2_19 = arith.constant 2 : index
    %c0_20 = arith.constant 0 : index
    %10 = vector.load %arg0[%c0_17, %c1_18, %c2_19, %c0_20] : memref<2x18x18x8xf32, #tpu.memory_space<vmem>>, vector<2x16x16x8xf32>
    %11 = vector.shape_cast %10 : vector<2x16x16x8xf32> to vector<512x8xf32>
    %c0_21 = arith.constant 0 : index
    %c2_22 = arith.constant 2 : index
    %c0_23 = arith.constant 0 : index
    %c0_24 = arith.constant 0 : index
    %12 = vector.load %arg0[%c0_21, %c2_22, %c0_23, %c0_24] : memref<2x18x18x8xf32, #tpu.memory_space<vmem>>, vector<2x16x16x8xf32>
    %13 = vector.shape_cast %12 : vector<2x16x16x8xf32> to vector<512x8xf32>
    %c0_25 = arith.constant 0 : index
    %c2_26 = arith.constant 2 : index
    %c1_27 = arith.constant 1 : index
    %c0_28 = arith.constant 0 : index
    %14 = vector.load %arg0[%c0_25, %c2_26, %c1_27, %c0_28] : memref<2x18x18x8xf32, #tpu.memory_space<vmem>>, vector<2x16x16x8xf32>
    %15 = vector.shape_cast %14 : vector<2x16x16x8xf32> to vector<512x8xf32>
    %c0_29 = arith.constant 0 : index
    %c2_30 = arith.constant 2 : index
    %c2_31 = arith.constant 2 : index
    %c0_32 = arith.constant 0 : index
    %16 = vector.load %arg0[%c0_29, %c2_30, %c2_31, %c0_32] : memref<2x18x18x8xf32, #tpu.memory_space<vmem>>, vector<2x16x16x8xf32>
    %17 = vector.shape_cast %16 : vector<2x16x16x8xf32> to vector<512x8xf32>
    %18 = tpu.concatenate %1, %3, %5, %7, %9, %11, %13, %15, %17 in 1 : vector<512x8xf32>, vector<512x8xf32>, vector<512x8xf32>, vector<512x8xf32>, vector<512x8xf32>, vector<512x8xf32>, vector<512x8xf32>, vector<512x8xf32>, vector<512x8xf32> -> vector<512x72xf32>
    %c0_33 = arith.constant 0 : index
    %c0_34 = arith.constant 0 : index
    %19 = vector.load %arg1[%c0_33, %c0_34] : memref<72x8xf32, #tpu.memory_space<vmem>>, vector<72x8xf32>
    %cst = arith.constant dense<0.000000e+00> : vector<512x8xf32>
    %20 = tpu.matmul %18, %19, %cst {dimension_numbers = #tpu.dot_dimension_numbers<[1], [0], [0], [1], [0, 0, 1, 1], [], []>} : vector<512x72xf32>, vector<72x8xf32>, vector<512x8xf32> -> vector<512x8xf32>
    %c0_35 = arith.constant 0 : index
    %c0_36 = arith.constant 0 : index
    %21 = vector.load %arg2[%c0_35, %c0_36] : memref<1x8xf32, #tpu.memory_space<vmem>>, vector<1x8xf32>
    %22 = vector.broadcast %21 : vector<1x8xf32> to vector<512x8xf32>
    %23 = arith.addf %20, %22 : vector<512x8xf32>
    %24 = vector.extract_strided_slice %23 {offsets = [0, 0], sizes = [512, 4], strides = [1, 1]} : vector<512x8xf32> to vector<512x4xf32>
    %25 = vector.extract_strided_slice %23 {offsets = [0, 4], sizes = [512, 4], strides = [1, 1]} : vector<512x8xf32> to vector<512x4xf32>
    %c0_37 = arith.constant 0 : index
    %c0_38 = arith.constant 0 : index
    %26 = vector.load %arg5[%c0_37, %c0_38] : memref<1x4xf32, #tpu.memory_space<vmem>>, vector<1x4xf32>
    %c0_39 = arith.constant 0 : index
    %c0_40 = arith.constant 0 : index
    %27 = vector.load %arg6[%c0_39, %c0_40] : memref<1x4xf32, #tpu.memory_space<vmem>>, vector<1x4xf32>
    %cst_41 = arith.constant dense<0.000000e+00> : vector<4xf32>
    %28 = vector.multi_reduction <add>, %25, %cst_41 [0] : vector<512x4xf32> to vector<4xf32>
    %29 = vector.shape_cast %28 : vector<4xf32> to vector<1x4xf32>
    %30 = arith.mulf %25, %25 : vector<512x4xf32>
    %cst_42 = arith.constant dense<0.000000e+00> : vector<4xf32>
    %31 = vector.multi_reduction <add>, %30, %cst_42 [0] : vector<512x4xf32> to vector<4xf32>
    %32 = vector.shape_cast %31 : vector<4xf32> to vector<1x4xf32>
    %cst_43 = arith.constant 0.001953125 : f32
    %33 = vector.broadcast %cst_43 : f32 to vector<1x4xf32>
    %34 = arith.mulf %29, %33 : vector<1x4xf32>
    %cst_44 = arith.constant 0.001953125 : f32
    %35 = vector.broadcast %cst_44 : f32 to vector<1x4xf32>
    %36 = arith.mulf %32, %35 : vector<1x4xf32>
    %37 = arith.mulf %34, %34 : vector<1x4xf32>
    %38 = arith.subf %36, %37 : vector<1x4xf32>
    %39 = vector.broadcast %34 : vector<1x4xf32> to vector<512x4xf32>
    %40 = arith.subf %25, %39 : vector<512x4xf32>
    %cst_45 = arith.constant 9.99999974E-6 : f32
    %41 = vector.broadcast %cst_45 : f32 to vector<1x4xf32>
    %42 = arith.addf %38, %41 : vector<1x4xf32>
    %43 = math.rsqrt %42 : vector<1x4xf32>
    %44 = vector.broadcast %43 : vector<1x4xf32> to vector<512x4xf32>
    %45 = arith.mulf %40, %44 : vector<512x4xf32>
    %46 = vector.broadcast %26 : vector<1x4xf32> to vector<512x4xf32>
    %47 = arith.mulf %45, %46 : vector<512x4xf32>
    %48 = vector.broadcast %27 : vector<1x4xf32> to vector<512x4xf32>
    %49 = arith.addf %47, %48 : vector<512x4xf32>
    %cst_46 = arith.constant 0.000000e+00 : f32
    %50 = vector.broadcast %cst_46 : f32 to vector<512x4xf32>
    %51 = arith.cmpf ogt, %49, %50 : vector<512x4xf32>
    %cst_47 = arith.constant 0.000000e+00 : f32
    %52 = vector.broadcast %cst_47 : f32 to vector<512x4xf32>
    %53 = arith.minimumf %49, %52 : vector<512x4xf32>
    %54 = math.exp %53 : vector<512x4xf32>
    %cst_48 = arith.constant 1.000000e+00 : f32
    %55 = vector.broadcast %cst_48 : f32 to vector<512x4xf32>
    %56 = arith.subf %54, %55 : vector<512x4xf32>
    %57 = arith.select %51, %49, %56 : vector<512x4xi1>, vector<512x4xf32>
    %cst_49 = arith.constant 0.000000e+00 : f32
    %58 = vector.broadcast %cst_49 : f32 to vector<2x18x18x4xf32>
    %c0_50 = arith.constant 0 : index
    %c0_51 = arith.constant 0 : index
    %c0_52 = arith.constant 0 : index
    %c0_53 = arith.constant 0 : index
    %59 = vector.load %arg12[%c0_50, %c0_51, %c0_52, %c0_53] : memref<2x18x18x4xf32, #tpu.memory_space<vmem>>, vector<2x18x18x4xf32>
    tpu.vector_store %arg12[%c0_50, %c0_51, %c0_52, %c0_53], %58 {strides = array<i32>} : memref<2x18x18x4xf32, #tpu.memory_space<vmem>>, vector<2x18x18x4xf32>,
    %60 = vector.shape_cast %57 : vector<512x4xf32> to vector<2x16x16x4xf32>
    %c0_54 = arith.constant 0 : index
    %c1_55 = arith.constant 1 : index
    %c1_56 = arith.constant 1 : index
    %c0_57 = arith.constant 0 : index
    %61 = vector.load %arg12[%c0_54, %c1_55, %c1_56, %c0_57] : memref<2x18x18x4xf32, #tpu.memory_space<vmem>>, vector<2x16x16x4xf32>
    tpu.vector_store %arg12[%c0_54, %c1_55, %c1_56, %c0_57], %60 {strides = array<i32>} : memref<2x18x18x4xf32, #tpu.memory_space<vmem>>, vector<2x16x16x4xf32>,
    %c0_58 = arith.constant 0 : index
    %c0_59 = arith.constant 0 : index
    %c0_60 = arith.constant 0 : index
    %c0_61 = arith.constant 0 : index
    %62 = vector.load %arg12[%c0_58, %c0_59, %c0_60, %c0_61] : memref<2x18x18x4xf32, #tpu.memory_space<vmem>>, vector<2x16x16x4xf32>
    %63 = vector.shape_cast %62 : vector<2x16x16x4xf32> to vector<512x4xf32>
    %c0_62 = arith.constant 0 : index
    %c0_63 = arith.constant 0 : index
    %c1_64 = arith.constant 1 : index
    %c0_65 = arith.constant 0 : index
    %64 = vector.load %arg12[%c0_62, %c0_63, %c1_64, %c0_65] : memref<2x18x18x4xf32, #tpu.memory_space<vmem>>, vector<2x16x16x4xf32>
    %65 = vector.shape_cast %64 : vector<2x16x16x4xf32> to vector<512x4xf32>
    %c0_66 = arith.constant 0 : index
    %c0_67 = arith.constant 0 : index
    %c2_68 = arith.constant 2 : index
    %c0_69 = arith.constant 0 : index
    %66 = vector.load %arg12[%c0_66, %c0_67, %c2_68, %c0_69] : memref<2x18x18x4xf32, #tpu.memory_space<vmem>>, vector<2x16x16x4xf32>
    %67 = vector.shape_cast %66 : vector<2x16x16x4xf32> to vector<512x4xf32>
    %c0_70 = arith.constant 0 : index
    %c1_71 = arith.constant 1 : index
    %c0_72 = arith.constant 0 : index
    %c0_73 = arith.constant 0 : index
    %68 = vector.load %arg12[%c0_70, %c1_71, %c0_72, %c0_73] : memref<2x18x18x4xf32, #tpu.memory_space<vmem>>, vector<2x16x16x4xf32>
    %69 = vector.shape_cast %68 : vector<2x16x16x4xf32> to vector<512x4xf32>
    %c0_74 = arith.constant 0 : index
    %c1_75 = arith.constant 1 : index
    %c1_76 = arith.constant 1 : index
    %c0_77 = arith.constant 0 : index
    %70 = vector.load %arg12[%c0_74, %c1_75, %c1_76, %c0_77] : memref<2x18x18x4xf32, #tpu.memory_space<vmem>>, vector<2x16x16x4xf32>
    %71 = vector.shape_cast %70 : vector<2x16x16x4xf32> to vector<512x4xf32>
    %c0_78 = arith.constant 0 : index
    %c1_79 = arith.constant 1 : index
    %c2_80 = arith.constant 2 : index
    %c0_81 = arith.constant 0 : index
    %72 = vector.load %arg12[%c0_78, %c1_79, %c2_80, %c0_81] : memref<2x18x18x4xf32, #tpu.memory_space<vmem>>, vector<2x16x16x4xf32>
    %73 = vector.shape_cast %72 : vector<2x16x16x4xf32> to vector<512x4xf32>
    %c0_82 = arith.constant 0 : index
    %c2_83 = arith.constant 2 : index
    %c0_84 = arith.constant 0 : index
    %c0_85 = arith.constant 0 : index
    %74 = vector.load %arg12[%c0_82, %c2_83, %c0_84, %c0_85] : memref<2x18x18x4xf32, #tpu.memory_space<vmem>>, vector<2x16x16x4xf32>
    %75 = vector.shape_cast %74 : vector<2x16x16x4xf32> to vector<512x4xf32>
    %c0_86 = arith.constant 0 : index
    %c2_87 = arith.constant 2 : index
    %c1_88 = arith.constant 1 : index
    %c0_89 = arith.constant 0 : index
    %76 = vector.load %arg12[%c0_86, %c2_87, %c1_88, %c0_89] : memref<2x18x18x4xf32, #tpu.memory_space<vmem>>, vector<2x16x16x4xf32>
    %77 = vector.shape_cast %76 : vector<2x16x16x4xf32> to vector<512x4xf32>
    %c0_90 = arith.constant 0 : index
    %c2_91 = arith.constant 2 : index
    %c2_92 = arith.constant 2 : index
    %c0_93 = arith.constant 0 : index
    %78 = vector.load %arg12[%c0_90, %c2_91, %c2_92, %c0_93] : memref<2x18x18x4xf32, #tpu.memory_space<vmem>>, vector<2x16x16x4xf32>
    %79 = vector.shape_cast %78 : vector<2x16x16x4xf32> to vector<512x4xf32>
    %80 = tpu.concatenate %63, %65, %67, %69, %71, %73, %75, %77, %79 in 1 : vector<512x4xf32>, vector<512x4xf32>, vector<512x4xf32>, vector<512x4xf32>, vector<512x4xf32>, vector<512x4xf32>, vector<512x4xf32>, vector<512x4xf32>, vector<512x4xf32> -> vector<512x36xf32>
    %c0_94 = arith.constant 0 : index
    %c0_95 = arith.constant 0 : index
    %81 = vector.load %arg3[%c0_94, %c0_95] : memref<36x4xf32, #tpu.memory_space<vmem>>, vector<36x4xf32>
    %cst_96 = arith.constant dense<0.000000e+00> : vector<512x4xf32>
    %82 = tpu.matmul %80, %81, %cst_96 {dimension_numbers = #tpu.dot_dimension_numbers<[1], [0], [0], [1], [0, 0, 1, 1], [], []>} : vector<512x36xf32>, vector<36x4xf32>, vector<512x4xf32> -> vector<512x4xf32>
    %c0_97 = arith.constant 0 : index
    %c0_98 = arith.constant 0 : index
    %83 = vector.load %arg4[%c0_97, %c0_98] : memref<1x4xf32, #tpu.memory_space<vmem>>, vector<1x4xf32>
    %84 = vector.broadcast %83 : vector<1x4xf32> to vector<512x4xf32>
    %85 = arith.addf %82, %84 : vector<512x4xf32>
    %86 = arith.addf %24, %85 : vector<512x4xf32>
    %c0_99 = arith.constant 0 : index
    %c0_100 = arith.constant 0 : index
    %87 = vector.load %arg7[%c0_99, %c0_100] : memref<1x4xf32, #tpu.memory_space<vmem>>, vector<1x4xf32>
    %c0_101 = arith.constant 0 : index
    %c0_102 = arith.constant 0 : index
    %88 = vector.load %arg8[%c0_101, %c0_102] : memref<1x4xf32, #tpu.memory_space<vmem>>, vector<1x4xf32>
    %cst_103 = arith.constant dense<0.000000e+00> : vector<4xf32>
    %89 = vector.multi_reduction <add>, %86, %cst_103 [0] : vector<512x4xf32> to vector<4xf32>
    %90 = vector.shape_cast %89 : vector<4xf32> to vector<1x4xf32>
    %91 = arith.mulf %86, %86 : vector<512x4xf32>
    %cst_104 = arith.constant dense<0.000000e+00> : vector<4xf32>
    %92 = vector.multi_reduction <add>, %91, %cst_104 [0] : vector<512x4xf32> to vector<4xf32>
    %93 = vector.shape_cast %92 : vector<4xf32> to vector<1x4xf32>
    %cst_105 = arith.constant 0.001953125 : f32
    %94 = vector.broadcast %cst_105 : f32 to vector<1x4xf32>
    %95 = arith.mulf %90, %94 : vector<1x4xf32>
    %cst_106 = arith.constant 0.001953125 : f32
    %96 = vector.broadcast %cst_106 : f32 to vector<1x4xf32>
    %97 = arith.mulf %93, %96 : vector<1x4xf32>
    %98 = arith.mulf %95, %95 : vector<1x4xf32>
    %99 = arith.subf %97, %98 : vector<1x4xf32>
    %100 = vector.broadcast %95 : vector<1x4xf32> to vector<512x4xf32>
    %101 = arith.subf %86, %100 : vector<512x4xf32>
    %cst_107 = arith.constant 9.99999974E-6 : f32
    %102 = vector.broadcast %cst_107 : f32 to vector<1x4xf32>
    %103 = arith.addf %99, %102 : vector<1x4xf32>
    %104 = math.rsqrt %103 : vector<1x4xf32>
    %105 = vector.broadcast %104 : vector<1x4xf32> to vector<512x4xf32>
    %106 = arith.mulf %101, %105 : vector<512x4xf32>
    %107 = vector.broadcast %87 : vector<1x4xf32> to vector<512x4xf32>
    %108 = arith.mulf %106, %107 : vector<512x4xf32>
    %109 = vector.broadcast %88 : vector<1x4xf32> to vector<512x4xf32>
    %110 = arith.addf %108, %109 : vector<512x4xf32>
    %cst_108 = arith.constant 0.000000e+00 : f32
    %111 = vector.broadcast %cst_108 : f32 to vector<512x4xf32>
    %112 = arith.cmpf ogt, %110, %111 : vector<512x4xf32>
    %cst_109 = arith.constant 0.000000e+00 : f32
    %113 = vector.broadcast %cst_109 : f32 to vector<512x4xf32>
    %114 = arith.minimumf %110, %113 : vector<512x4xf32>
    %115 = math.exp %114 : vector<512x4xf32>
    %cst_110 = arith.constant 1.000000e+00 : f32
    %116 = vector.broadcast %cst_110 : f32 to vector<512x4xf32>
    %117 = arith.subf %115, %116 : vector<512x4xf32>
    %118 = arith.select %112, %110, %117 : vector<512x4xi1>, vector<512x4xf32>
    %c0_111 = arith.constant 0 : index
    %c0_112 = arith.constant 0 : index
    %119 = vector.load %arg9[%c0_111, %c0_112] : memref<4x4xf32, #tpu.memory_space<vmem>>, vector<4x4xf32>
    %cst_113 = arith.constant dense<0.000000e+00> : vector<512x4xf32>
    %120 = tpu.matmul %118, %119, %cst_113 {dimension_numbers = #tpu.dot_dimension_numbers<[1], [0], [0], [1], [0, 0, 1, 1], [], []>} : vector<512x4xf32>, vector<4x4xf32>, vector<512x4xf32> -> vector<512x4xf32>
    %c0_114 = arith.constant 0 : index
    %c0_115 = arith.constant 0 : index
    %121 = vector.load %arg10[%c0_114, %c0_115] : memref<1x4xf32, #tpu.memory_space<vmem>>, vector<1x4xf32>
    %122 = vector.broadcast %121 : vector<1x4xf32> to vector<512x4xf32>
    %123 = arith.addf %120, %122 : vector<512x4xf32>
    %124 = math.tanh %123 : vector<512x4xf32>
    %c0_116 = arith.constant 0 : index
    %c0_117 = arith.constant 0 : index
    %125 = vector.load %arg11[%c0_116, %c0_117] : memref<512x4xf32, #tpu.memory_space<vmem>>, vector<512x4xf32>
    tpu.vector_store %arg11[%c0_116, %c0_117], %124 {strides = array<i32>} : memref<512x4xf32, #tpu.memory_space<vmem>>, vector<512x4xf32>,
    return
  }
}

</mosaic_0001>

<llo_original>
// kernel: _lambda_.3
$region0: #{_lambda_.3}
  #allocation0 [shape = 'u32[]', space=smem, size = 0x4, offset = 0x4, fixed_abs, tag = 'smem constant byte address 0x4 - core index']
  #allocation1 [shape = 'u32[72,128]{1,0:T(1,128)}', space=vmem, size = 0x9000, scoped, tag = 'internal scratch']
  %s0 = inlined_call_operand.vmem [shape: f32[2,8], index: 0, kind: input, shape index: {}]
  %s1 = inlined_call_operand.vmem [shape: f32[8,256], index: 1, kind: input, shape index: {}]
  %s2 = inlined_call_operand.vmem [shape: f32[1,256], index: 2, kind: input, shape index: {}]
  %s3 = inlined_call_operand.vmem [shape: f32[2,256], index: 3, kind: output, shape index: {}]
  %s4 = sld [smem:[#allocation0]]
  $region22: #{_lambda_.3} parent=0
    _
  %s6 = ssub.s32 1, %s4
  %s7 = scalar_select 0, %s6, %s4
  // Predicated region
  $region2: #{_lambda_.3} parent=0 // pred_check
    _
  $region3: #{_lambda_.3} parent=0 // pred_check_branch
    %9 = sbr.rel (0) target = $region5
  $region4: #{_lambda_.3} parent=0 // pred_region
    _
  $region5: #{_lambda_.3} parent=0 // pred_fallthru
    _
  // Predicated region
  $region6: #{_lambda_.3} parent=0 // pred_check
    _
  $region7: #{_lambda_.3} parent=0 // pred_check_branch
    %11 = sbr.rel (0) target = $region9
  $region8: #{_lambda_.3} parent=0 // pred_region
    _
  $region9: #{_lambda_.3} parent=0 // pred_fallthru
    _
  // Predicated region
  $region10: #{_lambda_.3} parent=0 // pred_check
    _
  $region11: #{_lambda_.3} parent=0 // pred_check_branch
    %13 = sbr.rel (0) target = $region13
  $region12: #{_lambda_.3} parent=0 // pred_region
    _
  $region13: #{_lambda_.3} parent=0 // pred_fallthru
    _
  %v14 = vld [vmem:[%s0] sm:$0x3]
  %v15 = vld [vmem:[%s1] sm:$0xff]
  %v16 = vld [vmem:[%s1 + $0x8] sm:$0xff]
  %v17 = vld [vmem:[%s2] sm:$0x3]
  %v19 = vperm.slane %v17, 0
  %v20 = vperm.slane %v17, 1
  %vm23 = vcmask 64512
  %v25 = vsel %vm23, %v14, 0
  %27 = vmatpush.msra.mxu0 0.0
  %28 = vmatpush.msra.mxu0 0.0
  %29 = vmatpush.msra.mxu0 0.0
  %30 = vmatpush.msra.mxu0 0.0
  %31 = vmatpush.msra.mxu0 0.0
  %32 = vmatpush.msra.mxu0 0.0
  %33 = vmatpush.msra.mxu0 0.0
  %34 = vmatpush.msra.mxu0 0.0
  %35 = vmatpush.msra.mxu0 0.0
  %36 = vmatpush.msra.mxu0 0.0
  %37 = vmatpush.msra.mxu0 0.0
  %38 = vmatpush.msra.mxu0 0.0
  %39 = vmatpush.msra.mxu0 0.0
  %40 = vmatpush.msra.mxu0 0.0
  %41 = vmatpush.msra.mxu0 0.0
  %42 = vmatpush.msra.mxu0 %v15
  %43 = vmatmul.f32.gmra.mxu0 %v25
  %v44 = vpop.f32.mrf.mxu0
  %v45 = vadd.f32 %v19, %v44
  %46 = vdwg.mxu0
  %47 = vmatpush.msra.mxu0 0.0
  %48 = vmatpush.msra.mxu0 0.0
  %49 = vmatpush.msra.mxu0 0.0
  %50 = vmatpush.msra.mxu0 0.0
  %51 = vmatpush.msra.mxu0 0.0
  %52 = vmatpush.msra.mxu0 0.0
  %53 = vmatpush.msra.mxu0 0.0
  %54 = vmatpush.msra.mxu0 0.0
  %55 = vmatpush.msra.mxu0 0.0
  %56 = vmatpush.msra.mxu0 0.0
  %57 = vmatpush.msra.mxu0 0.0
  %58 = vmatpush.msra.mxu0 0.0
  %59 = vmatpush.msra.mxu0 0.0
  %60 = vmatpush.msra.mxu0 0.0
  %61 = vmatpush.msra.mxu0 0.0
  %62 = vmatpush.msra.mxu0 %v16
  %63 = vmatmul.f32.gmra.mxu0 %v25
  %v64 = vpop.f32.mrf.mxu0
  %v65 = vadd.f32 %v20, %v64
  %66 = vdwg.mxu0
  %vm67 = vcmp.gt.f32.partialorder %v45, 0.0
  %vm68 = vcmp.gt.f32.partialorder %v65, 0.0
  %v69 = vmul.f32 %v45, 0.01
  %v70 = vmul.f32 %v65, 0.01
  %v71 = vsel %vm67, %v45, %v69
  %v72 = vsel %vm68, %v65, %v70
  %v75 = vrot.slane %v72, 6
  %vm76 = vcmask 1041408
  %v77 = vsel %vm76, %v71, %v75
  %79 = vst [vmem:[%s3] sm:$0xf] %v77
  // Predicated region
  $region14: #{_lambda_.3} parent=0 // pred_check
    _
  $region15: #{_lambda_.3} parent=0 // pred_check_branch
    %81 = sbr.rel (0) target = $region17
  $region16: #{_lambda_.3} parent=0 // pred_region
    _
  $region17: #{_lambda_.3} parent=0 // pred_fallthru
    _
  // Predicated region
  $region18: #{_lambda_.3} parent=0 // pred_check
    _
  $region19: #{_lambda_.3} parent=0 // pred_check_branch
    %83 = sbr.rel (0) target = $region21
  $region20: #{_lambda_.3} parent=0 // pred_region
    _
  $region21: #{_lambda_.3} parent=0 // pred_fallthru
    _

// kernel: _lambda_.4
$region0: #{_lambda_.4}
  #allocation0 [shape = 'u32[]', space=smem, size = 0x4, offset = 0x4, fixed_abs, tag = 'smem constant byte address 0x4 - core index']
  #allocation1 [shape = 'u32[72,128]{1,0:T(1,128)}', space=vmem, size = 0x9000, scoped, tag = 'internal scratch']
  #allocation2 [shape = 'f32[2,10,10,8]{3,2,1,0:T(8,128)}', space=vmem, size = 0x28000, scoped, tag = 'scratch operand']
  %s0 = inlined_call_operand.vmem [shape: f32[2,10,10,16], index: 0, kind: input, shape index: {}]
  %s1 = inlined_call_operand.vmem [shape: f32[144,16], index: 1, kind: input, shape index: {}]
  %s2 = inlined_call_operand.vmem [shape: f32[1,16], index: 2, kind: input, shape index: {}]
  %s3 = inlined_call_operand.vmem [shape: f32[72,8], index: 3, kind: input, shape index: {}]
  %s4 = inlined_call_operand.vmem [shape: f32[1,8], index: 4, kind: input, shape index: {}]
  %s5 = inlined_call_operand.vmem [shape: f32[1,8], index: 5, kind: input, shape index: {}]
  %s6 = inlined_call_operand.vmem [shape: f32[1,8], index: 6, kind: input, shape index: {}]
  %s7 = inlined_call_operand.vmem [shape: f32[1,8], index: 7, kind: input, shape index: {}]
  %s8 = inlined_call_operand.vmem [shape: f32[1,8], index: 8, kind: input, shape index: {}]
  %s9 = inlined_call_operand.vmem [shape: f32[128,8], index: 9, kind: output, shape index: {}]
  %s10 = sld [smem:[#allocation0]]
  $region46: #{_lambda_.4} parent=0
    _
  %s12 = ssub.s32 1, %s10
  %s13 = scalar_select 0, %s12, %s10
  // Predicated region
  $region2: #{_lambda_.4} parent=0 // pred_check
    _
  $region3: #{_lambda_.4} parent=0 // pred_check_branch
    %15 = sbr.rel (0) target = $region5
  $region4: #{_lambda_.4} parent=0 // pred_region
    _
  $region5: #{_lambda_.4} parent=0 // pred_fallthru
    _
  // Predicated region
  $region6: #{_lambda_.4} parent=0 // pred_check
    _
  $region7: #{_lambda_.4} parent=0 // pred_check_branch
    %17 = sbr.rel (0) target = $region9
  $region8: #{_lambda_.4} parent=0 // pred_region
    _
  $region9: #{_lambda_.4} parent=0 // pred_fallthru
    _
  // Predicated region
  $region10: #{_lambda_.4} parent=0 // pred_check
    _
  $region11: #{_lambda_.4} parent=0 // pred_check_branch
    %19 = sbr.rel (0) target = $region13
  $region12: #{_lambda_.4} parent=0 // pred_region
    _
  $region13: #{_lambda_.4} parent=0 // pred_fallthru
    _
  // Predicated region
  $region14: #{_lambda_.4} parent=0 // pred_check
    _
  $region15: #{_lambda_.4} parent=0 // pred_check_branch
    %21 = sbr.rel (0) target = $region17
  $region16: #{_lambda_.4} parent=0 // pred_region
    _
  $region17: #{_lambda_.4} parent=0 // pred_fallthru
    _
  // Predicated region
  $region18: #{_lambda_.4} parent=0 // pred_check
    _
  $region19: #{_lambda_.4} parent=0 // pred_check_branch
    %23 = sbr.rel (0) target = $region21
  $region20: #{_lambda_.4} parent=0 // pred_region
    _
  $region21: #{_lambda_.4} parent=0 // pred_fallthru
    _
  // Predicated region
  $region22: #{_lambda_.4} parent=0 // pred_check
    _
  $region23: #{_lambda_.4} parent=0 // pred_check_branch
    %25 = sbr.rel (0) target = $region25
  $region24: #{_lambda_.4} parent=0 // pred_region
    _
  $region25: #{_lambda_.4} parent=0 // pred_fallthru
    _
  // Predicated region
  $region26: #{_lambda_.4} parent=0 // pred_check
    _
  $region27: #{_lambda_.4} parent=0 // pred_check_branch
    %27 = sbr.rel (0) target = $region29
  $region28: #{_lambda_.4} parent=0 // pred_region
    _
  $region29: #{_lambda_.4} parent=0 // pred_fallthru
    _
  // Predicated region
  $region30: #{_lambda_.4} parent=0 // pred_check
    _
  $region31: #{_lambda_.4} parent=0 // pred_check_branch
    %29 = sbr.rel (0) target = $region33
  $region32: #{_lambda_.4} parent=0 // pred_region
    _
  $region33: #{_lambda_.4} parent=0 // pred_fallthru
    _
  // Predicated region
  $region34: #{_lambda_.4} parent=0 // pred_check
    _
  $region35: #{_lambda_.4} parent=0 // pred_check_branch
    %31 = sbr.rel (0) target = $region37
  $region36: #{_lambda_.4} parent=0 // pred_region
    _
  $region37: #{_lambda_.4} parent=0 // pred_fallthru
    _
  %v32 = vld [vmem:[%s0] sm:$0xff]
  %v33 = vld [vmem:[%s0 + $0x10] sm:$0xff]
  %v34 = vld [vmem:[%s0 + $0x20] sm:$0xff]
  %v35 = vld [vmem:[%s0 + $0x30] sm:$0xff]
  %v36 = vld [vmem:[%s0 + $0x40] sm:$0xff]
  %v37 = vld [vmem:[%s0 + $0x50] sm:$0xff]
  %v38 = vld [vmem:[%s0 + $0x60] sm:$0xff]
  %v39 = vld [vmem:[%s0 + $0x70] sm:$0xff]
  %v40 = vld [vmem:[%s0 + $0xa0] sm:$0xff]
  %v41 = vld [vmem:[%s0 + $0xb0] sm:$0xff]
  %v42 = vld [vmem:[%s0 + $0xc0] sm:$0xff]
  %v43 = vld [vmem:[%s0 + $0xd0] sm:$0xff]
  %v44 = vld [vmem:[%s0 + $0xe0] sm:$0xff]
  %v45 = vld [vmem:[%s0 + $0xf0] sm:$0xff]
  %v46 = vld [vmem:[%s0 + $0x100] sm:$0xff]
  %v47 = vld [vmem:[%s0 + $0x110] sm:$0xff]
  %v48 = vld [vmem:[%s0 + $0x1] sm:$0xff]
  %v49 = vld [vmem:[%s0 + $0x11] sm:$0xff]
  %v50 = vld [vmem:[%s0 + $0x21] sm:$0xff]
  %v51 = vld [vmem:[%s0 + $0x31] sm:$0xff]
  %v52 = vld [vmem:[%s0 + $0x41] sm:$0xff]
  %v53 = vld [vmem:[%s0 + $0x51] sm:$0xff]
  %v54 = vld [vmem:[%s0 + $0x61] sm:$0xff]
  %v55 = vld [vmem:[%s0 + $0x71] sm:$0xff]
  %v56 = vld [vmem:[%s0 + $0xa1] sm:$0xff]
  %v57 = vld [vmem:[%s0 + $0xb1] sm:$0xff]
  %v58 = vld [vmem:[%s0 + $0xc1] sm:$0xff]
  %v59 = vld [vmem:[%s0 + $0xd1] sm:$0xff]
  %v60 = vld [vmem:[%s0 + $0xe1] sm:$0xff]
  %v61 = vld [vmem:[%s0 + $0xf1] sm:$0xff]
  %v62 = vld [vmem:[%s0 + $0x101] sm:$0xff]
  %v63 = vld [vmem:[%s0 + $0x111] sm:$0xff]
  %v64 = vld [vmem:[%s0 + $0x2] sm:$0xff]
  %v65 = vld [vmem:[%s0 + $0x12] sm:$0xff]
  %v66 = vld [vmem:[%s0 + $0x22] sm:$0xff]
  %v67 = vld [vmem:[%s0 + $0x32] sm:$0xff]
  %v68 = vld [vmem:[%s0 + $0x42] sm:$0xff]
  %v69 = vld [vmem:[%s0 + $0x52] sm:$0xff]
  %v70 = vld [vmem:[%s0 + $0x62] sm:$0xff]
  %v71 = vld [vmem:[%s0 + $0x72] sm:$0xff]
  %v72 = vld [vmem:[%s0 + $0xa2] sm:$0xff]
  %v73 = vld [vmem:[%s0 + $0xb2] sm:$0xff]
  %v74 = vld [vmem:[%s0 + $0xc2] sm:$0xff]
  %v75 = vld [vmem:[%s0 + $0xd2] sm:$0xff]
  %v76 = vld [vmem:[%s0 + $0xe2] sm:$0xff]
  %v77 = vld [vmem:[%s0 + $0xf2] sm:$0xff]
  %v78 = vld [vmem:[%s0 + $0x102] sm:$0xff]
  %v79 = vld [vmem:[%s0 + $0x112] sm:$0xff]
  %s80 = scalar_lea.vmem %s0, 16
  %v81 = vld [vmem:[%s80] sm:$0xff]
  %v82 = vld [vmem:[%s80 + $0x10] sm:$0xff]
  %v83 = vld [vmem:[%s80 + $0x20] sm:$0xff]
  %v84 = vld [vmem:[%s80 + $0x30] sm:$0xff]
  %v85 = vld [vmem:[%s80 + $0x40] sm:$0xff]
  %v86 = vld [vmem:[%s80 + $0x50] sm:$0xff]
  %v87 = vld [vmem:[%s80 + $0x60] sm:$0xff]
  %v88 = vld [vmem:[%s80 + $0x70] sm:$0xff]
  %v89 = vld [vmem:[%s80 + $0xa0] sm:$0xff]
  %v90 = vld [vmem:[%s80 + $0xb0] sm:$0xff]
  %v91 = vld [vmem:[%s80 + $0xc0] sm:$0xff]
  %v92 = vld [vmem:[%s80 + $0xd0] sm:$0xff]
  %v93 = vld [vmem:[%s80 + $0xe0] sm:$0xff]
  %v94 = vld [vmem:[%s80 + $0xf0] sm:$0xff]
  %v95 = vld [vmem:[%s80 + $0x100] sm:$0xff]
  %v96 = vld [vmem:[%s80 + $0x110] sm:$0xff]
  %v97 = vld [vmem:[%s80 + $0x1] sm:$0xff]
  %v98 = vld [vmem:[%s80 + $0x11] sm:$0xff]
  %v99 = vld [vmem:[%s80 + $0x21] sm:$0xff]
  %v100 = vld [vmem:[%s80 + $0x31] sm:$0xff]
  %v101 = vld [vmem:[%s80 + $0x41] sm:$0xff]
  %v102 = vld [vmem:[%s80 + $0x51] sm:$0xff]
  %v103 = vld [vmem:[%s80 + $0x61] sm:$0xff]
  %v104 = vld [vmem:[%s80 + $0x71] sm:$0xff]
  %v105 = vld [vmem:[%s80 + $0xa1] sm:$0xff]
  %v106 = vld [vmem:[%s80 + $0xb1] sm:$0xff]
  %v107 = vld [vmem:[%s80 + $0xc1] sm:$0xff]
  %v108 = vld [vmem:[%s80 + $0xd1] sm:$0xff]
  %v109 = vld [vmem:[%s80 + $0xe1] sm:$0xff]
  %v110 = vld [vmem:[%s80 + $0xf1] sm:$0xff]
  %v111 = vld [vmem:[%s80 + $0x101] sm:$0xff]
  %v112 = vld [vmem:[%s80 + $0x111] sm:$0xff]
  %v113 = vld [vmem:[%s80 + $0x2] sm:$0xff]
  %v114 = vld [vmem:[%s80 + $0x12] sm:$0xff]
  %v115 = vld [vmem:[%s80 + $0x22] sm:$0xff]
  %v116 = vld [vmem:[%s80 + $0x32] sm:$0xff]
  %v117 = vld [vmem:[%s80 + $0x42] sm:$0xff]
  %v118 = vld [vmem:[%s80 + $0x52] sm:$0xff]
  %v119 = vld [vmem:[%s80 + $0x62] sm:$0xff]
  %v120 = vld [vmem:[%s80 + $0x72] sm:$0xff]
  %v121 = vld [vmem:[%s80 + $0xa2] sm:$0xff]
  %v122 = vld [vmem:[%s80 + $0xb2] sm:$0xff]
  %v123 = vld [vmem:[%s80 + $0xc2] sm:$0xff]
  %v124 = vld [vmem:[%s80 + $0xd2] sm:$0xff]
  %v125 = vld [vmem:[%s80 + $0xe2] sm:$0xff]
  %v126 = vld [vmem:[%s80 + $0xf2] sm:$0xff]
  %v127 = vld [vmem:[%s80 + $0x102] sm:$0xff]
  %v128 = vld [vmem:[%s80 + $0x112] sm:$0xff]
  %s129 = scalar_lea.vmem %s0, 32
  %v130 = vld [vmem:[%s129] sm:$0xff]
  %v131 = vld [vmem:[%s129 + $0x10] sm:$0xff]
  %v132 = vld [vmem:[%s129 + $0x20] sm:$0xff]
  %v133 = vld [vmem:[%s129 + $0x30] sm:$0xff]
  %v134 = vld [vmem:[%s129 + $0x40] sm:$0xff]
  %v135 = vld [vmem:[%s129 + $0x50] sm:$0xff]
  %v136 = vld [vmem:[%s129 + $0x60] sm:$0xff]
  %v137 = vld [vmem:[%s129 + $0x70] sm:$0xff]
  %v138 = vld [vmem:[%s129 + $0xa0] sm:$0xff]
  %v139 = vld [vmem:[%s129 + $0xb0] sm:$0xff]
  %v140 = vld [vmem:[%s129 + $0xc0] sm:$0xff]
  %v141 = vld [vmem:[%s129 + $0xd0] sm:$0xff]
  %v142 = vld [vmem:[%s129 + $0xe0] sm:$0xff]
  %v143 = vld [vmem:[%s129 + $0xf0] sm:$0xff]
  %v144 = vld [vmem:[%s129 + $0x100] sm:$0xff]
  %v145 = vld [vmem:[%s129 + $0x110] sm:$0xff]
  %v146 = vld [vmem:[%s129 + $0x1] sm:$0xff]
  %v147 = vld [vmem:[%s129 + $0x11] sm:$0xff]
  %v148 = vld [vmem:[%s129 + $0x21] sm:$0xff]
  %v149 = vld [vmem:[%s129 + $0x31] sm:$0xff]
  %v150 = vld [vmem:[%s129 + $0x41] sm:$0xff]
  %v151 = vld [vmem:[%s129 + $0x51] sm:$0xff]
  %v152 = vld [vmem:[%s129 + $0x61] sm:$0xff]
  %v153 = vld [vmem:[%s129 + $0x71] sm:$0xff]
  %v154 = vld [vmem:[%s129 + $0xa1] sm:$0xff]
  %v155 = vld [vmem:[%s129 + $0xb1] sm:$0xff]
  %v156 = vld [vmem:[%s129 + $0xc1] sm:$0xff]
  %v157 = vld [vmem:[%s129 + $0xd1] sm:$0xff]
  %v158 = vld [vmem:[%s129 + $0xe1] sm:$0xff]
  %v159 = vld [vmem:[%s129 + $0xf1] sm:$0xff]
  %v160 = vld [vmem:[%s129 + $0x101] sm:$0xff]
  %v161 = vld [vmem:[%s129 + $0x111] sm:$0xff]
  %v162 = vld [vmem:[%s129 + $0x2] sm:$0xff]
  %v163 = vld [vmem:[%s129 + $0x12] sm:$0xff]
  %v164 = vld [vmem:[%s129 + $0x22] sm:$0xff]
  %v165 = vld [vmem:[%s129 + $0x32] sm:$0xff]
  %v166 = vld [vmem:[%s129 + $0x42] sm:$0xff]
  %v167 = vld [vmem:[%s129 + $0x52] sm:$0xff]
  %v168 = vld [vmem:[%s129 + $0x62] sm:$0xff]
  %v169 = vld [vmem:[%s129 + $0x72] sm:$0xff]
  %v170 = vld [vmem:[%s129 + $0xa2] sm:$0xff]
  %v171 = vld [vmem:[%s129 + $0xb2] sm:$0xff]
  %v172 = vld [vmem:[%s129 + $0xc2] sm:$0xff]
  %v173 = vld [vmem:[%s129 + $0xd2] sm:$0xff]
  %v174 = vld [vmem:[%s129 + $0xe2] sm:$0xff]
  %v175 = vld [vmem:[%s129 + $0xf2] sm:$0xff]
  %v176 = vld [vmem:[%s129 + $0x102] sm:$0xff]
  %v177 = vld [vmem:[%s129 + $0x112] sm:$0xff]
  %194 = vrot.lane.b32.xlu0 %v48, 16
  %v195 = vpop.permute.xlu0 %194
  %196 = vrot.lane.b32.xlu0 %v49, 16
  %v197 = vpop.permute.xlu0 %196
  %198 = vrot.lane.b32.xlu0 %v50, 16
  %v199 = vpop.permute.xlu0 %198
  %200 = vrot.lane.b32.xlu0 %v51, 16
  %v201 = vpop.permute.xlu0 %200
  %202 = vrot.lane.b32.xlu0 %v52, 16
  %v203 = vpop.permute.xlu0 %202
  %204 = vrot.lane.b32.xlu0 %v53, 16
  %v205 = vpop.permute.xlu0 %204
  %206 = vrot.lane.b32.xlu0 %v54, 16
  %v207 = vpop.permute.xlu0 %206
  %208 = vrot.lane.b32.xlu0 %v55, 16
  %v209 = vpop.permute.xlu0 %208
  %210 = vrot.lane.b32.xlu0 %v56, 16
  %v211 = vpop.permute.xlu0 %210
  %212 = vrot.lane.b32.xlu0 %v57, 16
  %v213 = vpop.permute.xlu0 %212
  %214 = vrot.lane.b32.xlu0 %v58, 16
  %v215 = vpop.permute.xlu0 %214
  %216 = vrot.lane.b32.xlu0 %v59, 16
  %v217 = vpop.permute.xlu0 %216
  %218 = vrot.lane.b32.xlu0 %v60, 16
  %v219 = vpop.permute.xlu0 %218
  %220 = vrot.lane.b32.xlu0 %v61, 16
  %v221 = vpop.permute.xlu0 %220
  %222 = vrot.lane.b32.xlu0 %v62, 16
  %v223 = vpop.permute.xlu0 %222
  %224 = vrot.lane.b32.xlu0 %v63, 16
  %v225 = vpop.permute.xlu0 %224
  %258 = vrot.lane.b32.xlu0 %v64, 32
  %v259 = vpop.permute.xlu0 %258
  %260 = vrot.lane.b32.xlu0 %v65, 32
  %v261 = vpop.permute.xlu0 %260
  %262 = vrot.lane.b32.xlu0 %v66, 32
  %v263 = vpop.permute.xlu0 %262
  %264 = vrot.lane.b32.xlu0 %v67, 32
  %v265 = vpop.permute.xlu0 %264
  %266 = vrot.lane.b32.xlu0 %v68, 32
  %v267 = vpop.permute.xlu0 %266
  %268 = vrot.lane.b32.xlu0 %v69, 32
  %v269 = vpop.permute.xlu0 %268
  %270 = vrot.lane.b32.xlu0 %v70, 32
  %v271 = vpop.permute.xlu0 %270
  %272 = vrot.lane.b32.xlu0 %v71, 32
  %v273 = vpop.permute.xlu0 %272
  %274 = vrot.lane.b32.xlu0 %v72, 32
  %v275 = vpop.permute.xlu0 %274
  %276 = vrot.lane.b32.xlu0 %v73, 32
  %v277 = vpop.permute.xlu0 %276
  %278 = vrot.lane.b32.xlu0 %v74, 32
  %v279 = vpop.permute.xlu0 %278
  %280 = vrot.lane.b32.xlu0 %v75, 32
  %v281 = vpop.permute.xlu0 %280
  %282 = vrot.lane.b32.xlu0 %v76, 32
  %v283 = vpop.permute.xlu0 %282
  %284 = vrot.lane.b32.xlu0 %v77, 32
  %v285 = vpop.permute.xlu0 %284
  %286 = vrot.lane.b32.xlu0 %v78, 32
  %v287 = vpop.permute.xlu0 %286
  %288 = vrot.lane.b32.xlu0 %v79, 32
  %v289 = vpop.permute.xlu0 %288
  %322 = vrot.lane.b32.xlu0 %v81, 48
  %v323 = vpop.permute.xlu0 %322
  %324 = vrot.lane.b32.xlu0 %v82, 48
  %v325 = vpop.permute.xlu0 %324
  %326 = vrot.lane.b32.xlu0 %v83, 48
  %v327 = vpop.permute.xlu0 %326
  %328 = vrot.lane.b32.xlu0 %v84, 48
  %v329 = vpop.permute.xlu0 %328
  %330 = vrot.lane.b32.xlu0 %v85, 48
  %v331 = vpop.permute.xlu0 %330
  %332 = vrot.lane.b32.xlu0 %v86, 48
  %v333 = vpop.permute.xlu0 %332
  %334 = vrot.lane.b32.xlu0 %v87, 48
  %v335 = vpop.permute.xlu0 %334
  %336 = vrot.lane.b32.xlu0 %v88, 48
  %v337 = vpop.permute.xlu0 %336
  %338 = vrot.lane.b32.xlu0 %v89, 48
  %v339 = vpop.permute.xlu0 %338
  %340 = vrot.lane.b32.xlu0 %v90, 48
  %v341 = vpop.permute.xlu0 %340
  %342 = vrot.lane.b32.xlu0 %v91, 48
  %v343 = vpop.permute.xlu0 %342
  %344 = vrot.lane.b32.xlu0 %v92, 48
  %v345 = vpop.permute.xlu0 %344
  %346 = vrot.lane.b32.xlu0 %v93, 48
  %v347 = vpop.permute.xlu0 %346
  %348 = vrot.lane.b32.xlu0 %v94, 48
  %v349 = vpop.permute.xlu0 %348
  %350 = vrot.lane.b32.xlu0 %v95, 48
  %v351 = vpop.permute.xlu0 %350
  %352 = vrot.lane.b32.xlu0 %v96, 48
  %v353 = vpop.permute.xlu0 %352
  %386 = vrot.lane.b32.xlu0 %v97, 64
  %v387 = vpop.permute.xlu0 %386
  %388 = vrot.lane.b32.xlu0 %v98, 64
  %v389 = vpop.permute.xlu0 %388
  %390 = vrot.lane.b32.xlu0 %v99, 64
  %v391 = vpop.permute.xlu0 %390
  %392 = vrot.lane.b32.xlu0 %v100, 64
  %v393 = vpop.permute.xlu0 %392
  %394 = vrot.lane.b32.xlu0 %v101, 64
  %v395 = vpop.permute.xlu0 %394
  %396 = vrot.lane.b32.xlu0 %v102, 64
  %v397 = vpop.permute.xlu0 %396
  %398 = vrot.lane.b32.xlu0 %v103, 64
  %v399 = vpop.permute.xlu0 %398
  %400 = vrot.lane.b32.xlu0 %v104, 64
  %v401 = vpop.permute.xlu0 %400
  %402 = vrot.lane.b32.xlu0 %v105, 64
  %v403 = vpop.permute.xlu0 %402
  %404 = vrot.lane.b32.xlu0 %v106, 64
  %v405 = vpop.permute.xlu0 %404
  %406 = vrot.lane.b32.xlu0 %v107, 64
  %v407 = vpop.permute.xlu0 %406
  %408 = vrot.lane.b32.xlu0 %v108, 64
  %v409 = vpop.permute.xlu0 %408
  %410 = vrot.lane.b32.xlu0 %v109, 64
  %v411 = vpop.permute.xlu0 %410
  %412 = vrot.lane.b32.xlu0 %v110, 64
  %v413 = vpop.permute.xlu0 %412
  %414 = vrot.lane.b32.xlu0 %v111, 64
  %v415 = vpop.permute.xlu0 %414
  %416 = vrot.lane.b32.xlu0 %v112, 64
  %v417 = vpop.permute.xlu0 %416
  %450 = vrot.lane.b32.xlu0 %v113, 80
  %v451 = vpop.permute.xlu0 %450
  %452 = vrot.lane.b32.xlu0 %v114, 80
  %v453 = vpop.permute.xlu0 %452
  %454 = vrot.lane.b32.xlu0 %v115, 80
  %v455 = vpop.permute.xlu0 %454
  %456 = vrot.lane.b32.xlu0 %v116, 80
  %v457 = vpop.permute.xlu0 %456
  %458 = vrot.lane.b32.xlu0 %v117, 80
  %v459 = vpop.permute.xlu0 %458
  %460 = vrot.lane.b32.xlu0 %v118, 80
  %v461 = vpop.permute.xlu0 %460
  %462 = vrot.lane.b32.xlu0 %v119, 80
  %v463 = vpop.permute.xlu0 %462
  %464 = vrot.lane.b32.xlu0 %v120, 80
  %v465 = vpop.permute.xlu0 %464
  %466 = vrot.lane.b32.xlu0 %v121, 80
  %v467 = vpop.permute.xlu0 %466
  %468 = vrot.lane.b32.xlu0 %v122, 80
  %v469 = vpop.permute.xlu0 %468
  %470 = vrot.lane.b32.xlu0 %v123, 80
  %v471 = vpop.permute.xlu0 %470
  %472 = vrot.lane.b32.xlu0 %v124, 80
  %v473 = vpop.permute.xlu0 %472
  %474 = vrot.lane.b32.xlu0 %v125, 80
  %v475 = vpop.permute.xlu0 %474
  %476 = vrot.lane.b32.xlu0 %v126, 80
  %v477 = vpop.permute.xlu0 %476
  %478 = vrot.lane.b32.xlu0 %v127, 80
  %v479 = vpop.permute.xlu0 %478
  %480 = vrot.lane.b32.xlu0 %v128, 80
  %v481 = vpop.permute.xlu0 %480
  %514 = vrot.lane.b32.xlu0 %v130, 96
  %v515 = vpop.permute.xlu0 %514
  %516 = vrot.lane.b32.xlu0 %v131, 96
  %v517 = vpop.permute.xlu0 %516
  %518 = vrot.lane.b32.xlu0 %v132, 96
  %v519 = vpop.permute.xlu0 %518
  %520 = vrot.lane.b32.xlu0 %v133, 96
  %v521 = vpop.permute.xlu0 %520
  %522 = vrot.lane.b32.xlu0 %v134, 96
  %v523 = vpop.permute.xlu0 %522
  %524 = vrot.lane.b32.xlu0 %v135, 96
  %v525 = vpop.permute.xlu0 %524
  %526 = vrot.lane.b32.xlu0 %v136, 96
  %v527 = vpop.permute.xlu0 %526
  %528 = vrot.lane.b32.xlu0 %v137, 96
  %v529 = vpop.permute.xlu0 %528
  %530 = vrot.lane.b32.xlu0 %v138, 96
  %v531 = vpop.permute.xlu0 %530
  %532 = vrot.lane.b32.xlu0 %v139, 96
  %v533 = vpop.permute.xlu0 %532
  %534 = vrot.lane.b32.xlu0 %v140, 96
  %v535 = vpop.permute.xlu0 %534
  %536 = vrot.lane.b32.xlu0 %v141, 96
  %v537 = vpop.permute.xlu0 %536
  %538 = vrot.lane.b32.xlu0 %v142, 96
  %v539 = vpop.permute.xlu0 %538
  %540 = vrot.lane.b32.xlu0 %v143, 96
  %v541 = vpop.permute.xlu0 %540
  %542 = vrot.lane.b32.xlu0 %v144, 96
  %v543 = vpop.permute.xlu0 %542
  %544 = vrot.lane.b32.xlu0 %v145, 96
  %v545 = vpop.permute.xlu0 %544
  %578 = vrot.lane.b32.xlu0 %v146, 112
  %v579 = vpop.permute.xlu0 %578
  %580 = vrot.lane.b32.xlu0 %v147, 112
  %v581 = vpop.permute.xlu0 %580
  %582 = vrot.lane.b32.xlu0 %v148, 112
  %v583 = vpop.permute.xlu0 %582
  %584 = vrot.lane.b32.xlu0 %v149, 112
  %v585 = vpop.permute.xlu0 %584
  %586 = vrot.lane.b32.xlu0 %v150, 112
  %v587 = vpop.permute.xlu0 %586
  %588 = vrot.lane.b32.xlu0 %v151, 112
  %v589 = vpop.permute.xlu0 %588
  %590 = vrot.lane.b32.xlu0 %v152, 112
  %v591 = vpop.permute.xlu0 %590
  %592 = vrot.lane.b32.xlu0 %v153, 112
  %v593 = vpop.permute.xlu0 %592
  %594 = vrot.lane.b32.xlu0 %v154, 112
  %v595 = vpop.permute.xlu0 %594
  %596 = vrot.lane.b32.xlu0 %v155, 112
  %v597 = vpop.permute.xlu0 %596
  %598 = vrot.lane.b32.xlu0 %v156, 112
  %v599 = vpop.permute.xlu0 %598
  %600 = vrot.lane.b32.xlu0 %v157, 112
  %v601 = vpop.permute.xlu0 %600
  %602 = vrot.lane.b32.xlu0 %v158, 112
  %v603 = vpop.permute.xlu0 %602
  %604 = vrot.lane.b32.xlu0 %v159, 112
  %v605 = vpop.permute.xlu0 %604
  %606 = vrot.lane.b32.xlu0 %v160, 112
  %v607 = vpop.permute.xlu0 %606
  %608 = vrot.lane.b32.xlu0 %v161, 112
  %v609 = vpop.permute.xlu0 %608
  %vm626 = vcmask 130048
  %v627 = vsel %vm626, %v32, %v195
  %v628 = vsel %vm626, %v33, %v197
  %v629 = vsel %vm626, %v34, %v199
  %v630 = vsel %vm626, %v35, %v201
  %v631 = vsel %vm626, %v36, %v203
  %v632 = vsel %vm626, %v37, %v205
  %v633 = vsel %vm626, %v38, %v207
  %v634 = vsel %vm626, %v39, %v209
  %v635 = vsel %vm626, %v40, %v211
  %v636 = vsel %vm626, %v41, %v213
  %v637 = vsel %vm626, %v42, %v215
  %v638 = vsel %vm626, %v43, %v217
  %v639 = vsel %vm626, %v44, %v219
  %v640 = vsel %vm626, %v45, %v221
  %v641 = vsel %vm626, %v46, %v223
  %v642 = vsel %vm626, %v47, %v225
  %vm643 = vcmask 261120
  %v644 = vsel %vm643, %v627, %v259
  %v645 = vsel %vm643, %v628, %v261
  %v646 = vsel %vm643, %v629, %v263
  %v647 = vsel %vm643, %v630, %v265
  %v648 = vsel %vm643, %v631, %v267
  %v649 = vsel %vm643, %v632, %v269
  %v650 = vsel %vm643, %v633, %v271
  %v651 = vsel %vm643, %v634, %v273
  %v652 = vsel %vm643, %v635, %v275
  %v653 = vsel %vm643, %v636, %v277
  %v654 = vsel %vm643, %v637, %v279
  %v655 = vsel %vm643, %v638, %v281
  %v656 = vsel %vm643, %v639, %v283
  %v657 = vsel %vm643, %v640, %v285
  %v658 = vsel %vm643, %v641, %v287
  %v659 = vsel %vm643, %v642, %v289
  %vm660 = vcmask 392192
  %v661 = vsel %vm660, %v644, %v323
  %v662 = vsel %vm660, %v645, %v325
  %v663 = vsel %vm660, %v646, %v327
  %v664 = vsel %vm660, %v647, %v329
  %v665 = vsel %vm660, %v648, %v331
  %v666 = vsel %vm660, %v649, %v333
  %v667 = vsel %vm660, %v650, %v335
  %v668 = vsel %vm660, %v651, %v337
  %v669 = vsel %vm660, %v652, %v339
  %v670 = vsel %vm660, %v653, %v341
  %v671 = vsel %vm660, %v654, %v343
  %v672 = vsel %vm660, %v655, %v345
  %v673 = vsel %vm660, %v656, %v347
  %v674 = vsel %vm660, %v657, %v349
  %v675 = vsel %vm660, %v658, %v351
  %v676 = vsel %vm660, %v659, %v353
  %vm677 = vcmask 523264
  %v678 = vsel %vm677, %v661, %v387
  %v679 = vsel %vm677, %v662, %v389
  %v680 = vsel %vm677, %v663, %v391
  %v681 = vsel %vm677, %v664, %v393
  %v682 = vsel %vm677, %v665, %v395
  %v683 = vsel %vm677, %v666, %v397
  %v684 = vsel %vm677, %v667, %v399
  %v685 = vsel %vm677, %v668, %v401
  %v686 = vsel %vm677, %v669, %v403
  %v687 = vsel %vm677, %v670, %v405
  %v688 = vsel %vm677, %v671, %v407
  %v689 = vsel %vm677, %v672, %v409
  %v690 = vsel %vm677, %v673, %v411
  %v691 = vsel %vm677, %v674, %v413
  %v692 = vsel %vm677, %v675, %v415
  %v693 = vsel %vm677, %v676, %v417
  %vm694 = vcmask 654336
  %v695 = vsel %vm694, %v678, %v451
  %v696 = vsel %vm694, %v679, %v453
  %v697 = vsel %vm694, %v680, %v455
  %v698 = vsel %vm694, %v681, %v457
  %v699 = vsel %vm694, %v682, %v459
  %v700 = vsel %vm694, %v683, %v461
  %v701 = vsel %vm694, %v684, %v463
  %v702 = vsel %vm694, %v685, %v465
  %v703 = vsel %vm694, %v686, %v467
  %v704 = vsel %vm694, %v687, %v469
  %v705 = vsel %vm694, %v688, %v471
  %v706 = vsel %vm694, %v689, %v473
  %v707 = vsel %vm694, %v690, %v475
  %v708 = vsel %vm694, %v691, %v477
  %v709 = vsel %vm694, %v692, %v479
  %v710 = vsel %vm694, %v693, %v481
  %vm711 = vcmask 785408
  %v712 = vsel %vm711, %v695, %v515
  %v713 = vsel %vm711, %v696, %v517
  %v714 = vsel %vm711, %v697, %v519
  %v715 = vsel %vm711, %v698, %v521
  %v716 = vsel %vm711, %v699, %v523
  %v717 = vsel %vm711, %v700, %v525
  %v718 = vsel %vm711, %v701, %v527
  %v719 = vsel %vm711, %v702, %v529
  %v720 = vsel %vm711, %v703, %v531
  %v721 = vsel %vm711, %v704, %v533
  %v722 = vsel %vm711, %v705, %v535
  %v723 = vsel %vm711, %v706, %v537
  %v724 = vsel %vm711, %v707, %v539
  %v725 = vsel %vm711, %v708, %v541
  %v726 = vsel %vm711, %v709, %v543
  %v727 = vsel %vm711, %v710, %v545
  %vm728 = vcmask 916480
  %v729 = vsel %vm728, %v712, %v579
  %v730 = vsel %vm728, %v713, %v581
  %v731 = vsel %vm728, %v714, %v583
  %v732 = vsel %vm728, %v715, %v585
  %v733 = vsel %vm728, %v716, %v587
  %v734 = vsel %vm728, %v717, %v589
  %v735 = vsel %vm728, %v718, %v591
  %v736 = vsel %vm728, %v719, %v593
  %v737 = vsel %vm728, %v720, %v595
  %v738 = vsel %vm728, %v721, %v597
  %v739 = vsel %vm728, %v722, %v599
  %v740 = vsel %vm728, %v723, %v601
  %v741 = vsel %vm728, %v724, %v603
  %v742 = vsel %vm728, %v725, %v605
  %v743 = vsel %vm728, %v726, %v607
  %v744 = vsel %vm728, %v727, %v609
  %v745 = vld [vmem:[%s1] sm:$0xff]
  %v746 = vld [vmem:[%s1 + $0x8] sm:$0xff]
  %v747 = vld [vmem:[%s1 + $0x10] sm:$0xff]
  %v748 = vld [vmem:[%s1 + $0x18] sm:$0xff]
  %v749 = vld [vmem:[%s1 + $0x20] sm:$0xff]
  %v750 = vld [vmem:[%s1 + $0x28] sm:$0xff]
  %v751 = vld [vmem:[%s1 + $0x30] sm:$0xff]
  %v752 = vld [vmem:[%s1 + $0x38] sm:$0xff]
  %v753 = vld [vmem:[%s1 + $0x40] sm:$0xff]
  %v754 = vld [vmem:[%s1 + $0x48] sm:$0xff]
  %v755 = vld [vmem:[%s1 + $0x50] sm:$0xff]
  %v756 = vld [vmem:[%s1 + $0x58] sm:$0xff]
  %v757 = vld [vmem:[%s1 + $0x60] sm:$0xff]
  %v758 = vld [vmem:[%s1 + $0x68] sm:$0xff]
  %v759 = vld [vmem:[%s1 + $0x70] sm:$0xff]
  %v760 = vld [vmem:[%s1 + $0x78] sm:$0xff]
  %v761 = vld [vmem:[%s1 + $0x80] sm:$0xff]
  %v762 = vld [vmem:[%s1 + $0x88] sm:$0xff]
  %v763 = vld [vmem:[%s2] sm:$0x1]
  %v765 = vperm.slane %v763, 0
  %v768 = vsel %vm626, %v162, 0
  %v771 = vsel %vm626, %v163, 0
  %v774 = vsel %vm626, %v164, 0
  %v777 = vsel %vm626, %v165, 0
  %v780 = vsel %vm626, %v166, 0
  %v783 = vsel %vm626, %v167, 0
  %v786 = vsel %vm626, %v168, 0
  %v789 = vsel %vm626, %v169, 0
  %v792 = vsel %vm626, %v170, 0
  %v795 = vsel %vm626, %v171, 0
  %v798 = vsel %vm626, %v172, 0
  %v801 = vsel %vm626, %v173, 0
  %v804 = vsel %vm626, %v174, 0
  %v807 = vsel %vm626, %v175, 0
  %v810 = vsel %vm626, %v176, 0
  %v813 = vsel %vm626, %v177, 0
  %815 = vmatpush.msra.mxu0 %v760
  %816 = vmatpush.msra.mxu0 %v759
  %817 = vmatpush.msra.mxu0 %v758
  %818 = vmatpush.msra.mxu0 %v757
  %819 = vmatpush.msra.mxu0 %v756
  %820 = vmatpush.msra.mxu0 %v755
  %821 = vmatpush.msra.mxu0 %v754
  %822 = vmatpush.msra.mxu0 %v753
  %823 = vmatpush.msra.mxu0 %v752
  %824 = vmatpush.msra.mxu0 %v751
  %825 = vmatpush.msra.mxu0 %v750
  %826 = vmatpush.msra.mxu0 %v749
  %827 = vmatpush.msra.mxu0 %v748
  %828 = vmatpush.msra.mxu0 %v747
  %829 = vmatpush.msra.mxu0 %v746
  %830 = vmatpush.msra.mxu0 %v745
  %831 = vmatmul.f32.gmra.mxu0 %v729
  %v832 = vpop.f32.mrf.mxu0
  %v833 = vadd.f32 %v765, %v832
  %834 = vmatmul.f32.gmra.mxu0 %v730
  %v835 = vpop.f32.mrf.mxu0
  %v836 = vadd.f32 %v765, %v835
  %837 = vmatmul.f32.gmra.mxu0 %v731
  %v838 = vpop.f32.mrf.mxu0
  %v839 = vadd.f32 %v765, %v838
  %840 = vmatmul.f32.gmra.mxu0 %v732
  %v841 = vpop.f32.mrf.mxu0
  %v842 = vadd.f32 %v765, %v841
  %843 = vmatmul.f32.gmra.mxu0 %v733
  %v844 = vpop.f32.mrf.mxu0
  %v845 = vadd.f32 %v765, %v844
  %846 = vmatmul.f32.gmra.mxu0 %v734
  %v847 = vpop.f32.mrf.mxu0
  %v848 = vadd.f32 %v765, %v847
  %849 = vmatmul.f32.gmra.mxu0 %v735
  %v850 = vpop.f32.mrf.mxu0
  %v851 = vadd.f32 %v765, %v850
  %852 = vmatmul.f32.gmra.mxu0 %v736
  %v853 = vpop.f32.mrf.mxu0
  %v854 = vadd.f32 %v765, %v853
  %855 = vmatmul.f32.gmra.mxu0 %v737
  %v856 = vpop.f32.mrf.mxu0
  %v857 = vadd.f32 %v765, %v856
  %858 = vmatmul.f32.gmra.mxu0 %v738
  %v859 = vpop.f32.mrf.mxu0
  %v860 = vadd.f32 %v765, %v859
  %861 = vmatmul.f32.gmra.mxu0 %v739
  %v862 = vpop.f32.mrf.mxu0
  %v863 = vadd.f32 %v765, %v862
  %864 = vmatmul.f32.gmra.mxu0 %v740
  %v865 = vpop.f32.mrf.mxu0
  %v866 = vadd.f32 %v765, %v865
  %867 = vmatmul.f32.gmra.mxu0 %v741
  %v868 = vpop.f32.mrf.mxu0
  %v869 = vadd.f32 %v765, %v868
  %870 = vmatmul.f32.gmra.mxu0 %v742
  %v871 = vpop.f32.mrf.mxu0
  %v872 = vadd.f32 %v765, %v871
  %873 = vmatmul.f32.gmra.mxu0 %v743
  %v874 = vpop.f32.mrf.mxu0
  %v875 = vadd.f32 %v765, %v874
  %876 = vmatmul.f32.gmra.mxu0 %v744
  %v877 = vpop.f32.mrf.mxu0
  %v878 = vadd.f32 %v765, %v877
  %879 = vdwg.mxu0
  %880 = vmatpush.msra.mxu0 0.0
  %881 = vmatpush.msra.mxu0 0.0
  %882 = vmatpush.msra.mxu0 0.0
  %883 = vmatpush.msra.mxu0 0.0
  %884 = vmatpush.msra.mxu0 0.0
  %885 = vmatpush.msra.mxu0 0.0
  %886 = vmatpush.msra.mxu0 0.0
  %887 = vmatpush.msra.mxu0 0.0
  %888 = vmatpush.msra.mxu0 0.0
  %889 = vmatpush.msra.mxu0 0.0
  %890 = vmatpush.msra.mxu0 0.0
  %891 = vmatpush.msra.mxu0 0.0
  %892 = vmatpush.msra.mxu0 0.0
  %893 = vmatpush.msra.mxu0 0.0
  %894 = vmatpush.msra.mxu0 %v762
  %895 = vmatpush.msra.mxu0 %v761
  %896 = vmatmul.f32.gmra.mxu0 %v768
  %v897 = vpop.f32.mrf.mxu0
  %v898 = vadd.f32 %v833, %v897
  %899 = vmatmul.f32.gmra.mxu0 %v771
  %v900 = vpop.f32.mrf.mxu0
  %v901 = vadd.f32 %v836, %v900
  %902 = vmatmul.f32.gmra.mxu0 %v774
  %v903 = vpop.f32.mrf.mxu0
  %v904 = vadd.f32 %v839, %v903
  %905 = vmatmul.f32.gmra.mxu0 %v777
  %v906 = vpop.f32.mrf.mxu0
  %v907 = vadd.f32 %v842, %v906
  %908 = vmatmul.f32.gmra.mxu0 %v780
  %v909 = vpop.f32.mrf.mxu0
  %v910 = vadd.f32 %v845, %v909
  %911 = vmatmul.f32.gmra.mxu0 %v783
  %v912 = vpop.f32.mrf.mxu0
  %v913 = vadd.f32 %v848, %v912
  %914 = vmatmul.f32.gmra.mxu0 %v786
  %v915 = vpop.f32.mrf.mxu0
  %v916 = vadd.f32 %v851, %v915
  %917 = vmatmul.f32.gmra.mxu0 %v789
  %v918 = vpop.f32.mrf.mxu0
  %v919 = vadd.f32 %v854, %v918
  %920 = vmatmul.f32.gmra.mxu0 %v792
  %v921 = vpop.f32.mrf.mxu0
  %v922 = vadd.f32 %v857, %v921
  %923 = vmatmul.f32.gmra.mxu0 %v795
  %v924 = vpop.f32.mrf.mxu0
  %v925 = vadd.f32 %v860, %v924
  %926 = vmatmul.f32.gmra.mxu0 %v798
  %v927 = vpop.f32.mrf.mxu0
  %v928 = vadd.f32 %v863, %v927
  %929 = vmatmul.f32.gmra.mxu0 %v801
  %v930 = vpop.f32.mrf.mxu0
  %v931 = vadd.f32 %v866, %v930
  %932 = vmatmul.f32.gmra.mxu0 %v804
  %v933 = vpop.f32.mrf.mxu0
  %v934 = vadd.f32 %v869, %v933
  %935 = vmatmul.f32.gmra.mxu0 %v807
  %v936 = vpop.f32.mrf.mxu0
  %v937 = vadd.f32 %v872, %v936
  %938 = vmatmul.f32.gmra.mxu0 %v810
  %v939 = vpop.f32.mrf.mxu0
  %v940 = vadd.f32 %v875, %v939
  %941 = vmatmul.f32.gmra.mxu0 %v813
  %v942 = vpop.f32.mrf.mxu0
  %v943 = vadd.f32 %v878, %v942
  %944 = vdwg.mxu0
  %v945 = vld [vmem:[%s5] sm:$0x1]
  %v946 = vld [vmem:[%s6] sm:$0x1]
  %vm947 = vcmask 130112
  %v948 = vsel %vm947, %v898, 0.0
  %v949 = vsel %vm947, %v901, 0.0
  %v950 = vadd.f32 %v948, %v949
  %v951 = vsel %vm947, %v904, 0.0
  %v952 = vadd.f32 %v950, %v951
  %v953 = vsel %vm947, %v907, 0.0
  %v954 = vadd.f32 %v952, %v953
  %v955 = vsel %vm947, %v910, 0.0
  %v956 = vadd.f32 %v954, %v955
  %v957 = vsel %vm947, %v913, 0.0
  %v958 = vadd.f32 %v956, %v957
  %v959 = vsel %vm947, %v916, 0.0
  %v960 = vadd.f32 %v958, %v959
  %v961 = vsel %vm947, %v919, 0.0
  %v962 = vadd.f32 %v960, %v961
  %v963 = vsel %vm947, %v922, 0.0
  %v964 = vadd.f32 %v962, %v963
  %v965 = vsel %vm947, %v925, 0.0
  %v966 = vadd.f32 %v964, %v965
  %v967 = vsel %vm947, %v928, 0.0
  %v968 = vadd.f32 %v966, %v967
  %v969 = vsel %vm947, %v931, 0.0
  %v970 = vadd.f32 %v968, %v969
  %v971 = vsel %vm947, %v934, 0.0
  %v972 = vadd.f32 %v970, %v971
  %v973 = vsel %vm947, %v937, 0.0
  %v974 = vadd.f32 %v972, %v973
  %v975 = vsel %vm947, %v940, 0.0
  %v976 = vadd.f32 %v974, %v975
  %v977 = vsel %vm947, %v943, 0.0
  %v978 = vadd.f32 %v976, %v977
  %v979 = vrot.slane %v978, 4
  %v980 = vadd.f32 %v978, %v979
  %v981 = vrot.slane %v980, 2
  %v982 = vadd.f32 %v980, %v981
  %v983 = vrot.slane %v982, 1
  %v984 = vadd.f32 %v982, %v983
  %v985 = vmul.f32 %v898, %v898
  %v986 = vmul.f32 %v901, %v901
  %v987 = vmul.f32 %v904, %v904
  %v988 = vmul.f32 %v907, %v907
  %v989 = vmul.f32 %v910, %v910
  %v990 = vmul.f32 %v913, %v913
  %v991 = vmul.f32 %v916, %v916
  %v992 = vmul.f32 %v919, %v919
  %v993 = vmul.f32 %v922, %v922
  %v994 = vmul.f32 %v925, %v925
  %v995 = vmul.f32 %v928, %v928
  %v996 = vmul.f32 %v931, %v931
  %v997 = vmul.f32 %v934, %v934
  %v998 = vmul.f32 %v937, %v937
  %v999 = vmul.f32 %v940, %v940
  %v1000 = vmul.f32 %v943, %v943
  %v1001 = vsel %vm947, %v985, 0.0
  %v1002 = vsel %vm947, %v986, 0.0
  %v1003 = vadd.f32 %v1001, %v1002
  %v1004 = vsel %vm947, %v987, 0.0
  %v1005 = vadd.f32 %v1003, %v1004
  %v1006 = vsel %vm947, %v988, 0.0
  %v1007 = vadd.f32 %v1005, %v1006
  %v1008 = vsel %vm947, %v989, 0.0
  %v1009 = vadd.f32 %v1007, %v1008
  %v1010 = vsel %vm947, %v990, 0.0
  %v1011 = vadd.f32 %v1009, %v1010
  %v1012 = vsel %vm947, %v991, 0.0
  %v1013 = vadd.f32 %v1011, %v1012
  %v1014 = vsel %vm947, %v992, 0.0
  %v1015 = vadd.f32 %v1013, %v1014
  %v1016 = vsel %vm947, %v993, 0.0
  %v1017 = vadd.f32 %v1015, %v1016
  %v1018 = vsel %vm947, %v994, 0.0
  %v1019 = vadd.f32 %v1017, %v1018
  %v1020 = vsel %vm947, %v995, 0.0
  %v1021 = vadd.f32 %v1019, %v1020
  %v1022 = vsel %vm947, %v996, 0.0
  %v1023 = vadd.f32 %v1021, %v1022
  %v1024 = vsel %vm947, %v997, 0.0
  %v1025 = vadd.f32 %v1023, %v1024
  %v1026 = vsel %vm947, %v998, 0.0
  %v1027 = vadd.f32 %v1025, %v1026
  %v1028 = vsel %vm947, %v999, 0.0
  %v1029 = vadd.f32 %v1027, %v1028
  %v1030 = vsel %vm947, %v1000, 0.0
  %v1031 = vadd.f32 %v1029, %v1030
  %v1032 = vrot.slane %v1031, 4
  %v1033 = vadd.f32 %v1031, %v1032
  %v1034 = vrot.slane %v1033, 2
  %v1035 = vadd.f32 %v1033, %v1034
  %v1036 = vrot.slane %v1035, 1
  %v1037 = vadd.f32 %v1035, %v1036
  %v1038 = vmul.f32 %v984, 0.0078125
  %v1039 = vmul.f32 %v1037, 0.0078125
  %v1040 = vmul.f32 %v1038, %v1038
  %v1041 = vsub.f32 %v1039, %v1040
  %v1042 = vsub.f32 %v898, %v1038
  %v1043 = vsub.f32 %v901, %v1038
  %v1044 = vsub.f32 %v904, %v1038
  %v1045 = vsub.f32 %v907, %v1038
  %v1046 = vsub.f32 %v910, %v1038
  %v1047 = vsub.f32 %v913, %v1038
  %v1048 = vsub.f32 %v916, %v1038
  %v1049 = vsub.f32 %v919, %v1038
  %v1050 = vsub.f32 %v922, %v1038
  %v1051 = vsub.f32 %v925, %v1038
  %v1052 = vsub.f32 %v928, %v1038
  %v1053 = vsub.f32 %v931, %v1038
  %v1054 = vsub.f32 %v934, %v1038
  %v1055 = vsub.f32 %v937, %v1038
  %v1056 = vsub.f32 %v940, %v1038
  %v1057 = vsub.f32 %v943, %v1038
  %v1058 = vadd.f32 %v1041, 1e-05
  %v1059 = vrsqrt.pop %v1058
  %v1060 = vmul.f32 %v1059, %v1058
  %v1061 = vmul.f32 %v1060, %v1059
  %v1062 = vmul.f32 0.5, %v1061
  %v1063 = vsub.f32 1.5, %v1062
  %v1064 = vmul.f32 %v1059, %v1063
  %vm1065 = vweird.f32 %v1058
  %vm1066 = vweird.f32 %v1059
  %vm1067 = vmor %vm1065, %vm1066
  %v1068 = vsel %vm1067, %v1059, %v1064
  %v1069 = vmul.f32 %v1042, %v1068
  %v1070 = vmul.f32 %v1043, %v1068
  %v1071 = vmul.f32 %v1044, %v1068
  %v1072 = vmul.f32 %v1045, %v1068
  %v1073 = vmul.f32 %v1046, %v1068
  %v1074 = vmul.f32 %v1047, %v1068
  %v1075 = vmul.f32 %v1048, %v1068
  %v1076 = vmul.f32 %v1049, %v1068
  %v1077 = vmul.f32 %v1050, %v1068
  %v1078 = vmul.f32 %v1051, %v1068
  %v1079 = vmul.f32 %v1052, %v1068
  %v1080 = vmul.f32 %v1053, %v1068
  %v1081 = vmul.f32 %v1054, %v1068
  %v1082 = vmul.f32 %v1055, %v1068
  %v1083 = vmul.f32 %v1056, %v1068
  %v1084 = vmul.f32 %v1057, %v1068
  %v1086 = vperm.slane %v945, 0
  %1087 = vrot.lane.b32.xlu0 %v1086, 8
  %v1088 = vpop.permute.xlu0 %1087
  %v1090 = vmul.f32 %v1069, %v1088
  %v1091 = vmul.f32 %v1070, %v1088
  %v1092 = vmul.f32 %v1071, %v1088
  %v1093 = vmul.f32 %v1072, %v1088
  %v1094 = vmul.f32 %v1073, %v1088
  %v1095 = vmul.f32 %v1074, %v1088
  %v1096 = vmul.f32 %v1075, %v1088
  %v1097 = vmul.f32 %v1076, %v1088
  %v1098 = vmul.f32 %v1077, %v1088
  %v1099 = vmul.f32 %v1078, %v1088
  %v1100 = vmul.f32 %v1079, %v1088
  %v1101 = vmul.f32 %v1080, %v1088
  %v1102 = vmul.f32 %v1081, %v1088
  %v1103 = vmul.f32 %v1082, %v1088
  %v1104 = vmul.f32 %v1083, %v1088
  %v1105 = vmul.f32 %v1084, %v1088
  %v1107 = vperm.slane %v946, 0
  %1108 = vrot.lane.b32.xlu0 %v1107, 8
  %v1109 = vpop.permute.xlu0 %1108
  %v1111 = vadd.f32 %v1090, %v1109
  %v1112 = vadd.f32 %v1091, %v1109
  %v1113 = vadd.f32 %v1092, %v1109
  %v1114 = vadd.f32 %v1093, %v1109
  %v1115 = vadd.f32 %v1094, %v1109
  %v1116 = vadd.f32 %v1095, %v1109
  %v1117 = vadd.f32 %v1096, %v1109
  %v1118 = vadd.f32 %v1097, %v1109
  %v1119 = vadd.f32 %v1098, %v1109
  %v1120 = vadd.f32 %v1099, %v1109
  %v1121 = vadd.f32 %v1100, %v1109
  %v1122 = vadd.f32 %v1101, %v1109
  %v1123 = vadd.f32 %v1102, %v1109
  %v1124 = vadd.f32 %v1103, %v1109
  %v1125 = vadd.f32 %v1104, %v1109
  %v1126 = vadd.f32 %v1105, %v1109
  %vm1127 = vcmp.gt.f32.partialorder %v1111, 0.0
  %vm1128 = vcmp.gt.f32.partialorder %v1112, 0.0
  %vm1129 = vcmp.gt.f32.partialorder %v1113, 0.0
  %vm1130 = vcmp.gt.f32.partialorder %v1114, 0.0
  %vm1131 = vcmp.gt.f32.partialorder %v1115, 0.0
  %vm1132 = vcmp.gt.f32.partialorder %v1116, 0.0
  %vm1133 = vcmp.gt.f32.partialorder %v1117, 0.0
  %vm1134 = vcmp.gt.f32.partialorder %v1118, 0.0
  %vm1135 = vcmp.gt.f32.partialorder %v1119, 0.0
  %vm1136 = vcmp.gt.f32.partialorder %v1120, 0.0
  %vm1137 = vcmp.gt.f32.partialorder %v1121, 0.0
  %vm1138 = vcmp.gt.f32.partialorder %v1122, 0.0
  %vm1139 = vcmp.gt.f32.partialorder %v1123, 0.0
  %vm1140 = vcmp.gt.f32.partialorder %v1124, 0.0
  %vm1141 = vcmp.gt.f32.partialorder %v1125, 0.0
  %vm1142 = vcmp.gt.f32.partialorder %v1126, 0.0
  %v1143 = vmin.f32 %v1111, 0.0
  %v1144 = vmin.f32 %v1112, 0.0
  %v1145 = vmin.f32 %v1113, 0.0
  %v1146 = vmin.f32 %v1114, 0.0
  %v1147 = vmin.f32 %v1115, 0.0
  %v1148 = vmin.f32 %v1116, 0.0
  %v1149 = vmin.f32 %v1117, 0.0
  %v1150 = vmin.f32 %v1118, 0.0
  %v1151 = vmin.f32 %v1119, 0.0
  %v1152 = vmin.f32 %v1120, 0.0
  %v1153 = vmin.f32 %v1121, 0.0
  %v1154 = vmin.f32 %v1122, 0.0
  %v1155 = vmin.f32 %v1123, 0.0
  %v1156 = vmin.f32 %v1124, 0.0
  %v1157 = vmin.f32 %v1125, 0.0
  %v1158 = vmin.f32 %v1126, 0.0
  %v1159 = vmul.f32 %v1143, 1.442695
  %v1160 = vpow.pop %v1159
  %v1161 = vmul.f32 %v1144, 1.442695
  %v1162 = vpow.pop %v1161
  %v1163 = vmul.f32 %v1145, 1.442695
  %v1164 = vpow.pop %v1163
  %v1165 = vmul.f32 %v1146, 1.442695
  %v1166 = vpow.pop %v1165
  %v1167 = vmul.f32 %v1147, 1.442695
  %v1168 = vpow.pop %v1167
  %v1169 = vmul.f32 %v1148, 1.442695
  %v1170 = vpow.pop %v1169
  %v1171 = vmul.f32 %v1149, 1.442695
  %v1172 = vpow.pop %v1171
  %v1173 = vmul.f32 %v1150, 1.442695
  %v1174 = vpow.pop %v1173
  %v1175 = vmul.f32 %v1151, 1.442695
  %v1176 = vpow.pop %v1175
  %v1177 = vmul.f32 %v1152, 1.442695
  %v1178 = vpow.pop %v1177
  %v1179 = vmul.f32 %v1153, 1.442695
  %v1180 = vpow.pop %v1179
  %v1181 = vmul.f32 %v1154, 1.442695
  %v1182 = vpow.pop %v1181
  %v1183 = vmul.f32 %v1155, 1.442695
  %v1184 = vpow.pop %v1183
  %v1185 = vmul.f32 %v1156, 1.442695
  %v1186 = vpow.pop %v1185
  %v1187 = vmul.f32 %v1157, 1.442695
  %v1188 = vpow.pop %v1187
  %v1189 = vmul.f32 %v1158, 1.442695
  %v1190 = vpow.pop %v1189
  %v1191 = vsub.f32 %v1160, 1.0
  %v1192 = vsub.f32 %v1162, 1.0
  %v1193 = vsub.f32 %v1164, 1.0
  %v1194 = vsub.f32 %v1166, 1.0
  %v1195 = vsub.f32 %v1168, 1.0
  %v1196 = vsub.f32 %v1170, 1.0
  %v1197 = vsub.f32 %v1172, 1.0
  %v1198 = vsub.f32 %v1174, 1.0
  %v1199 = vsub.f32 %v1176, 1.0
  %v1200 = vsub.f32 %v1178, 1.0
  %v1201 = vsub.f32 %v1180, 1.0
  %v1202 = vsub.f32 %v1182, 1.0
  %v1203 = vsub.f32 %v1184, 1.0
  %v1204 = vsub.f32 %v1186, 1.0
  %v1205 = vsub.f32 %v1188, 1.0
  %v1206 = vsub.f32 %v1190, 1.0
  %v1207 = vsel %vm1127, %v1111, %v1191
  %v1208 = vsel %vm1128, %v1112, %v1192
  %v1209 = vsel %vm1129, %v1113, %v1193
  %v1210 = vsel %vm1130, %v1114, %v1194
  %v1211 = vsel %vm1131, %v1115, %v1195
  %v1212 = vsel %vm1132, %v1116, %v1196
  %v1213 = vsel %vm1133, %v1117, %v1197
  %v1214 = vsel %vm1134, %v1118, %v1198
  %v1215 = vsel %vm1135, %v1119, %v1199
  %v1216 = vsel %vm1136, %v1120, %v1200
  %v1217 = vsel %vm1137, %v1121, %v1201
  %v1218 = vsel %vm1138, %v1122, %v1202
  %v1219 = vsel %vm1139, %v1123, %v1203
  %v1220 = vsel %vm1140, %v1124, %v1204
  %v1221 = vsel %vm1141, %v1125, %v1205
  %v1222 = vsel %vm1142, %v1126, %v1206
  %vm1223 = vcmask 64512
  %1224 = vst.msk [vmem:[#allocation2] sm:$0xff] %vm1223, 0.0
  %vm1225 = vcmask 58368
  %1226 = vst.msk [vmem:[#allocation2 + $0x8] sm:$0x3] %vm1225, 0.0
  %1227 = vst.msk [vmem:[#allocation2 + $0x10] sm:$0xff] %vm1223, 0.0
  %1228 = vst.msk [vmem:[#allocation2 + $0x18] sm:$0x3] %vm1225, 0.0
  %1229 = vst.msk [vmem:[#allocation2 + $0x20] sm:$0xff] %vm1223, 0.0
  %1230 = vst.msk [vmem:[#allocation2 + $0x28] sm:$0x3] %vm1225, 0.0
  %1231 = vst.msk [vmem:[#allocation2 + $0x30] sm:$0xff] %vm1223, 0.0
  %1232 = vst.msk [vmem:[#allocation2 + $0x38] sm:$0x3] %vm1225, 0.0
  %1233 = vst.msk [vmem:[#allocation2 + $0x40] sm:$0xff] %vm1223, 0.0
  %1234 = vst.msk [vmem:[#allocation2 + $0x48] sm:$0x3] %vm1225, 0.0
  %1235 = vst.msk [vmem:[#allocation2 + $0x50] sm:$0xff] %vm1223, 0.0
  %1236 = vst.msk [vmem:[#allocation2 + $0x58] sm:$0x3] %vm1225, 0.0
  %1237 = vst.msk [vmem:[#allocation2 + $0x60] sm:$0xff] %vm1223, 0.0
  %1238 = vst.msk [vmem:[#allocation2 + $0x68] sm:$0x3] %vm1225, 0.0
  %1239 = vst.msk [vmem:[#allocation2 + $0x70] sm:$0xff] %vm1223, 0.0
  %1240 = vst.msk [vmem:[#allocation2 + $0x78] sm:$0x3] %vm1225, 0.0
  %1241 = vst.msk [vmem:[#allocation2 + $0x80] sm:$0xff] %vm1223, 0.0
  %1242 = vst.msk [vmem:[#allocation2 + $0x88] sm:$0x3] %vm1225, 0.0
  %1243 = vst.msk [vmem:[#allocation2 + $0x90] sm:$0xff] %vm1223, 0.0
  %1244 = vst.msk [vmem:[#allocation2 + $0x98] sm:$0x3] %vm1225, 0.0
  %1245 = vst.msk [vmem:[#allocation2 + $0xa0] sm:$0xff] %vm1223, 0.0
  %1246 = vst.msk [vmem:[#allocation2 + $0xa8] sm:$0x3] %vm1225, 0.0
  %1247 = vst.msk [vmem:[#allocation2 + $0xb0] sm:$0xff] %vm1223, 0.0
  %1248 = vst.msk [vmem:[#allocation2 + $0xb8] sm:$0x3] %vm1225, 0.0
  %1249 = vst.msk [vmem:[#allocation2 + $0xc0] sm:$0xff] %vm1223, 0.0
  %1250 = vst.msk [vmem:[#allocation2 + $0xc8] sm:$0x3] %vm1225, 0.0
  %1251 = vst.msk [vmem:[#allocation2 + $0xd0] sm:$0xff] %vm1223, 0.0
  %1252 = vst.msk [vmem:[#allocation2 + $0xd8] sm:$0x3] %vm1225, 0.0
  %1253 = vst.msk [vmem:[#allocation2 + $0xe0] sm:$0xff] %vm1223, 0.0
  %1254 = vst.msk [vmem:[#allocation2 + $0xe8] sm:$0x3] %vm1225, 0.0
  %1255 = vst.msk [vmem:[#allocation2 + $0xf0] sm:$0xff] %vm1223, 0.0
  %1256 = vst.msk [vmem:[#allocation2 + $0xf8] sm:$0x3] %vm1225, 0.0
  %1257 = vst.msk [vmem:[#allocation2 + $0x100] sm:$0xff] %vm1223, 0.0
  %1258 = vst.msk [vmem:[#allocation2 + $0x108] sm:$0x3] %vm1225, 0.0
  %1259 = vst.msk [vmem:[#allocation2 + $0x110] sm:$0xff] %vm1223, 0.0
  %1260 = vst.msk [vmem:[#allocation2 + $0x118] sm:$0x3] %vm1225, 0.0
  %1261 = vst.msk [vmem:[#allocation2 + $0x120] sm:$0xff] %vm1223, 0.0
  %1262 = vst.msk [vmem:[#allocation2 + $0x128] sm:$0x3] %vm1225, 0.0
  %1263 = vst.msk [vmem:[#allocation2 + $0x130] sm:$0xff] %vm1223, 0.0
  %1264 = vst.msk [vmem:[#allocation2 + $0x138] sm:$0x3] %vm1225, 0.0
  %1281 = vrot.lane.b32.xlu0 %v1207, 120
  %v1282 = vpop.permute.xlu0 %1281
  %1283 = vrot.lane.b32.xlu0 %v1208, 120
  %v1284 = vpop.permute.xlu0 %1283
  %1285 = vrot.lane.b32.xlu0 %v1209, 120
  %v1286 = vpop.permute.xlu0 %1285
  %1287 = vrot.lane.b32.xlu0 %v1210, 120
  %v1288 = vpop.permute.xlu0 %1287
  %1289 = vrot.lane.b32.xlu0 %v1211, 120
  %v1290 = vpop.permute.xlu0 %1289
  %1291 = vrot.lane.b32.xlu0 %v1212, 120
  %v1292 = vpop.permute.xlu0 %1291
  %1293 = vrot.lane.b32.xlu0 %v1213, 120
  %v1294 = vpop.permute.xlu0 %1293
  %1295 = vrot.lane.b32.xlu0 %v1214, 120
  %v1296 = vpop.permute.xlu0 %1295
  %1297 = vrot.lane.b32.xlu0 %v1215, 120
  %v1298 = vpop.permute.xlu0 %1297
  %1299 = vrot.lane.b32.xlu0 %v1216, 120
  %v1300 = vpop.permute.xlu0 %1299
  %1301 = vrot.lane.b32.xlu0 %v1217, 120
  %v1302 = vpop.permute.xlu0 %1301
  %1303 = vrot.lane.b32.xlu0 %v1218, 120
  %v1304 = vpop.permute.xlu0 %1303
  %1305 = vrot.lane.b32.xlu0 %v1219, 120
  %v1306 = vpop.permute.xlu0 %1305
  %1307 = vrot.lane.b32.xlu0 %v1220, 120
  %v1308 = vpop.permute.xlu0 %1307
  %1309 = vrot.lane.b32.xlu0 %v1221, 120
  %v1310 = vpop.permute.xlu0 %1309
  %1311 = vrot.lane.b32.xlu0 %v1222, 120
  %v1312 = vpop.permute.xlu0 %1311
  %s1329 = scalar_lea.vmem [#allocation2], 16
  %1330 = vst.msk [vmem:[%s1329 + $0x1] sm:$0xff] %vm1223, %v1282
  %1331 = vst.msk [vmem:[%s1329 + $0x11] sm:$0xff] %vm1223, %v1284
  %1332 = vst.msk [vmem:[%s1329 + $0x21] sm:$0xff] %vm1223, %v1286
  %1333 = vst.msk [vmem:[%s1329 + $0x31] sm:$0xff] %vm1223, %v1288
  %1334 = vst.msk [vmem:[%s1329 + $0x41] sm:$0xff] %vm1223, %v1290
  %1335 = vst.msk [vmem:[%s1329 + $0x51] sm:$0xff] %vm1223, %v1292
  %1336 = vst.msk [vmem:[%s1329 + $0x61] sm:$0xff] %vm1223, %v1294
  %1337 = vst.msk [vmem:[%s1329 + $0x71] sm:$0xff] %vm1223, %v1296
  %1338 = vst.msk [vmem:[%s1329 + $0xa1] sm:$0xff] %vm1223, %v1298
  %1339 = vst.msk [vmem:[%s1329 + $0xb1] sm:$0xff] %vm1223, %v1300
  %1340 = vst.msk [vmem:[%s1329 + $0xc1] sm:$0xff] %vm1223, %v1302
  %1341 = vst.msk [vmem:[%s1329 + $0xd1] sm:$0xff] %vm1223, %v1304
  %1342 = vst.msk [vmem:[%s1329 + $0xe1] sm:$0xff] %vm1223, %v1306
  %1343 = vst.msk [vmem:[%s1329 + $0xf1] sm:$0xff] %vm1223, %v1308
  %1344 = vst.msk [vmem:[%s1329 + $0x101] sm:$0xff] %vm1223, %v1310
  %1345 = vst.msk [vmem:[%s1329 + $0x111] sm:$0xff] %vm1223, %v1312
  %v1346 = vld [vmem:[#allocation2] sm:$0xff]
  %v1347 = vld [vmem:[#allocation2 + $0x10] sm:$0xff]
  %v1348 = vld [vmem:[#allocation2 + $0x20] sm:$0xff]
  %v1349 = vld [vmem:[#allocation2 + $0x30] sm:$0xff]
  %v1350 = vld [vmem:[#allocation2 + $0x40] sm:$0xff]
  %v1351 = vld [vmem:[#allocation2 + $0x50] sm:$0xff]
  %v1352 = vld [vmem:[#allocation2 + $0x60] sm:$0xff]
  %v1353 = vld [vmem:[#allocation2 + $0x70] sm:$0xff]
  %v1354 = vld [vmem:[#allocation2 + $0xa0] sm:$0xff]
  %v1355 = vld [vmem:[#allocation2 + $0xb0] sm:$0xff]
  %v1356 = vld [vmem:[#allocation2 + $0xc0] sm:$0xff]
  %v1357 = vld [vmem:[#allocation2 + $0xd0] sm:$0xff]
  %v1358 = vld [vmem:[#allocation2 + $0xe0] sm:$0xff]
  %v1359 = vld [vmem:[#allocation2 + $0xf0] sm:$0xff]
  %v1360 = vld [vmem:[#allocation2 + $0x100] sm:$0xff]
  %v1361 = vld [vmem:[#allocation2 + $0x110] sm:$0xff]
  %v1362 = vld [vmem:[#allocation2 + $0x1] sm:$0xff]
  %v1363 = vld [vmem:[#allocation2 + $0x11] sm:$0xff]
  %v1364 = vld [vmem:[#allocation2 + $0x21] sm:$0xff]
  %v1365 = vld [vmem:[#allocation2 + $0x31] sm:$0xff]
  %v1366 = vld [vmem:[#allocation2 + $0x41] sm:$0xff]
  %v1367 = vld [vmem:[#allocation2 + $0x51] sm:$0xff]
  %v1368 = vld [vmem:[#allocation2 + $0x61] sm:$0xff]
  %v1369 = vld [vmem:[#allocation2 + $0x71] sm:$0xff]
  %v1370 = vld [vmem:[#allocation2 + $0xa1] sm:$0xff]
  %v1371 = vld [vmem:[#allocation2 + $0xb1] sm:$0xff]
  %v1372 = vld [vmem:[#allocation2 + $0xc1] sm:$0xff]
  %v1373 = vld [vmem:[#allocation2 + $0xd1] sm:$0xff]
  %v1374 = vld [vmem:[#allocation2 + $0xe1] sm:$0xff]
  %v1375 = vld [vmem:[#allocation2 + $0xf1] sm:$0xff]
  %v1376 = vld [vmem:[#allocation2 + $0x101] sm:$0xff]
  %v1377 = vld [vmem:[#allocation2 + $0x111] sm:$0xff]
  %v1378 = vld [vmem:[#allocation2 + $0x2] sm:$0xff]
  %v1379 = vld [vmem:[#allocation2 + $0x12] sm:$0xff]
  %v1380 = vld [vmem:[#allocation2 + $0x22] sm:$0xff]
  %v1381 = vld [vmem:[#allocation2 + $0x32] sm:$0xff]
  %v1382 = vld [vmem:[#allocation2 + $0x42] sm:$0xff]
  %v1383 = vld [vmem:[#allocation2 + $0x52] sm:$0xff]
  %v1384 = vld [vmem:[#allocation2 + $0x62] sm:$0xff]
  %v1385 = vld [vmem:[#allocation2 + $0x72] sm:$0xff]
  %v1386 = vld [vmem:[#allocation2 + $0xa2] sm:$0xff]
  %v1387 = vld [vmem:[#allocation2 + $0xb2] sm:$0xff]
  %v1388 = vld [vmem:[#allocation2 + $0xc2] sm:$0xff]
  %v1389 = vld [vmem:[#allocation2 + $0xd2] sm:$0xff]
  %v1390 = vld [vmem:[#allocation2 + $0xe2] sm:$0xff]
  %v1391 = vld [vmem:[#allocation2 + $0xf2] sm:$0xff]
  %v1392 = vld [vmem:[#allocation2 + $0x102] sm:$0xff]
  %v1393 = vld [vmem:[#allocation2 + $0x112] sm:$0xff]
  %v1394 = vld [vmem:[%s1329] sm:$0xff]
  %v1395 = vld [vmem:[%s1329 + $0x10] sm:$0xff]
  %v1396 = vld [vmem:[%s1329 + $0x20] sm:$0xff]
  %v1397 = vld [vmem:[%s1329 + $0x30] sm:$0xff]
  %v1398 = vld [vmem:[%s1329 + $0x40] sm:$0xff]
  %v1399 = vld [vmem:[%s1329 + $0x50] sm:$0xff]
  %v1400 = vld [vmem:[%s1329 + $0x60] sm:$0xff]
  %v1401 = vld [vmem:[%s1329 + $0x70] sm:$0xff]
  %v1402 = vld [vmem:[%s1329 + $0xa0] sm:$0xff]
  %v1403 = vld [vmem:[%s1329 + $0xb0] sm:$0xff]
  %v1404 = vld [vmem:[%s1329 + $0xc0] sm:$0xff]
  %v1405 = vld [vmem:[%s1329 + $0xd0] sm:$0xff]
  %v1406 = vld [vmem:[%s1329 + $0xe0] sm:$0xff]
  %v1407 = vld [vmem:[%s1329 + $0xf0] sm:$0xff]
  %v1408 = vld [vmem:[%s1329 + $0x100] sm:$0xff]
  %v1409 = vld [vmem:[%s1329 + $0x110] sm:$0xff]
  %v1410 = vld [vmem:[%s1329 + $0x1] sm:$0xff]
  %v1411 = vld [vmem:[%s1329 + $0x11] sm:$0xff]
  %v1412 = vld [vmem:[%s1329 + $0x21] sm:$0xff]
  %v1413 = vld [vmem:[%s1329 + $0x31] sm:$0xff]
  %v1414 = vld [vmem:[%s1329 + $0x41] sm:$0xff]
  %v1415 = vld [vmem:[%s1329 + $0x51] sm:$0xff]
  %v1416 = vld [vmem:[%s1329 + $0x61] sm:$0xff]
  %v1417 = vld [vmem:[%s1329 + $0x71] sm:$0xff]
  %v1418 = vld [vmem:[%s1329 + $0xa1] sm:$0xff]
  %v1419 = vld [vmem:[%s1329 + $0xb1] sm:$0xff]
  %v1420 = vld [vmem:[%s1329 + $0xc1] sm:$0xff]
  %v1421 = vld [vmem:[%s1329 + $0xd1] sm:$0xff]
  %v1422 = vld [vmem:[%s1329 + $0xe1] sm:$0xff]
  %v1423 = vld [vmem:[%s1329 + $0xf1] sm:$0xff]
  %v1424 = vld [vmem:[%s1329 + $0x101] sm:$0xff]
  %v1425 = vld [vmem:[%s1329 + $0x111] sm:$0xff]
  %v1426 = vld [vmem:[%s1329 + $0x2] sm:$0xff]
  %v1427 = vld [vmem:[%s1329 + $0x12] sm:$0xff]
  %v1428 = vld [vmem:[%s1329 + $0x22] sm:$0xff]
  %v1429 = vld [vmem:[%s1329 + $0x32] sm:$0xff]
  %v1430 = vld [vmem:[%s1329 + $0x42] sm:$0xff]
  %v1431 = vld [vmem:[%s1329 + $0x52] sm:$0xff]
  %v1432 = vld [vmem:[%s1329 + $0x62] sm:$0xff]
  %v1433 = vld [vmem:[%s1329 + $0x72] sm:$0xff]
  %v1434 = vld [vmem:[%s1329 + $0xa2] sm:$0xff]
  %v1435 = vld [vmem:[%s1329 + $0xb2] sm:$0xff]
  %v1436 = vld [vmem:[%s1329 + $0xc2] sm:$0xff]
  %v1437 = vld [vmem:[%s1329 + $0xd2] sm:$0xff]
  %v1438 = vld [vmem:[%s1329 + $0xe2] sm:$0xff]
  %v1439 = vld [vmem:[%s1329 + $0xf2] sm:$0xff]
  %v1440 = vld [vmem:[%s1329 + $0x102] sm:$0xff]
  %v1441 = vld [vmem:[%s1329 + $0x112] sm:$0xff]
  %s1442 = scalar_lea.vmem [#allocation2], 32
  %v1443 = vld [vmem:[%s1442] sm:$0xff]
  %v1444 = vld [vmem:[%s1442 + $0x10] sm:$0xff]
  %v1445 = vld [vmem:[%s1442 + $0x20] sm:$0xff]
  %v1446 = vld [vmem:[%s1442 + $0x30] sm:$0xff]
  %v1447 = vld [vmem:[%s1442 + $0x40] sm:$0xff]
  %v1448 = vld [vmem:[%s1442 + $0x50] sm:$0xff]
  %v1449 = vld [vmem:[%s1442 + $0x60] sm:$0xff]
  %v1450 = vld [vmem:[%s1442 + $0x70] sm:$0xff]
  %v1451 = vld [vmem:[%s1442 + $0xa0] sm:$0xff]
  %v1452 = vld [vmem:[%s1442 + $0xb0] sm:$0xff]
  %v1453 = vld [vmem:[%s1442 + $0xc0] sm:$0xff]
  %v1454 = vld [vmem:[%s1442 + $0xd0] sm:$0xff]
  %v1455 = vld [vmem:[%s1442 + $0xe0] sm:$0xff]
  %v1456 = vld [vmem:[%s1442 + $0xf0] sm:$0xff]
  %v1457 = vld [vmem:[%s1442 + $0x100] sm:$0xff]
  %v1458 = vld [vmem:[%s1442 + $0x110] sm:$0xff]
  %v1459 = vld [vmem:[%s1442 + $0x1] sm:$0xff]
  %v1460 = vld [vmem:[%s1442 + $0x11] sm:$0xff]
  %v1461 = vld [vmem:[%s1442 + $0x21] sm:$0xff]
  %v1462 = vld [vmem:[%s1442 + $0x31] sm:$0xff]
  %v1463 = vld [vmem:[%s1442 + $0x41] sm:$0xff]
  %v1464 = vld [vmem:[%s1442 + $0x51] sm:$0xff]
  %v1465 = vld [vmem:[%s1442 + $0x61] sm:$0xff]
  %v1466 = vld [vmem:[%s1442 + $0x71] sm:$0xff]
  %v1467 = vld [vmem:[%s1442 + $0xa1] sm:$0xff]
  %v1468 = vld [vmem:[%s1442 + $0xb1] sm:$0xff]
  %v1469 = vld [vmem:[%s1442 + $0xc1] sm:$0xff]
  %v1470 = vld [vmem:[%s1442 + $0xd1] sm:$0xff]
  %v1471 = vld [vmem:[%s1442 + $0xe1] sm:$0xff]
  %v1472 = vld [vmem:[%s1442 + $0xf1] sm:$0xff]
  %v1473 = vld [vmem:[%s1442 + $0x101] sm:$0xff]
  %v1474 = vld [vmem:[%s1442 + $0x111] sm:$0xff]
  %v1475 = vld [vmem:[%s1442 + $0x2] sm:$0xff]
  %v1476 = vld [vmem:[%s1442 + $0x12] sm:$0xff]
  %v1477 = vld [vmem:[%s1442 + $0x22] sm:$0xff]
  %v1478 = vld [vmem:[%s1442 + $0x32] sm:$0xff]
  %v1479 = vld [vmem:[%s1442 + $0x42] sm:$0xff]
  %v1480 = vld [vmem:[%s1442 + $0x52] sm:$0xff]
  %v1481 = vld [vmem:[%s1442 + $0x62] sm:$0xff]
  %v1482 = vld [vmem:[%s1442 + $0x72] sm:$0xff]
  %v1483 = vld [vmem:[%s1442 + $0xa2] sm:$0xff]
  %v1484 = vld [vmem:[%s1442 + $0xb2] sm:$0xff]
  %v1485 = vld [vmem:[%s1442 + $0xc2] sm:$0xff]
  %v1486 = vld [vmem:[%s1442 + $0xd2] sm:$0xff]
  %v1487 = vld [vmem:[%s1442 + $0xe2] sm:$0xff]
  %v1488 = vld [vmem:[%s1442 + $0xf2] sm:$0xff]
  %v1489 = vld [vmem:[%s1442 + $0x102] sm:$0xff]
  %v1490 = vld [vmem:[%s1442 + $0x112] sm:$0xff]
  %1507 = vrot.lane.b32.xlu0 %v1362, 8
  %v1508 = vpop.permute.xlu0 %1507
  %1509 = vrot.lane.b32.xlu0 %v1363, 8
  %v1510 = vpop.permute.xlu0 %1509
  %1511 = vrot.lane.b32.xlu0 %v1364, 8
  %v1512 = vpop.permute.xlu0 %1511
  %1513 = vrot.lane.b32.xlu0 %v1365, 8
  %v1514 = vpop.permute.xlu0 %1513
  %1515 = vrot.lane.b32.xlu0 %v1366, 8
  %v1516 = vpop.permute.xlu0 %1515
  %1517 = vrot.lane.b32.xlu0 %v1367, 8
  %v1518 = vpop.permute.xlu0 %1517
  %1519 = vrot.lane.b32.xlu0 %v1368, 8
  %v1520 = vpop.permute.xlu0 %1519
  %1521 = vrot.lane.b32.xlu0 %v1369, 8
  %v1522 = vpop.permute.xlu0 %1521
  %1523 = vrot.lane.b32.xlu0 %v1370, 8
  %v1524 = vpop.permute.xlu0 %1523
  %1525 = vrot.lane.b32.xlu0 %v1371, 8
  %v1526 = vpop.permute.xlu0 %1525
  %1527 = vrot.lane.b32.xlu0 %v1372, 8
  %v1528 = vpop.permute.xlu0 %1527
  %1529 = vrot.lane.b32.xlu0 %v1373, 8
  %v1530 = vpop.permute.xlu0 %1529
  %1531 = vrot.lane.b32.xlu0 %v1374, 8
  %v1532 = vpop.permute.xlu0 %1531
  %1533 = vrot.lane.b32.xlu0 %v1375, 8
  %v1534 = vpop.permute.xlu0 %1533
  %1535 = vrot.lane.b32.xlu0 %v1376, 8
  %v1536 = vpop.permute.xlu0 %1535
  %1537 = vrot.lane.b32.xlu0 %v1377, 8
  %v1538 = vpop.permute.xlu0 %1537
  %1571 = vrot.lane.b32.xlu0 %v1378, 16
  %v1572 = vpop.permute.xlu0 %1571
  %1573 = vrot.lane.b32.xlu0 %v1379, 16
  %v1574 = vpop.permute.xlu0 %1573
  %1575 = vrot.lane.b32.xlu0 %v1380, 16
  %v1576 = vpop.permute.xlu0 %1575
  %1577 = vrot.lane.b32.xlu0 %v1381, 16
  %v1578 = vpop.permute.xlu0 %1577
  %1579 = vrot.lane.b32.xlu0 %v1382, 16
  %v1580 = vpop.permute.xlu0 %1579
  %1581 = vrot.lane.b32.xlu0 %v1383, 16
  %v1582 = vpop.permute.xlu0 %1581
  %1583 = vrot.lane.b32.xlu0 %v1384, 16
  %v1584 = vpop.permute.xlu0 %1583
  %1585 = vrot.lane.b32.xlu0 %v1385, 16
  %v1586 = vpop.permute.xlu0 %1585
  %1587 = vrot.lane.b32.xlu0 %v1386, 16
  %v1588 = vpop.permute.xlu0 %1587
  %1589 = vrot.lane.b32.xlu0 %v1387, 16
  %v1590 = vpop.permute.xlu0 %1589
  %1591 = vrot.lane.b32.xlu0 %v1388, 16
  %v1592 = vpop.permute.xlu0 %1591
  %1593 = vrot.lane.b32.xlu0 %v1389, 16
  %v1594 = vpop.permute.xlu0 %1593
  %1595 = vrot.lane.b32.xlu0 %v1390, 16
  %v1596 = vpop.permute.xlu0 %1595
  %1597 = vrot.lane.b32.xlu0 %v1391, 16
  %v1598 = vpop.permute.xlu0 %1597
  %1599 = vrot.lane.b32.xlu0 %v1392, 16
  %v1600 = vpop.permute.xlu0 %1599
  %1601 = vrot.lane.b32.xlu0 %v1393, 16
  %v1602 = vpop.permute.xlu0 %1601
  %1635 = vrot.lane.b32.xlu0 %v1394, 24
  %v1636 = vpop.permute.xlu0 %1635
  %1637 = vrot.lane.b32.xlu0 %v1395, 24
  %v1638 = vpop.permute.xlu0 %1637
  %1639 = vrot.lane.b32.xlu0 %v1396, 24
  %v1640 = vpop.permute.xlu0 %1639
  %1641 = vrot.lane.b32.xlu0 %v1397, 24
  %v1642 = vpop.permute.xlu0 %1641
  %1643 = vrot.lane.b32.xlu0 %v1398, 24
  %v1644 = vpop.permute.xlu0 %1643
  %1645 = vrot.lane.b32.xlu0 %v1399, 24
  %v1646 = vpop.permute.xlu0 %1645
  %1647 = vrot.lane.b32.xlu0 %v1400, 24
  %v1648 = vpop.permute.xlu0 %1647
  %1649 = vrot.lane.b32.xlu0 %v1401, 24
  %v1650 = vpop.permute.xlu0 %1649
  %1651 = vrot.lane.b32.xlu0 %v1402, 24
  %v1652 = vpop.permute.xlu0 %1651
  %1653 = vrot.lane.b32.xlu0 %v1403, 24
  %v1654 = vpop.permute.xlu0 %1653
  %1655 = vrot.lane.b32.xlu0 %v1404, 24
  %v1656 = vpop.permute.xlu0 %1655
  %1657 = vrot.lane.b32.xlu0 %v1405, 24
  %v1658 = vpop.permute.xlu0 %1657
  %1659 = vrot.lane.b32.xlu0 %v1406, 24
  %v1660 = vpop.permute.xlu0 %1659
  %1661 = vrot.lane.b32.xlu0 %v1407, 24
  %v1662 = vpop.permute.xlu0 %1661
  %1663 = vrot.lane.b32.xlu0 %v1408, 24
  %v1664 = vpop.permute.xlu0 %1663
  %1665 = vrot.lane.b32.xlu0 %v1409, 24
  %v1666 = vpop.permute.xlu0 %1665
  %1699 = vrot.lane.b32.xlu0 %v1410, 32
  %v1700 = vpop.permute.xlu0 %1699
  %1701 = vrot.lane.b32.xlu0 %v1411, 32
  %v1702 = vpop.permute.xlu0 %1701
  %1703 = vrot.lane.b32.xlu0 %v1412, 32
  %v1704 = vpop.permute.xlu0 %1703
  %1705 = vrot.lane.b32.xlu0 %v1413, 32
  %v1706 = vpop.permute.xlu0 %1705
  %1707 = vrot.lane.b32.xlu0 %v1414, 32
  %v1708 = vpop.permute.xlu0 %1707
  %1709 = vrot.lane.b32.xlu0 %v1415, 32
  %v1710 = vpop.permute.xlu0 %1709
  %1711 = vrot.lane.b32.xlu0 %v1416, 32
  %v1712 = vpop.permute.xlu0 %1711
  %1713 = vrot.lane.b32.xlu0 %v1417, 32
  %v1714 = vpop.permute.xlu0 %1713
  %1715 = vrot.lane.b32.xlu0 %v1418, 32
  %v1716 = vpop.permute.xlu0 %1715
  %1717 = vrot.lane.b32.xlu0 %v1419, 32
  %v1718 = vpop.permute.xlu0 %1717
  %1719 = vrot.lane.b32.xlu0 %v1420, 32
  %v1720 = vpop.permute.xlu0 %1719
  %1721 = vrot.lane.b32.xlu0 %v1421, 32
  %v1722 = vpop.permute.xlu0 %1721
  %1723 = vrot.lane.b32.xlu0 %v1422, 32
  %v1724 = vpop.permute.xlu0 %1723
  %1725 = vrot.lane.b32.xlu0 %v1423, 32
  %v1726 = vpop.permute.xlu0 %1725
  %1727 = vrot.lane.b32.xlu0 %v1424, 32
  %v1728 = vpop.permute.xlu0 %1727
  %1729 = vrot.lane.b32.xlu0 %v1425, 32
  %v1730 = vpop.permute.xlu0 %1729
  %1763 = vrot.lane.b32.xlu0 %v1426, 40
  %v1764 = vpop.permute.xlu0 %1763
  %1765 = vrot.lane.b32.xlu0 %v1427, 40
  %v1766 = vpop.permute.xlu0 %1765
  %1767 = vrot.lane.b32.xlu0 %v1428, 40
  %v1768 = vpop.permute.xlu0 %1767
  %1769 = vrot.lane.b32.xlu0 %v1429, 40
  %v1770 = vpop.permute.xlu0 %1769
  %1771 = vrot.lane.b32.xlu0 %v1430, 40
  %v1772 = vpop.permute.xlu0 %1771
  %1773 = vrot.lane.b32.xlu0 %v1431, 40
  %v1774 = vpop.permute.xlu0 %1773
  %1775 = vrot.lane.b32.xlu0 %v1432, 40
  %v1776 = vpop.permute.xlu0 %1775
  %1777 = vrot.lane.b32.xlu0 %v1433, 40
  %v1778 = vpop.permute.xlu0 %1777
  %1779 = vrot.lane.b32.xlu0 %v1434, 40
  %v1780 = vpop.permute.xlu0 %1779
  %1781 = vrot.lane.b32.xlu0 %v1435, 40
  %v1782 = vpop.permute.xlu0 %1781
  %1783 = vrot.lane.b32.xlu0 %v1436, 40
  %v1784 = vpop.permute.xlu0 %1783
  %1785 = vrot.lane.b32.xlu0 %v1437, 40
  %v1786 = vpop.permute.xlu0 %1785
  %1787 = vrot.lane.b32.xlu0 %v1438, 40
  %v1788 = vpop.permute.xlu0 %1787
  %1789 = vrot.lane.b32.xlu0 %v1439, 40
  %v1790 = vpop.permute.xlu0 %1789
  %1791 = vrot.lane.b32.xlu0 %v1440, 40
  %v1792 = vpop.permute.xlu0 %1791
  %1793 = vrot.lane.b32.xlu0 %v1441, 40
  %v1794 = vpop.permute.xlu0 %1793
  %1827 = vrot.lane.b32.xlu0 %v1443, 48
  %v1828 = vpop.permute.xlu0 %1827
  %1829 = vrot.lane.b32.xlu0 %v1444, 48
  %v1830 = vpop.permute.xlu0 %1829
  %1831 = vrot.lane.b32.xlu0 %v1445, 48
  %v1832 = vpop.permute.xlu0 %1831
  %1833 = vrot.lane.b32.xlu0 %v1446, 48
  %v1834 = vpop.permute.xlu0 %1833
  %1835 = vrot.lane.b32.xlu0 %v1447, 48
  %v1836 = vpop.permute.xlu0 %1835
  %1837 = vrot.lane.b32.xlu0 %v1448, 48
  %v1838 = vpop.permute.xlu0 %1837
  %1839 = vrot.lane.b32.xlu0 %v1449, 48
  %v1840 = vpop.permute.xlu0 %1839
  %1841 = vrot.lane.b32.xlu0 %v1450, 48
  %v1842 = vpop.permute.xlu0 %1841
  %1843 = vrot.lane.b32.xlu0 %v1451, 48
  %v1844 = vpop.permute.xlu0 %1843
  %1845 = vrot.lane.b32.xlu0 %v1452, 48
  %v1846 = vpop.permute.xlu0 %1845
  %1847 = vrot.lane.b32.xlu0 %v1453, 48
  %v1848 = vpop.permute.xlu0 %1847
  %1849 = vrot.lane.b32.xlu0 %v1454, 48
  %v1850 = vpop.permute.xlu0 %1849
  %1851 = vrot.lane.b32.xlu0 %v1455, 48
  %v1852 = vpop.permute.xlu0 %1851
  %1853 = vrot.lane.b32.xlu0 %v1456, 48
  %v1854 = vpop.permute.xlu0 %1853
  %1855 = vrot.lane.b32.xlu0 %v1457, 48
  %v1856 = vpop.permute.xlu0 %1855
  %1857 = vrot.lane.b32.xlu0 %v1458, 48
  %v1858 = vpop.permute.xlu0 %1857
  %1891 = vrot.lane.b32.xlu0 %v1459, 56
  %v1892 = vpop.permute.xlu0 %1891
  %1893 = vrot.lane.b32.xlu0 %v1460, 56
  %v1894 = vpop.permute.xlu0 %1893
  %1895 = vrot.lane.b32.xlu0 %v1461, 56
  %v1896 = vpop.permute.xlu0 %1895
  %1897 = vrot.lane.b32.xlu0 %v1462, 56
  %v1898 = vpop.permute.xlu0 %1897
  %1899 = vrot.lane.b32.xlu0 %v1463, 56
  %v1900 = vpop.permute.xlu0 %1899
  %1901 = vrot.lane.b32.xlu0 %v1464, 56
  %v1902 = vpop.permute.xlu0 %1901
  %1903 = vrot.lane.b32.xlu0 %v1465, 56
  %v1904 = vpop.permute.xlu0 %1903
  %1905 = vrot.lane.b32.xlu0 %v1466, 56
  %v1906 = vpop.permute.xlu0 %1905
  %1907 = vrot.lane.b32.xlu0 %v1467, 56
  %v1908 = vpop.permute.xlu0 %1907
  %1909 = vrot.lane.b32.xlu0 %v1468, 56
  %v1910 = vpop.permute.xlu0 %1909
  %1911 = vrot.lane.b32.xlu0 %v1469, 56
  %v1912 = vpop.permute.xlu0 %1911
  %1913 = vrot.lane.b32.xlu0 %v1470, 56
  %v1914 = vpop.permute.xlu0 %1913
  %1915 = vrot.lane.b32.xlu0 %v1471, 56
  %v1916 = vpop.permute.xlu0 %1915
  %1917 = vrot.lane.b32.xlu0 %v1472, 56
  %v1918 = vpop.permute.xlu0 %1917
  %1919 = vrot.lane.b32.xlu0 %v1473, 56
  %v1920 = vpop.permute.xlu0 %1919
  %1921 = vrot.lane.b32.xlu0 %v1474, 56
  %v1922 = vpop.permute.xlu0 %1921
  %1955 = vrot.lane.b32.xlu0 %v1475, 64
  %v1956 = vpop.permute.xlu0 %1955
  %1957 = vrot.lane.b32.xlu0 %v1476, 64
  %v1958 = vpop.permute.xlu0 %1957
  %1959 = vrot.lane.b32.xlu0 %v1477, 64
  %v1960 = vpop.permute.xlu0 %1959
  %1961 = vrot.lane.b32.xlu0 %v1478, 64
  %v1962 = vpop.permute.xlu0 %1961
  %1963 = vrot.lane.b32.xlu0 %v1479, 64
  %v1964 = vpop.permute.xlu0 %1963
  %1965 = vrot.lane.b32.xlu0 %v1480, 64
  %v1966 = vpop.permute.xlu0 %1965
  %1967 = vrot.lane.b32.xlu0 %v1481, 64
  %v1968 = vpop.permute.xlu0 %1967
  %1969 = vrot.lane.b32.xlu0 %v1482, 64
  %v1970 = vpop.permute.xlu0 %1969
  %1971 = vrot.lane.b32.xlu0 %v1483, 64
  %v1972 = vpop.permute.xlu0 %1971
  %1973 = vrot.lane.b32.xlu0 %v1484, 64
  %v1974 = vpop.permute.xlu0 %1973
  %1975 = vrot.lane.b32.xlu0 %v1485, 64
  %v1976 = vpop.permute.xlu0 %1975
  %1977 = vrot.lane.b32.xlu0 %v1486, 64
  %v1978 = vpop.permute.xlu0 %1977
  %1979 = vrot.lane.b32.xlu0 %v1487, 64
  %v1980 = vpop.permute.xlu0 %1979
  %1981 = vrot.lane.b32.xlu0 %v1488, 64
  %v1982 = vpop.permute.xlu0 %1981
  %1983 = vrot.lane.b32.xlu0 %v1489, 64
  %v1984 = vpop.permute.xlu0 %1983
  %1985 = vrot.lane.b32.xlu0 %v1490, 64
  %v1986 = vpop.permute.xlu0 %1985
  %v2003 = vsel %vm1223, %v1346, %v1508
  %v2004 = vsel %vm1223, %v1347, %v1510
  %v2005 = vsel %vm1223, %v1348, %v1512
  %v2006 = vsel %vm1223, %v1349, %v1514
  %v2007 = vsel %vm1223, %v1350, %v1516
  %v2008 = vsel %vm1223, %v1351, %v1518
  %v2009 = vsel %vm1223, %v1352, %v1520
  %v2010 = vsel %vm1223, %v1353, %v1522
  %v2011 = vsel %vm1223, %v1354, %v1524
  %v2012 = vsel %vm1223, %v1355, %v1526
  %v2013 = vsel %vm1223, %v1356, %v1528
  %v2014 = vsel %vm1223, %v1357, %v1530
  %v2015 = vsel %vm1223, %v1358, %v1532
  %v2016 = vsel %vm1223, %v1359, %v1534
  %v2017 = vsel %vm1223, %v1360, %v1536
  %v2018 = vsel %vm1223, %v1361, %v1538
  %v2019 = vsel %vm626, %v2003, %v1572
  %v2020 = vsel %vm626, %v2004, %v1574
  %v2021 = vsel %vm626, %v2005, %v1576
  %v2022 = vsel %vm626, %v2006, %v1578
  %v2023 = vsel %vm626, %v2007, %v1580
  %v2024 = vsel %vm626, %v2008, %v1582
  %v2025 = vsel %vm626, %v2009, %v1584
  %v2026 = vsel %vm626, %v2010, %v1586
  %v2027 = vsel %vm626, %v2011, %v1588
  %v2028 = vsel %vm626, %v2012, %v1590
  %v2029 = vsel %vm626, %v2013, %v1592
  %v2030 = vsel %vm626, %v2014, %v1594
  %v2031 = vsel %vm626, %v2015, %v1596
  %v2032 = vsel %vm626, %v2016, %v1598
  %v2033 = vsel %vm626, %v2017, %v1600
  %v2034 = vsel %vm626, %v2018, %v1602
  %vm2035 = vcmask 195584
  %v2036 = vsel %vm2035, %v2019, %v1636
  %v2037 = vsel %vm2035, %v2020, %v1638
  %v2038 = vsel %vm2035, %v2021, %v1640
  %v2039 = vsel %vm2035, %v2022, %v1642
  %v2040 = vsel %vm2035, %v2023, %v1644
  %v2041 = vsel %vm2035, %v2024, %v1646
  %v2042 = vsel %vm2035, %v2025, %v1648
  %v2043 = vsel %vm2035, %v2026, %v1650
  %v2044 = vsel %vm2035, %v2027, %v1652
  %v2045 = vsel %vm2035, %v2028, %v1654
  %v2046 = vsel %vm2035, %v2029, %v1656
  %v2047 = vsel %vm2035, %v2030, %v1658
  %v2048 = vsel %vm2035, %v2031, %v1660
  %v2049 = vsel %vm2035, %v2032, %v1662
  %v2050 = vsel %vm2035, %v2033, %v1664
  %v2051 = vsel %vm2035, %v2034, %v1666
  %v2052 = vsel %vm643, %v2036, %v1700
  %v2053 = vsel %vm643, %v2037, %v1702
  %v2054 = vsel %vm643, %v2038, %v1704
  %v2055 = vsel %vm643, %v2039, %v1706
  %v2056 = vsel %vm643, %v2040, %v1708
  %v2057 = vsel %vm643, %v2041, %v1710
  %v2058 = vsel %vm643, %v2042, %v1712
  %v2059 = vsel %vm643, %v2043, %v1714
  %v2060 = vsel %vm643, %v2044, %v1716
  %v2061 = vsel %vm643, %v2045, %v1718
  %v2062 = vsel %vm643, %v2046, %v1720
  %v2063 = vsel %vm643, %v2047, %v1722
  %v2064 = vsel %vm643, %v2048, %v1724
  %v2065 = vsel %vm643, %v2049, %v1726
  %v2066 = vsel %vm643, %v2050, %v1728
  %v2067 = vsel %vm643, %v2051, %v1730
  %vm2068 = vcmask 326656
  %v2069 = vsel %vm2068, %v2052, %v1764
  %v2070 = vsel %vm2068, %v2053, %v1766
  %v2071 = vsel %vm2068, %v2054, %v1768
  %v2072 = vsel %vm2068, %v2055, %v1770
  %v2073 = vsel %vm2068, %v2056, %v1772
  %v2074 = vsel %vm2068, %v2057, %v1774
  %v2075 = vsel %vm2068, %v2058, %v1776
  %v2076 = vsel %vm2068, %v2059, %v1778
  %v2077 = vsel %vm2068, %v2060, %v1780
  %v2078 = vsel %vm2068, %v2061, %v1782
  %v2079 = vsel %vm2068, %v2062, %v1784
  %v2080 = vsel %vm2068, %v2063, %v1786
  %v2081 = vsel %vm2068, %v2064, %v1788
  %v2082 = vsel %vm2068, %v2065, %v1790
  %v2083 = vsel %vm2068, %v2066, %v1792
  %v2084 = vsel %vm2068, %v2067, %v1794
  %v2085 = vsel %vm660, %v2069, %v1828
  %v2086 = vsel %vm660, %v2070, %v1830
  %v2087 = vsel %vm660, %v2071, %v1832
  %v2088 = vsel %vm660, %v2072, %v1834
  %v2089 = vsel %vm660, %v2073, %v1836
  %v2090 = vsel %vm660, %v2074, %v1838
  %v2091 = vsel %vm660, %v2075, %v1840
  %v2092 = vsel %vm660, %v2076, %v1842
  %v2093 = vsel %vm660, %v2077, %v1844
  %v2094 = vsel %vm660, %v2078, %v1846
  %v2095 = vsel %vm660, %v2079, %v1848
  %v2096 = vsel %vm660, %v2080, %v1850
  %v2097 = vsel %vm660, %v2081, %v1852
  %v2098 = vsel %vm660, %v2082, %v1854
  %v2099 = vsel %vm660, %v2083, %v1856
  %v2100 = vsel %vm660, %v2084, %v1858
  %vm2101 = vcmask 457728
  %v2102 = vsel %vm2101, %v2085, %v1892
  %v2103 = vsel %vm2101, %v2086, %v1894
  %v2104 = vsel %vm2101, %v2087, %v1896
  %v2105 = vsel %vm2101, %v2088, %v1898
  %v2106 = vsel %vm2101, %v2089, %v1900
  %v2107 = vsel %vm2101, %v2090, %v1902
  %v2108 = vsel %vm2101, %v2091, %v1904
  %v2109 = vsel %vm2101, %v2092, %v1906
  %v2110 = vsel %vm2101, %v2093, %v1908
  %v2111 = vsel %vm2101, %v2094, %v1910
  %v2112 = vsel %vm2101, %v2095, %v1912
  %v2113 = vsel %vm2101, %v2096, %v1914
  %v2114 = vsel %vm2101, %v2097, %v1916
  %v2115 = vsel %vm2101, %v2098, %v1918
  %v2116 = vsel %vm2101, %v2099, %v1920
  %v2117 = vsel %vm2101, %v2100, %v1922
  %v2118 = vsel %vm677, %v2102, %v1956
  %v2119 = vsel %vm677, %v2103, %v1958
  %v2120 = vsel %vm677, %v2104, %v1960
  %v2121 = vsel %vm677, %v2105, %v1962
  %v2122 = vsel %vm677, %v2106, %v1964
  %v2123 = vsel %vm677, %v2107, %v1966
  %v2124 = vsel %vm677, %v2108, %v1968
  %v2125 = vsel %vm677, %v2109, %v1970
  %v2126 = vsel %vm677, %v2110, %v1972
  %v2127 = vsel %vm677, %v2111, %v1974
  %v2128 = vsel %vm677, %v2112, %v1976
  %v2129 = vsel %vm677, %v2113, %v1978
  %v2130 = vsel %vm677, %v2114, %v1980
  %v2131 = vsel %vm677, %v2115, %v1982
  %v2132 = vsel %vm677, %v2116, %v1984
  %v2133 = vsel %vm677, %v2117, %v1986
  %v2134 = vld [vmem:[%s3] sm:$0xff]
  %v2135 = vld [vmem:[%s3 + $0x8] sm:$0xff]
  %v2136 = vld [vmem:[%s3 + $0x10] sm:$0xff]
  %v2137 = vld [vmem:[%s3 + $0x18] sm:$0xff]
  %v2138 = vld [vmem:[%s3 + $0x20] sm:$0xff]
  %v2139 = vld [vmem:[%s3 + $0x28] sm:$0xff]
  %v2140 = vld [vmem:[%s3 + $0x30] sm:$0xff]
  %v2141 = vld [vmem:[%s3 + $0x38] sm:$0xff]
  %v2142 = vld [vmem:[%s3 + $0x40] sm:$0xff]
  %v2143 = vld [vmem:[%s4] sm:$0x1]
  %v2145 = vperm.slane %v2143, 0
  %vm2147 = vcmask 588800
  %v2149 = vsel %vm2147, %v2118, 0
  %v2152 = vsel %vm2147, %v2119, 0
  %v2155 = vsel %vm2147, %v2120, 0
  %v2158 = vsel %vm2147, %v2121, 0
  %v2161 = vsel %vm2147, %v2122, 0
  %v2164 = vsel %vm2147, %v2123, 0
  %v2167 = vsel %vm2147, %v2124, 0
  %v2170 = vsel %vm2147, %v2125, 0
  %v2173 = vsel %vm2147, %v2126, 0
  %v2176 = vsel %vm2147, %v2127, 0
  %v2179 = vsel %vm2147, %v2128, 0
  %v2182 = vsel %vm2147, %v2129, 0
  %v2185 = vsel %vm2147, %v2130, 0
  %v2188 = vsel %vm2147, %v2131, 0
  %v2191 = vsel %vm2147, %v2132, 0
  %v2194 = vsel %vm2147, %v2133, 0
  %2196 = vmatpush.msra.mxu0 0.0
  %2197 = vmatpush.msra.mxu0 0.0
  %2198 = vmatpush.msra.mxu0 0.0
  %2199 = vmatpush.msra.mxu0 0.0
  %2200 = vmatpush.msra.mxu0 0.0
  %2201 = vmatpush.msra.mxu0 0.0
  %2202 = vmatpush.msra.mxu0 0.0
  %2203 = vmatpush.msra.mxu0 %v2142
  %2204 = vmatpush.msra.mxu0 %v2141
  %2205 = vmatpush.msra.mxu0 %v2140
  %2206 = vmatpush.msra.mxu0 %v2139
  %2207 = vmatpush.msra.mxu0 %v2138
  %2208 = vmatpush.msra.mxu0 %v2137
  %2209 = vmatpush.msra.mxu0 %v2136
  %2210 = vmatpush.msra.mxu0 %v2135
  %2211 = vmatpush.msra.mxu0 %v2134
  %2212 = vmatmul.f32.gmra.mxu0 %v2149
  %v2213 = vpop.f32.mrf.mxu0
  %v2214 = vadd.f32 %v2145, %v2213
  %2215 = vmatmul.f32.gmra.mxu0 %v2152
  %v2216 = vpop.f32.mrf.mxu0
  %v2217 = vadd.f32 %v2145, %v2216
  %2218 = vmatmul.f32.gmra.mxu0 %v2155
  %v2219 = vpop.f32.mrf.mxu0
  %v2220 = vadd.f32 %v2145, %v2219
  %2221 = vmatmul.f32.gmra.mxu0 %v2158
  %v2222 = vpop.f32.mrf.mxu0
  %v2223 = vadd.f32 %v2145, %v2222
  %2224 = vmatmul.f32.gmra.mxu0 %v2161
  %v2225 = vpop.f32.mrf.mxu0
  %v2226 = vadd.f32 %v2145, %v2225
  %2227 = vmatmul.f32.gmra.mxu0 %v2164
  %v2228 = vpop.f32.mrf.mxu0
  %v2229 = vadd.f32 %v2145, %v2228
  %2230 = vmatmul.f32.gmra.mxu0 %v2167
  %v2231 = vpop.f32.mrf.mxu0
  %v2232 = vadd.f32 %v2145, %v2231
  %2233 = vmatmul.f32.gmra.mxu0 %v2170
  %v2234 = vpop.f32.mrf.mxu0
  %v2235 = vadd.f32 %v2145, %v2234
  %2236 = vmatmul.f32.gmra.mxu0 %v2173
  %v2237 = vpop.f32.mrf.mxu0
  %v2238 = vadd.f32 %v2145, %v2237
  %2239 = vmatmul.f32.gmra.mxu0 %v2176
  %v2240 = vpop.f32.mrf.mxu0
  %v2241 = vadd.f32 %v2145, %v2240
  %2242 = vmatmul.f32.gmra.mxu0 %v2179
  %v2243 = vpop.f32.mrf.mxu0
  %v2244 = vadd.f32 %v2145, %v2243
  %2245 = vmatmul.f32.gmra.mxu0 %v2182
  %v2246 = vpop.f32.mrf.mxu0
  %v2247 = vadd.f32 %v2145, %v2246
  %2248 = vmatmul.f32.gmra.mxu0 %v2185
  %v2249 = vpop.f32.mrf.mxu0
  %v2250 = vadd.f32 %v2145, %v2249
  %2251 = vmatmul.f32.gmra.mxu0 %v2188
  %v2252 = vpop.f32.mrf.mxu0
  %v2253 = vadd.f32 %v2145, %v2252
  %2254 = vmatmul.f32.gmra.mxu0 %v2191
  %v2255 = vpop.f32.mrf.mxu0
  %v2256 = vadd.f32 %v2145, %v2255
  %2257 = vmatmul.f32.gmra.mxu0 %v2194
  %v2258 = vpop.f32.mrf.mxu0
  %v2259 = vadd.f32 %v2145, %v2258
  %2260 = vdwg.mxu0
  %v2261 = vadd.f32 %v898, %v2214
  %v2262 = vadd.f32 %v901, %v2217
  %v2263 = vadd.f32 %v904, %v2220
  %v2264 = vadd.f32 %v907, %v2223
  %v2265 = vadd.f32 %v910, %v2226
  %v2266 = vadd.f32 %v913, %v2229
  %v2267 = vadd.f32 %v916, %v2232
  %v2268 = vadd.f32 %v919, %v2235
  %v2269 = vadd.f32 %v922, %v2238
  %v2270 = vadd.f32 %v925, %v2241
  %v2271 = vadd.f32 %v928, %v2244
  %v2272 = vadd.f32 %v931, %v2247
  %v2273 = vadd.f32 %v934, %v2250
  %v2274 = vadd.f32 %v937, %v2253
  %v2275 = vadd.f32 %v940, %v2256
  %v2276 = vadd.f32 %v943, %v2259
  %v2277 = vld [vmem:[%s7] sm:$0x1]
  %v2278 = vld [vmem:[%s8] sm:$0x1]
  %v2279 = vsel %vm1223, %v2261, 0.0
  %v2280 = vsel %vm1223, %v2262, 0.0
  %v2281 = vadd.f32 %v2279, %v2280
  %v2282 = vsel %vm1223, %v2263, 0.0
  %v2283 = vadd.f32 %v2281, %v2282
  %v2284 = vsel %vm1223, %v2264, 0.0
  %v2285 = vadd.f32 %v2283, %v2284
  %v2286 = vsel %vm1223, %v2265, 0.0
  %v2287 = vadd.f32 %v2285, %v2286
  %v2288 = vsel %vm1223, %v2266, 0.0
  %v2289 = vadd.f32 %v2287, %v2288
  %v2290 = vsel %vm1223, %v2267, 0.0
  %v2291 = vadd.f32 %v2289, %v2290
  %v2292 = vsel %vm1223, %v2268, 0.0
  %v2293 = vadd.f32 %v2291, %v2292
  %v2294 = vsel %vm1223, %v2269, 0.0
  %v2295 = vadd.f32 %v2293, %v2294
  %v2296 = vsel %vm1223, %v2270, 0.0
  %v2297 = vadd.f32 %v2295, %v2296
  %v2298 = vsel %vm1223, %v2271, 0.0
  %v2299 = vadd.f32 %v2297, %v2298
  %v2300 = vsel %vm1223, %v2272, 0.0
  %v2301 = vadd.f32 %v2299, %v2300
  %v2302 = vsel %vm1223, %v2273, 0.0
  %v2303 = vadd.f32 %v2301, %v2302
  %v2304 = vsel %vm1223, %v2274, 0.0
  %v2305 = vadd.f32 %v2303, %v2304
  %v2306 = vsel %vm1223, %v2275, 0.0
  %v2307 = vadd.f32 %v2305, %v2306
  %v2308 = vsel %vm1223, %v2276, 0.0
  %v2309 = vadd.f32 %v2307, %v2308
  %v2310 = vrot.slane %v2309, 4
  %v2311 = vadd.f32 %v2309, %v2310
  %v2312 = vrot.slane %v2311, 2
  %v2313 = vadd.f32 %v2311, %v2312
  %v2314 = vrot.slane %v2313, 1
  %v2315 = vadd.f32 %v2313, %v2314
  %v2316 = vmul.f32 %v2261, %v2261
  %v2317 = vmul.f32 %v2262, %v2262
  %v2318 = vmul.f32 %v2263, %v2263
  %v2319 = vmul.f32 %v2264, %v2264
  %v2320 = vmul.f32 %v2265, %v2265
  %v2321 = vmul.f32 %v2266, %v2266
  %v2322 = vmul.f32 %v2267, %v2267
  %v2323 = vmul.f32 %v2268, %v2268
  %v2324 = vmul.f32 %v2269, %v2269
  %v2325 = vmul.f32 %v2270, %v2270
  %v2326 = vmul.f32 %v2271, %v2271
  %v2327 = vmul.f32 %v2272, %v2272
  %v2328 = vmul.f32 %v2273, %v2273
  %v2329 = vmul.f32 %v2274, %v2274
  %v2330 = vmul.f32 %v2275, %v2275
  %v2331 = vmul.f32 %v2276, %v2276
  %v2332 = vsel %vm1223, %v2316, 0.0
  %v2333 = vsel %vm1223, %v2317, 0.0
  %v2334 = vadd.f32 %v2332, %v2333
  %v2335 = vsel %vm1223, %v2318, 0.0
  %v2336 = vadd.f32 %v2334, %v2335
  %v2337 = vsel %vm1223, %v2319, 0.0
  %v2338 = vadd.f32 %v2336, %v2337
  %v2339 = vsel %vm1223, %v2320, 0.0
  %v2340 = vadd.f32 %v2338, %v2339
  %v2341 = vsel %vm1223, %v2321, 0.0
  %v2342 = vadd.f32 %v2340, %v2341
  %v2343 = vsel %vm1223, %v2322, 0.0
  %v2344 = vadd.f32 %v2342, %v2343
  %v2345 = vsel %vm1223, %v2323, 0.0
  %v2346 = vadd.f32 %v2344, %v2345
  %v2347 = vsel %vm1223, %v2324, 0.0
  %v2348 = vadd.f32 %v2346, %v2347
  %v2349 = vsel %vm1223, %v2325, 0.0
  %v2350 = vadd.f32 %v2348, %v2349
  %v2351 = vsel %vm1223, %v2326, 0.0
  %v2352 = vadd.f32 %v2350, %v2351
  %v2353 = vsel %vm1223, %v2327, 0.0
  %v2354 = vadd.f32 %v2352, %v2353
  %v2355 = vsel %vm1223, %v2328, 0.0
  %v2356 = vadd.f32 %v2354, %v2355
  %v2357 = vsel %vm1223, %v2329, 0.0
  %v2358 = vadd.f32 %v2356, %v2357
  %v2359 = vsel %vm1223, %v2330, 0.0
  %v2360 = vadd.f32 %v2358, %v2359
  %v2361 = vsel %vm1223, %v2331, 0.0
  %v2362 = vadd.f32 %v2360, %v2361
  %v2363 = vrot.slane %v2362, 4
  %v2364 = vadd.f32 %v2362, %v2363
  %v2365 = vrot.slane %v2364, 2
  %v2366 = vadd.f32 %v2364, %v2365
  %v2367 = vrot.slane %v2366, 1
  %v2368 = vadd.f32 %v2366, %v2367
  %v2369 = vmul.f32 %v2315, 0.0078125
  %v2370 = vmul.f32 %v2368, 0.0078125
  %v2371 = vmul.f32 %v2369, %v2369
  %v2372 = vsub.f32 %v2370, %v2371
  %v2373 = vsub.f32 %v2261, %v2369
  %v2374 = vsub.f32 %v2262, %v2369
  %v2375 = vsub.f32 %v2263, %v2369
  %v2376 = vsub.f32 %v2264, %v2369
  %v2377 = vsub.f32 %v2265, %v2369
  %v2378 = vsub.f32 %v2266, %v2369
  %v2379 = vsub.f32 %v2267, %v2369
  %v2380 = vsub.f32 %v2268, %v2369
  %v2381 = vsub.f32 %v2269, %v2369
  %v2382 = vsub.f32 %v2270, %v2369
  %v2383 = vsub.f32 %v2271, %v2369
  %v2384 = vsub.f32 %v2272, %v2369
  %v2385 = vsub.f32 %v2273, %v2369
  %v2386 = vsub.f32 %v2274, %v2369
  %v2387 = vsub.f32 %v2275, %v2369
  %v2388 = vsub.f32 %v2276, %v2369
  %v2389 = vadd.f32 %v2372, 1e-05
  %v2390 = vrsqrt.pop %v2389
  %v2391 = vmul.f32 %v2390, %v2389
  %v2392 = vmul.f32 %v2391, %v2390
  %v2393 = vmul.f32 0.5, %v2392
  %v2394 = vsub.f32 1.5, %v2393
  %v2395 = vmul.f32 %v2390, %v2394
  %vm2396 = vweird.f32 %v2389
  %vm2397 = vweird.f32 %v2390
  %vm2398 = vmor %vm2396, %vm2397
  %v2399 = vsel %vm2398, %v2390, %v2395
  %v2400 = vmul.f32 %v2373, %v2399
  %v2401 = vmul.f32 %v2374, %v2399
  %v2402 = vmul.f32 %v2375, %v2399
  %v2403 = vmul.f32 %v2376, %v2399
  %v2404 = vmul.f32 %v2377, %v2399
  %v2405 = vmul.f32 %v2378, %v2399
  %v2406 = vmul.f32 %v2379, %v2399
  %v2407 = vmul.f32 %v2380, %v2399
  %v2408 = vmul.f32 %v2381, %v2399
  %v2409 = vmul.f32 %v2382, %v2399
  %v2410 = vmul.f32 %v2383, %v2399
  %v2411 = vmul.f32 %v2384, %v2399
  %v2412 = vmul.f32 %v2385, %v2399
  %v2413 = vmul.f32 %v2386, %v2399
  %v2414 = vmul.f32 %v2387, %v2399
  %v2415 = vmul.f32 %v2388, %v2399
  %v2417 = vperm.slane %v2277, 0
  %v2419 = vmul.f32 %v2400, %v2417
  %v2420 = vmul.f32 %v2401, %v2417
  %v2421 = vmul.f32 %v2402, %v2417
  %v2422 = vmul.f32 %v2403, %v2417
  %v2423 = vmul.f32 %v2404, %v2417
  %v2424 = vmul.f32 %v2405, %v2417
  %v2425 = vmul.f32 %v2406, %v2417
  %v2426 = vmul.f32 %v2407, %v2417
  %v2427 = vmul.f32 %v2408, %v2417
  %v2428 = vmul.f32 %v2409, %v2417
  %v2429 = vmul.f32 %v2410, %v2417
  %v2430 = vmul.f32 %v2411, %v2417
  %v2431 = vmul.f32 %v2412, %v2417
  %v2432 = vmul.f32 %v2413, %v2417
  %v2433 = vmul.f32 %v2414, %v2417
  %v2434 = vmul.f32 %v2415, %v2417
  %v2436 = vperm.slane %v2278, 0
  %v2438 = vadd.f32 %v2419, %v2436
  %v2439 = vadd.f32 %v2420, %v2436
  %v2440 = vadd.f32 %v2421, %v2436
  %v2441 = vadd.f32 %v2422, %v2436
  %v2442 = vadd.f32 %v2423, %v2436
  %v2443 = vadd.f32 %v2424, %v2436
  %v2444 = vadd.f32 %v2425, %v2436
  %v2445 = vadd.f32 %v2426, %v2436
  %v2446 = vadd.f32 %v2427, %v2436
  %v2447 = vadd.f32 %v2428, %v2436
  %v2448 = vadd.f32 %v2429, %v2436
  %v2449 = vadd.f32 %v2430, %v2436
  %v2450 = vadd.f32 %v2431, %v2436
  %v2451 = vadd.f32 %v2432, %v2436
  %v2452 = vadd.f32 %v2433, %v2436
  %v2453 = vadd.f32 %v2434, %v2436
  %vm2454 = vcmp.gt.f32.partialorder %v2438, 0.0
  %vm2455 = vcmp.gt.f32.partialorder %v2439, 0.0
  %vm2456 = vcmp.gt.f32.partialorder %v2440, 0.0
  %vm2457 = vcmp.gt.f32.partialorder %v2441, 0.0
  %vm2458 = vcmp.gt.f32.partialorder %v2442, 0.0
  %vm2459 = vcmp.gt.f32.partialorder %v2443, 0.0
  %vm2460 = vcmp.gt.f32.partialorder %v2444, 0.0
  %vm2461 = vcmp.gt.f32.partialorder %v2445, 0.0
  %vm2462 = vcmp.gt.f32.partialorder %v2446, 0.0
  %vm2463 = vcmp.gt.f32.partialorder %v2447, 0.0
  %vm2464 = vcmp.gt.f32.partialorder %v2448, 0.0
  %vm2465 = vcmp.gt.f32.partialorder %v2449, 0.0
  %vm2466 = vcmp.gt.f32.partialorder %v2450, 0.0
  %vm2467 = vcmp.gt.f32.partialorder %v2451, 0.0
  %vm2468 = vcmp.gt.f32.partialorder %v2452, 0.0
  %vm2469 = vcmp.gt.f32.partialorder %v2453, 0.0
  %v2470 = vmin.f32 %v2438, 0.0
  %v2471 = vmin.f32 %v2439, 0.0
  %v2472 = vmin.f32 %v2440, 0.0
  %v2473 = vmin.f32 %v2441, 0.0
  %v2474 = vmin.f32 %v2442, 0.0
  %v2475 = vmin.f32 %v2443, 0.0
  %v2476 = vmin.f32 %v2444, 0.0
  %v2477 = vmin.f32 %v2445, 0.0
  %v2478 = vmin.f32 %v2446, 0.0
  %v2479 = vmin.f32 %v2447, 0.0
  %v2480 = vmin.f32 %v2448, 0.0
  %v2481 = vmin.f32 %v2449, 0.0
  %v2482 = vmin.f32 %v2450, 0.0
  %v2483 = vmin.f32 %v2451, 0.0
  %v2484 = vmin.f32 %v2452, 0.0
  %v2485 = vmin.f32 %v2453, 0.0
  %v2486 = vmul.f32 %v2470, 1.442695
  %v2487 = vpow.pop %v2486
  %v2488 = vmul.f32 %v2471, 1.442695
  %v2489 = vpow.pop %v2488
  %v2490 = vmul.f32 %v2472, 1.442695
  %v2491 = vpow.pop %v2490
  %v2492 = vmul.f32 %v2473, 1.442695
  %v2493 = vpow.pop %v2492
  %v2494 = vmul.f32 %v2474, 1.442695
  %v2495 = vpow.pop %v2494
  %v2496 = vmul.f32 %v2475, 1.442695
  %v2497 = vpow.pop %v2496
  %v2498 = vmul.f32 %v2476, 1.442695
  %v2499 = vpow.pop %v2498
  %v2500 = vmul.f32 %v2477, 1.442695
  %v2501 = vpow.pop %v2500
  %v2502 = vmul.f32 %v2478, 1.442695
  %v2503 = vpow.pop %v2502
  %v2504 = vmul.f32 %v2479, 1.442695
  %v2505 = vpow.pop %v2504
  %v2506 = vmul.f32 %v2480, 1.442695
  %v2507 = vpow.pop %v2506
  %v2508 = vmul.f32 %v2481, 1.442695
  %v2509 = vpow.pop %v2508
  %v2510 = vmul.f32 %v2482, 1.442695
  %v2511 = vpow.pop %v2510
  %v2512 = vmul.f32 %v2483, 1.442695
  %v2513 = vpow.pop %v2512
  %v2514 = vmul.f32 %v2484, 1.442695
  %v2515 = vpow.pop %v2514
  %v2516 = vmul.f32 %v2485, 1.442695
  %v2517 = vpow.pop %v2516
  %v2518 = vsub.f32 %v2487, 1.0
  %v2519 = vsub.f32 %v2489, 1.0
  %v2520 = vsub.f32 %v2491, 1.0
  %v2521 = vsub.f32 %v2493, 1.0
  %v2522 = vsub.f32 %v2495, 1.0
  %v2523 = vsub.f32 %v2497, 1.0
  %v2524 = vsub.f32 %v2499, 1.0
  %v2525 = vsub.f32 %v2501, 1.0
  %v2526 = vsub.f32 %v2503, 1.0
  %v2527 = vsub.f32 %v2505, 1.0
  %v2528 = vsub.f32 %v2507, 1.0
  %v2529 = vsub.f32 %v2509, 1.0
  %v2530 = vsub.f32 %v2511, 1.0
  %v2531 = vsub.f32 %v2513, 1.0
  %v2532 = vsub.f32 %v2515, 1.0
  %v2533 = vsub.f32 %v2517, 1.0
  %v2534 = vsel %vm2454, %v2438, %v2518
  %v2535 = vsel %vm2455, %v2439, %v2519
  %v2536 = vsel %vm2456, %v2440, %v2520
  %v2537 = vsel %vm2457, %v2441, %v2521
  %v2538 = vsel %vm2458, %v2442, %v2522
  %v2539 = vsel %vm2459, %v2443, %v2523
  %v2540 = vsel %vm2460, %v2444, %v2524
  %v2541 = vsel %vm2461, %v2445, %v2525
  %v2542 = vsel %vm2462, %v2446, %v2526
  %v2543 = vsel %vm2463, %v2447, %v2527
  %v2544 = vsel %vm2464, %v2448, %v2528
  %v2545 = vsel %vm2465, %v2449, %v2529
  %v2546 = vsel %vm2466, %v2450, %v2530
  %v2547 = vsel %vm2467, %v2451, %v2531
  %v2548 = vsel %vm2468, %v2452, %v2532
  %v2549 = vsel %vm2469, %v2453, %v2533
  %2550 = vst.msk [vmem:[%s9] sm:$0xff] %vm1223, %v2534
  %2551 = vst.msk [vmem:[%s9 + $0x8] sm:$0xff] %vm1223, %v2535
  %2552 = vst.msk [vmem:[%s9 + $0x10] sm:$0xff] %vm1223, %v2536
  %2553 = vst.msk [vmem:[%s9 + $0x18] sm:$0xff] %vm1223, %v2537
  %2554 = vst.msk [vmem:[%s9 + $0x20] sm:$0xff] %vm1223, %v2538
  %2555 = vst.msk [vmem:[%s9 + $0x28] sm:$0xff] %vm1223, %v2539
  %2556 = vst.msk [vmem:[%s9 + $0x30] sm:$0xff] %vm1223, %v2540
  %2557 = vst.msk [vmem:[%s9 + $0x38] sm:$0xff] %vm1223, %v2541
  %2558 = vst.msk [vmem:[%s9 + $0x40] sm:$0xff] %vm1223, %v2542
  %2559 = vst.msk [vmem:[%s9 + $0x48] sm:$0xff] %vm1223, %v2543
  %2560 = vst.msk [vmem:[%s9 + $0x50] sm:$0xff] %vm1223, %v2544
  %2561 = vst.msk [vmem:[%s9 + $0x58] sm:$0xff] %vm1223, %v2545
  %2562 = vst.msk [vmem:[%s9 + $0x60] sm:$0xff] %vm1223, %v2546
  %2563 = vst.msk [vmem:[%s9 + $0x68] sm:$0xff] %vm1223, %v2547
  %2564 = vst.msk [vmem:[%s9 + $0x70] sm:$0xff] %vm1223, %v2548
  %2565 = vst.msk [vmem:[%s9 + $0x78] sm:$0xff] %vm1223, %v2549
  // Predicated region
  $region38: #{_lambda_.4} parent=0 // pred_check
    _
  $region39: #{_lambda_.4} parent=0 // pred_check_branch
    %2567 = sbr.rel (0) target = $region41
  $region40: #{_lambda_.4} parent=0 // pred_region
    _
  $region41: #{_lambda_.4} parent=0 // pred_fallthru
    _
  // Predicated region
  $region42: #{_lambda_.4} parent=0 // pred_check
    _
  $region43: #{_lambda_.4} parent=0 // pred_check_branch
    %2569 = sbr.rel (0) target = $region45
  $region44: #{_lambda_.4} parent=0 // pred_region
    _
  $region45: #{_lambda_.4} parent=0 // pred_fallthru
    _

// kernel: _lambda_.5
$region0: #{_lambda_.5}
  #allocation0 [shape = 'u32[]', space=smem, size = 0x4, offset = 0x4, fixed_abs, tag = 'smem constant byte address 0x4 - core index']
  #allocation1 [shape = 'u32[72,128]{1,0:T(1,128)}', space=vmem, size = 0x9000, scoped, tag = 'internal scratch']
  #allocation2 [shape = 'f32[2,18,18,4]{3,2,1,0:T(8,128)}', space=vmem, size = 0x6c000, scoped, tag = 'scratch operand']
  %s0 = inlined_call_operand.vmem [shape: f32[2,18,18,8], index: 0, kind: input, shape index: {}]
  %s1 = inlined_call_operand.vmem [shape: f32[72,8], index: 1, kind: input, shape index: {}]
  %s2 = inlined_call_operand.vmem [shape: f32[1,8], index: 2, kind: input, shape index: {}]
  %s3 = inlined_call_operand.vmem [shape: f32[36,4], index: 3, kind: input, shape index: {}]
  %s4 = inlined_call_operand.vmem [shape: f32[1,4], index: 4, kind: input, shape index: {}]
  %s5 = inlined_call_operand.vmem [shape: f32[1,4], index: 5, kind: input, shape index: {}]
  %s6 = inlined_call_operand.vmem [shape: f32[1,4], index: 6, kind: input, shape index: {}]
  %s7 = inlined_call_operand.vmem [shape: f32[1,4], index: 7, kind: input, shape index: {}]
  %s8 = inlined_call_operand.vmem [shape: f32[1,4], index: 8, kind: input, shape index: {}]
  %s9 = inlined_call_operand.vmem [shape: f32[4,4], index: 9, kind: input, shape index: {}]
  %s10 = inlined_call_operand.vmem [shape: f32[1,4], index: 10, kind: input, shape index: {}]
  %s11 = inlined_call_operand.vmem [shape: f32[512,4], index: 11, kind: output, shape index: {}]
  %s12 = sld [smem:[#allocation0]]
  $region54: #{_lambda_.5} parent=0
    _
  %s14 = ssub.s32 1, %s12
  %s15 = scalar_select 0, %s14, %s12
  // Predicated region
  $region2: #{_lambda_.5} parent=0 // pred_check
    _
  $region3: #{_lambda_.5} parent=0 // pred_check_branch
    %17 = sbr.rel (0) target = $region5
  $region4: #{_lambda_.5} parent=0 // pred_region
    _
  $region5: #{_lambda_.5} parent=0 // pred_fallthru
    _
  // Predicated region
  $region6: #{_lambda_.5} parent=0 // pred_check
    _
  $region7: #{_lambda_.5} parent=0 // pred_check_branch
    %19 = sbr.rel (0) target = $region9
  $region8: #{_lambda_.5} parent=0 // pred_region
    _
  $region9: #{_lambda_.5} parent=0 // pred_fallthru
    _
  // Predicated region
  $region10: #{_lambda_.5} parent=0 // pred_check
    _
  $region11: #{_lambda_.5} parent=0 // pred_check_branch
    %21 = sbr.rel (0) target = $region13
  $region12: #{_lambda_.5} parent=0 // pred_region
    _
  $region13: #{_lambda_.5} parent=0 // pred_fallthru
    _
  // Predicated region
  $region14: #{_lambda_.5} parent=0 // pred_check
    _
  $region15: #{_lambda_.5} parent=0 // pred_check_branch
    %23 = sbr.rel (0) target = $region17
  $region16: #{_lambda_.5} parent=0 // pred_region
    _
  $region17: #{_lambda_.5} parent=0 // pred_fallthru
    _
  // Predicated region
  $region18: #{_lambda_.5} parent=0 // pred_check
    _
  $region19: #{_lambda_.5} parent=0 // pred_check_branch
    %25 = sbr.rel (0) target = $region21
  $region20: #{_lambda_.5} parent=0 // pred_region
    _
  $region21: #{_lambda_.5} parent=0 // pred_fallthru
    _
  // Predicated region
  $region22: #{_lambda_.5} parent=0 // pred_check
    _
  $region23: #{_lambda_.5} parent=0 // pred_check_branch
    %27 = sbr.rel (0) target = $region25
  $region24: #{_lambda_.5} parent=0 // pred_region
    _
  $region25: #{_lambda_.5} parent=0 // pred_fallthru
    _
  // Predicated region
  $region26: #{_lambda_.5} parent=0 // pred_check
    _
  $region27: #{_lambda_.5} parent=0 // pred_check_branch
    %29 = sbr.rel (0) target = $region29
  $region28: #{_lambda_.5} parent=0 // pred_region
    _
  $region29: #{_lambda_.5} parent=0 // pred_fallthru
    _
  // Predicated region
  $region30: #{_lambda_.5} parent=0 // pred_check
    _
  $region31: #{_lambda_.5} parent=0 // pred_check_branch
    %31 = sbr.rel (0) target = $region33
  $region32: #{_lambda_.5} parent=0 // pred_region
    _
  $region33: #{_lambda_.5} parent=0 // pred_fallthru
    _
  // Predicated region
  $region34: #{_lambda_.5} parent=0 // pred_check
    _
  $region35: #{_lambda_.5} parent=0 // pred_check_branch
    %33 = sbr.rel (0) target = $region37
  $region36: #{_lambda_.5} parent=0 // pred_region
    _
  $region37: #{_lambda_.5} parent=0 // pred_fallthru
    _
  // Predicated region
  $region38: #{_lambda_.5} parent=0 // pred_check
    _
  $region39: #{_lambda_.5} parent=0 // pred_check_branch
    %35 = sbr.rel (0) target = $region41
  $region40: #{_lambda_.5} parent=0 // pred_region
    _
  $region41: #{_lambda_.5} parent=0 // pred_fallthru
    _
  // Predicated region
  $region42: #{_lambda_.5} parent=0 // pred_check
    _
  $region43: #{_lambda_.5} parent=0 // pred_check_branch
    %37 = sbr.rel (0) target = $region45
  $region44: #{_lambda_.5} parent=0 // pred_region
    _
  $region45: #{_lambda_.5} parent=0 // pred_fallthru
    _
  %v38 = vld [vmem:[%s0] sm:$0xff]
  %v39 = vld [vmem:[%s0 + $0x8] sm:$0xff]
  %v40 = vld [vmem:[%s0 + $0x18] sm:$0xff]
  %v41 = vld [vmem:[%s0 + $0x20] sm:$0xff]
  %v42 = vld [vmem:[%s0 + $0x30] sm:$0xff]
  %v43 = vld [vmem:[%s0 + $0x38] sm:$0xff]
  %v44 = vld [vmem:[%s0 + $0x48] sm:$0xff]
  %v45 = vld [vmem:[%s0 + $0x50] sm:$0xff]
  %v46 = vld [vmem:[%s0 + $0x60] sm:$0xff]
  %v47 = vld [vmem:[%s0 + $0x68] sm:$0xff]
  %v48 = vld [vmem:[%s0 + $0x78] sm:$0xff]
  %v49 = vld [vmem:[%s0 + $0x80] sm:$0xff]
  %v50 = vld [vmem:[%s0 + $0x90] sm:$0xff]
  %v51 = vld [vmem:[%s0 + $0x98] sm:$0xff]
  %v52 = vld [vmem:[%s0 + $0xa8] sm:$0xff]
  %v53 = vld [vmem:[%s0 + $0xb0] sm:$0xff]
  %v54 = vld [vmem:[%s0 + $0xc0] sm:$0xff]
  %v55 = vld [vmem:[%s0 + $0xc8] sm:$0xff]
  %v56 = vld [vmem:[%s0 + $0xd8] sm:$0xff]
  %v57 = vld [vmem:[%s0 + $0xe0] sm:$0xff]
  %v58 = vld [vmem:[%s0 + $0xf0] sm:$0xff]
  %v59 = vld [vmem:[%s0 + $0xf8] sm:$0xff]
  %v60 = vld [vmem:[%s0 + $0x108] sm:$0xff]
  %v61 = vld [vmem:[%s0 + $0x110] sm:$0xff]
  %v62 = vld [vmem:[%s0 + $0x120] sm:$0xff]
  %v63 = vld [vmem:[%s0 + $0x128] sm:$0xff]
  %v64 = vld [vmem:[%s0 + $0x138] sm:$0xff]
  %v65 = vld [vmem:[%s0 + $0x140] sm:$0xff]
  %v66 = vld [vmem:[%s0 + $0x150] sm:$0xff]
  %v67 = vld [vmem:[%s0 + $0x158] sm:$0xff]
  %v68 = vld [vmem:[%s0 + $0x168] sm:$0xff]
  %v69 = vld [vmem:[%s0 + $0x170] sm:$0xff]
  %v70 = vld [vmem:[%s0 + $0x1b0] sm:$0xff]
  %v71 = vld [vmem:[%s0 + $0x1b8] sm:$0xff]
  %v72 = vld [vmem:[%s0 + $0x1c8] sm:$0xff]
  %v73 = vld [vmem:[%s0 + $0x1d0] sm:$0xff]
  %v74 = vld [vmem:[%s0 + $0x1e0] sm:$0xff]
  %v75 = vld [vmem:[%s0 + $0x1e8] sm:$0xff]
  %v76 = vld [vmem:[%s0 + $0x1f8] sm:$0xff]
  %v77 = vld [vmem:[%s0 + $0x200] sm:$0xff]
  %v78 = vld [vmem:[%s0 + $0x210] sm:$0xff]
  %v79 = vld [vmem:[%s0 + $0x218] sm:$0xff]
  %v80 = vld [vmem:[%s0 + $0x228] sm:$0xff]
  %v81 = vld [vmem:[%s0 + $0x230] sm:$0xff]
  %v82 = vld [vmem:[%s0 + $0x240] sm:$0xff]
  %v83 = vld [vmem:[%s0 + $0x248] sm:$0xff]
  %v84 = vld [vmem:[%s0 + $0x258] sm:$0xff]
  %v85 = vld [vmem:[%s0 + $0x260] sm:$0xff]
  %v86 = vld [vmem:[%s0 + $0x270] sm:$0xff]
  %v87 = vld [vmem:[%s0 + $0x278] sm:$0xff]
  %v88 = vld [vmem:[%s0 + $0x288] sm:$0xff]
  %v89 = vld [vmem:[%s0 + $0x290] sm:$0xff]
  %v90 = vld [vmem:[%s0 + $0x2a0] sm:$0xff]
  %v91 = vld [vmem:[%s0 + $0x2a8] sm:$0xff]
  %v92 = vld [vmem:[%s0 + $0x2b8] sm:$0xff]
  %v93 = vld [vmem:[%s0 + $0x2c0] sm:$0xff]
  %v94 = vld [vmem:[%s0 + $0x2d0] sm:$0xff]
  %v95 = vld [vmem:[%s0 + $0x2d8] sm:$0xff]
  %v96 = vld [vmem:[%s0 + $0x2e8] sm:$0xff]
  %v97 = vld [vmem:[%s0 + $0x2f0] sm:$0xff]
  %v98 = vld [vmem:[%s0 + $0x300] sm:$0xff]
  %v99 = vld [vmem:[%s0 + $0x308] sm:$0xff]
  %v100 = vld [vmem:[%s0 + $0x318] sm:$0xff]
  %v101 = vld [vmem:[%s0 + $0x320] sm:$0xff]
  %v102 = vld [vmem:[%s0 + $0x1] sm:$0xff]
  %v103 = vld [vmem:[%s0 + $0x9] sm:$0xff]
  %v104 = vld [vmem:[%s0 + $0x19] sm:$0xff]
  %v105 = vld [vmem:[%s0 + $0x21] sm:$0xff]
  %v106 = vld [vmem:[%s0 + $0x31] sm:$0xff]
  %v107 = vld [vmem:[%s0 + $0x39] sm:$0xff]
  %v108 = vld [vmem:[%s0 + $0x49] sm:$0xff]
  %v109 = vld [vmem:[%s0 + $0x51] sm:$0xff]
  %v110 = vld [vmem:[%s0 + $0x61] sm:$0xff]
  %v111 = vld [vmem:[%s0 + $0x69] sm:$0xff]
  %v112 = vld [vmem:[%s0 + $0x79] sm:$0xff]
  %v113 = vld [vmem:[%s0 + $0x81] sm:$0xff]
  %v114 = vld [vmem:[%s0 + $0x91] sm:$0xff]
  %v115 = vld [vmem:[%s0 + $0x99] sm:$0xff]
  %v116 = vld [vmem:[%s0 + $0xa9] sm:$0xff]
  %v117 = vld [vmem:[%s0 + $0xb1] sm:$0xff]
  %v118 = vld [vmem:[%s0 + $0xc1] sm:$0xff]
  %v119 = vld [vmem:[%s0 + $0xc9] sm:$0xff]
  %v120 = vld [vmem:[%s0 + $0xd9] sm:$0xff]
  %v121 = vld [vmem:[%s0 + $0xe1] sm:$0xff]
  %v122 = vld [vmem:[%s0 + $0xf1] sm:$0xff]
  %v123 = vld [vmem:[%s0 + $0xf9] sm:$0xff]
  %v124 = vld [vmem:[%s0 + $0x109] sm:$0xff]
  %v125 = vld [vmem:[%s0 + $0x111] sm:$0xff]
  %v126 = vld [vmem:[%s0 + $0x121] sm:$0xff]
  %v127 = vld [vmem:[%s0 + $0x129] sm:$0xff]
  %v128 = vld [vmem:[%s0 + $0x139] sm:$0xff]
  %v129 = vld [vmem:[%s0 + $0x141] sm:$0xff]
  %v130 = vld [vmem:[%s0 + $0x151] sm:$0xff]
  %v131 = vld [vmem:[%s0 + $0x159] sm:$0xff]
  %v132 = vld [vmem:[%s0 + $0x169] sm:$0xff]
  %v133 = vld [vmem:[%s0 + $0x171] sm:$0xff]
  %v134 = vld [vmem:[%s0 + $0x1b1] sm:$0xff]
  %v135 = vld [vmem:[%s0 + $0x1b9] sm:$0xff]
  %v136 = vld [vmem:[%s0 + $0x1c9] sm:$0xff]
  %v137 = vld [vmem:[%s0 + $0x1d1] sm:$0xff]
  %v138 = vld [vmem:[%s0 + $0x1e1] sm:$0xff]
  %v139 = vld [vmem:[%s0 + $0x1e9] sm:$0xff]
  %v140 = vld [vmem:[%s0 + $0x1f9] sm:$0xff]
  %v141 = vld [vmem:[%s0 + $0x201] sm:$0xff]
  %v142 = vld [vmem:[%s0 + $0x211] sm:$0xff]
  %v143 = vld [vmem:[%s0 + $0x219] sm:$0xff]
  %v144 = vld [vmem:[%s0 + $0x229] sm:$0xff]
  %v145 = vld [vmem:[%s0 + $0x231] sm:$0xff]
  %v146 = vld [vmem:[%s0 + $0x241] sm:$0xff]
  %v147 = vld [vmem:[%s0 + $0x249] sm:$0xff]
  %v148 = vld [vmem:[%s0 + $0x259] sm:$0xff]
  %v149 = vld [vmem:[%s0 + $0x261] sm:$0xff]
  %v150 = vld [vmem:[%s0 + $0x271] sm:$0xff]
  %v151 = vld [vmem:[%s0 + $0x279] sm:$0xff]
  %v152 = vld [vmem:[%s0 + $0x289] sm:$0xff]
  %v153 = vld [vmem:[%s0 + $0x291] sm:$0xff]
  %v154 = vld [vmem:[%s0 + $0x2a1] sm:$0xff]
  %v155 = vld [vmem:[%s0 + $0x2a9] sm:$0xff]
  %v156 = vld [vmem:[%s0 + $0x2b9] sm:$0xff]
  %v157 = vld [vmem:[%s0 + $0x2c1] sm:$0xff]
  %v158 = vld [vmem:[%s0 + $0x2d1] sm:$0xff]
  %v159 = vld [vmem:[%s0 + $0x2d9] sm:$0xff]
  %v160 = vld [vmem:[%s0 + $0x2e9] sm:$0xff]
  %v161 = vld [vmem:[%s0 + $0x2f1] sm:$0xff]
  %v162 = vld [vmem:[%s0 + $0x301] sm:$0xff]
  %v163 = vld [vmem:[%s0 + $0x309] sm:$0xff]
  %v164 = vld [vmem:[%s0 + $0x319] sm:$0xff]
  %v165 = vld [vmem:[%s0 + $0x321] sm:$0xff]
  %v166 = vld [vmem:[%s0 + $0x2] sm:$0xff]
  %v167 = vld [vmem:[%s0 + $0xa] sm:$0xff]
  %v168 = vld [vmem:[%s0 + $0x1a] sm:$0xff]
  %v169 = vld [vmem:[%s0 + $0x22] sm:$0xff]
  %v170 = vld [vmem:[%s0 + $0x32] sm:$0xff]
  %v171 = vld [vmem:[%s0 + $0x3a] sm:$0xff]
  %v172 = vld [vmem:[%s0 + $0x4a] sm:$0xff]
  %v173 = vld [vmem:[%s0 + $0x52] sm:$0xff]
  %v174 = vld [vmem:[%s0 + $0x62] sm:$0xff]
  %v175 = vld [vmem:[%s0 + $0x6a] sm:$0xff]
  %v176 = vld [vmem:[%s0 + $0x7a] sm:$0xff]
  %v177 = vld [vmem:[%s0 + $0x82] sm:$0xff]
  %v178 = vld [vmem:[%s0 + $0x92] sm:$0xff]
  %v179 = vld [vmem:[%s0 + $0x9a] sm:$0xff]
  %v180 = vld [vmem:[%s0 + $0xaa] sm:$0xff]
  %v181 = vld [vmem:[%s0 + $0xb2] sm:$0xff]
  %v182 = vld [vmem:[%s0 + $0xc2] sm:$0xff]
  %v183 = vld [vmem:[%s0 + $0xca] sm:$0xff]
  %v184 = vld [vmem:[%s0 + $0xda] sm:$0xff]
  %v185 = vld [vmem:[%s0 + $0xe2] sm:$0xff]
  %v186 = vld [vmem:[%s0 + $0xf2] sm:$0xff]
  %v187 = vld [vmem:[%s0 + $0xfa] sm:$0xff]
  %v188 = vld [vmem:[%s0 + $0x10a] sm:$0xff]
  %v189 = vld [vmem:[%s0 + $0x112] sm:$0xff]
  %v190 = vld [vmem:[%s0 + $0x122] sm:$0xff]
  %v191 = vld [vmem:[%s0 + $0x12a] sm:$0xff]
  %v192 = vld [vmem:[%s0 + $0x13a] sm:$0xff]
  %v193 = vld [vmem:[%s0 + $0x142] sm:$0xff]
  %v194 = vld [vmem:[%s0 + $0x152] sm:$0xff]
  %v195 = vld [vmem:[%s0 + $0x15a] sm:$0xff]
  %v196 = vld [vmem:[%s0 + $0x16a] sm:$0xff]
  %v197 = vld [vmem:[%s0 + $0x172] sm:$0xff]
  %v198 = vld [vmem:[%s0 + $0x1b2] sm:$0xff]
  %v199 = vld [vmem:[%s0 + $0x1ba] sm:$0xff]
  %v200 = vld [vmem:[%s0 + $0x1ca] sm:$0xff]
  %v201 = vld [vmem:[%s0 + $0x1d2] sm:$0xff]
  %v202 = vld [vmem:[%s0 + $0x1e2] sm:$0xff]
  %v203 = vld [vmem:[%s0 + $0x1ea] sm:$0xff]
  %v204 = vld [vmem:[%s0 + $0x1fa] sm:$0xff]
  %v205 = vld [vmem:[%s0 + $0x202] sm:$0xff]
  %v206 = vld [vmem:[%s0 + $0x212] sm:$0xff]
  %v207 = vld [vmem:[%s0 + $0x21a] sm:$0xff]
  %v208 = vld [vmem:[%s0 + $0x22a] sm:$0xff]
  %v209 = vld [vmem:[%s0 + $0x232] sm:$0xff]
  %v210 = vld [vmem:[%s0 + $0x242] sm:$0xff]
  %v211 = vld [vmem:[%s0 + $0x24a] sm:$0xff]
  %v212 = vld [vmem:[%s0 + $0x25a] sm:$0xff]
  %v213 = vld [vmem:[%s0 + $0x262] sm:$0xff]
  %v214 = vld [vmem:[%s0 + $0x272] sm:$0xff]
  %v215 = vld [vmem:[%s0 + $0x27a] sm:$0xff]
  %v216 = vld [vmem:[%s0 + $0x28a] sm:$0xff]
  %v217 = vld [vmem:[%s0 + $0x292] sm:$0xff]
  %v218 = vld [vmem:[%s0 + $0x2a2] sm:$0xff]
  %v219 = vld [vmem:[%s0 + $0x2aa] sm:$0xff]
  %v220 = vld [vmem:[%s0 + $0x2ba] sm:$0xff]
  %v221 = vld [vmem:[%s0 + $0x2c2] sm:$0xff]
  %v222 = vld [vmem:[%s0 + $0x2d2] sm:$0xff]
  %v223 = vld [vmem:[%s0 + $0x2da] sm:$0xff]
  %v224 = vld [vmem:[%s0 + $0x2ea] sm:$0xff]
  %v225 = vld [vmem:[%s0 + $0x2f2] sm:$0xff]
  %v226 = vld [vmem:[%s0 + $0x302] sm:$0xff]
  %v227 = vld [vmem:[%s0 + $0x30a] sm:$0xff]
  %v228 = vld [vmem:[%s0 + $0x31a] sm:$0xff]
  %v229 = vld [vmem:[%s0 + $0x322] sm:$0xff]
  %s230 = scalar_lea.vmem %s0, 24
  %v231 = vld [vmem:[%s230] sm:$0xff]
  %v232 = vld [vmem:[%s230 + $0x8] sm:$0xff]
  %v233 = vld [vmem:[%s230 + $0x18] sm:$0xff]
  %v234 = vld [vmem:[%s230 + $0x20] sm:$0xff]
  %v235 = vld [vmem:[%s230 + $0x30] sm:$0xff]
  %v236 = vld [vmem:[%s230 + $0x38] sm:$0xff]
  %v237 = vld [vmem:[%s230 + $0x48] sm:$0xff]
  %v238 = vld [vmem:[%s230 + $0x50] sm:$0xff]
  %v239 = vld [vmem:[%s230 + $0x60] sm:$0xff]
  %v240 = vld [vmem:[%s230 + $0x68] sm:$0xff]
  %v241 = vld [vmem:[%s230 + $0x78] sm:$0xff]
  %v242 = vld [vmem:[%s230 + $0x80] sm:$0xff]
  %v243 = vld [vmem:[%s230 + $0x90] sm:$0xff]
  %v244 = vld [vmem:[%s230 + $0x98] sm:$0xff]
  %v245 = vld [vmem:[%s230 + $0xa8] sm:$0xff]
  %v246 = vld [vmem:[%s230 + $0xb0] sm:$0xff]
  %v247 = vld [vmem:[%s230 + $0xc0] sm:$0xff]
  %v248 = vld [vmem:[%s230 + $0xc8] sm:$0xff]
  %v249 = vld [vmem:[%s230 + $0xd8] sm:$0xff]
  %v250 = vld [vmem:[%s230 + $0xe0] sm:$0xff]
  %v251 = vld [vmem:[%s230 + $0xf0] sm:$0xff]
  %v252 = vld [vmem:[%s230 + $0xf8] sm:$0xff]
  %v253 = vld [vmem:[%s230 + $0x108] sm:$0xff]
  %v254 = vld [vmem:[%s230 + $0x110] sm:$0xff]
  %v255 = vld [vmem:[%s230 + $0x120] sm:$0xff]
  %v256 = vld [vmem:[%s230 + $0x128] sm:$0xff]
  %v257 = vld [vmem:[%s230 + $0x138] sm:$0xff]
  %v258 = vld [vmem:[%s230 + $0x140] sm:$0xff]
  %v259 = vld [vmem:[%s230 + $0x150] sm:$0xff]
  %v260 = vld [vmem:[%s230 + $0x158] sm:$0xff]
  %v261 = vld [vmem:[%s230 + $0x168] sm:$0xff]
  %v262 = vld [vmem:[%s230 + $0x170] sm:$0xff]
  %v263 = vld [vmem:[%s230 + $0x1b0] sm:$0xff]
  %v264 = vld [vmem:[%s230 + $0x1b8] sm:$0xff]
  %v265 = vld [vmem:[%s230 + $0x1c8] sm:$0xff]
  %v266 = vld [vmem:[%s230 + $0x1d0] sm:$0xff]
  %v267 = vld [vmem:[%s230 + $0x1e0] sm:$0xff]
  %v268 = vld [vmem:[%s230 + $0x1e8] sm:$0xff]
  %v269 = vld [vmem:[%s230 + $0x1f8] sm:$0xff]
  %v270 = vld [vmem:[%s230 + $0x200] sm:$0xff]
  %v271 = vld [vmem:[%s230 + $0x210] sm:$0xff]
  %v272 = vld [vmem:[%s230 + $0x218] sm:$0xff]
  %v273 = vld [vmem:[%s230 + $0x228] sm:$0xff]
  %v274 = vld [vmem:[%s230 + $0x230] sm:$0xff]
  %v275 = vld [vmem:[%s230 + $0x240] sm:$0xff]
  %v276 = vld [vmem:[%s230 + $0x248] sm:$0xff]
  %v277 = vld [vmem:[%s230 + $0x258] sm:$0xff]
  %v278 = vld [vmem:[%s230 + $0x260] sm:$0xff]
  %v279 = vld [vmem:[%s230 + $0x270] sm:$0xff]
  %v280 = vld [vmem:[%s230 + $0x278] sm:$0xff]
  %v281 = vld [vmem:[%s230 + $0x288] sm:$0xff]
  %v282 = vld [vmem:[%s230 + $0x290] sm:$0xff]
  %v283 = vld [vmem:[%s230 + $0x2a0] sm:$0xff]
  %v284 = vld [vmem:[%s230 + $0x2a8] sm:$0xff]
  %v285 = vld [vmem:[%s230 + $0x2b8] sm:$0xff]
  %v286 = vld [vmem:[%s230 + $0x2c0] sm:$0xff]
  %v287 = vld [vmem:[%s230 + $0x2d0] sm:$0xff]
  %v288 = vld [vmem:[%s230 + $0x2d8] sm:$0xff]
  %v289 = vld [vmem:[%s230 + $0x2e8] sm:$0xff]
  %v290 = vld [vmem:[%s230 + $0x2f0] sm:$0xff]
  %v291 = vld [vmem:[%s230 + $0x300] sm:$0xff]
  %v292 = vld [vmem:[%s230 + $0x308] sm:$0xff]
  %v293 = vld [vmem:[%s230 + $0x318] sm:$0xff]
  %v294 = vld [vmem:[%s230 + $0x320] sm:$0xff]
  %v295 = vld [vmem:[%s230 + $0x1] sm:$0xff]
  %v296 = vld [vmem:[%s230 + $0x9] sm:$0xff]
  %v297 = vld [vmem:[%s230 + $0x19] sm:$0xff]
  %v298 = vld [vmem:[%s230 + $0x21] sm:$0xff]
  %v299 = vld [vmem:[%s230 + $0x31] sm:$0xff]
  %v300 = vld [vmem:[%s230 + $0x39] sm:$0xff]
  %v301 = vld [vmem:[%s230 + $0x49] sm:$0xff]
  %v302 = vld [vmem:[%s230 + $0x51] sm:$0xff]
  %v303 = vld [vmem:[%s230 + $0x61] sm:$0xff]
  %v304 = vld [vmem:[%s230 + $0x69] sm:$0xff]
  %v305 = vld [vmem:[%s230 + $0x79] sm:$0xff]
  %v306 = vld [vmem:[%s230 + $0x81] sm:$0xff]
  %v307 = vld [vmem:[%s230 + $0x91] sm:$0xff]
  %v308 = vld [vmem:[%s230 + $0x99] sm:$0xff]
  %v309 = vld [vmem:[%s230 + $0xa9] sm:$0xff]
  %v310 = vld [vmem:[%s230 + $0xb1] sm:$0xff]
  %v311 = vld [vmem:[%s230 + $0xc1] sm:$0xff]
  %v312 = vld [vmem:[%s230 + $0xc9] sm:$0xff]
  %v313 = vld [vmem:[%s230 + $0xd9] sm:$0xff]
  %v314 = vld [vmem:[%s230 + $0xe1] sm:$0xff]
  %v315 = vld [vmem:[%s230 + $0xf1] sm:$0xff]
  %v316 = vld [vmem:[%s230 + $0xf9] sm:$0xff]
  %v317 = vld [vmem:[%s230 + $0x109] sm:$0xff]
  %v318 = vld [vmem:[%s230 + $0x111] sm:$0xff]
  %v319 = vld [vmem:[%s230 + $0x121] sm:$0xff]
  %v320 = vld [vmem:[%s230 + $0x129] sm:$0xff]
  %v321 = vld [vmem:[%s230 + $0x139] sm:$0xff]
  %v322 = vld [vmem:[%s230 + $0x141] sm:$0xff]
  %v323 = vld [vmem:[%s230 + $0x151] sm:$0xff]
  %v324 = vld [vmem:[%s230 + $0x159] sm:$0xff]
  %v325 = vld [vmem:[%s230 + $0x169] sm:$0xff]
  %v326 = vld [vmem:[%s230 + $0x171] sm:$0xff]
  %v327 = vld [vmem:[%s230 + $0x1b1] sm:$0xff]
  %v328 = vld [vmem:[%s230 + $0x1b9] sm:$0xff]
  %v329 = vld [vmem:[%s230 + $0x1c9] sm:$0xff]
  %v330 = vld [vmem:[%s230 + $0x1d1] sm:$0xff]
  %v331 = vld [vmem:[%s230 + $0x1e1] sm:$0xff]
  %v332 = vld [vmem:[%s230 + $0x1e9] sm:$0xff]
  %v333 = vld [vmem:[%s230 + $0x1f9] sm:$0xff]
  %v334 = vld [vmem:[%s230 + $0x201] sm:$0xff]
  %v335 = vld [vmem:[%s230 + $0x211] sm:$0xff]
  %v336 = vld [vmem:[%s230 + $0x219] sm:$0xff]
  %v337 = vld [vmem:[%s230 + $0x229] sm:$0xff]
  %v338 = vld [vmem:[%s230 + $0x231] sm:$0xff]
  %v339 = vld [vmem:[%s230 + $0x241] sm:$0xff]
  %v340 = vld [vmem:[%s230 + $0x249] sm:$0xff]
  %v341 = vld [vmem:[%s230 + $0x259] sm:$0xff]
  %v342 = vld [vmem:[%s230 + $0x261] sm:$0xff]
  %v343 = vld [vmem:[%s230 + $0x271] sm:$0xff]
  %v344 = vld [vmem:[%s230 + $0x279] sm:$0xff]
  %v345 = vld [vmem:[%s230 + $0x289] sm:$0xff]
  %v346 = vld [vmem:[%s230 + $0x291] sm:$0xff]
  %v347 = vld [vmem:[%s230 + $0x2a1] sm:$0xff]
  %v348 = vld [vmem:[%s230 + $0x2a9] sm:$0xff]
  %v349 = vld [vmem:[%s230 + $0x2b9] sm:$0xff]
  %v350 = vld [vmem:[%s230 + $0x2c1] sm:$0xff]
  %v351 = vld [vmem:[%s230 + $0x2d1] sm:$0xff]
  %v352 = vld [vmem:[%s230 + $0x2d9] sm:$0xff]
  %v353 = vld [vmem:[%s230 + $0x2e9] sm:$0xff]
  %v354 = vld [vmem:[%s230 + $0x2f1] sm:$0xff]
  %v355 = vld [vmem:[%s230 + $0x301] sm:$0xff]
  %v356 = vld [vmem:[%s230 + $0x309] sm:$0xff]
  %v357 = vld [vmem:[%s230 + $0x319] sm:$0xff]
  %v358 = vld [vmem:[%s230 + $0x321] sm:$0xff]
  %v359 = vld [vmem:[%s230 + $0x2] sm:$0xff]
  %v360 = vld [vmem:[%s230 + $0xa] sm:$0xff]
  %v361 = vld [vmem:[%s230 + $0x1a] sm:$0xff]
  %v362 = vld [vmem:[%s230 + $0x22] sm:$0xff]
  %v363 = vld [vmem:[%s230 + $0x32] sm:$0xff]
  %v364 = vld [vmem:[%s230 + $0x3a] sm:$0xff]
  %v365 = vld [vmem:[%s230 + $0x4a] sm:$0xff]
  %v366 = vld [vmem:[%s230 + $0x52] sm:$0xff]
  %v367 = vld [vmem:[%s230 + $0x62] sm:$0xff]
  %v368 = vld [vmem:[%s230 + $0x6a] sm:$0xff]
  %v369 = vld [vmem:[%s230 + $0x7a] sm:$0xff]
  %v370 = vld [vmem:[%s230 + $0x82] sm:$0xff]
  %v371 = vld [vmem:[%s230 + $0x92] sm:$0xff]
  %v372 = vld [vmem:[%s230 + $0x9a] sm:$0xff]
  %v373 = vld [vmem:[%s230 + $0xaa] sm:$0xff]
  %v374 = vld [vmem:[%s230 + $0xb2] sm:$0xff]
  %v375 = vld [vmem:[%s230 + $0xc2] sm:$0xff]
  %v376 = vld [vmem:[%s230 + $0xca] sm:$0xff]
  %v377 = vld [vmem:[%s230 + $0xda] sm:$0xff]
  %v378 = vld [vmem:[%s230 + $0xe2] sm:$0xff]
  %v379 = vld [vmem:[%s230 + $0xf2] sm:$0xff]
  %v380 = vld [vmem:[%s230 + $0xfa] sm:$0xff]
  %v381 = vld [vmem:[%s230 + $0x10a] sm:$0xff]
  %v382 = vld [vmem:[%s230 + $0x112] sm:$0xff]
  %v383 = vld [vmem:[%s230 + $0x122] sm:$0xff]
  %v384 = vld [vmem:[%s230 + $0x12a] sm:$0xff]
  %v385 = vld [vmem:[%s230 + $0x13a] sm:$0xff]
  %v386 = vld [vmem:[%s230 + $0x142] sm:$0xff]
  %v387 = vld [vmem:[%s230 + $0x152] sm:$0xff]
  %v388 = vld [vmem:[%s230 + $0x15a] sm:$0xff]
  %v389 = vld [vmem:[%s230 + $0x16a] sm:$0xff]
  %v390 = vld [vmem:[%s230 + $0x172] sm:$0xff]
  %v391 = vld [vmem:[%s230 + $0x1b2] sm:$0xff]
  %v392 = vld [vmem:[%s230 + $0x1ba] sm:$0xff]
  %v393 = vld [vmem:[%s230 + $0x1ca] sm:$0xff]
  %v394 = vld [vmem:[%s230 + $0x1d2] sm:$0xff]
  %v395 = vld [vmem:[%s230 + $0x1e2] sm:$0xff]
  %v396 = vld [vmem:[%s230 + $0x1ea] sm:$0xff]
  %v397 = vld [vmem:[%s230 + $0x1fa] sm:$0xff]
  %v398 = vld [vmem:[%s230 + $0x202] sm:$0xff]
  %v399 = vld [vmem:[%s230 + $0x212] sm:$0xff]
  %v400 = vld [vmem:[%s230 + $0x21a] sm:$0xff]
  %v401 = vld [vmem:[%s230 + $0x22a] sm:$0xff]
  %v402 = vld [vmem:[%s230 + $0x232] sm:$0xff]
  %v403 = vld [vmem:[%s230 + $0x242] sm:$0xff]
  %v404 = vld [vmem:[%s230 + $0x24a] sm:$0xff]
  %v405 = vld [vmem:[%s230 + $0x25a] sm:$0xff]
  %v406 = vld [vmem:[%s230 + $0x262] sm:$0xff]
  %v407 = vld [vmem:[%s230 + $0x272] sm:$0xff]
  %v408 = vld [vmem:[%s230 + $0x27a] sm:$0xff]
  %v409 = vld [vmem:[%s230 + $0x28a] sm:$0xff]
  %v410 = vld [vmem:[%s230 + $0x292] sm:$0xff]
  %v411 = vld [vmem:[%s230 + $0x2a2] sm:$0xff]
  %v412 = vld [vmem:[%s230 + $0x2aa] sm:$0xff]
  %v413 = vld [vmem:[%s230 + $0x2ba] sm:$0xff]
  %v414 = vld [vmem:[%s230 + $0x2c2] sm:$0xff]
  %v415 = vld [vmem:[%s230 + $0x2d2] sm:$0xff]
  %v416 = vld [vmem:[%s230 + $0x2da] sm:$0xff]
  %v417 = vld [vmem:[%s230 + $0x2ea] sm:$0xff]
  %v418 = vld [vmem:[%s230 + $0x2f2] sm:$0xff]
  %v419 = vld [vmem:[%s230 + $0x302] sm:$0xff]
  %v420 = vld [vmem:[%s230 + $0x30a] sm:$0xff]
  %v421 = vld [vmem:[%s230 + $0x31a] sm:$0xff]
  %v422 = vld [vmem:[%s230 + $0x322] sm:$0xff]
  %s423 = scalar_lea.vmem %s0, 48
  %v424 = vld [vmem:[%s423] sm:$0xff]
  %v425 = vld [vmem:[%s423 + $0x8] sm:$0xff]
  %v426 = vld [vmem:[%s423 + $0x18] sm:$0xff]
  %v427 = vld [vmem:[%s423 + $0x20] sm:$0xff]
  %v428 = vld [vmem:[%s423 + $0x30] sm:$0xff]
  %v429 = vld [vmem:[%s423 + $0x38] sm:$0xff]
  %v430 = vld [vmem:[%s423 + $0x48] sm:$0xff]
  %v431 = vld [vmem:[%s423 + $0x50] sm:$0xff]
  %v432 = vld [vmem:[%s423 + $0x60] sm:$0xff]
  %v433 = vld [vmem:[%s423 + $0x68] sm:$0xff]
  %v434 = vld [vmem:[%s423 + $0x78] sm:$0xff]
  %v435 = vld [vmem:[%s423 + $0x80] sm:$0xff]
  %v436 = vld [vmem:[%s423 + $0x90] sm:$0xff]
  %v437 = vld [vmem:[%s423 + $0x98] sm:$0xff]
  %v438 = vld [vmem:[%s423 + $0xa8] sm:$0xff]
  %v439 = vld [vmem:[%s423 + $0xb0] sm:$0xff]
  %v440 = vld [vmem:[%s423 + $0xc0] sm:$0xff]
  %v441 = vld [vmem:[%s423 + $0xc8] sm:$0xff]
  %v442 = vld [vmem:[%s423 + $0xd8] sm:$0xff]
  %v443 = vld [vmem:[%s423 + $0xe0] sm:$0xff]
  %v444 = vld [vmem:[%s423 + $0xf0] sm:$0xff]
  %v445 = vld [vmem:[%s423 + $0xf8] sm:$0xff]
  %v446 = vld [vmem:[%s423 + $0x108] sm:$0xff]
  %v447 = vld [vmem:[%s423 + $0x110] sm:$0xff]
  %v448 = vld [vmem:[%s423 + $0x120] sm:$0xff]
  %v449 = vld [vmem:[%s423 + $0x128] sm:$0xff]
  %v450 = vld [vmem:[%s423 + $0x138] sm:$0xff]
  %v451 = vld [vmem:[%s423 + $0x140] sm:$0xff]
  %v452 = vld [vmem:[%s423 + $0x150] sm:$0xff]
  %v453 = vld [vmem:[%s423 + $0x158] sm:$0xff]
  %v454 = vld [vmem:[%s423 + $0x168] sm:$0xff]
  %v455 = vld [vmem:[%s423 + $0x170] sm:$0xff]
  %v456 = vld [vmem:[%s423 + $0x1b0] sm:$0xff]
  %v457 = vld [vmem:[%s423 + $0x1b8] sm:$0xff]
  %v458 = vld [vmem:[%s423 + $0x1c8] sm:$0xff]
  %v459 = vld [vmem:[%s423 + $0x1d0] sm:$0xff]
  %v460 = vld [vmem:[%s423 + $0x1e0] sm:$0xff]
  %v461 = vld [vmem:[%s423 + $0x1e8] sm:$0xff]
  %v462 = vld [vmem:[%s423 + $0x1f8] sm:$0xff]
  %v463 = vld [vmem:[%s423 + $0x200] sm:$0xff]
  %v464 = vld [vmem:[%s423 + $0x210] sm:$0xff]
  %v465 = vld [vmem:[%s423 + $0x218] sm:$0xff]
  %v466 = vld [vmem:[%s423 + $0x228] sm:$0xff]
  %v467 = vld [vmem:[%s423 + $0x230] sm:$0xff]
  %v468 = vld [vmem:[%s423 + $0x240] sm:$0xff]
  %v469 = vld [vmem:[%s423 + $0x248] sm:$0xff]
  %v470 = vld [vmem:[%s423 + $0x258] sm:$0xff]
  %v471 = vld [vmem:[%s423 + $0x260] sm:$0xff]
  %v472 = vld [vmem:[%s423 + $0x270] sm:$0xff]
  %v473 = vld [vmem:[%s423 + $0x278] sm:$0xff]
  %v474 = vld [vmem:[%s423 + $0x288] sm:$0xff]
  %v475 = vld [vmem:[%s423 + $0x290] sm:$0xff]
  %v476 = vld [vmem:[%s423 + $0x2a0] sm:$0xff]
  %v477 = vld [vmem:[%s423 + $0x2a8] sm:$0xff]
  %v478 = vld [vmem:[%s423 + $0x2b8] sm:$0xff]
  %v479 = vld [vmem:[%s423 + $0x2c0] sm:$0xff]
  %v480 = vld [vmem:[%s423 + $0x2d0] sm:$0xff]
  %v481 = vld [vmem:[%s423 + $0x2d8] sm:$0xff]
  %v482 = vld [vmem:[%s423 + $0x2e8] sm:$0xff]
  %v483 = vld [vmem:[%s423 + $0x2f0] sm:$0xff]
  %v484 = vld [vmem:[%s423 + $0x300] sm:$0xff]
  %v485 = vld [vmem:[%s423 + $0x308] sm:$0xff]
  %v486 = vld [vmem:[%s423 + $0x318] sm:$0xff]
  %v487 = vld [vmem:[%s423 + $0x320] sm:$0xff]
  %v488 = vld [vmem:[%s423 + $0x1] sm:$0xff]
  %v489 = vld [vmem:[%s423 + $0x9] sm:$0xff]
  %v490 = vld [vmem:[%s423 + $0x19] sm:$0xff]
  %v491 = vld [vmem:[%s423 + $0x21] sm:$0xff]
  %v492 = vld [vmem:[%s423 + $0x31] sm:$0xff]
  %v493 = vld [vmem:[%s423 + $0x39] sm:$0xff]
  %v494 = vld [vmem:[%s423 + $0x49] sm:$0xff]
  %v495 = vld [vmem:[%s423 + $0x51] sm:$0xff]
  %v496 = vld [vmem:[%s423 + $0x61] sm:$0xff]
  %v497 = vld [vmem:[%s423 + $0x69] sm:$0xff]
  %v498 = vld [vmem:[%s423 + $0x79] sm:$0xff]
  %v499 = vld [vmem:[%s423 + $0x81] sm:$0xff]
  %v500 = vld [vmem:[%s423 + $0x91] sm:$0xff]
  %v501 = vld [vmem:[%s423 + $0x99] sm:$0xff]
  %v502 = vld [vmem:[%s423 + $0xa9] sm:$0xff]
  %v503 = vld [vmem:[%s423 + $0xb1] sm:$0xff]
  %v504 = vld [vmem:[%s423 + $0xc1] sm:$0xff]
  %v505 = vld [vmem:[%s423 + $0xc9] sm:$0xff]
  %v506 = vld [vmem:[%s423 + $0xd9] sm:$0xff]
  %v507 = vld [vmem:[%s423 + $0xe1] sm:$0xff]
  %v508 = vld [vmem:[%s423 + $0xf1] sm:$0xff]
  %v509 = vld [vmem:[%s423 + $0xf9] sm:$0xff]
  %v510 = vld [vmem:[%s423 + $0x109] sm:$0xff]
  %v511 = vld [vmem:[%s423 + $0x111] sm:$0xff]
  %v512 = vld [vmem:[%s423 + $0x121] sm:$0xff]
  %v513 = vld [vmem:[%s423 + $0x129] sm:$0xff]
  %v514 = vld [vmem:[%s423 + $0x139] sm:$0xff]
  %v515 = vld [vmem:[%s423 + $0x141] sm:$0xff]
  %v516 = vld [vmem:[%s423 + $0x151] sm:$0xff]
  %v517 = vld [vmem:[%s423 + $0x159] sm:$0xff]
  %v518 = vld [vmem:[%s423 + $0x169] sm:$0xff]
  %v519 = vld [vmem:[%s423 + $0x171] sm:$0xff]
  %v520 = vld [vmem:[%s423 + $0x1b1] sm:$0xff]
  %v521 = vld [vmem:[%s423 + $0x1b9] sm:$0xff]
  %v522 = vld [vmem:[%s423 + $0x1c9] sm:$0xff]
  %v523 = vld [vmem:[%s423 + $0x1d1] sm:$0xff]
  %v524 = vld [vmem:[%s423 + $0x1e1] sm:$0xff]
  %v525 = vld [vmem:[%s423 + $0x1e9] sm:$0xff]
  %v526 = vld [vmem:[%s423 + $0x1f9] sm:$0xff]
  %v527 = vld [vmem:[%s423 + $0x201] sm:$0xff]
  %v528 = vld [vmem:[%s423 + $0x211] sm:$0xff]
  %v529 = vld [vmem:[%s423 + $0x219] sm:$0xff]
  %v530 = vld [vmem:[%s423 + $0x229] sm:$0xff]
  %v531 = vld [vmem:[%s423 + $0x231] sm:$0xff]
  %v532 = vld [vmem:[%s423 + $0x241] sm:$0xff]
  %v533 = vld [vmem:[%s423 + $0x249] sm:$0xff]
  %v534 = vld [vmem:[%s423 + $0x259] sm:$0xff]
  %v535 = vld [vmem:[%s423 + $0x261] sm:$0xff]
  %v536 = vld [vmem:[%s423 + $0x271] sm:$0xff]
  %v537 = vld [vmem:[%s423 + $0x279] sm:$0xff]
  %v538 = vld [vmem:[%s423 + $0x289] sm:$0xff]
  %v539 = vld [vmem:[%s423 + $0x291] sm:$0xff]
  %v540 = vld [vmem:[%s423 + $0x2a1] sm:$0xff]
  %v541 = vld [vmem:[%s423 + $0x2a9] sm:$0xff]
  %v542 = vld [vmem:[%s423 + $0x2b9] sm:$0xff]
  %v543 = vld [vmem:[%s423 + $0x2c1] sm:$0xff]
  %v544 = vld [vmem:[%s423 + $0x2d1] sm:$0xff]
  %v545 = vld [vmem:[%s423 + $0x2d9] sm:$0xff]
  %v546 = vld [vmem:[%s423 + $0x2e9] sm:$0xff]
  %v547 = vld [vmem:[%s423 + $0x2f1] sm:$0xff]
  %v548 = vld [vmem:[%s423 + $0x301] sm:$0xff]
  %v549 = vld [vmem:[%s423 + $0x309] sm:$0xff]
  %v550 = vld [vmem:[%s423 + $0x319] sm:$0xff]
  %v551 = vld [vmem:[%s423 + $0x321] sm:$0xff]
  %v552 = vld [vmem:[%s423 + $0x2] sm:$0xff]
  %v553 = vld [vmem:[%s423 + $0xa] sm:$0xff]
  %v554 = vld [vmem:[%s423 + $0x1a] sm:$0xff]
  %v555 = vld [vmem:[%s423 + $0x22] sm:$0xff]
  %v556 = vld [vmem:[%s423 + $0x32] sm:$0xff]
  %v557 = vld [vmem:[%s423 + $0x3a] sm:$0xff]
  %v558 = vld [vmem:[%s423 + $0x4a] sm:$0xff]
  %v559 = vld [vmem:[%s423 + $0x52] sm:$0xff]
  %v560 = vld [vmem:[%s423 + $0x62] sm:$0xff]
  %v561 = vld [vmem:[%s423 + $0x6a] sm:$0xff]
  %v562 = vld [vmem:[%s423 + $0x7a] sm:$0xff]
  %v563 = vld [vmem:[%s423 + $0x82] sm:$0xff]
  %v564 = vld [vmem:[%s423 + $0x92] sm:$0xff]
  %v565 = vld [vmem:[%s423 + $0x9a] sm:$0xff]
  %v566 = vld [vmem:[%s423 + $0xaa] sm:$0xff]
  %v567 = vld [vmem:[%s423 + $0xb2] sm:$0xff]
  %v568 = vld [vmem:[%s423 + $0xc2] sm:$0xff]
  %v569 = vld [vmem:[%s423 + $0xca] sm:$0xff]
  %v570 = vld [vmem:[%s423 + $0xda] sm:$0xff]
  %v571 = vld [vmem:[%s423 + $0xe2] sm:$0xff]
  %v572 = vld [vmem:[%s423 + $0xf2] sm:$0xff]
  %v573 = vld [vmem:[%s423 + $0xfa] sm:$0xff]
  %v574 = vld [vmem:[%s423 + $0x10a] sm:$0xff]
  %v575 = vld [vmem:[%s423 + $0x112] sm:$0xff]
  %v576 = vld [vmem:[%s423 + $0x122] sm:$0xff]
  %v577 = vld [vmem:[%s423 + $0x12a] sm:$0xff]
  %v578 = vld [vmem:[%s423 + $0x13a] sm:$0xff]
  %v579 = vld [vmem:[%s423 + $0x142] sm:$0xff]
  %v580 = vld [vmem:[%s423 + $0x152] sm:$0xff]
  %v581 = vld [vmem:[%s423 + $0x15a] sm:$0xff]
  %v582 = vld [vmem:[%s423 + $0x16a] sm:$0xff]
  %v583 = vld [vmem:[%s423 + $0x172] sm:$0xff]
  %v584 = vld [vmem:[%s423 + $0x1b2] sm:$0xff]
  %v585 = vld [vmem:[%s423 + $0x1ba] sm:$0xff]
  %v586 = vld [vmem:[%s423 + $0x1ca] sm:$0xff]
  %v587 = vld [vmem:[%s423 + $0x1d2] sm:$0xff]
  %v588 = vld [vmem:[%s423 + $0x1e2] sm:$0xff]
  %v589 = vld [vmem:[%s423 + $0x1ea] sm:$0xff]
  %v590 = vld [vmem:[%s423 + $0x1fa] sm:$0xff]
  %v591 = vld [vmem:[%s423 + $0x202] sm:$0xff]
  %v592 = vld [vmem:[%s423 + $0x212] sm:$0xff]
  %v593 = vld [vmem:[%s423 + $0x21a] sm:$0xff]
  %v594 = vld [vmem:[%s423 + $0x22a] sm:$0xff]
  %v595 = vld [vmem:[%s423 + $0x232] sm:$0xff]
  %v596 = vld [vmem:[%s423 + $0x242] sm:$0xff]
  %v597 = vld [vmem:[%s423 + $0x24a] sm:$0xff]
  %v598 = vld [vmem:[%s423 + $0x25a] sm:$0xff]
  %v599 = vld [vmem:[%s423 + $0x262] sm:$0xff]
  %v600 = vld [vmem:[%s423 + $0x272] sm:$0xff]
  %v601 = vld [vmem:[%s423 + $0x27a] sm:$0xff]
  %v602 = vld [vmem:[%s423 + $0x28a] sm:$0xff]
  %v603 = vld [vmem:[%s423 + $0x292] sm:$0xff]
  %v604 = vld [vmem:[%s423 + $0x2a2] sm:$0xff]
  %v605 = vld [vmem:[%s423 + $0x2aa] sm:$0xff]
  %v606 = vld [vmem:[%s423 + $0x2ba] sm:$0xff]
  %v607 = vld [vmem:[%s423 + $0x2c2] sm:$0xff]
  %v608 = vld [vmem:[%s423 + $0x2d2] sm:$0xff]
  %v609 = vld [vmem:[%s423 + $0x2da] sm:$0xff]
  %v610 = vld [vmem:[%s423 + $0x2ea] sm:$0xff]
  %v611 = vld [vmem:[%s423 + $0x2f2] sm:$0xff]
  %v612 = vld [vmem:[%s423 + $0x302] sm:$0xff]
  %v613 = vld [vmem:[%s423 + $0x30a] sm:$0xff]
  %v614 = vld [vmem:[%s423 + $0x31a] sm:$0xff]
  %v615 = vld [vmem:[%s423 + $0x322] sm:$0xff]
  %680 = vrot.lane.b32.xlu0 %v102, 8
  %v681 = vpop.permute.xlu0 %680
  %682 = vrot.lane.b32.xlu0 %v103, 8
  %v683 = vpop.permute.xlu0 %682
  %684 = vrot.lane.b32.xlu0 %v104, 8
  %v685 = vpop.permute.xlu0 %684
  %686 = vrot.lane.b32.xlu0 %v105, 8
  %v687 = vpop.permute.xlu0 %686
  %688 = vrot.lane.b32.xlu0 %v106, 8
  %v689 = vpop.permute.xlu0 %688
  %690 = vrot.lane.b32.xlu0 %v107, 8
  %v691 = vpop.permute.xlu0 %690
  %692 = vrot.lane.b32.xlu0 %v108, 8
  %v693 = vpop.permute.xlu0 %692
  %694 = vrot.lane.b32.xlu0 %v109, 8
  %v695 = vpop.permute.xlu0 %694
  %696 = vrot.lane.b32.xlu0 %v110, 8
  %v697 = vpop.permute.xlu0 %696
  %698 = vrot.lane.b32.xlu0 %v111, 8
  %v699 = vpop.permute.xlu0 %698
  %700 = vrot.lane.b32.xlu0 %v112, 8
  %v701 = vpop.permute.xlu0 %700
  %702 = vrot.lane.b32.xlu0 %v113, 8
  %v703 = vpop.permute.xlu0 %702
  %704 = vrot.lane.b32.xlu0 %v114, 8
  %v705 = vpop.permute.xlu0 %704
  %706 = vrot.lane.b32.xlu0 %v115, 8
  %v707 = vpop.permute.xlu0 %706
  %708 = vrot.lane.b32.xlu0 %v116, 8
  %v709 = vpop.permute.xlu0 %708
  %710 = vrot.lane.b32.xlu0 %v117, 8
  %v711 = vpop.permute.xlu0 %710
  %712 = vrot.lane.b32.xlu0 %v118, 8
  %v713 = vpop.permute.xlu0 %712
  %714 = vrot.lane.b32.xlu0 %v119, 8
  %v715 = vpop.permute.xlu0 %714
  %716 = vrot.lane.b32.xlu0 %v120, 8
  %v717 = vpop.permute.xlu0 %716
  %718 = vrot.lane.b32.xlu0 %v121, 8
  %v719 = vpop.permute.xlu0 %718
  %720 = vrot.lane.b32.xlu0 %v122, 8
  %v721 = vpop.permute.xlu0 %720
  %722 = vrot.lane.b32.xlu0 %v123, 8
  %v723 = vpop.permute.xlu0 %722
  %724 = vrot.lane.b32.xlu0 %v124, 8
  %v725 = vpop.permute.xlu0 %724
  %726 = vrot.lane.b32.xlu0 %v125, 8
  %v727 = vpop.permute.xlu0 %726
  %728 = vrot.lane.b32.xlu0 %v126, 8
  %v729 = vpop.permute.xlu0 %728
  %730 = vrot.lane.b32.xlu0 %v127, 8
  %v731 = vpop.permute.xlu0 %730
  %732 = vrot.lane.b32.xlu0 %v128, 8
  %v733 = vpop.permute.xlu0 %732
  %734 = vrot.lane.b32.xlu0 %v129, 8
  %v735 = vpop.permute.xlu0 %734
  %736 = vrot.lane.b32.xlu0 %v130, 8
  %v737 = vpop.permute.xlu0 %736
  %738 = vrot.lane.b32.xlu0 %v131, 8
  %v739 = vpop.permute.xlu0 %738
  %740 = vrot.lane.b32.xlu0 %v132, 8
  %v741 = vpop.permute.xlu0 %740
  %742 = vrot.lane.b32.xlu0 %v133, 8
  %v743 = vpop.permute.xlu0 %742
  %744 = vrot.lane.b32.xlu0 %v134, 8
  %v745 = vpop.permute.xlu0 %744
  %746 = vrot.lane.b32.xlu0 %v135, 8
  %v747 = vpop.permute.xlu0 %746
  %748 = vrot.lane.b32.xlu0 %v136, 8
  %v749 = vpop.permute.xlu0 %748
  %750 = vrot.lane.b32.xlu0 %v137, 8
  %v751 = vpop.permute.xlu0 %750
  %752 = vrot.lane.b32.xlu0 %v138, 8
  %v753 = vpop.permute.xlu0 %752
  %754 = vrot.lane.b32.xlu0 %v139, 8
  %v755 = vpop.permute.xlu0 %754
  %756 = vrot.lane.b32.xlu0 %v140, 8
  %v757 = vpop.permute.xlu0 %756
  %758 = vrot.lane.b32.xlu0 %v141, 8
  %v759 = vpop.permute.xlu0 %758
  %760 = vrot.lane.b32.xlu0 %v142, 8
  %v761 = vpop.permute.xlu0 %760
  %762 = vrot.lane.b32.xlu0 %v143, 8
  %v763 = vpop.permute.xlu0 %762
  %764 = vrot.lane.b32.xlu0 %v144, 8
  %v765 = vpop.permute.xlu0 %764
  %766 = vrot.lane.b32.xlu0 %v145, 8
  %v767 = vpop.permute.xlu0 %766
  %768 = vrot.lane.b32.xlu0 %v146, 8
  %v769 = vpop.permute.xlu0 %768
  %770 = vrot.lane.b32.xlu0 %v147, 8
  %v771 = vpop.permute.xlu0 %770
  %772 = vrot.lane.b32.xlu0 %v148, 8
  %v773 = vpop.permute.xlu0 %772
  %774 = vrot.lane.b32.xlu0 %v149, 8
  %v775 = vpop.permute.xlu0 %774
  %776 = vrot.lane.b32.xlu0 %v150, 8
  %v777 = vpop.permute.xlu0 %776
  %778 = vrot.lane.b32.xlu0 %v151, 8
  %v779 = vpop.permute.xlu0 %778
  %780 = vrot.lane.b32.xlu0 %v152, 8
  %v781 = vpop.permute.xlu0 %780
  %782 = vrot.lane.b32.xlu0 %v153, 8
  %v783 = vpop.permute.xlu0 %782
  %784 = vrot.lane.b32.xlu0 %v154, 8
  %v785 = vpop.permute.xlu0 %784
  %786 = vrot.lane.b32.xlu0 %v155, 8
  %v787 = vpop.permute.xlu0 %786
  %788 = vrot.lane.b32.xlu0 %v156, 8
  %v789 = vpop.permute.xlu0 %788
  %790 = vrot.lane.b32.xlu0 %v157, 8
  %v791 = vpop.permute.xlu0 %790
  %792 = vrot.lane.b32.xlu0 %v158, 8
  %v793 = vpop.permute.xlu0 %792
  %794 = vrot.lane.b32.xlu0 %v159, 8
  %v795 = vpop.permute.xlu0 %794
  %796 = vrot.lane.b32.xlu0 %v160, 8
  %v797 = vpop.permute.xlu0 %796
  %798 = vrot.lane.b32.xlu0 %v161, 8
  %v799 = vpop.permute.xlu0 %798
  %800 = vrot.lane.b32.xlu0 %v162, 8
  %v801 = vpop.permute.xlu0 %800
  %802 = vrot.lane.b32.xlu0 %v163, 8
  %v803 = vpop.permute.xlu0 %802
  %804 = vrot.lane.b32.xlu0 %v164, 8
  %v805 = vpop.permute.xlu0 %804
  %806 = vrot.lane.b32.xlu0 %v165, 8
  %v807 = vpop.permute.xlu0 %806
  %936 = vrot.lane.b32.xlu0 %v166, 16
  %v937 = vpop.permute.xlu0 %936
  %938 = vrot.lane.b32.xlu0 %v167, 16
  %v939 = vpop.permute.xlu0 %938
  %940 = vrot.lane.b32.xlu0 %v168, 16
  %v941 = vpop.permute.xlu0 %940
  %942 = vrot.lane.b32.xlu0 %v169, 16
  %v943 = vpop.permute.xlu0 %942
  %944 = vrot.lane.b32.xlu0 %v170, 16
  %v945 = vpop.permute.xlu0 %944
  %946 = vrot.lane.b32.xlu0 %v171, 16
  %v947 = vpop.permute.xlu0 %946
  %948 = vrot.lane.b32.xlu0 %v172, 16
  %v949 = vpop.permute.xlu0 %948
  %950 = vrot.lane.b32.xlu0 %v173, 16
  %v951 = vpop.permute.xlu0 %950
  %952 = vrot.lane.b32.xlu0 %v174, 16
  %v953 = vpop.permute.xlu0 %952
  %954 = vrot.lane.b32.xlu0 %v175, 16
  %v955 = vpop.permute.xlu0 %954
  %956 = vrot.lane.b32.xlu0 %v176, 16
  %v957 = vpop.permute.xlu0 %956
  %958 = vrot.lane.b32.xlu0 %v177, 16
  %v959 = vpop.permute.xlu0 %958
  %960 = vrot.lane.b32.xlu0 %v178, 16
  %v961 = vpop.permute.xlu0 %960
  %962 = vrot.lane.b32.xlu0 %v179, 16
  %v963 = vpop.permute.xlu0 %962
  %964 = vrot.lane.b32.xlu0 %v180, 16
  %v965 = vpop.permute.xlu0 %964
  %966 = vrot.lane.b32.xlu0 %v181, 16
  %v967 = vpop.permute.xlu0 %966
  %968 = vrot.lane.b32.xlu0 %v182, 16
  %v969 = vpop.permute.xlu0 %968
  %970 = vrot.lane.b32.xlu0 %v183, 16
  %v971 = vpop.permute.xlu0 %970
  %972 = vrot.lane.b32.xlu0 %v184, 16
  %v973 = vpop.permute.xlu0 %972
  %974 = vrot.lane.b32.xlu0 %v185, 16
  %v975 = vpop.permute.xlu0 %974
  %976 = vrot.lane.b32.xlu0 %v186, 16
  %v977 = vpop.permute.xlu0 %976
  %978 = vrot.lane.b32.xlu0 %v187, 16
  %v979 = vpop.permute.xlu0 %978
  %980 = vrot.lane.b32.xlu0 %v188, 16
  %v981 = vpop.permute.xlu0 %980
  %982 = vrot.lane.b32.xlu0 %v189, 16
  %v983 = vpop.permute.xlu0 %982
  %984 = vrot.lane.b32.xlu0 %v190, 16
  %v985 = vpop.permute.xlu0 %984
  %986 = vrot.lane.b32.xlu0 %v191, 16
  %v987 = vpop.permute.xlu0 %986
  %988 = vrot.lane.b32.xlu0 %v192, 16
  %v989 = vpop.permute.xlu0 %988
  %990 = vrot.lane.b32.xlu0 %v193, 16
  %v991 = vpop.permute.xlu0 %990
  %992 = vrot.lane.b32.xlu0 %v194, 16
  %v993 = vpop.permute.xlu0 %992
  %994 = vrot.lane.b32.xlu0 %v195, 16
  %v995 = vpop.permute.xlu0 %994
  %996 = vrot.lane.b32.xlu0 %v196, 16
  %v997 = vpop.permute.xlu0 %996
  %998 = vrot.lane.b32.xlu0 %v197, 16
  %v999 = vpop.permute.xlu0 %998
  %1000 = vrot.lane.b32.xlu0 %v198, 16
  %v1001 = vpop.permute.xlu0 %1000
  %1002 = vrot.lane.b32.xlu0 %v199, 16
  %v1003 = vpop.permute.xlu0 %1002
  %1004 = vrot.lane.b32.xlu0 %v200, 16
  %v1005 = vpop.permute.xlu0 %1004
  %1006 = vrot.lane.b32.xlu0 %v201, 16
  %v1007 = vpop.permute.xlu0 %1006
  %1008 = vrot.lane.b32.xlu0 %v202, 16
  %v1009 = vpop.permute.xlu0 %1008
  %1010 = vrot.lane.b32.xlu0 %v203, 16
  %v1011 = vpop.permute.xlu0 %1010
  %1012 = vrot.lane.b32.xlu0 %v204, 16
  %v1013 = vpop.permute.xlu0 %1012
  %1014 = vrot.lane.b32.xlu0 %v205, 16
  %v1015 = vpop.permute.xlu0 %1014
  %1016 = vrot.lane.b32.xlu0 %v206, 16
  %v1017 = vpop.permute.xlu0 %1016
  %1018 = vrot.lane.b32.xlu0 %v207, 16
  %v1019 = vpop.permute.xlu0 %1018
  %1020 = vrot.lane.b32.xlu0 %v208, 16
  %v1021 = vpop.permute.xlu0 %1020
  %1022 = vrot.lane.b32.xlu0 %v209, 16
  %v1023 = vpop.permute.xlu0 %1022
  %1024 = vrot.lane.b32.xlu0 %v210, 16
  %v1025 = vpop.permute.xlu0 %1024
  %1026 = vrot.lane.b32.xlu0 %v211, 16
  %v1027 = vpop.permute.xlu0 %1026
  %1028 = vrot.lane.b32.xlu0 %v212, 16
  %v1029 = vpop.permute.xlu0 %1028
  %1030 = vrot.lane.b32.xlu0 %v213, 16
  %v1031 = vpop.permute.xlu0 %1030
  %1032 = vrot.lane.b32.xlu0 %v214, 16
  %v1033 = vpop.permute.xlu0 %1032
  %1034 = vrot.lane.b32.xlu0 %v215, 16
  %v1035 = vpop.permute.xlu0 %1034
  %1036 = vrot.lane.b32.xlu0 %v216, 16
  %v1037 = vpop.permute.xlu0 %1036
  %1038 = vrot.lane.b32.xlu0 %v217, 16
  %v1039 = vpop.permute.xlu0 %1038
  %1040 = vrot.lane.b32.xlu0 %v218, 16
  %v1041 = vpop.permute.xlu0 %1040
  %1042 = vrot.lane.b32.xlu0 %v219, 16
  %v1043 = vpop.permute.xlu0 %1042
  %1044 = vrot.lane.b32.xlu0 %v220, 16
  %v1045 = vpop.permute.xlu0 %1044
  %1046 = vrot.lane.b32.xlu0 %v221, 16
  %v1047 = vpop.permute.xlu0 %1046
  %1048 = vrot.lane.b32.xlu0 %v222, 16
  %v1049 = vpop.permute.xlu0 %1048
  %1050 = vrot.lane.b32.xlu0 %v223, 16
  %v1051 = vpop.permute.xlu0 %1050
  %1052 = vrot.lane.b32.xlu0 %v224, 16
  %v1053 = vpop.permute.xlu0 %1052
  %1054 = vrot.lane.b32.xlu0 %v225, 16
  %v1055 = vpop.permute.xlu0 %1054
  %1056 = vrot.lane.b32.xlu0 %v226, 16
  %v1057 = vpop.permute.xlu0 %1056
  %1058 = vrot.lane.b32.xlu0 %v227, 16
  %v1059 = vpop.permute.xlu0 %1058
  %1060 = vrot.lane.b32.xlu0 %v228, 16
  %v1061 = vpop.permute.xlu0 %1060
  %1062 = vrot.lane.b32.xlu0 %v229, 16
  %v1063 = vpop.permute.xlu0 %1062
  %1192 = vrot.lane.b32.xlu0 %v231, 24
  %v1193 = vpop.permute.xlu0 %1192
  %1194 = vrot.lane.b32.xlu0 %v232, 24
  %v1195 = vpop.permute.xlu0 %1194
  %1196 = vrot.lane.b32.xlu0 %v233, 24
  %v1197 = vpop.permute.xlu0 %1196
  %1198 = vrot.lane.b32.xlu0 %v234, 24
  %v1199 = vpop.permute.xlu0 %1198
  %1200 = vrot.lane.b32.xlu0 %v235, 24
  %v1201 = vpop.permute.xlu0 %1200
  %1202 = vrot.lane.b32.xlu0 %v236, 24
  %v1203 = vpop.permute.xlu0 %1202
  %1204 = vrot.lane.b32.xlu0 %v237, 24
  %v1205 = vpop.permute.xlu0 %1204
  %1206 = vrot.lane.b32.xlu0 %v238, 24
  %v1207 = vpop.permute.xlu0 %1206
  %1208 = vrot.lane.b32.xlu0 %v239, 24
  %v1209 = vpop.permute.xlu0 %1208
  %1210 = vrot.lane.b32.xlu0 %v240, 24
  %v1211 = vpop.permute.xlu0 %1210
  %1212 = vrot.lane.b32.xlu0 %v241, 24
  %v1213 = vpop.permute.xlu0 %1212
  %1214 = vrot.lane.b32.xlu0 %v242, 24
  %v1215 = vpop.permute.xlu0 %1214
  %1216 = vrot.lane.b32.xlu0 %v243, 24
  %v1217 = vpop.permute.xlu0 %1216
  %1218 = vrot.lane.b32.xlu0 %v244, 24
  %v1219 = vpop.permute.xlu0 %1218
  %1220 = vrot.lane.b32.xlu0 %v245, 24
  %v1221 = vpop.permute.xlu0 %1220
  %1222 = vrot.lane.b32.xlu0 %v246, 24
  %v1223 = vpop.permute.xlu0 %1222
  %1224 = vrot.lane.b32.xlu0 %v247, 24
  %v1225 = vpop.permute.xlu0 %1224
  %1226 = vrot.lane.b32.xlu0 %v248, 24
  %v1227 = vpop.permute.xlu0 %1226
  %1228 = vrot.lane.b32.xlu0 %v249, 24
  %v1229 = vpop.permute.xlu0 %1228
  %1230 = vrot.lane.b32.xlu0 %v250, 24
  %v1231 = vpop.permute.xlu0 %1230
  %1232 = vrot.lane.b32.xlu0 %v251, 24
  %v1233 = vpop.permute.xlu0 %1232
  %1234 = vrot.lane.b32.xlu0 %v252, 24
  %v1235 = vpop.permute.xlu0 %1234
  %1236 = vrot.lane.b32.xlu0 %v253, 24
  %v1237 = vpop.permute.xlu0 %1236
  %1238 = vrot.lane.b32.xlu0 %v254, 24
  %v1239 = vpop.permute.xlu0 %1238
  %1240 = vrot.lane.b32.xlu0 %v255, 24
  %v1241 = vpop.permute.xlu0 %1240
  %1242 = vrot.lane.b32.xlu0 %v256, 24
  %v1243 = vpop.permute.xlu0 %1242
  %1244 = vrot.lane.b32.xlu0 %v257, 24
  %v1245 = vpop.permute.xlu0 %1244
  %1246 = vrot.lane.b32.xlu0 %v258, 24
  %v1247 = vpop.permute.xlu0 %1246
  %1248 = vrot.lane.b32.xlu0 %v259, 24
  %v1249 = vpop.permute.xlu0 %1248
  %1250 = vrot.lane.b32.xlu0 %v260, 24
  %v1251 = vpop.permute.xlu0 %1250
  %1252 = vrot.lane.b32.xlu0 %v261, 24
  %v1253 = vpop.permute.xlu0 %1252
  %1254 = vrot.lane.b32.xlu0 %v262, 24
  %v1255 = vpop.permute.xlu0 %1254
  %1256 = vrot.lane.b32.xlu0 %v263, 24
  %v1257 = vpop.permute.xlu0 %1256
  %1258 = vrot.lane.b32.xlu0 %v264, 24
  %v1259 = vpop.permute.xlu0 %1258
  %1260 = vrot.lane.b32.xlu0 %v265, 24
  %v1261 = vpop.permute.xlu0 %1260
  %1262 = vrot.lane.b32.xlu0 %v266, 24
  %v1263 = vpop.permute.xlu0 %1262
  %1264 = vrot.lane.b32.xlu0 %v267, 24
  %v1265 = vpop.permute.xlu0 %1264
  %1266 = vrot.lane.b32.xlu0 %v268, 24
  %v1267 = vpop.permute.xlu0 %1266
  %1268 = vrot.lane.b32.xlu0 %v269, 24
  %v1269 = vpop.permute.xlu0 %1268
  %1270 = vrot.lane.b32.xlu0 %v270, 24
  %v1271 = vpop.permute.xlu0 %1270
  %1272 = vrot.lane.b32.xlu0 %v271, 24
  %v1273 = vpop.permute.xlu0 %1272
  %1274 = vrot.lane.b32.xlu0 %v272, 24
  %v1275 = vpop.permute.xlu0 %1274
  %1276 = vrot.lane.b32.xlu0 %v273, 24
  %v1277 = vpop.permute.xlu0 %1276
  %1278 = vrot.lane.b32.xlu0 %v274, 24
  %v1279 = vpop.permute.xlu0 %1278
  %1280 = vrot.lane.b32.xlu0 %v275, 24
  %v1281 = vpop.permute.xlu0 %1280
  %1282 = vrot.lane.b32.xlu0 %v276, 24
  %v1283 = vpop.permute.xlu0 %1282
  %1284 = vrot.lane.b32.xlu0 %v277, 24
  %v1285 = vpop.permute.xlu0 %1284
  %1286 = vrot.lane.b32.xlu0 %v278, 24
  %v1287 = vpop.permute.xlu0 %1286
  %1288 = vrot.lane.b32.xlu0 %v279, 24
  %v1289 = vpop.permute.xlu0 %1288
  %1290 = vrot.lane.b32.xlu0 %v280, 24
  %v1291 = vpop.permute.xlu0 %1290
  %1292 = vrot.lane.b32.xlu0 %v281, 24
  %v1293 = vpop.permute.xlu0 %1292
  %1294 = vrot.lane.b32.xlu0 %v282, 24
  %v1295 = vpop.permute.xlu0 %1294
  %1296 = vrot.lane.b32.xlu0 %v283, 24
  %v1297 = vpop.permute.xlu0 %1296
  %1298 = vrot.lane.b32.xlu0 %v284, 24
  %v1299 = vpop.permute.xlu0 %1298
  %1300 = vrot.lane.b32.xlu0 %v285, 24
  %v1301 = vpop.permute.xlu0 %1300
  %1302 = vrot.lane.b32.xlu0 %v286, 24
  %v1303 = vpop.permute.xlu0 %1302
  %1304 = vrot.lane.b32.xlu0 %v287, 24
  %v1305 = vpop.permute.xlu0 %1304
  %1306 = vrot.lane.b32.xlu0 %v288, 24
  %v1307 = vpop.permute.xlu0 %1306
  %1308 = vrot.lane.b32.xlu0 %v289, 24
  %v1309 = vpop.permute.xlu0 %1308
  %1310 = vrot.lane.b32.xlu0 %v290, 24
  %v1311 = vpop.permute.xlu0 %1310
  %1312 = vrot.lane.b32.xlu0 %v291, 24
  %v1313 = vpop.permute.xlu0 %1312
  %1314 = vrot.lane.b32.xlu0 %v292, 24
  %v1315 = vpop.permute.xlu0 %1314
  %1316 = vrot.lane.b32.xlu0 %v293, 24
  %v1317 = vpop.permute.xlu0 %1316
  %1318 = vrot.lane.b32.xlu0 %v294, 24
  %v1319 = vpop.permute.xlu0 %1318
  %1448 = vrot.lane.b32.xlu0 %v295, 32
  %v1449 = vpop.permute.xlu0 %1448
  %1450 = vrot.lane.b32.xlu0 %v296, 32
  %v1451 = vpop.permute.xlu0 %1450
  %1452 = vrot.lane.b32.xlu0 %v297, 32
  %v1453 = vpop.permute.xlu0 %1452
  %1454 = vrot.lane.b32.xlu0 %v298, 32
  %v1455 = vpop.permute.xlu0 %1454
  %1456 = vrot.lane.b32.xlu0 %v299, 32
  %v1457 = vpop.permute.xlu0 %1456
  %1458 = vrot.lane.b32.xlu0 %v300, 32
  %v1459 = vpop.permute.xlu0 %1458
  %1460 = vrot.lane.b32.xlu0 %v301, 32
  %v1461 = vpop.permute.xlu0 %1460
  %1462 = vrot.lane.b32.xlu0 %v302, 32
  %v1463 = vpop.permute.xlu0 %1462
  %1464 = vrot.lane.b32.xlu0 %v303, 32
  %v1465 = vpop.permute.xlu0 %1464
  %1466 = vrot.lane.b32.xlu0 %v304, 32
  %v1467 = vpop.permute.xlu0 %1466
  %1468 = vrot.lane.b32.xlu0 %v305, 32
  %v1469 = vpop.permute.xlu0 %1468
  %1470 = vrot.lane.b32.xlu0 %v306, 32
  %v1471 = vpop.permute.xlu0 %1470
  %1472 = vrot.lane.b32.xlu0 %v307, 32
  %v1473 = vpop.permute.xlu0 %1472
  %1474 = vrot.lane.b32.xlu0 %v308, 32
  %v1475 = vpop.permute.xlu0 %1474
  %1476 = vrot.lane.b32.xlu0 %v309, 32
  %v1477 = vpop.permute.xlu0 %1476
  %1478 = vrot.lane.b32.xlu0 %v310, 32
  %v1479 = vpop.permute.xlu0 %1478
  %1480 = vrot.lane.b32.xlu0 %v311, 32
  %v1481 = vpop.permute.xlu0 %1480
  %1482 = vrot.lane.b32.xlu0 %v312, 32
  %v1483 = vpop.permute.xlu0 %1482
  %1484 = vrot.lane.b32.xlu0 %v313, 32
  %v1485 = vpop.permute.xlu0 %1484
  %1486 = vrot.lane.b32.xlu0 %v314, 32
  %v1487 = vpop.permute.xlu0 %1486
  %1488 = vrot.lane.b32.xlu0 %v315, 32
  %v1489 = vpop.permute.xlu0 %1488
  %1490 = vrot.lane.b32.xlu0 %v316, 32
  %v1491 = vpop.permute.xlu0 %1490
  %1492 = vrot.lane.b32.xlu0 %v317, 32
  %v1493 = vpop.permute.xlu0 %1492
  %1494 = vrot.lane.b32.xlu0 %v318, 32
  %v1495 = vpop.permute.xlu0 %1494
  %1496 = vrot.lane.b32.xlu0 %v319, 32
  %v1497 = vpop.permute.xlu0 %1496
  %1498 = vrot.lane.b32.xlu0 %v320, 32
  %v1499 = vpop.permute.xlu0 %1498
  %1500 = vrot.lane.b32.xlu0 %v321, 32
  %v1501 = vpop.permute.xlu0 %1500
  %1502 = vrot.lane.b32.xlu0 %v322, 32
  %v1503 = vpop.permute.xlu0 %1502
  %1504 = vrot.lane.b32.xlu0 %v323, 32
  %v1505 = vpop.permute.xlu0 %1504
  %1506 = vrot.lane.b32.xlu0 %v324, 32
  %v1507 = vpop.permute.xlu0 %1506
  %1508 = vrot.lane.b32.xlu0 %v325, 32
  %v1509 = vpop.permute.xlu0 %1508
  %1510 = vrot.lane.b32.xlu0 %v326, 32
  %v1511 = vpop.permute.xlu0 %1510
  %1512 = vrot.lane.b32.xlu0 %v327, 32
  %v1513 = vpop.permute.xlu0 %1512
  %1514 = vrot.lane.b32.xlu0 %v328, 32
  %v1515 = vpop.permute.xlu0 %1514
  %1516 = vrot.lane.b32.xlu0 %v329, 32
  %v1517 = vpop.permute.xlu0 %1516
  %1518 = vrot.lane.b32.xlu0 %v330, 32
  %v1519 = vpop.permute.xlu0 %1518
  %1520 = vrot.lane.b32.xlu0 %v331, 32
  %v1521 = vpop.permute.xlu0 %1520
  %1522 = vrot.lane.b32.xlu0 %v332, 32
  %v1523 = vpop.permute.xlu0 %1522
  %1524 = vrot.lane.b32.xlu0 %v333, 32
  %v1525 = vpop.permute.xlu0 %1524
  %1526 = vrot.lane.b32.xlu0 %v334, 32
  %v1527 = vpop.permute.xlu0 %1526
  %1528 = vrot.lane.b32.xlu0 %v335, 32
  %v1529 = vpop.permute.xlu0 %1528
  %1530 = vrot.lane.b32.xlu0 %v336, 32
  %v1531 = vpop.permute.xlu0 %1530
  %1532 = vrot.lane.b32.xlu0 %v337, 32
  %v1533 = vpop.permute.xlu0 %1532
  %1534 = vrot.lane.b32.xlu0 %v338, 32
  %v1535 = vpop.permute.xlu0 %1534
  %1536 = vrot.lane.b32.xlu0 %v339, 32
  %v1537 = vpop.permute.xlu0 %1536
  %1538 = vrot.lane.b32.xlu0 %v340, 32
  %v1539 = vpop.permute.xlu0 %1538
  %1540 = vrot.lane.b32.xlu0 %v341, 32
  %v1541 = vpop.permute.xlu0 %1540
  %1542 = vrot.lane.b32.xlu0 %v342, 32
  %v1543 = vpop.permute.xlu0 %1542
  %1544 = vrot.lane.b32.xlu0 %v343, 32
  %v1545 = vpop.permute.xlu0 %1544
  %1546 = vrot.lane.b32.xlu0 %v344, 32
  %v1547 = vpop.permute.xlu0 %1546
  %1548 = vrot.lane.b32.xlu0 %v345, 32
  %v1549 = vpop.permute.xlu0 %1548
  %1550 = vrot.lane.b32.xlu0 %v346, 32
  %v1551 = vpop.permute.xlu0 %1550
  %1552 = vrot.lane.b32.xlu0 %v347, 32
  %v1553 = vpop.permute.xlu0 %1552
  %1554 = vrot.lane.b32.xlu0 %v348, 32
  %v1555 = vpop.permute.xlu0 %1554
  %1556 = vrot.lane.b32.xlu0 %v349, 32
  %v1557 = vpop.permute.xlu0 %1556
  %1558 = vrot.lane.b32.xlu0 %v350, 32
  %v1559 = vpop.permute.xlu0 %1558
  %1560 = vrot.lane.b32.xlu0 %v351, 32
  %v1561 = vpop.permute.xlu0 %1560
  %1562 = vrot.lane.b32.xlu0 %v352, 32
  %v1563 = vpop.permute.xlu0 %1562
  %1564 = vrot.lane.b32.xlu0 %v353, 32
  %v1565 = vpop.permute.xlu0 %1564
  %1566 = vrot.lane.b32.xlu0 %v354, 32
  %v1567 = vpop.permute.xlu0 %1566
  %1568 = vrot.lane.b32.xlu0 %v355, 32
  %v1569 = vpop.permute.xlu0 %1568
  %1570 = vrot.lane.b32.xlu0 %v356, 32
  %v1571 = vpop.permute.xlu0 %1570
  %1572 = vrot.lane.b32.xlu0 %v357, 32
  %v1573 = vpop.permute.xlu0 %1572
  %1574 = vrot.lane.b32.xlu0 %v358, 32
  %v1575 = vpop.permute.xlu0 %1574
  %1704 = vrot.lane.b32.xlu0 %v359, 40
  %v1705 = vpop.permute.xlu0 %1704
  %1706 = vrot.lane.b32.xlu0 %v360, 40
  %v1707 = vpop.permute.xlu0 %1706
  %1708 = vrot.lane.b32.xlu0 %v361, 40
  %v1709 = vpop.permute.xlu0 %1708
  %1710 = vrot.lane.b32.xlu0 %v362, 40
  %v1711 = vpop.permute.xlu0 %1710
  %1712 = vrot.lane.b32.xlu0 %v363, 40
  %v1713 = vpop.permute.xlu0 %1712
  %1714 = vrot.lane.b32.xlu0 %v364, 40
  %v1715 = vpop.permute.xlu0 %1714
  %1716 = vrot.lane.b32.xlu0 %v365, 40
  %v1717 = vpop.permute.xlu0 %1716
  %1718 = vrot.lane.b32.xlu0 %v366, 40
  %v1719 = vpop.permute.xlu0 %1718
  %1720 = vrot.lane.b32.xlu0 %v367, 40
  %v1721 = vpop.permute.xlu0 %1720
  %1722 = vrot.lane.b32.xlu0 %v368, 40
  %v1723 = vpop.permute.xlu0 %1722
  %1724 = vrot.lane.b32.xlu0 %v369, 40
  %v1725 = vpop.permute.xlu0 %1724
  %1726 = vrot.lane.b32.xlu0 %v370, 40
  %v1727 = vpop.permute.xlu0 %1726
  %1728 = vrot.lane.b32.xlu0 %v371, 40
  %v1729 = vpop.permute.xlu0 %1728
  %1730 = vrot.lane.b32.xlu0 %v372, 40
  %v1731 = vpop.permute.xlu0 %1730
  %1732 = vrot.lane.b32.xlu0 %v373, 40
  %v1733 = vpop.permute.xlu0 %1732
  %1734 = vrot.lane.b32.xlu0 %v374, 40
  %v1735 = vpop.permute.xlu0 %1734
  %1736 = vrot.lane.b32.xlu0 %v375, 40
  %v1737 = vpop.permute.xlu0 %1736
  %1738 = vrot.lane.b32.xlu0 %v376, 40
  %v1739 = vpop.permute.xlu0 %1738
  %1740 = vrot.lane.b32.xlu0 %v377, 40
  %v1741 = vpop.permute.xlu0 %1740
  %1742 = vrot.lane.b32.xlu0 %v378, 40
  %v1743 = vpop.permute.xlu0 %1742
  %1744 = vrot.lane.b32.xlu0 %v379, 40
  %v1745 = vpop.permute.xlu0 %1744
  %1746 = vrot.lane.b32.xlu0 %v380, 40
  %v1747 = vpop.permute.xlu0 %1746
  %1748 = vrot.lane.b32.xlu0 %v381, 40
  %v1749 = vpop.permute.xlu0 %1748
  %1750 = vrot.lane.b32.xlu0 %v382, 40
  %v1751 = vpop.permute.xlu0 %1750
  %1752 = vrot.lane.b32.xlu0 %v383, 40
  %v1753 = vpop.permute.xlu0 %1752
  %1754 = vrot.lane.b32.xlu0 %v384, 40
  %v1755 = vpop.permute.xlu0 %1754
  %1756 = vrot.lane.b32.xlu0 %v385, 40
  %v1757 = vpop.permute.xlu0 %1756
  %1758 = vrot.lane.b32.xlu0 %v386, 40
  %v1759 = vpop.permute.xlu0 %1758
  %1760 = vrot.lane.b32.xlu0 %v387, 40
  %v1761 = vpop.permute.xlu0 %1760
  %1762 = vrot.lane.b32.xlu0 %v388, 40
  %v1763 = vpop.permute.xlu0 %1762
  %1764 = vrot.lane.b32.xlu0 %v389, 40
  %v1765 = vpop.permute.xlu0 %1764
  %1766 = vrot.lane.b32.xlu0 %v390, 40
  %v1767 = vpop.permute.xlu0 %1766
  %1768 = vrot.lane.b32.xlu0 %v391, 40
  %v1769 = vpop.permute.xlu0 %1768
  %1770 = vrot.lane.b32.xlu0 %v392, 40
  %v1771 = vpop.permute.xlu0 %1770
  %1772 = vrot.lane.b32.xlu0 %v393, 40
  %v1773 = vpop.permute.xlu0 %1772
  %1774 = vrot.lane.b32.xlu0 %v394, 40
  %v1775 = vpop.permute.xlu0 %1774
  %1776 = vrot.lane.b32.xlu0 %v395, 40
  %v1777 = vpop.permute.xlu0 %1776
  %1778 = vrot.lane.b32.xlu0 %v396, 40
  %v1779 = vpop.permute.xlu0 %1778
  %1780 = vrot.lane.b32.xlu0 %v397, 40
  %v1781 = vpop.permute.xlu0 %1780
  %1782 = vrot.lane.b32.xlu0 %v398, 40
  %v1783 = vpop.permute.xlu0 %1782
  %1784 = vrot.lane.b32.xlu0 %v399, 40
  %v1785 = vpop.permute.xlu0 %1784
  %1786 = vrot.lane.b32.xlu0 %v400, 40
  %v1787 = vpop.permute.xlu0 %1786
  %1788 = vrot.lane.b32.xlu0 %v401, 40
  %v1789 = vpop.permute.xlu0 %1788
  %1790 = vrot.lane.b32.xlu0 %v402, 40
  %v1791 = vpop.permute.xlu0 %1790
  %1792 = vrot.lane.b32.xlu0 %v403, 40
  %v1793 = vpop.permute.xlu0 %1792
  %1794 = vrot.lane.b32.xlu0 %v404, 40
  %v1795 = vpop.permute.xlu0 %1794
  %1796 = vrot.lane.b32.xlu0 %v405, 40
  %v1797 = vpop.permute.xlu0 %1796
  %1798 = vrot.lane.b32.xlu0 %v406, 40
  %v1799 = vpop.permute.xlu0 %1798
  %1800 = vrot.lane.b32.xlu0 %v407, 40
  %v1801 = vpop.permute.xlu0 %1800
  %1802 = vrot.lane.b32.xlu0 %v408, 40
  %v1803 = vpop.permute.xlu0 %1802
  %1804 = vrot.lane.b32.xlu0 %v409, 40
  %v1805 = vpop.permute.xlu0 %1804
  %1806 = vrot.lane.b32.xlu0 %v410, 40
  %v1807 = vpop.permute.xlu0 %1806
  %1808 = vrot.lane.b32.xlu0 %v411, 40
  %v1809 = vpop.permute.xlu0 %1808
  %1810 = vrot.lane.b32.xlu0 %v412, 40
  %v1811 = vpop.permute.xlu0 %1810
  %1812 = vrot.lane.b32.xlu0 %v413, 40
  %v1813 = vpop.permute.xlu0 %1812
  %1814 = vrot.lane.b32.xlu0 %v414, 40
  %v1815 = vpop.permute.xlu0 %1814
  %1816 = vrot.lane.b32.xlu0 %v415, 40
  %v1817 = vpop.permute.xlu0 %1816
  %1818 = vrot.lane.b32.xlu0 %v416, 40
  %v1819 = vpop.permute.xlu0 %1818
  %1820 = vrot.lane.b32.xlu0 %v417, 40
  %v1821 = vpop.permute.xlu0 %1820
  %1822 = vrot.lane.b32.xlu0 %v418, 40
  %v1823 = vpop.permute.xlu0 %1822
  %1824 = vrot.lane.b32.xlu0 %v419, 40
  %v1825 = vpop.permute.xlu0 %1824
  %1826 = vrot.lane.b32.xlu0 %v420, 40
  %v1827 = vpop.permute.xlu0 %1826
  %1828 = vrot.lane.b32.xlu0 %v421, 40
  %v1829 = vpop.permute.xlu0 %1828
  %1830 = vrot.lane.b32.xlu0 %v422, 40
  %v1831 = vpop.permute.xlu0 %1830
  %1960 = vrot.lane.b32.xlu0 %v424, 48
  %v1961 = vpop.permute.xlu0 %1960
  %1962 = vrot.lane.b32.xlu0 %v425, 48
  %v1963 = vpop.permute.xlu0 %1962
  %1964 = vrot.lane.b32.xlu0 %v426, 48
  %v1965 = vpop.permute.xlu0 %1964
  %1966 = vrot.lane.b32.xlu0 %v427, 48
  %v1967 = vpop.permute.xlu0 %1966
  %1968 = vrot.lane.b32.xlu0 %v428, 48
  %v1969 = vpop.permute.xlu0 %1968
  %1970 = vrot.lane.b32.xlu0 %v429, 48
  %v1971 = vpop.permute.xlu0 %1970
  %1972 = vrot.lane.b32.xlu0 %v430, 48
  %v1973 = vpop.permute.xlu0 %1972
  %1974 = vrot.lane.b32.xlu0 %v431, 48
  %v1975 = vpop.permute.xlu0 %1974
  %1976 = vrot.lane.b32.xlu0 %v432, 48
  %v1977 = vpop.permute.xlu0 %1976
  %1978 = vrot.lane.b32.xlu0 %v433, 48
  %v1979 = vpop.permute.xlu0 %1978
  %1980 = vrot.lane.b32.xlu0 %v434, 48
  %v1981 = vpop.permute.xlu0 %1980
  %1982 = vrot.lane.b32.xlu0 %v435, 48
  %v1983 = vpop.permute.xlu0 %1982
  %1984 = vrot.lane.b32.xlu0 %v436, 48
  %v1985 = vpop.permute.xlu0 %1984
  %1986 = vrot.lane.b32.xlu0 %v437, 48
  %v1987 = vpop.permute.xlu0 %1986
  %1988 = vrot.lane.b32.xlu0 %v438, 48
  %v1989 = vpop.permute.xlu0 %1988
  %1990 = vrot.lane.b32.xlu0 %v439, 48
  %v1991 = vpop.permute.xlu0 %1990
  %1992 = vrot.lane.b32.xlu0 %v440, 48
  %v1993 = vpop.permute.xlu0 %1992
  %1994 = vrot.lane.b32.xlu0 %v441, 48
  %v1995 = vpop.permute.xlu0 %1994
  %1996 = vrot.lane.b32.xlu0 %v442, 48
  %v1997 = vpop.permute.xlu0 %1996
  %1998 = vrot.lane.b32.xlu0 %v443, 48
  %v1999 = vpop.permute.xlu0 %1998
  %2000 = vrot.lane.b32.xlu0 %v444, 48
  %v2001 = vpop.permute.xlu0 %2000
  %2002 = vrot.lane.b32.xlu0 %v445, 48
  %v2003 = vpop.permute.xlu0 %2002
  %2004 = vrot.lane.b32.xlu0 %v446, 48
  %v2005 = vpop.permute.xlu0 %2004
  %2006 = vrot.lane.b32.xlu0 %v447, 48
  %v2007 = vpop.permute.xlu0 %2006
  %2008 = vrot.lane.b32.xlu0 %v448, 48
  %v2009 = vpop.permute.xlu0 %2008
  %2010 = vrot.lane.b32.xlu0 %v449, 48
  %v2011 = vpop.permute.xlu0 %2010
  %2012 = vrot.lane.b32.xlu0 %v450, 48
  %v2013 = vpop.permute.xlu0 %2012
  %2014 = vrot.lane.b32.xlu0 %v451, 48
  %v2015 = vpop.permute.xlu0 %2014
  %2016 = vrot.lane.b32.xlu0 %v452, 48
  %v2017 = vpop.permute.xlu0 %2016
  %2018 = vrot.lane.b32.xlu0 %v453, 48
  %v2019 = vpop.permute.xlu0 %2018
  %2020 = vrot.lane.b32.xlu0 %v454, 48
  %v2021 = vpop.permute.xlu0 %2020
  %2022 = vrot.lane.b32.xlu0 %v455, 48
  %v2023 = vpop.permute.xlu0 %2022
  %2024 = vrot.lane.b32.xlu0 %v456, 48
  %v2025 = vpop.permute.xlu0 %2024
  %2026 = vrot.lane.b32.xlu0 %v457, 48
  %v2027 = vpop.permute.xlu0 %2026
  %2028 = vrot.lane.b32.xlu0 %v458, 48
  %v2029 = vpop.permute.xlu0 %2028
  %2030 = vrot.lane.b32.xlu0 %v459, 48
  %v2031 = vpop.permute.xlu0 %2030
  %2032 = vrot.lane.b32.xlu0 %v460, 48
  %v2033 = vpop.permute.xlu0 %2032
  %2034 = vrot.lane.b32.xlu0 %v461, 48
  %v2035 = vpop.permute.xlu0 %2034
  %2036 = vrot.lane.b32.xlu0 %v462, 48
  %v2037 = vpop.permute.xlu0 %2036
  %2038 = vrot.lane.b32.xlu0 %v463, 48
  %v2039 = vpop.permute.xlu0 %2038
  %2040 = vrot.lane.b32.xlu0 %v464, 48
  %v2041 = vpop.permute.xlu0 %2040
  %2042 = vrot.lane.b32.xlu0 %v465, 48
  %v2043 = vpop.permute.xlu0 %2042
  %2044 = vrot.lane.b32.xlu0 %v466, 48
  %v2045 = vpop.permute.xlu0 %2044
  %2046 = vrot.lane.b32.xlu0 %v467, 48
  %v2047 = vpop.permute.xlu0 %2046
  %2048 = vrot.lane.b32.xlu0 %v468, 48
  %v2049 = vpop.permute.xlu0 %2048
  %2050 = vrot.lane.b32.xlu0 %v469, 48
  %v2051 = vpop.permute.xlu0 %2050
  %2052 = vrot.lane.b32.xlu0 %v470, 48
  %v2053 = vpop.permute.xlu0 %2052
  %2054 = vrot.lane.b32.xlu0 %v471, 48
  %v2055 = vpop.permute.xlu0 %2054
  %2056 = vrot.lane.b32.xlu0 %v472, 48
  %v2057 = vpop.permute.xlu0 %2056
  %2058 = vrot.lane.b32.xlu0 %v473, 48
  %v2059 = vpop.permute.xlu0 %2058
  %2060 = vrot.lane.b32.xlu0 %v474, 48
  %v2061 = vpop.permute.xlu0 %2060
  %2062 = vrot.lane.b32.xlu0 %v475, 48
  %v2063 = vpop.permute.xlu0 %2062
  %2064 = vrot.lane.b32.xlu0 %v476, 48
  %v2065 = vpop.permute.xlu0 %2064
  %2066 = vrot.lane.b32.xlu0 %v477, 48
  %v2067 = vpop.permute.xlu0 %2066
  %2068 = vrot.lane.b32.xlu0 %v478, 48
  %v2069 = vpop.permute.xlu0 %2068
  %2070 = vrot.lane.b32.xlu0 %v479, 48
  %v2071 = vpop.permute.xlu0 %2070
  %2072 = vrot.lane.b32.xlu0 %v480, 48
  %v2073 = vpop.permute.xlu0 %2072
  %2074 = vrot.lane.b32.xlu0 %v481, 48
  %v2075 = vpop.permute.xlu0 %2074
  %2076 = vrot.lane.b32.xlu0 %v482, 48
  %v2077 = vpop.permute.xlu0 %2076
  %2078 = vrot.lane.b32.xlu0 %v483, 48
  %v2079 = vpop.permute.xlu0 %2078
  %2080 = vrot.lane.b32.xlu0 %v484, 48
  %v2081 = vpop.permute.xlu0 %2080
  %2082 = vrot.lane.b32.xlu0 %v485, 48
  %v2083 = vpop.permute.xlu0 %2082
  %2084 = vrot.lane.b32.xlu0 %v486, 48
  %v2085 = vpop.permute.xlu0 %2084
  %2086 = vrot.lane.b32.xlu0 %v487, 48
  %v2087 = vpop.permute.xlu0 %2086
  %2216 = vrot.lane.b32.xlu0 %v488, 56
  %v2217 = vpop.permute.xlu0 %2216
  %2218 = vrot.lane.b32.xlu0 %v489, 56
  %v2219 = vpop.permute.xlu0 %2218
  %2220 = vrot.lane.b32.xlu0 %v490, 56
  %v2221 = vpop.permute.xlu0 %2220
  %2222 = vrot.lane.b32.xlu0 %v491, 56
  %v2223 = vpop.permute.xlu0 %2222
  %2224 = vrot.lane.b32.xlu0 %v492, 56
  %v2225 = vpop.permute.xlu0 %2224
  %2226 = vrot.lane.b32.xlu0 %v493, 56
  %v2227 = vpop.permute.xlu0 %2226
  %2228 = vrot.lane.b32.xlu0 %v494, 56
  %v2229 = vpop.permute.xlu0 %2228
  %2230 = vrot.lane.b32.xlu0 %v495, 56
  %v2231 = vpop.permute.xlu0 %2230
  %2232 = vrot.lane.b32.xlu0 %v496, 56
  %v2233 = vpop.permute.xlu0 %2232
  %2234 = vrot.lane.b32.xlu0 %v497, 56
  %v2235 = vpop.permute.xlu0 %2234
  %2236 = vrot.lane.b32.xlu0 %v498, 56
  %v2237 = vpop.permute.xlu0 %2236
  %2238 = vrot.lane.b32.xlu0 %v499, 56
  %v2239 = vpop.permute.xlu0 %2238
  %2240 = vrot.lane.b32.xlu0 %v500, 56
  %v2241 = vpop.permute.xlu0 %2240
  %2242 = vrot.lane.b32.xlu0 %v501, 56
  %v2243 = vpop.permute.xlu0 %2242
  %2244 = vrot.lane.b32.xlu0 %v502, 56
  %v2245 = vpop.permute.xlu0 %2244
  %2246 = vrot.lane.b32.xlu0 %v503, 56
  %v2247 = vpop.permute.xlu0 %2246
  %2248 = vrot.lane.b32.xlu0 %v504, 56
  %v2249 = vpop.permute.xlu0 %2248
  %2250 = vrot.lane.b32.xlu0 %v505, 56
  %v2251 = vpop.permute.xlu0 %2250
  %2252 = vrot.lane.b32.xlu0 %v506, 56
  %v2253 = vpop.permute.xlu0 %2252
  %2254 = vrot.lane.b32.xlu0 %v507, 56
  %v2255 = vpop.permute.xlu0 %2254
  %2256 = vrot.lane.b32.xlu0 %v508, 56
  %v2257 = vpop.permute.xlu0 %2256
  %2258 = vrot.lane.b32.xlu0 %v509, 56
  %v2259 = vpop.permute.xlu0 %2258
  %2260 = vrot.lane.b32.xlu0 %v510, 56
  %v2261 = vpop.permute.xlu0 %2260
  %2262 = vrot.lane.b32.xlu0 %v511, 56
  %v2263 = vpop.permute.xlu0 %2262
  %2264 = vrot.lane.b32.xlu0 %v512, 56
  %v2265 = vpop.permute.xlu0 %2264
  %2266 = vrot.lane.b32.xlu0 %v513, 56
  %v2267 = vpop.permute.xlu0 %2266
  %2268 = vrot.lane.b32.xlu0 %v514, 56
  %v2269 = vpop.permute.xlu0 %2268
  %2270 = vrot.lane.b32.xlu0 %v515, 56
  %v2271 = vpop.permute.xlu0 %2270
  %2272 = vrot.lane.b32.xlu0 %v516, 56
  %v2273 = vpop.permute.xlu0 %2272
  %2274 = vrot.lane.b32.xlu0 %v517, 56
  %v2275 = vpop.permute.xlu0 %2274
  %2276 = vrot.lane.b32.xlu0 %v518, 56
  %v2277 = vpop.permute.xlu0 %2276
  %2278 = vrot.lane.b32.xlu0 %v519, 56
  %v2279 = vpop.permute.xlu0 %2278
  %2280 = vrot.lane.b32.xlu0 %v520, 56
  %v2281 = vpop.permute.xlu0 %2280
  %2282 = vrot.lane.b32.xlu0 %v521, 56
  %v2283 = vpop.permute.xlu0 %2282
  %2284 = vrot.lane.b32.xlu0 %v522, 56
  %v2285 = vpop.permute.xlu0 %2284
  %2286 = vrot.lane.b32.xlu0 %v523, 56
  %v2287 = vpop.permute.xlu0 %2286
  %2288 = vrot.lane.b32.xlu0 %v524, 56
  %v2289 = vpop.permute.xlu0 %2288
  %2290 = vrot.lane.b32.xlu0 %v525, 56
  %v2291 = vpop.permute.xlu0 %2290
  %2292 = vrot.lane.b32.xlu0 %v526, 56
  %v2293 = vpop.permute.xlu0 %2292
  %2294 = vrot.lane.b32.xlu0 %v527, 56
  %v2295 = vpop.permute.xlu0 %2294
  %2296 = vrot.lane.b32.xlu0 %v528, 56
  %v2297 = vpop.permute.xlu0 %2296
  %2298 = vrot.lane.b32.xlu0 %v529, 56
  %v2299 = vpop.permute.xlu0 %2298
  %2300 = vrot.lane.b32.xlu0 %v530, 56
  %v2301 = vpop.permute.xlu0 %2300
  %2302 = vrot.lane.b32.xlu0 %v531, 56
  %v2303 = vpop.permute.xlu0 %2302
  %2304 = vrot.lane.b32.xlu0 %v532, 56
  %v2305 = vpop.permute.xlu0 %2304
  %2306 = vrot.lane.b32.xlu0 %v533, 56
  %v2307 = vpop.permute.xlu0 %2306
  %2308 = vrot.lane.b32.xlu0 %v534, 56
  %v2309 = vpop.permute.xlu0 %2308
  %2310 = vrot.lane.b32.xlu0 %v535, 56
  %v2311 = vpop.permute.xlu0 %2310
  %2312 = vrot.lane.b32.xlu0 %v536, 56
  %v2313 = vpop.permute.xlu0 %2312
  %2314 = vrot.lane.b32.xlu0 %v537, 56
  %v2315 = vpop.permute.xlu0 %2314
  %2316 = vrot.lane.b32.xlu0 %v538, 56
  %v2317 = vpop.permute.xlu0 %2316
  %2318 = vrot.lane.b32.xlu0 %v539, 56
  %v2319 = vpop.permute.xlu0 %2318
  %2320 = vrot.lane.b32.xlu0 %v540, 56
  %v2321 = vpop.permute.xlu0 %2320
  %2322 = vrot.lane.b32.xlu0 %v541, 56
  %v2323 = vpop.permute.xlu0 %2322
  %2324 = vrot.lane.b32.xlu0 %v542, 56
  %v2325 = vpop.permute.xlu0 %2324
  %2326 = vrot.lane.b32.xlu0 %v543, 56
  %v2327 = vpop.permute.xlu0 %2326
  %2328 = vrot.lane.b32.xlu0 %v544, 56
  %v2329 = vpop.permute.xlu0 %2328
  %2330 = vrot.lane.b32.xlu0 %v545, 56
  %v2331 = vpop.permute.xlu0 %2330
  %2332 = vrot.lane.b32.xlu0 %v546, 56
  %v2333 = vpop.permute.xlu0 %2332
  %2334 = vrot.lane.b32.xlu0 %v547, 56
  %v2335 = vpop.permute.xlu0 %2334
  %2336 = vrot.lane.b32.xlu0 %v548, 56
  %v2337 = vpop.permute.xlu0 %2336
  %2338 = vrot.lane.b32.xlu0 %v549, 56
  %v2339 = vpop.permute.xlu0 %2338
  %2340 = vrot.lane.b32.xlu0 %v550, 56
  %v2341 = vpop.permute.xlu0 %2340
  %2342 = vrot.lane.b32.xlu0 %v551, 56
  %v2343 = vpop.permute.xlu0 %2342
  %2472 = vrot.lane.b32.xlu0 %v552, 64
  %v2473 = vpop.permute.xlu0 %2472
  %2474 = vrot.lane.b32.xlu0 %v553, 64
  %v2475 = vpop.permute.xlu0 %2474
  %2476 = vrot.lane.b32.xlu0 %v554, 64
  %v2477 = vpop.permute.xlu0 %2476
  %2478 = vrot.lane.b32.xlu0 %v555, 64
  %v2479 = vpop.permute.xlu0 %2478
  %2480 = vrot.lane.b32.xlu0 %v556, 64
  %v2481 = vpop.permute.xlu0 %2480
  %2482 = vrot.lane.b32.xlu0 %v557, 64
  %v2483 = vpop.permute.xlu0 %2482
  %2484 = vrot.lane.b32.xlu0 %v558, 64
  %v2485 = vpop.permute.xlu0 %2484
  %2486 = vrot.lane.b32.xlu0 %v559, 64
  %v2487 = vpop.permute.xlu0 %2486
  %2488 = vrot.lane.b32.xlu0 %v560, 64
  %v2489 = vpop.permute.xlu0 %2488
  %2490 = vrot.lane.b32.xlu0 %v561, 64
  %v2491 = vpop.permute.xlu0 %2490
  %2492 = vrot.lane.b32.xlu0 %v562, 64
  %v2493 = vpop.permute.xlu0 %2492
  %2494 = vrot.lane.b32.xlu0 %v563, 64
  %v2495 = vpop.permute.xlu0 %2494
  %2496 = vrot.lane.b32.xlu0 %v564, 64
  %v2497 = vpop.permute.xlu0 %2496
  %2498 = vrot.lane.b32.xlu0 %v565, 64
  %v2499 = vpop.permute.xlu0 %2498
  %2500 = vrot.lane.b32.xlu0 %v566, 64
  %v2501 = vpop.permute.xlu0 %2500
  %2502 = vrot.lane.b32.xlu0 %v567, 64
  %v2503 = vpop.permute.xlu0 %2502
  %2504 = vrot.lane.b32.xlu0 %v568, 64
  %v2505 = vpop.permute.xlu0 %2504
  %2506 = vrot.lane.b32.xlu0 %v569, 64
  %v2507 = vpop.permute.xlu0 %2506
  %2508 = vrot.lane.b32.xlu0 %v570, 64
  %v2509 = vpop.permute.xlu0 %2508
  %2510 = vrot.lane.b32.xlu0 %v571, 64
  %v2511 = vpop.permute.xlu0 %2510
  %2512 = vrot.lane.b32.xlu0 %v572, 64
  %v2513 = vpop.permute.xlu0 %2512
  %2514 = vrot.lane.b32.xlu0 %v573, 64
  %v2515 = vpop.permute.xlu0 %2514
  %2516 = vrot.lane.b32.xlu0 %v574, 64
  %v2517 = vpop.permute.xlu0 %2516
  %2518 = vrot.lane.b32.xlu0 %v575, 64
  %v2519 = vpop.permute.xlu0 %2518
  %2520 = vrot.lane.b32.xlu0 %v576, 64
  %v2521 = vpop.permute.xlu0 %2520
  %2522 = vrot.lane.b32.xlu0 %v577, 64
  %v2523 = vpop.permute.xlu0 %2522
  %2524 = vrot.lane.b32.xlu0 %v578, 64
  %v2525 = vpop.permute.xlu0 %2524
  %2526 = vrot.lane.b32.xlu0 %v579, 64
  %v2527 = vpop.permute.xlu0 %2526
  %2528 = vrot.lane.b32.xlu0 %v580, 64
  %v2529 = vpop.permute.xlu0 %2528
  %2530 = vrot.lane.b32.xlu0 %v581, 64
  %v2531 = vpop.permute.xlu0 %2530
  %2532 = vrot.lane.b32.xlu0 %v582, 64
  %v2533 = vpop.permute.xlu0 %2532
  %2534 = vrot.lane.b32.xlu0 %v583, 64
  %v2535 = vpop.permute.xlu0 %2534
  %2536 = vrot.lane.b32.xlu0 %v584, 64
  %v2537 = vpop.permute.xlu0 %2536
  %2538 = vrot.lane.b32.xlu0 %v585, 64
  %v2539 = vpop.permute.xlu0 %2538
  %2540 = vrot.lane.b32.xlu0 %v586, 64
  %v2541 = vpop.permute.xlu0 %2540
  %2542 = vrot.lane.b32.xlu0 %v587, 64
  %v2543 = vpop.permute.xlu0 %2542
  %2544 = vrot.lane.b32.xlu0 %v588, 64
  %v2545 = vpop.permute.xlu0 %2544
  %2546 = vrot.lane.b32.xlu0 %v589, 64
  %v2547 = vpop.permute.xlu0 %2546
  %2548 = vrot.lane.b32.xlu0 %v590, 64
  %v2549 = vpop.permute.xlu0 %2548
  %2550 = vrot.lane.b32.xlu0 %v591, 64
  %v2551 = vpop.permute.xlu0 %2550
  %2552 = vrot.lane.b32.xlu0 %v592, 64
  %v2553 = vpop.permute.xlu0 %2552
  %2554 = vrot.lane.b32.xlu0 %v593, 64
  %v2555 = vpop.permute.xlu0 %2554
  %2556 = vrot.lane.b32.xlu0 %v594, 64
  %v2557 = vpop.permute.xlu0 %2556
  %2558 = vrot.lane.b32.xlu0 %v595, 64
  %v2559 = vpop.permute.xlu0 %2558
  %2560 = vrot.lane.b32.xlu0 %v596, 64
  %v2561 = vpop.permute.xlu0 %2560
  %2562 = vrot.lane.b32.xlu0 %v597, 64
  %v2563 = vpop.permute.xlu0 %2562
  %2564 = vrot.lane.b32.xlu0 %v598, 64
  %v2565 = vpop.permute.xlu0 %2564
  %2566 = vrot.lane.b32.xlu0 %v599, 64
  %v2567 = vpop.permute.xlu0 %2566
  %2568 = vrot.lane.b32.xlu0 %v600, 64
  %v2569 = vpop.permute.xlu0 %2568
  %2570 = vrot.lane.b32.xlu0 %v601, 64
  %v2571 = vpop.permute.xlu0 %2570
  %2572 = vrot.lane.b32.xlu0 %v602, 64
  %v2573 = vpop.permute.xlu0 %2572
  %2574 = vrot.lane.b32.xlu0 %v603, 64
  %v2575 = vpop.permute.xlu0 %2574
  %2576 = vrot.lane.b32.xlu0 %v604, 64
  %v2577 = vpop.permute.xlu0 %2576
  %2578 = vrot.lane.b32.xlu0 %v605, 64
  %v2579 = vpop.permute.xlu0 %2578
  %2580 = vrot.lane.b32.xlu0 %v606, 64
  %v2581 = vpop.permute.xlu0 %2580
  %2582 = vrot.lane.b32.xlu0 %v607, 64
  %v2583 = vpop.permute.xlu0 %2582
  %2584 = vrot.lane.b32.xlu0 %v608, 64
  %v2585 = vpop.permute.xlu0 %2584
  %2586 = vrot.lane.b32.xlu0 %v609, 64
  %v2587 = vpop.permute.xlu0 %2586
  %2588 = vrot.lane.b32.xlu0 %v610, 64
  %v2589 = vpop.permute.xlu0 %2588
  %2590 = vrot.lane.b32.xlu0 %v611, 64
  %v2591 = vpop.permute.xlu0 %2590
  %2592 = vrot.lane.b32.xlu0 %v612, 64
  %v2593 = vpop.permute.xlu0 %2592
  %2594 = vrot.lane.b32.xlu0 %v613, 64
  %v2595 = vpop.permute.xlu0 %2594
  %2596 = vrot.lane.b32.xlu0 %v614, 64
  %v2597 = vpop.permute.xlu0 %2596
  %2598 = vrot.lane.b32.xlu0 %v615, 64
  %v2599 = vpop.permute.xlu0 %2598
  %vm2664 = vcmask 64512
  %v2665 = vsel %vm2664, %v38, %v681
  %v2666 = vsel %vm2664, %v39, %v683
  %v2667 = vsel %vm2664, %v40, %v685
  %v2668 = vsel %vm2664, %v41, %v687
  %v2669 = vsel %vm2664, %v42, %v689
  %v2670 = vsel %vm2664, %v43, %v691
  %v2671 = vsel %vm2664, %v44, %v693
  %v2672 = vsel %vm2664, %v45, %v695
  %v2673 = vsel %vm2664, %v46, %v697
  %v2674 = vsel %vm2664, %v47, %v699
  %v2675 = vsel %vm2664, %v48, %v701
  %v2676 = vsel %vm2664, %v49, %v703
  %v2677 = vsel %vm2664, %v50, %v705
  %v2678 = vsel %vm2664, %v51, %v707
  %v2679 = vsel %vm2664, %v52, %v709
  %v2680 = vsel %vm2664, %v53, %v711
  %v2681 = vsel %vm2664, %v54, %v713
  %v2682 = vsel %vm2664, %v55, %v715
  %v2683 = vsel %vm2664, %v56, %v717
  %v2684 = vsel %vm2664, %v57, %v719
  %v2685 = vsel %vm2664, %v58, %v721
  %v2686 = vsel %vm2664, %v59, %v723
  %v2687 = vsel %vm2664, %v60, %v725
  %v2688 = vsel %vm2664, %v61, %v727
  %v2689 = vsel %vm2664, %v62, %v729
  %v2690 = vsel %vm2664, %v63, %v731
  %v2691 = vsel %vm2664, %v64, %v733
  %v2692 = vsel %vm2664, %v65, %v735
  %v2693 = vsel %vm2664, %v66, %v737
  %v2694 = vsel %vm2664, %v67, %v739
  %v2695 = vsel %vm2664, %v68, %v741
  %v2696 = vsel %vm2664, %v69, %v743
  %v2697 = vsel %vm2664, %v70, %v745
  %v2698 = vsel %vm2664, %v71, %v747
  %v2699 = vsel %vm2664, %v72, %v749
  %v2700 = vsel %vm2664, %v73, %v751
  %v2701 = vsel %vm2664, %v74, %v753
  %v2702 = vsel %vm2664, %v75, %v755
  %v2703 = vsel %vm2664, %v76, %v757
  %v2704 = vsel %vm2664, %v77, %v759
  %v2705 = vsel %vm2664, %v78, %v761
  %v2706 = vsel %vm2664, %v79, %v763
  %v2707 = vsel %vm2664, %v80, %v765
  %v2708 = vsel %vm2664, %v81, %v767
  %v2709 = vsel %vm2664, %v82, %v769
  %v2710 = vsel %vm2664, %v83, %v771
  %v2711 = vsel %vm2664, %v84, %v773
  %v2712 = vsel %vm2664, %v85, %v775
  %v2713 = vsel %vm2664, %v86, %v777
  %v2714 = vsel %vm2664, %v87, %v779
  %v2715 = vsel %vm2664, %v88, %v781
  %v2716 = vsel %vm2664, %v89, %v783
  %v2717 = vsel %vm2664, %v90, %v785
  %v2718 = vsel %vm2664, %v91, %v787
  %v2719 = vsel %vm2664, %v92, %v789
  %v2720 = vsel %vm2664, %v93, %v791
  %v2721 = vsel %vm2664, %v94, %v793
  %v2722 = vsel %vm2664, %v95, %v795
  %v2723 = vsel %vm2664, %v96, %v797
  %v2724 = vsel %vm2664, %v97, %v799
  %v2725 = vsel %vm2664, %v98, %v801
  %v2726 = vsel %vm2664, %v99, %v803
  %v2727 = vsel %vm2664, %v100, %v805
  %v2728 = vsel %vm2664, %v101, %v807
  %vm2729 = vcmask 130048
  %v2730 = vsel %vm2729, %v2665, %v937
  %v2731 = vsel %vm2729, %v2666, %v939
  %v2732 = vsel %vm2729, %v2667, %v941
  %v2733 = vsel %vm2729, %v2668, %v943
  %v2734 = vsel %vm2729, %v2669, %v945
  %v2735 = vsel %vm2729, %v2670, %v947
  %v2736 = vsel %vm2729, %v2671, %v949
  %v2737 = vsel %vm2729, %v2672, %v951
  %v2738 = vsel %vm2729, %v2673, %v953
  %v2739 = vsel %vm2729, %v2674, %v955
  %v2740 = vsel %vm2729, %v2675, %v957
  %v2741 = vsel %vm2729, %v2676, %v959
  %v2742 = vsel %vm2729, %v2677, %v961
  %v2743 = vsel %vm2729, %v2678, %v963
  %v2744 = vsel %vm2729, %v2679, %v965
  %v2745 = vsel %vm2729, %v2680, %v967
  %v2746 = vsel %vm2729, %v2681, %v969
  %v2747 = vsel %vm2729, %v2682, %v971
  %v2748 = vsel %vm2729, %v2683, %v973
  %v2749 = vsel %vm2729, %v2684, %v975
  %v2750 = vsel %vm2729, %v2685, %v977
  %v2751 = vsel %vm2729, %v2686, %v979
  %v2752 = vsel %vm2729, %v2687, %v981
  %v2753 = vsel %vm2729, %v2688, %v983
  %v2754 = vsel %vm2729, %v2689, %v985
  %v2755 = vsel %vm2729, %v2690, %v987
  %v2756 = vsel %vm2729, %v2691, %v989
  %v2757 = vsel %vm2729, %v2692, %v991
  %v2758 = vsel %vm2729, %v2693, %v993
  %v2759 = vsel %vm2729, %v2694, %v995
  %v2760 = vsel %vm2729, %v2695, %v997
  %v2761 = vsel %vm2729, %v2696, %v999
  %v2762 = vsel %vm2729, %v2697, %v1001
  %v2763 = vsel %vm2729, %v2698, %v1003
  %v2764 = vsel %vm2729, %v2699, %v1005
  %v2765 = vsel %vm2729, %v2700, %v1007
  %v2766 = vsel %vm2729, %v2701, %v1009
  %v2767 = vsel %vm2729, %v2702, %v1011
  %v2768 = vsel %vm2729, %v2703, %v1013
  %v2769 = vsel %vm2729, %v2704, %v1015
  %v2770 = vsel %vm2729, %v2705, %v1017
  %v2771 = vsel %vm2729, %v2706, %v1019
  %v2772 = vsel %vm2729, %v2707, %v1021
  %v2773 = vsel %vm2729, %v2708, %v1023
  %v2774 = vsel %vm2729, %v2709, %v1025
  %v2775 = vsel %vm2729, %v2710, %v1027
  %v2776 = vsel %vm2729, %v2711, %v1029
  %v2777 = vsel %vm2729, %v2712, %v1031
  %v2778 = vsel %vm2729, %v2713, %v1033
  %v2779 = vsel %vm2729, %v2714, %v1035
  %v2780 = vsel %vm2729, %v2715, %v1037
  %v2781 = vsel %vm2729, %v2716, %v1039
  %v2782 = vsel %vm2729, %v2717, %v1041
  %v2783 = vsel %vm2729, %v2718, %v1043
  %v2784 = vsel %vm2729, %v2719, %v1045
  %v2785 = vsel %vm2729, %v2720, %v1047
  %v2786 = vsel %vm2729, %v2721, %v1049
  %v2787 = vsel %vm2729, %v2722, %v1051
  %v2788 = vsel %vm2729, %v2723, %v1053
  %v2789 = vsel %vm2729, %v2724, %v1055
  %v2790 = vsel %vm2729, %v2725, %v1057
  %v2791 = vsel %vm2729, %v2726, %v1059
  %v2792 = vsel %vm2729, %v2727, %v1061
  %v2793 = vsel %vm2729, %v2728, %v1063
  %vm2794 = vcmask 195584
  %v2795 = vsel %vm2794, %v2730, %v1193
  %v2796 = vsel %vm2794, %v2731, %v1195
  %v2797 = vsel %vm2794, %v2732, %v1197
  %v2798 = vsel %vm2794, %v2733, %v1199
  %v2799 = vsel %vm2794, %v2734, %v1201
  %v2800 = vsel %vm2794, %v2735, %v1203
  %v2801 = vsel %vm2794, %v2736, %v1205
  %v2802 = vsel %vm2794, %v2737, %v1207
  %v2803 = vsel %vm2794, %v2738, %v1209
  %v2804 = vsel %vm2794, %v2739, %v1211
  %v2805 = vsel %vm2794, %v2740, %v1213
  %v2806 = vsel %vm2794, %v2741, %v1215
  %v2807 = vsel %vm2794, %v2742, %v1217
  %v2808 = vsel %vm2794, %v2743, %v1219
  %v2809 = vsel %vm2794, %v2744, %v1221
  %v2810 = vsel %vm2794, %v2745, %v1223
  %v2811 = vsel %vm2794, %v2746, %v1225
  %v2812 = vsel %vm2794, %v2747, %v1227
  %v2813 = vsel %vm2794, %v2748, %v1229
  %v2814 = vsel %vm2794, %v2749, %v1231
  %v2815 = vsel %vm2794, %v2750, %v1233
  %v2816 = vsel %vm2794, %v2751, %v1235
  %v2817 = vsel %vm2794, %v2752, %v1237
  %v2818 = vsel %vm2794, %v2753, %v1239
  %v2819 = vsel %vm2794, %v2754, %v1241
  %v2820 = vsel %vm2794, %v2755, %v1243
  %v2821 = vsel %vm2794, %v2756, %v1245
  %v2822 = vsel %vm2794, %v2757, %v1247
  %v2823 = vsel %vm2794, %v2758, %v1249
  %v2824 = vsel %vm2794, %v2759, %v1251
  %v2825 = vsel %vm2794, %v2760, %v1253
  %v2826 = vsel %vm2794, %v2761, %v1255
  %v2827 = vsel %vm2794, %v2762, %v1257
  %v2828 = vsel %vm2794, %v2763, %v1259
  %v2829 = vsel %vm2794, %v2764, %v1261
  %v2830 = vsel %vm2794, %v2765, %v1263
  %v2831 = vsel %vm2794, %v2766, %v1265
  %v2832 = vsel %vm2794, %v2767, %v1267
  %v2833 = vsel %vm2794, %v2768, %v1269
  %v2834 = vsel %vm2794, %v2769, %v1271
  %v2835 = vsel %vm2794, %v2770, %v1273
  %v2836 = vsel %vm2794, %v2771, %v1275
  %v2837 = vsel %vm2794, %v2772, %v1277
  %v2838 = vsel %vm2794, %v2773, %v1279
  %v2839 = vsel %vm2794, %v2774, %v1281
  %v2840 = vsel %vm2794, %v2775, %v1283
  %v2841 = vsel %vm2794, %v2776, %v1285
  %v2842 = vsel %vm2794, %v2777, %v1287
  %v2843 = vsel %vm2794, %v2778, %v1289
  %v2844 = vsel %vm2794, %v2779, %v1291
  %v2845 = vsel %vm2794, %v2780, %v1293
  %v2846 = vsel %vm2794, %v2781, %v1295
  %v2847 = vsel %vm2794, %v2782, %v1297
  %v2848 = vsel %vm2794, %v2783, %v1299
  %v2849 = vsel %vm2794, %v2784, %v1301
  %v2850 = vsel %vm2794, %v2785, %v1303
  %v2851 = vsel %vm2794, %v2786, %v1305
  %v2852 = vsel %vm2794, %v2787, %v1307
  %v2853 = vsel %vm2794, %v2788, %v1309
  %v2854 = vsel %vm2794, %v2789, %v1311
  %v2855 = vsel %vm2794, %v2790, %v1313
  %v2856 = vsel %vm2794, %v2791, %v1315
  %v2857 = vsel %vm2794, %v2792, %v1317
  %v2858 = vsel %vm2794, %v2793, %v1319
  %vm2859 = vcmask 261120
  %v2860 = vsel %vm2859, %v2795, %v1449
  %v2861 = vsel %vm2859, %v2796, %v1451
  %v2862 = vsel %vm2859, %v2797, %v1453
  %v2863 = vsel %vm2859, %v2798, %v1455
  %v2864 = vsel %vm2859, %v2799, %v1457
  %v2865 = vsel %vm2859, %v2800, %v1459
  %v2866 = vsel %vm2859, %v2801, %v1461
  %v2867 = vsel %vm2859, %v2802, %v1463
  %v2868 = vsel %vm2859, %v2803, %v1465
  %v2869 = vsel %vm2859, %v2804, %v1467
  %v2870 = vsel %vm2859, %v2805, %v1469
  %v2871 = vsel %vm2859, %v2806, %v1471
  %v2872 = vsel %vm2859, %v2807, %v1473
  %v2873 = vsel %vm2859, %v2808, %v1475
  %v2874 = vsel %vm2859, %v2809, %v1477
  %v2875 = vsel %vm2859, %v2810, %v1479
  %v2876 = vsel %vm2859, %v2811, %v1481
  %v2877 = vsel %vm2859, %v2812, %v1483
  %v2878 = vsel %vm2859, %v2813, %v1485
  %v2879 = vsel %vm2859, %v2814, %v1487
  %v2880 = vsel %vm2859, %v2815, %v1489
  %v2881 = vsel %vm2859, %v2816, %v1491
  %v2882 = vsel %vm2859, %v2817, %v1493
  %v2883 = vsel %vm2859, %v2818, %v1495
  %v2884 = vsel %vm2859, %v2819, %v1497
  %v2885 = vsel %vm2859, %v2820, %v1499
  %v2886 = vsel %vm2859, %v2821, %v1501
  %v2887 = vsel %vm2859, %v2822, %v1503
  %v2888 = vsel %vm2859, %v2823, %v1505
  %v2889 = vsel %vm2859, %v2824, %v1507
  %v2890 = vsel %vm2859, %v2825, %v1509
  %v2891 = vsel %vm2859, %v2826, %v1511
  %v2892 = vsel %vm2859, %v2827, %v1513
  %v2893 = vsel %vm2859, %v2828, %v1515
  %v2894 = vsel %vm2859, %v2829, %v1517
  %v2895 = vsel %vm2859, %v2830, %v1519
  %v2896 = vsel %vm2859, %v2831, %v1521
  %v2897 = vsel %vm2859, %v2832, %v1523
  %v2898 = vsel %vm2859, %v2833, %v1525
  %v2899 = vsel %vm2859, %v2834, %v1527
  %v2900 = vsel %vm2859, %v2835, %v1529
  %v2901 = vsel %vm2859, %v2836, %v1531
  %v2902 = vsel %vm2859, %v2837, %v1533
  %v2903 = vsel %vm2859, %v2838, %v1535
  %v2904 = vsel %vm2859, %v2839, %v1537
  %v2905 = vsel %vm2859, %v2840, %v1539
  %v2906 = vsel %vm2859, %v2841, %v1541
  %v2907 = vsel %vm2859, %v2842, %v1543
  %v2908 = vsel %vm2859, %v2843, %v1545
  %v2909 = vsel %vm2859, %v2844, %v1547
  %v2910 = vsel %vm2859, %v2845, %v1549
  %v2911 = vsel %vm2859, %v2846, %v1551
  %v2912 = vsel %vm2859, %v2847, %v1553
  %v2913 = vsel %vm2859, %v2848, %v1555
  %v2914 = vsel %vm2859, %v2849, %v1557
  %v2915 = vsel %vm2859, %v2850, %v1559
  %v2916 = vsel %vm2859, %v2851, %v1561
  %v2917 = vsel %vm2859, %v2852, %v1563
  %v2918 = vsel %vm2859, %v2853, %v1565
  %v2919 = vsel %vm2859, %v2854, %v1567
  %v2920 = vsel %vm2859, %v2855, %v1569
  %v2921 = vsel %vm2859, %v2856, %v1571
  %v2922 = vsel %vm2859, %v2857, %v1573
  %v2923 = vsel %vm2859, %v2858, %v1575
  %vm2924 = vcmask 326656
  %v2925 = vsel %vm2924, %v2860, %v1705
  %v2926 = vsel %vm2924, %v2861, %v1707
  %v2927 = vsel %vm2924, %v2862, %v1709
  %v2928 = vsel %vm2924, %v2863, %v1711
  %v2929 = vsel %vm2924, %v2864, %v1713
  %v2930 = vsel %vm2924, %v2865, %v1715
  %v2931 = vsel %vm2924, %v2866, %v1717
  %v2932 = vsel %vm2924, %v2867, %v1719
  %v2933 = vsel %vm2924, %v2868, %v1721
  %v2934 = vsel %vm2924, %v2869, %v1723
  %v2935 = vsel %vm2924, %v2870, %v1725
  %v2936 = vsel %vm2924, %v2871, %v1727
  %v2937 = vsel %vm2924, %v2872, %v1729
  %v2938 = vsel %vm2924, %v2873, %v1731
  %v2939 = vsel %vm2924, %v2874, %v1733
  %v2940 = vsel %vm2924, %v2875, %v1735
  %v2941 = vsel %vm2924, %v2876, %v1737
  %v2942 = vsel %vm2924, %v2877, %v1739
  %v2943 = vsel %vm2924, %v2878, %v1741
  %v2944 = vsel %vm2924, %v2879, %v1743
  %v2945 = vsel %vm2924, %v2880, %v1745
  %v2946 = vsel %vm2924, %v2881, %v1747
  %v2947 = vsel %vm2924, %v2882, %v1749
  %v2948 = vsel %vm2924, %v2883, %v1751
  %v2949 = vsel %vm2924, %v2884, %v1753
  %v2950 = vsel %vm2924, %v2885, %v1755
  %v2951 = vsel %vm2924, %v2886, %v1757
  %v2952 = vsel %vm2924, %v2887, %v1759
  %v2953 = vsel %vm2924, %v2888, %v1761
  %v2954 = vsel %vm2924, %v2889, %v1763
  %v2955 = vsel %vm2924, %v2890, %v1765
  %v2956 = vsel %vm2924, %v2891, %v1767
  %v2957 = vsel %vm2924, %v2892, %v1769
  %v2958 = vsel %vm2924, %v2893, %v1771
  %v2959 = vsel %vm2924, %v2894, %v1773
  %v2960 = vsel %vm2924, %v2895, %v1775
  %v2961 = vsel %vm2924, %v2896, %v1777
  %v2962 = vsel %vm2924, %v2897, %v1779
  %v2963 = vsel %vm2924, %v2898, %v1781
  %v2964 = vsel %vm2924, %v2899, %v1783
  %v2965 = vsel %vm2924, %v2900, %v1785
  %v2966 = vsel %vm2924, %v2901, %v1787
  %v2967 = vsel %vm2924, %v2902, %v1789
  %v2968 = vsel %vm2924, %v2903, %v1791
  %v2969 = vsel %vm2924, %v2904, %v1793
  %v2970 = vsel %vm2924, %v2905, %v1795
  %v2971 = vsel %vm2924, %v2906, %v1797
  %v2972 = vsel %vm2924, %v2907, %v1799
  %v2973 = vsel %vm2924, %v2908, %v1801
  %v2974 = vsel %vm2924, %v2909, %v1803
  %v2975 = vsel %vm2924, %v2910, %v1805
  %v2976 = vsel %vm2924, %v2911, %v1807
  %v2977 = vsel %vm2924, %v2912, %v1809
  %v2978 = vsel %vm2924, %v2913, %v1811
  %v2979 = vsel %vm2924, %v2914, %v1813
  %v2980 = vsel %vm2924, %v2915, %v1815
  %v2981 = vsel %vm2924, %v2916, %v1817
  %v2982 = vsel %vm2924, %v2917, %v1819
  %v2983 = vsel %vm2924, %v2918, %v1821
  %v2984 = vsel %vm2924, %v2919, %v1823
  %v2985 = vsel %vm2924, %v2920, %v1825
  %v2986 = vsel %vm2924, %v2921, %v1827
  %v2987 = vsel %vm2924, %v2922, %v1829
  %v2988 = vsel %vm2924, %v2923, %v1831
  %vm2989 = vcmask 392192
  %v2990 = vsel %vm2989, %v2925, %v1961
  %v2991 = vsel %vm2989, %v2926, %v1963
  %v2992 = vsel %vm2989, %v2927, %v1965
  %v2993 = vsel %vm2989, %v2928, %v1967
  %v2994 = vsel %vm2989, %v2929, %v1969
  %v2995 = vsel %vm2989, %v2930, %v1971
  %v2996 = vsel %vm2989, %v2931, %v1973
  %v2997 = vsel %vm2989, %v2932, %v1975
  %v2998 = vsel %vm2989, %v2933, %v1977
  %v2999 = vsel %vm2989, %v2934, %v1979
  %v3000 = vsel %vm2989, %v2935, %v1981
  %v3001 = vsel %vm2989, %v2936, %v1983
  %v3002 = vsel %vm2989, %v2937, %v1985
  %v3003 = vsel %vm2989, %v2938, %v1987
  %v3004 = vsel %vm2989, %v2939, %v1989
  %v3005 = vsel %vm2989, %v2940, %v1991
  %v3006 = vsel %vm2989, %v2941, %v1993
  %v3007 = vsel %vm2989, %v2942, %v1995
  %v3008 = vsel %vm2989, %v2943, %v1997
  %v3009 = vsel %vm2989, %v2944, %v1999
  %v3010 = vsel %vm2989, %v2945, %v2001
  %v3011 = vsel %vm2989, %v2946, %v2003
  %v3012 = vsel %vm2989, %v2947, %v2005
  %v3013 = vsel %vm2989, %v2948, %v2007
  %v3014 = vsel %vm2989, %v2949, %v2009
  %v3015 = vsel %vm2989, %v2950, %v2011
  %v3016 = vsel %vm2989, %v2951, %v2013
  %v3017 = vsel %vm2989, %v2952, %v2015
  %v3018 = vsel %vm2989, %v2953, %v2017
  %v3019 = vsel %vm2989, %v2954, %v2019
  %v3020 = vsel %vm2989, %v2955, %v2021
  %v3021 = vsel %vm2989, %v2956, %v2023
  %v3022 = vsel %vm2989, %v2957, %v2025
  %v3023 = vsel %vm2989, %v2958, %v2027
  %v3024 = vsel %vm2989, %v2959, %v2029
  %v3025 = vsel %vm2989, %v2960, %v2031
  %v3026 = vsel %vm2989, %v2961, %v2033
  %v3027 = vsel %vm2989, %v2962, %v2035
  %v3028 = vsel %vm2989, %v2963, %v2037
  %v3029 = vsel %vm2989, %v2964, %v2039
  %v3030 = vsel %vm2989, %v2965, %v2041
  %v3031 = vsel %vm2989, %v2966, %v2043
  %v3032 = vsel %vm2989, %v2967, %v2045
  %v3033 = vsel %vm2989, %v2968, %v2047
  %v3034 = vsel %vm2989, %v2969, %v2049
  %v3035 = vsel %vm2989, %v2970, %v2051
  %v3036 = vsel %vm2989, %v2971, %v2053
  %v3037 = vsel %vm2989, %v2972, %v2055
  %v3038 = vsel %vm2989, %v2973, %v2057
  %v3039 = vsel %vm2989, %v2974, %v2059
  %v3040 = vsel %vm2989, %v2975, %v2061
  %v3041 = vsel %vm2989, %v2976, %v2063
  %v3042 = vsel %vm2989, %v2977, %v2065
  %v3043 = vsel %vm2989, %v2978, %v2067
  %v3044 = vsel %vm2989, %v2979, %v2069
  %v3045 = vsel %vm2989, %v2980, %v2071
  %v3046 = vsel %vm2989, %v2981, %v2073
  %v3047 = vsel %vm2989, %v2982, %v2075
  %v3048 = vsel %vm2989, %v2983, %v2077
  %v3049 = vsel %vm2989, %v2984, %v2079
  %v3050 = vsel %vm2989, %v2985, %v2081
  %v3051 = vsel %vm2989, %v2986, %v2083
  %v3052 = vsel %vm2989, %v2987, %v2085
  %v3053 = vsel %vm2989, %v2988, %v2087
  %vm3054 = vcmask 457728
  %v3055 = vsel %vm3054, %v2990, %v2217
  %v3056 = vsel %vm3054, %v2991, %v2219
  %v3057 = vsel %vm3054, %v2992, %v2221
  %v3058 = vsel %vm3054, %v2993, %v2223
  %v3059 = vsel %vm3054, %v2994, %v2225
  %v3060 = vsel %vm3054, %v2995, %v2227
  %v3061 = vsel %vm3054, %v2996, %v2229
  %v3062 = vsel %vm3054, %v2997, %v2231
  %v3063 = vsel %vm3054, %v2998, %v2233
  %v3064 = vsel %vm3054, %v2999, %v2235
  %v3065 = vsel %vm3054, %v3000, %v2237
  %v3066 = vsel %vm3054, %v3001, %v2239
  %v3067 = vsel %vm3054, %v3002, %v2241
  %v3068 = vsel %vm3054, %v3003, %v2243
  %v3069 = vsel %vm3054, %v3004, %v2245
  %v3070 = vsel %vm3054, %v3005, %v2247
  %v3071 = vsel %vm3054, %v3006, %v2249
  %v3072 = vsel %vm3054, %v3007, %v2251
  %v3073 = vsel %vm3054, %v3008, %v2253
  %v3074 = vsel %vm3054, %v3009, %v2255
  %v3075 = vsel %vm3054, %v3010, %v2257
  %v3076 = vsel %vm3054, %v3011, %v2259
  %v3077 = vsel %vm3054, %v3012, %v2261
  %v3078 = vsel %vm3054, %v3013, %v2263
  %v3079 = vsel %vm3054, %v3014, %v2265
  %v3080 = vsel %vm3054, %v3015, %v2267
  %v3081 = vsel %vm3054, %v3016, %v2269
  %v3082 = vsel %vm3054, %v3017, %v2271
  %v3083 = vsel %vm3054, %v3018, %v2273
  %v3084 = vsel %vm3054, %v3019, %v2275
  %v3085 = vsel %vm3054, %v3020, %v2277
  %v3086 = vsel %vm3054, %v3021, %v2279
  %v3087 = vsel %vm3054, %v3022, %v2281
  %v3088 = vsel %vm3054, %v3023, %v2283
  %v3089 = vsel %vm3054, %v3024, %v2285
  %v3090 = vsel %vm3054, %v3025, %v2287
  %v3091 = vsel %vm3054, %v3026, %v2289
  %v3092 = vsel %vm3054, %v3027, %v2291
  %v3093 = vsel %vm3054, %v3028, %v2293
  %v3094 = vsel %vm3054, %v3029, %v2295
  %v3095 = vsel %vm3054, %v3030, %v2297
  %v3096 = vsel %vm3054, %v3031, %v2299
  %v3097 = vsel %vm3054, %v3032, %v2301
  %v3098 = vsel %vm3054, %v3033, %v2303
  %v3099 = vsel %vm3054, %v3034, %v2305
  %v3100 = vsel %vm3054, %v3035, %v2307
  %v3101 = vsel %vm3054, %v3036, %v2309
  %v3102 = vsel %vm3054, %v3037, %v2311
  %v3103 = vsel %vm3054, %v3038, %v2313
  %v3104 = vsel %vm3054, %v3039, %v2315
  %v3105 = vsel %vm3054, %v3040, %v2317
  %v3106 = vsel %vm3054, %v3041, %v2319
  %v3107 = vsel %vm3054, %v3042, %v2321
  %v3108 = vsel %vm3054, %v3043, %v2323
  %v3109 = vsel %vm3054, %v3044, %v2325
  %v3110 = vsel %vm3054, %v3045, %v2327
  %v3111 = vsel %vm3054, %v3046, %v2329
  %v3112 = vsel %vm3054, %v3047, %v2331
  %v3113 = vsel %vm3054, %v3048, %v2333
  %v3114 = vsel %vm3054, %v3049, %v2335
  %v3115 = vsel %vm3054, %v3050, %v2337
  %v3116 = vsel %vm3054, %v3051, %v2339
  %v3117 = vsel %vm3054, %v3052, %v2341
  %v3118 = vsel %vm3054, %v3053, %v2343
  %vm3119 = vcmask 523264
  %v3120 = vsel %vm3119, %v3055, %v2473
  %v3121 = vsel %vm3119, %v3056, %v2475
  %v3122 = vsel %vm3119, %v3057, %v2477
  %v3123 = vsel %vm3119, %v3058, %v2479
  %v3124 = vsel %vm3119, %v3059, %v2481
  %v3125 = vsel %vm3119, %v3060, %v2483
  %v3126 = vsel %vm3119, %v3061, %v2485
  %v3127 = vsel %vm3119, %v3062, %v2487
  %v3128 = vsel %vm3119, %v3063, %v2489
  %v3129 = vsel %vm3119, %v3064, %v2491
  %v3130 = vsel %vm3119, %v3065, %v2493
  %v3131 = vsel %vm3119, %v3066, %v2495
  %v3132 = vsel %vm3119, %v3067, %v2497
  %v3133 = vsel %vm3119, %v3068, %v2499
  %v3134 = vsel %vm3119, %v3069, %v2501
  %v3135 = vsel %vm3119, %v3070, %v2503
  %v3136 = vsel %vm3119, %v3071, %v2505
  %v3137 = vsel %vm3119, %v3072, %v2507
  %v3138 = vsel %vm3119, %v3073, %v2509
  %v3139 = vsel %vm3119, %v3074, %v2511
  %v3140 = vsel %vm3119, %v3075, %v2513
  %v3141 = vsel %vm3119, %v3076, %v2515
  %v3142 = vsel %vm3119, %v3077, %v2517
  %v3143 = vsel %vm3119, %v3078, %v2519
  %v3144 = vsel %vm3119, %v3079, %v2521
  %v3145 = vsel %vm3119, %v3080, %v2523
  %v3146 = vsel %vm3119, %v3081, %v2525
  %v3147 = vsel %vm3119, %v3082, %v2527
  %v3148 = vsel %vm3119, %v3083, %v2529
  %v3149 = vsel %vm3119, %v3084, %v2531
  %v3150 = vsel %vm3119, %v3085, %v2533
  %v3151 = vsel %vm3119, %v3086, %v2535
  %v3152 = vsel %vm3119, %v3087, %v2537
  %v3153 = vsel %vm3119, %v3088, %v2539
  %v3154 = vsel %vm3119, %v3089, %v2541
  %v3155 = vsel %vm3119, %v3090, %v2543
  %v3156 = vsel %vm3119, %v3091, %v2545
  %v3157 = vsel %vm3119, %v3092, %v2547
  %v3158 = vsel %vm3119, %v3093, %v2549
  %v3159 = vsel %vm3119, %v3094, %v2551
  %v3160 = vsel %vm3119, %v3095, %v2553
  %v3161 = vsel %vm3119, %v3096, %v2555
  %v3162 = vsel %vm3119, %v3097, %v2557
  %v3163 = vsel %vm3119, %v3098, %v2559
  %v3164 = vsel %vm3119, %v3099, %v2561
  %v3165 = vsel %vm3119, %v3100, %v2563
  %v3166 = vsel %vm3119, %v3101, %v2565
  %v3167 = vsel %vm3119, %v3102, %v2567
  %v3168 = vsel %vm3119, %v3103, %v2569
  %v3169 = vsel %vm3119, %v3104, %v2571
  %v3170 = vsel %vm3119, %v3105, %v2573
  %v3171 = vsel %vm3119, %v3106, %v2575
  %v3172 = vsel %vm3119, %v3107, %v2577
  %v3173 = vsel %vm3119, %v3108, %v2579
  %v3174 = vsel %vm3119, %v3109, %v2581
  %v3175 = vsel %vm3119, %v3110, %v2583
  %v3176 = vsel %vm3119, %v3111, %v2585
  %v3177 = vsel %vm3119, %v3112, %v2587
  %v3178 = vsel %vm3119, %v3113, %v2589
  %v3179 = vsel %vm3119, %v3114, %v2591
  %v3180 = vsel %vm3119, %v3115, %v2593
  %v3181 = vsel %vm3119, %v3116, %v2595
  %v3182 = vsel %vm3119, %v3117, %v2597
  %v3183 = vsel %vm3119, %v3118, %v2599
  %v3184 = vld [vmem:[%s1] sm:$0xff]
  %v3185 = vld [vmem:[%s1 + $0x8] sm:$0xff]
  %v3186 = vld [vmem:[%s1 + $0x10] sm:$0xff]
  %v3187 = vld [vmem:[%s1 + $0x18] sm:$0xff]
  %v3188 = vld [vmem:[%s1 + $0x20] sm:$0xff]
  %v3189 = vld [vmem:[%s1 + $0x28] sm:$0xff]
  %v3190 = vld [vmem:[%s1 + $0x30] sm:$0xff]
  %v3191 = vld [vmem:[%s1 + $0x38] sm:$0xff]
  %v3192 = vld [vmem:[%s1 + $0x40] sm:$0xff]
  %v3193 = vld [vmem:[%s2] sm:$0x1]
  %v3195 = vperm.slane %v3193, 0
  %vm3197 = vcmask 588800
  %v3199 = vsel %vm3197, %v3120, 0
  %v3202 = vsel %vm3197, %v3121, 0
  %v3205 = vsel %vm3197, %v3122, 0
  %v3208 = vsel %vm3197, %v3123, 0
  %v3211 = vsel %vm3197, %v3124, 0
  %v3214 = vsel %vm3197, %v3125, 0
  %v3217 = vsel %vm3197, %v3126, 0
  %v3220 = vsel %vm3197, %v3127, 0
  %v3223 = vsel %vm3197, %v3128, 0
  %v3226 = vsel %vm3197, %v3129, 0
  %v3229 = vsel %vm3197, %v3130, 0
  %v3232 = vsel %vm3197, %v3131, 0
  %v3235 = vsel %vm3197, %v3132, 0
  %v3238 = vsel %vm3197, %v3133, 0
  %v3241 = vsel %vm3197, %v3134, 0
  %v3244 = vsel %vm3197, %v3135, 0
  %v3247 = vsel %vm3197, %v3136, 0
  %v3250 = vsel %vm3197, %v3137, 0
  %v3253 = vsel %vm3197, %v3138, 0
  %v3256 = vsel %vm3197, %v3139, 0
  %v3259 = vsel %vm3197, %v3140, 0
  %v3262 = vsel %vm3197, %v3141, 0
  %v3265 = vsel %vm3197, %v3142, 0
  %v3268 = vsel %vm3197, %v3143, 0
  %v3271 = vsel %vm3197, %v3144, 0
  %v3274 = vsel %vm3197, %v3145, 0
  %v3277 = vsel %vm3197, %v3146, 0
  %v3280 = vsel %vm3197, %v3147, 0
  %v3283 = vsel %vm3197, %v3148, 0
  %v3286 = vsel %vm3197, %v3149, 0
  %v3289 = vsel %vm3197, %v3150, 0
  %v3292 = vsel %vm3197, %v3151, 0
  %v3295 = vsel %vm3197, %v3152, 0
  %v3298 = vsel %vm3197, %v3153, 0
  %v3301 = vsel %vm3197, %v3154, 0
  %v3304 = vsel %vm3197, %v3155, 0
  %v3307 = vsel %vm3197, %v3156, 0
  %v3310 = vsel %vm3197, %v3157, 0
  %v3313 = vsel %vm3197, %v3158, 0
  %v3316 = vsel %vm3197, %v3159, 0
  %v3319 = vsel %vm3197, %v3160, 0
  %v3322 = vsel %vm3197, %v3161, 0
  %v3325 = vsel %vm3197, %v3162, 0
  %v3328 = vsel %vm3197, %v3163, 0
  %v3331 = vsel %vm3197, %v3164, 0
  %v3334 = vsel %vm3197, %v3165, 0
  %v3337 = vsel %vm3197, %v3166, 0
  %v3340 = vsel %vm3197, %v3167, 0
  %v3343 = vsel %vm3197, %v3168, 0
  %v3346 = vsel %vm3197, %v3169, 0
  %v3349 = vsel %vm3197, %v3170, 0
  %v3352 = vsel %vm3197, %v3171, 0
  %v3355 = vsel %vm3197, %v3172, 0
  %v3358 = vsel %vm3197, %v3173, 0
  %v3361 = vsel %vm3197, %v3174, 0
  %v3364 = vsel %vm3197, %v3175, 0
  %v3367 = vsel %vm3197, %v3176, 0
  %v3370 = vsel %vm3197, %v3177, 0
  %v3373 = vsel %vm3197, %v3178, 0
  %v3376 = vsel %vm3197, %v3179, 0
  %v3379 = vsel %vm3197, %v3180, 0
  %v3382 = vsel %vm3197, %v3181, 0
  %v3385 = vsel %vm3197, %v3182, 0
  %v3388 = vsel %vm3197, %v3183, 0
  %3390 = vmatpush.msra.mxu0 0.0
  %3391 = vmatpush.msra.mxu0 0.0
  %3392 = vmatpush.msra.mxu0 0.0
  %3393 = vmatpush.msra.mxu0 0.0
  %3394 = vmatpush.msra.mxu0 0.0
  %3395 = vmatpush.msra.mxu0 0.0
  %3396 = vmatpush.msra.mxu0 0.0
  %3397 = vmatpush.msra.mxu0 %v3192
  %3398 = vmatpush.msra.mxu0 %v3191
  %3399 = vmatpush.msra.mxu0 %v3190
  %3400 = vmatpush.msra.mxu0 %v3189
  %3401 = vmatpush.msra.mxu0 %v3188
  %3402 = vmatpush.msra.mxu0 %v3187
  %3403 = vmatpush.msra.mxu0 %v3186
  %3404 = vmatpush.msra.mxu0 %v3185
  %3405 = vmatpush.msra.mxu0 %v3184
  %3406 = vmatmul.f32.gmra.mxu0 %v3199
  %v3407 = vpop.f32.mrf.mxu0
  %v3408 = vadd.f32 %v3195, %v3407
  %3409 = vmatmul.f32.gmra.mxu0 %v3202
  %v3410 = vpop.f32.mrf.mxu0
  %v3411 = vadd.f32 %v3195, %v3410
  %3412 = vmatmul.f32.gmra.mxu0 %v3205
  %v3413 = vpop.f32.mrf.mxu0
  %v3414 = vadd.f32 %v3195, %v3413
  %3415 = vmatmul.f32.gmra.mxu0 %v3208
  %v3416 = vpop.f32.mrf.mxu0
  %v3417 = vadd.f32 %v3195, %v3416
  %3418 = vmatmul.f32.gmra.mxu0 %v3211
  %v3419 = vpop.f32.mrf.mxu0
  %v3420 = vadd.f32 %v3195, %v3419
  %3421 = vmatmul.f32.gmra.mxu0 %v3214
  %v3422 = vpop.f32.mrf.mxu0
  %v3423 = vadd.f32 %v3195, %v3422
  %3424 = vmatmul.f32.gmra.mxu0 %v3217
  %v3425 = vpop.f32.mrf.mxu0
  %v3426 = vadd.f32 %v3195, %v3425
  %3427 = vmatmul.f32.gmra.mxu0 %v3220
  %v3428 = vpop.f32.mrf.mxu0
  %v3429 = vadd.f32 %v3195, %v3428
  %3430 = vmatmul.f32.gmra.mxu0 %v3223
  %v3431 = vpop.f32.mrf.mxu0
  %v3432 = vadd.f32 %v3195, %v3431
  %3433 = vmatmul.f32.gmra.mxu0 %v3226
  %v3434 = vpop.f32.mrf.mxu0
  %v3435 = vadd.f32 %v3195, %v3434
  %3436 = vmatmul.f32.gmra.mxu0 %v3229
  %v3437 = vpop.f32.mrf.mxu0
  %v3438 = vadd.f32 %v3195, %v3437
  %3439 = vmatmul.f32.gmra.mxu0 %v3232
  %v3440 = vpop.f32.mrf.mxu0
  %v3441 = vadd.f32 %v3195, %v3440
  %3442 = vmatmul.f32.gmra.mxu0 %v3235
  %v3443 = vpop.f32.mrf.mxu0
  %v3444 = vadd.f32 %v3195, %v3443
  %3445 = vmatmul.f32.gmra.mxu0 %v3238
  %v3446 = vpop.f32.mrf.mxu0
  %v3447 = vadd.f32 %v3195, %v3446
  %3448 = vmatmul.f32.gmra.mxu0 %v3241
  %v3449 = vpop.f32.mrf.mxu0
  %v3450 = vadd.f32 %v3195, %v3449
  %3451 = vmatmul.f32.gmra.mxu0 %v3244
  %v3452 = vpop.f32.mrf.mxu0
  %v3453 = vadd.f32 %v3195, %v3452
  %3454 = vmatmul.f32.gmra.mxu0 %v3247
  %v3455 = vpop.f32.mrf.mxu0
  %v3456 = vadd.f32 %v3195, %v3455
  %3457 = vmatmul.f32.gmra.mxu0 %v3250
  %v3458 = vpop.f32.mrf.mxu0
  %v3459 = vadd.f32 %v3195, %v3458
  %3460 = vmatmul.f32.gmra.mxu0 %v3253
  %v3461 = vpop.f32.mrf.mxu0
  %v3462 = vadd.f32 %v3195, %v3461
  %3463 = vmatmul.f32.gmra.mxu0 %v3256
  %v3464 = vpop.f32.mrf.mxu0
  %v3465 = vadd.f32 %v3195, %v3464
  %3466 = vmatmul.f32.gmra.mxu0 %v3259
  %v3467 = vpop.f32.mrf.mxu0
  %v3468 = vadd.f32 %v3195, %v3467
  %3469 = vmatmul.f32.gmra.mxu0 %v3262
  %v3470 = vpop.f32.mrf.mxu0
  %v3471 = vadd.f32 %v3195, %v3470
  %3472 = vmatmul.f32.gmra.mxu0 %v3265
  %v3473 = vpop.f32.mrf.mxu0
  %v3474 = vadd.f32 %v3195, %v3473
  %3475 = vmatmul.f32.gmra.mxu0 %v3268
  %v3476 = vpop.f32.mrf.mxu0
  %v3477 = vadd.f32 %v3195, %v3476
  %3478 = vmatmul.f32.gmra.mxu0 %v3271
  %v3479 = vpop.f32.mrf.mxu0
  %v3480 = vadd.f32 %v3195, %v3479
  %3481 = vmatmul.f32.gmra.mxu0 %v3274
  %v3482 = vpop.f32.mrf.mxu0
  %v3483 = vadd.f32 %v3195, %v3482
  %3484 = vmatmul.f32.gmra.mxu0 %v3277
  %v3485 = vpop.f32.mrf.mxu0
  %v3486 = vadd.f32 %v3195, %v3485
  %3487 = vmatmul.f32.gmra.mxu0 %v3280
  %v3488 = vpop.f32.mrf.mxu0
  %v3489 = vadd.f32 %v3195, %v3488
  %3490 = vmatmul.f32.gmra.mxu0 %v3283
  %v3491 = vpop.f32.mrf.mxu0
  %v3492 = vadd.f32 %v3195, %v3491
  %3493 = vmatmul.f32.gmra.mxu0 %v3286
  %v3494 = vpop.f32.mrf.mxu0
  %v3495 = vadd.f32 %v3195, %v3494
  %3496 = vmatmul.f32.gmra.mxu0 %v3289
  %v3497 = vpop.f32.mrf.mxu0
  %v3498 = vadd.f32 %v3195, %v3497
  %3499 = vmatmul.f32.gmra.mxu0 %v3292
  %v3500 = vpop.f32.mrf.mxu0
  %v3501 = vadd.f32 %v3195, %v3500
  %3502 = vmatmul.f32.gmra.mxu0 %v3295
  %v3503 = vpop.f32.mrf.mxu0
  %v3504 = vadd.f32 %v3195, %v3503
  %3505 = vmatmul.f32.gmra.mxu0 %v3298
  %v3506 = vpop.f32.mrf.mxu0
  %v3507 = vadd.f32 %v3195, %v3506
  %3508 = vmatmul.f32.gmra.mxu0 %v3301
  %v3509 = vpop.f32.mrf.mxu0
  %v3510 = vadd.f32 %v3195, %v3509
  %3511 = vmatmul.f32.gmra.mxu0 %v3304
  %v3512 = vpop.f32.mrf.mxu0
  %v3513 = vadd.f32 %v3195, %v3512
  %3514 = vmatmul.f32.gmra.mxu0 %v3307
  %v3515 = vpop.f32.mrf.mxu0
  %v3516 = vadd.f32 %v3195, %v3515
  %3517 = vmatmul.f32.gmra.mxu0 %v3310
  %v3518 = vpop.f32.mrf.mxu0
  %v3519 = vadd.f32 %v3195, %v3518
  %3520 = vmatmul.f32.gmra.mxu0 %v3313
  %v3521 = vpop.f32.mrf.mxu0
  %v3522 = vadd.f32 %v3195, %v3521
  %3523 = vmatmul.f32.gmra.mxu0 %v3316
  %v3524 = vpop.f32.mrf.mxu0
  %v3525 = vadd.f32 %v3195, %v3524
  %3526 = vmatmul.f32.gmra.mxu0 %v3319
  %v3527 = vpop.f32.mrf.mxu0
  %v3528 = vadd.f32 %v3195, %v3527
  %3529 = vmatmul.f32.gmra.mxu0 %v3322
  %v3530 = vpop.f32.mrf.mxu0
  %v3531 = vadd.f32 %v3195, %v3530
  %3532 = vmatmul.f32.gmra.mxu0 %v3325
  %v3533 = vpop.f32.mrf.mxu0
  %v3534 = vadd.f32 %v3195, %v3533
  %3535 = vmatmul.f32.gmra.mxu0 %v3328
  %v3536 = vpop.f32.mrf.mxu0
  %v3537 = vadd.f32 %v3195, %v3536
  %3538 = vmatmul.f32.gmra.mxu0 %v3331
  %v3539 = vpop.f32.mrf.mxu0
  %v3540 = vadd.f32 %v3195, %v3539
  %3541 = vmatmul.f32.gmra.mxu0 %v3334
  %v3542 = vpop.f32.mrf.mxu0
  %v3543 = vadd.f32 %v3195, %v3542
  %3544 = vmatmul.f32.gmra.mxu0 %v3337
  %v3545 = vpop.f32.mrf.mxu0
  %v3546 = vadd.f32 %v3195, %v3545
  %3547 = vmatmul.f32.gmra.mxu0 %v3340
  %v3548 = vpop.f32.mrf.mxu0
  %v3549 = vadd.f32 %v3195, %v3548
  %3550 = vmatmul.f32.gmra.mxu0 %v3343
  %v3551 = vpop.f32.mrf.mxu0
  %v3552 = vadd.f32 %v3195, %v3551
  %3553 = vmatmul.f32.gmra.mxu0 %v3346
  %v3554 = vpop.f32.mrf.mxu0
  %v3555 = vadd.f32 %v3195, %v3554
  %3556 = vmatmul.f32.gmra.mxu0 %v3349
  %v3557 = vpop.f32.mrf.mxu0
  %v3558 = vadd.f32 %v3195, %v3557
  %3559 = vmatmul.f32.gmra.mxu0 %v3352
  %v3560 = vpop.f32.mrf.mxu0
  %v3561 = vadd.f32 %v3195, %v3560
  %3562 = vmatmul.f32.gmra.mxu0 %v3355
  %v3563 = vpop.f32.mrf.mxu0
  %v3564 = vadd.f32 %v3195, %v3563
  %3565 = vmatmul.f32.gmra.mxu0 %v3358
  %v3566 = vpop.f32.mrf.mxu0
  %v3567 = vadd.f32 %v3195, %v3566
  %3568 = vmatmul.f32.gmra.mxu0 %v3361
  %v3569 = vpop.f32.mrf.mxu0
  %v3570 = vadd.f32 %v3195, %v3569
  %3571 = vmatmul.f32.gmra.mxu0 %v3364
  %v3572 = vpop.f32.mrf.mxu0
  %v3573 = vadd.f32 %v3195, %v3572
  %3574 = vmatmul.f32.gmra.mxu0 %v3367
  %v3575 = vpop.f32.mrf.mxu0
  %v3576 = vadd.f32 %v3195, %v3575
  %3577 = vmatmul.f32.gmra.mxu0 %v3370
  %v3578 = vpop.f32.mrf.mxu0
  %v3579 = vadd.f32 %v3195, %v3578
  %3580 = vmatmul.f32.gmra.mxu0 %v3373
  %v3581 = vpop.f32.mrf.mxu0
  %v3582 = vadd.f32 %v3195, %v3581
  %3583 = vmatmul.f32.gmra.mxu0 %v3376
  %v3584 = vpop.f32.mrf.mxu0
  %v3585 = vadd.f32 %v3195, %v3584
  %3586 = vmatmul.f32.gmra.mxu0 %v3379
  %v3587 = vpop.f32.mrf.mxu0
  %v3588 = vadd.f32 %v3195, %v3587
  %3589 = vmatmul.f32.gmra.mxu0 %v3382
  %v3590 = vpop.f32.mrf.mxu0
  %v3591 = vadd.f32 %v3195, %v3590
  %3592 = vmatmul.f32.gmra.mxu0 %v3385
  %v3593 = vpop.f32.mrf.mxu0
  %v3594 = vadd.f32 %v3195, %v3593
  %3595 = vmatmul.f32.gmra.mxu0 %v3388
  %v3596 = vpop.f32.mrf.mxu0
  %v3597 = vadd.f32 %v3195, %v3596
  %3598 = vdwg.mxu0
  %v3599 = vld [vmem:[%s5] sm:$0x1]
  %v3600 = vld [vmem:[%s6] sm:$0x1]
  %vm3601 = vcmask 64544
  %v3602 = vsel %vm3601, %v3408, 0.0
  %v3603 = vsel %vm3601, %v3411, 0.0
  %v3604 = vadd.f32 %v3602, %v3603
  %v3605 = vsel %vm3601, %v3414, 0.0
  %v3606 = vadd.f32 %v3604, %v3605
  %v3607 = vsel %vm3601, %v3417, 0.0
  %v3608 = vadd.f32 %v3606, %v3607
  %v3609 = vsel %vm3601, %v3420, 0.0
  %v3610 = vadd.f32 %v3608, %v3609
  %v3611 = vsel %vm3601, %v3423, 0.0
  %v3612 = vadd.f32 %v3610, %v3611
  %v3613 = vsel %vm3601, %v3426, 0.0
  %v3614 = vadd.f32 %v3612, %v3613
  %v3615 = vsel %vm3601, %v3429, 0.0
  %v3616 = vadd.f32 %v3614, %v3615
  %v3617 = vsel %vm3601, %v3432, 0.0
  %v3618 = vadd.f32 %v3616, %v3617
  %v3619 = vsel %vm3601, %v3435, 0.0
  %v3620 = vadd.f32 %v3618, %v3619
  %v3621 = vsel %vm3601, %v3438, 0.0
  %v3622 = vadd.f32 %v3620, %v3621
  %v3623 = vsel %vm3601, %v3441, 0.0
  %v3624 = vadd.f32 %v3622, %v3623
  %v3625 = vsel %vm3601, %v3444, 0.0
  %v3626 = vadd.f32 %v3624, %v3625
  %v3627 = vsel %vm3601, %v3447, 0.0
  %v3628 = vadd.f32 %v3626, %v3627
  %v3629 = vsel %vm3601, %v3450, 0.0
  %v3630 = vadd.f32 %v3628, %v3629
  %v3631 = vsel %vm3601, %v3453, 0.0
  %v3632 = vadd.f32 %v3630, %v3631
  %v3633 = vsel %vm3601, %v3456, 0.0
  %v3634 = vadd.f32 %v3632, %v3633
  %v3635 = vsel %vm3601, %v3459, 0.0
  %v3636 = vadd.f32 %v3634, %v3635
  %v3637 = vsel %vm3601, %v3462, 0.0
  %v3638 = vadd.f32 %v3636, %v3637
  %v3639 = vsel %vm3601, %v3465, 0.0
  %v3640 = vadd.f32 %v3638, %v3639
  %v3641 = vsel %vm3601, %v3468, 0.0
  %v3642 = vadd.f32 %v3640, %v3641
  %v3643 = vsel %vm3601, %v3471, 0.0
  %v3644 = vadd.f32 %v3642, %v3643
  %v3645 = vsel %vm3601, %v3474, 0.0
  %v3646 = vadd.f32 %v3644, %v3645
  %v3647 = vsel %vm3601, %v3477, 0.0
  %v3648 = vadd.f32 %v3646, %v3647
  %v3649 = vsel %vm3601, %v3480, 0.0
  %v3650 = vadd.f32 %v3648, %v3649
  %v3651 = vsel %vm3601, %v3483, 0.0
  %v3652 = vadd.f32 %v3650, %v3651
  %v3653 = vsel %vm3601, %v3486, 0.0
  %v3654 = vadd.f32 %v3652, %v3653
  %v3655 = vsel %vm3601, %v3489, 0.0
  %v3656 = vadd.f32 %v3654, %v3655
  %v3657 = vsel %vm3601, %v3492, 0.0
  %v3658 = vadd.f32 %v3656, %v3657
  %v3659 = vsel %vm3601, %v3495, 0.0
  %v3660 = vadd.f32 %v3658, %v3659
  %v3661 = vsel %vm3601, %v3498, 0.0
  %v3662 = vadd.f32 %v3660, %v3661
  %v3663 = vsel %vm3601, %v3501, 0.0
  %v3664 = vadd.f32 %v3662, %v3663
  %v3665 = vsel %vm3601, %v3504, 0.0
  %v3666 = vadd.f32 %v3664, %v3665
  %v3667 = vsel %vm3601, %v3507, 0.0
  %v3668 = vadd.f32 %v3666, %v3667
  %v3669 = vsel %vm3601, %v3510, 0.0
  %v3670 = vadd.f32 %v3668, %v3669
  %v3671 = vsel %vm3601, %v3513, 0.0
  %v3672 = vadd.f32 %v3670, %v3671
  %v3673 = vsel %vm3601, %v3516, 0.0
  %v3674 = vadd.f32 %v3672, %v3673
  %v3675 = vsel %vm3601, %v3519, 0.0
  %v3676 = vadd.f32 %v3674, %v3675
  %v3677 = vsel %vm3601, %v3522, 0.0
  %v3678 = vadd.f32 %v3676, %v3677
  %v3679 = vsel %vm3601, %v3525, 0.0
  %v3680 = vadd.f32 %v3678, %v3679
  %v3681 = vsel %vm3601, %v3528, 0.0
  %v3682 = vadd.f32 %v3680, %v3681
  %v3683 = vsel %vm3601, %v3531, 0.0
  %v3684 = vadd.f32 %v3682, %v3683
  %v3685 = vsel %vm3601, %v3534, 0.0
  %v3686 = vadd.f32 %v3684, %v3685
  %v3687 = vsel %vm3601, %v3537, 0.0
  %v3688 = vadd.f32 %v3686, %v3687
  %v3689 = vsel %vm3601, %v3540, 0.0
  %v3690 = vadd.f32 %v3688, %v3689
  %v3691 = vsel %vm3601, %v3543, 0.0
  %v3692 = vadd.f32 %v3690, %v3691
  %v3693 = vsel %vm3601, %v3546, 0.0
  %v3694 = vadd.f32 %v3692, %v3693
  %v3695 = vsel %vm3601, %v3549, 0.0
  %v3696 = vadd.f32 %v3694, %v3695
  %v3697 = vsel %vm3601, %v3552, 0.0
  %v3698 = vadd.f32 %v3696, %v3697
  %v3699 = vsel %vm3601, %v3555, 0.0
  %v3700 = vadd.f32 %v3698, %v3699
  %v3701 = vsel %vm3601, %v3558, 0.0
  %v3702 = vadd.f32 %v3700, %v3701
  %v3703 = vsel %vm3601, %v3561, 0.0
  %v3704 = vadd.f32 %v3702, %v3703
  %v3705 = vsel %vm3601, %v3564, 0.0
  %v3706 = vadd.f32 %v3704, %v3705
  %v3707 = vsel %vm3601, %v3567, 0.0
  %v3708 = vadd.f32 %v3706, %v3707
  %v3709 = vsel %vm3601, %v3570, 0.0
  %v3710 = vadd.f32 %v3708, %v3709
  %v3711 = vsel %vm3601, %v3573, 0.0
  %v3712 = vadd.f32 %v3710, %v3711
  %v3713 = vsel %vm3601, %v3576, 0.0
  %v3714 = vadd.f32 %v3712, %v3713
  %v3715 = vsel %vm3601, %v3579, 0.0
  %v3716 = vadd.f32 %v3714, %v3715
  %v3717 = vsel %vm3601, %v3582, 0.0
  %v3718 = vadd.f32 %v3716, %v3717
  %v3719 = vsel %vm3601, %v3585, 0.0
  %v3720 = vadd.f32 %v3718, %v3719
  %v3721 = vsel %vm3601, %v3588, 0.0
  %v3722 = vadd.f32 %v3720, %v3721
  %v3723 = vsel %vm3601, %v3591, 0.0
  %v3724 = vadd.f32 %v3722, %v3723
  %v3725 = vsel %vm3601, %v3594, 0.0
  %v3726 = vadd.f32 %v3724, %v3725
  %v3727 = vsel %vm3601, %v3597, 0.0
  %v3728 = vadd.f32 %v3726, %v3727
  %v3729 = vrot.slane %v3728, 4
  %v3730 = vadd.f32 %v3728, %v3729
  %v3731 = vrot.slane %v3730, 2
  %v3732 = vadd.f32 %v3730, %v3731
  %v3733 = vrot.slane %v3732, 1
  %v3734 = vadd.f32 %v3732, %v3733
  %v3735 = vmul.f32 %v3408, %v3408
  %v3736 = vmul.f32 %v3411, %v3411
  %v3737 = vmul.f32 %v3414, %v3414
  %v3738 = vmul.f32 %v3417, %v3417
  %v3739 = vmul.f32 %v3420, %v3420
  %v3740 = vmul.f32 %v3423, %v3423
  %v3741 = vmul.f32 %v3426, %v3426
  %v3742 = vmul.f32 %v3429, %v3429
  %v3743 = vmul.f32 %v3432, %v3432
  %v3744 = vmul.f32 %v3435, %v3435
  %v3745 = vmul.f32 %v3438, %v3438
  %v3746 = vmul.f32 %v3441, %v3441
  %v3747 = vmul.f32 %v3444, %v3444
  %v3748 = vmul.f32 %v3447, %v3447
  %v3749 = vmul.f32 %v3450, %v3450
  %v3750 = vmul.f32 %v3453, %v3453
  %v3751 = vmul.f32 %v3456, %v3456
  %v3752 = vmul.f32 %v3459, %v3459
  %v3753 = vmul.f32 %v3462, %v3462
  %v3754 = vmul.f32 %v3465, %v3465
  %v3755 = vmul.f32 %v3468, %v3468
  %v3756 = vmul.f32 %v3471, %v3471
  %v3757 = vmul.f32 %v3474, %v3474
  %v3758 = vmul.f32 %v3477, %v3477
  %v3759 = vmul.f32 %v3480, %v3480
  %v3760 = vmul.f32 %v3483, %v3483
  %v3761 = vmul.f32 %v3486, %v3486
  %v3762 = vmul.f32 %v3489, %v3489
  %v3763 = vmul.f32 %v3492, %v3492
  %v3764 = vmul.f32 %v3495, %v3495
  %v3765 = vmul.f32 %v3498, %v3498
  %v3766 = vmul.f32 %v3501, %v3501
  %v3767 = vmul.f32 %v3504, %v3504
  %v3768 = vmul.f32 %v3507, %v3507
  %v3769 = vmul.f32 %v3510, %v3510
  %v3770 = vmul.f32 %v3513, %v3513
  %v3771 = vmul.f32 %v3516, %v3516
  %v3772 = vmul.f32 %v3519, %v3519
  %v3773 = vmul.f32 %v3522, %v3522
  %v3774 = vmul.f32 %v3525, %v3525
  %v3775 = vmul.f32 %v3528, %v3528
  %v3776 = vmul.f32 %v3531, %v3531
  %v3777 = vmul.f32 %v3534, %v3534
  %v3778 = vmul.f32 %v3537, %v3537
  %v3779 = vmul.f32 %v3540, %v3540
  %v3780 = vmul.f32 %v3543, %v3543
  %v3781 = vmul.f32 %v3546, %v3546
  %v3782 = vmul.f32 %v3549, %v3549
  %v3783 = vmul.f32 %v3552, %v3552
  %v3784 = vmul.f32 %v3555, %v3555
  %v3785 = vmul.f32 %v3558, %v3558
  %v3786 = vmul.f32 %v3561, %v3561
  %v3787 = vmul.f32 %v3564, %v3564
  %v3788 = vmul.f32 %v3567, %v3567
  %v3789 = vmul.f32 %v3570, %v3570
  %v3790 = vmul.f32 %v3573, %v3573
  %v3791 = vmul.f32 %v3576, %v3576
  %v3792 = vmul.f32 %v3579, %v3579
  %v3793 = vmul.f32 %v3582, %v3582
  %v3794 = vmul.f32 %v3585, %v3585
  %v3795 = vmul.f32 %v3588, %v3588
  %v3796 = vmul.f32 %v3591, %v3591
  %v3797 = vmul.f32 %v3594, %v3594
  %v3798 = vmul.f32 %v3597, %v3597
  %v3799 = vsel %vm3601, %v3735, 0.0
  %v3800 = vsel %vm3601, %v3736, 0.0
  %v3801 = vadd.f32 %v3799, %v3800
  %v3802 = vsel %vm3601, %v3737, 0.0
  %v3803 = vadd.f32 %v3801, %v3802
  %v3804 = vsel %vm3601, %v3738, 0.0
  %v3805 = vadd.f32 %v3803, %v3804
  %v3806 = vsel %vm3601, %v3739, 0.0
  %v3807 = vadd.f32 %v3805, %v3806
  %v3808 = vsel %vm3601, %v3740, 0.0
  %v3809 = vadd.f32 %v3807, %v3808
  %v3810 = vsel %vm3601, %v3741, 0.0
  %v3811 = vadd.f32 %v3809, %v3810
  %v3812 = vsel %vm3601, %v3742, 0.0
  %v3813 = vadd.f32 %v3811, %v3812
  %v3814 = vsel %vm3601, %v3743, 0.0
  %v3815 = vadd.f32 %v3813, %v3814
  %v3816 = vsel %vm3601, %v3744, 0.0
  %v3817 = vadd.f32 %v3815, %v3816
  %v3818 = vsel %vm3601, %v3745, 0.0
  %v3819 = vadd.f32 %v3817, %v3818
  %v3820 = vsel %vm3601, %v3746, 0.0
  %v3821 = vadd.f32 %v3819, %v3820
  %v3822 = vsel %vm3601, %v3747, 0.0
  %v3823 = vadd.f32 %v3821, %v3822
  %v3824 = vsel %vm3601, %v3748, 0.0
  %v3825 = vadd.f32 %v3823, %v3824
  %v3826 = vsel %vm3601, %v3749, 0.0
  %v3827 = vadd.f32 %v3825, %v3826
  %v3828 = vsel %vm3601, %v3750, 0.0
  %v3829 = vadd.f32 %v3827, %v3828
  %v3830 = vsel %vm3601, %v3751, 0.0
  %v3831 = vadd.f32 %v3829, %v3830
  %v3832 = vsel %vm3601, %v3752, 0.0
  %v3833 = vadd.f32 %v3831, %v3832
  %v3834 = vsel %vm3601, %v3753, 0.0
  %v3835 = vadd.f32 %v3833, %v3834
  %v3836 = vsel %vm3601, %v3754, 0.0
  %v3837 = vadd.f32 %v3835, %v3836
  %v3838 = vsel %vm3601, %v3755, 0.0
  %v3839 = vadd.f32 %v3837, %v3838
  %v3840 = vsel %vm3601, %v3756, 0.0
  %v3841 = vadd.f32 %v3839, %v3840
  %v3842 = vsel %vm3601, %v3757, 0.0
  %v3843 = vadd.f32 %v3841, %v3842
  %v3844 = vsel %vm3601, %v3758, 0.0
  %v3845 = vadd.f32 %v3843, %v3844
  %v3846 = vsel %vm3601, %v3759, 0.0
  %v3847 = vadd.f32 %v3845, %v3846
  %v3848 = vsel %vm3601, %v3760, 0.0
  %v3849 = vadd.f32 %v3847, %v3848
  %v3850 = vsel %vm3601, %v3761, 0.0
  %v3851 = vadd.f32 %v3849, %v3850
  %v3852 = vsel %vm3601, %v3762, 0.0
  %v3853 = vadd.f32 %v3851, %v3852
  %v3854 = vsel %vm3601, %v3763, 0.0
  %v3855 = vadd.f32 %v3853, %v3854
  %v3856 = vsel %vm3601, %v3764, 0.0
  %v3857 = vadd.f32 %v3855, %v3856
  %v3858 = vsel %vm3601, %v3765, 0.0
  %v3859 = vadd.f32 %v3857, %v3858
  %v3860 = vsel %vm3601, %v3766, 0.0
  %v3861 = vadd.f32 %v3859, %v3860
  %v3862 = vsel %vm3601, %v3767, 0.0
  %v3863 = vadd.f32 %v3861, %v3862
  %v3864 = vsel %vm3601, %v3768, 0.0
  %v3865 = vadd.f32 %v3863, %v3864
  %v3866 = vsel %vm3601, %v3769, 0.0
  %v3867 = vadd.f32 %v3865, %v3866
  %v3868 = vsel %vm3601, %v3770, 0.0
  %v3869 = vadd.f32 %v3867, %v3868
  %v3870 = vsel %vm3601, %v3771, 0.0
  %v3871 = vadd.f32 %v3869, %v3870
  %v3872 = vsel %vm3601, %v3772, 0.0
  %v3873 = vadd.f32 %v3871, %v3872
  %v3874 = vsel %vm3601, %v3773, 0.0
  %v3875 = vadd.f32 %v3873, %v3874
  %v3876 = vsel %vm3601, %v3774, 0.0
  %v3877 = vadd.f32 %v3875, %v3876
  %v3878 = vsel %vm3601, %v3775, 0.0
  %v3879 = vadd.f32 %v3877, %v3878
  %v3880 = vsel %vm3601, %v3776, 0.0
  %v3881 = vadd.f32 %v3879, %v3880
  %v3882 = vsel %vm3601, %v3777, 0.0
  %v3883 = vadd.f32 %v3881, %v3882
  %v3884 = vsel %vm3601, %v3778, 0.0
  %v3885 = vadd.f32 %v3883, %v3884
  %v3886 = vsel %vm3601, %v3779, 0.0
  %v3887 = vadd.f32 %v3885, %v3886
  %v3888 = vsel %vm3601, %v3780, 0.0
  %v3889 = vadd.f32 %v3887, %v3888
  %v3890 = vsel %vm3601, %v3781, 0.0
  %v3891 = vadd.f32 %v3889, %v3890
  %v3892 = vsel %vm3601, %v3782, 0.0
  %v3893 = vadd.f32 %v3891, %v3892
  %v3894 = vsel %vm3601, %v3783, 0.0
  %v3895 = vadd.f32 %v3893, %v3894
  %v3896 = vsel %vm3601, %v3784, 0.0
  %v3897 = vadd.f32 %v3895, %v3896
  %v3898 = vsel %vm3601, %v3785, 0.0
  %v3899 = vadd.f32 %v3897, %v3898
  %v3900 = vsel %vm3601, %v3786, 0.0
  %v3901 = vadd.f32 %v3899, %v3900
  %v3902 = vsel %vm3601, %v3787, 0.0
  %v3903 = vadd.f32 %v3901, %v3902
  %v3904 = vsel %vm3601, %v3788, 0.0
  %v3905 = vadd.f32 %v3903, %v3904
  %v3906 = vsel %vm3601, %v3789, 0.0
  %v3907 = vadd.f32 %v3905, %v3906
  %v3908 = vsel %vm3601, %v3790, 0.0
  %v3909 = vadd.f32 %v3907, %v3908
  %v3910 = vsel %vm3601, %v3791, 0.0
  %v3911 = vadd.f32 %v3909, %v3910
  %v3912 = vsel %vm3601, %v3792, 0.0
  %v3913 = vadd.f32 %v3911, %v3912
  %v3914 = vsel %vm3601, %v3793, 0.0
  %v3915 = vadd.f32 %v3913, %v3914
  %v3916 = vsel %vm3601, %v3794, 0.0
  %v3917 = vadd.f32 %v3915, %v3916
  %v3918 = vsel %vm3601, %v3795, 0.0
  %v3919 = vadd.f32 %v3917, %v3918
  %v3920 = vsel %vm3601, %v3796, 0.0
  %v3921 = vadd.f32 %v3919, %v3920
  %v3922 = vsel %vm3601, %v3797, 0.0
  %v3923 = vadd.f32 %v3921, %v3922
  %v3924 = vsel %vm3601, %v3798, 0.0
  %v3925 = vadd.f32 %v3923, %v3924
  %v3926 = vrot.slane %v3925, 4
  %v3927 = vadd.f32 %v3925, %v3926
  %v3928 = vrot.slane %v3927, 2
  %v3929 = vadd.f32 %v3927, %v3928
  %v3930 = vrot.slane %v3929, 1
  %v3931 = vadd.f32 %v3929, %v3930
  %v3932 = vmul.f32 %v3734, 0.001953125
  %v3933 = vmul.f32 %v3931, 0.001953125
  %v3934 = vmul.f32 %v3932, %v3932
  %v3935 = vsub.f32 %v3933, %v3934
  %v3936 = vsub.f32 %v3408, %v3932
  %v3937 = vsub.f32 %v3411, %v3932
  %v3938 = vsub.f32 %v3414, %v3932
  %v3939 = vsub.f32 %v3417, %v3932
  %v3940 = vsub.f32 %v3420, %v3932
  %v3941 = vsub.f32 %v3423, %v3932
  %v3942 = vsub.f32 %v3426, %v3932
  %v3943 = vsub.f32 %v3429, %v3932
  %v3944 = vsub.f32 %v3432, %v3932
  %v3945 = vsub.f32 %v3435, %v3932
  %v3946 = vsub.f32 %v3438, %v3932
  %v3947 = vsub.f32 %v3441, %v3932
  %v3948 = vsub.f32 %v3444, %v3932
  %v3949 = vsub.f32 %v3447, %v3932
  %v3950 = vsub.f32 %v3450, %v3932
  %v3951 = vsub.f32 %v3453, %v3932
  %v3952 = vsub.f32 %v3456, %v3932
  %v3953 = vsub.f32 %v3459, %v3932
  %v3954 = vsub.f32 %v3462, %v3932
  %v3955 = vsub.f32 %v3465, %v3932
  %v3956 = vsub.f32 %v3468, %v3932
  %v3957 = vsub.f32 %v3471, %v3932
  %v3958 = vsub.f32 %v3474, %v3932
  %v3959 = vsub.f32 %v3477, %v3932
  %v3960 = vsub.f32 %v3480, %v3932
  %v3961 = vsub.f32 %v3483, %v3932
  %v3962 = vsub.f32 %v3486, %v3932
  %v3963 = vsub.f32 %v3489, %v3932
  %v3964 = vsub.f32 %v3492, %v3932
  %v3965 = vsub.f32 %v3495, %v3932
  %v3966 = vsub.f32 %v3498, %v3932
  %v3967 = vsub.f32 %v3501, %v3932
  %v3968 = vsub.f32 %v3504, %v3932
  %v3969 = vsub.f32 %v3507, %v3932
  %v3970 = vsub.f32 %v3510, %v3932
  %v3971 = vsub.f32 %v3513, %v3932
  %v3972 = vsub.f32 %v3516, %v3932
  %v3973 = vsub.f32 %v3519, %v3932
  %v3974 = vsub.f32 %v3522, %v3932
  %v3975 = vsub.f32 %v3525, %v3932
  %v3976 = vsub.f32 %v3528, %v3932
  %v3977 = vsub.f32 %v3531, %v3932
  %v3978 = vsub.f32 %v3534, %v3932
  %v3979 = vsub.f32 %v3537, %v3932
  %v3980 = vsub.f32 %v3540, %v3932
  %v3981 = vsub.f32 %v3543, %v3932
  %v3982 = vsub.f32 %v3546, %v3932
  %v3983 = vsub.f32 %v3549, %v3932
  %v3984 = vsub.f32 %v3552, %v3932
  %v3985 = vsub.f32 %v3555, %v3932
  %v3986 = vsub.f32 %v3558, %v3932
  %v3987 = vsub.f32 %v3561, %v3932
  %v3988 = vsub.f32 %v3564, %v3932
  %v3989 = vsub.f32 %v3567, %v3932
  %v3990 = vsub.f32 %v3570, %v3932
  %v3991 = vsub.f32 %v3573, %v3932
  %v3992 = vsub.f32 %v3576, %v3932
  %v3993 = vsub.f32 %v3579, %v3932
  %v3994 = vsub.f32 %v3582, %v3932
  %v3995 = vsub.f32 %v3585, %v3932
  %v3996 = vsub.f32 %v3588, %v3932
  %v3997 = vsub.f32 %v3591, %v3932
  %v3998 = vsub.f32 %v3594, %v3932
  %v3999 = vsub.f32 %v3597, %v3932
  %v4000 = vadd.f32 %v3935, 1e-05
  %v4001 = vrsqrt.pop %v4000
  %v4002 = vmul.f32 %v4001, %v4000
  %v4003 = vmul.f32 %v4002, %v4001
  %v4004 = vmul.f32 0.5, %v4003
  %v4005 = vsub.f32 1.5, %v4004
  %v4006 = vmul.f32 %v4001, %v4005
  %vm4007 = vweird.f32 %v4000
  %vm4008 = vweird.f32 %v4001
  %vm4009 = vmor %vm4007, %vm4008
  %v4010 = vsel %vm4009, %v4001, %v4006
  %v4011 = vmul.f32 %v3936, %v4010
  %v4012 = vmul.f32 %v3937, %v4010
  %v4013 = vmul.f32 %v3938, %v4010
  %v4014 = vmul.f32 %v3939, %v4010
  %v4015 = vmul.f32 %v3940, %v4010
  %v4016 = vmul.f32 %v3941, %v4010
  %v4017 = vmul.f32 %v3942, %v4010
  %v4018 = vmul.f32 %v3943, %v4010
  %v4019 = vmul.f32 %v3944, %v4010
  %v4020 = vmul.f32 %v3945, %v4010
  %v4021 = vmul.f32 %v3946, %v4010
  %v4022 = vmul.f32 %v3947, %v4010
  %v4023 = vmul.f32 %v3948, %v4010
  %v4024 = vmul.f32 %v3949, %v4010
  %v4025 = vmul.f32 %v3950, %v4010
  %v4026 = vmul.f32 %v3951, %v4010
  %v4027 = vmul.f32 %v3952, %v4010
  %v4028 = vmul.f32 %v3953, %v4010
  %v4029 = vmul.f32 %v3954, %v4010
  %v4030 = vmul.f32 %v3955, %v4010
  %v4031 = vmul.f32 %v3956, %v4010
  %v4032 = vmul.f32 %v3957, %v4010
  %v4033 = vmul.f32 %v3958, %v4010
  %v4034 = vmul.f32 %v3959, %v4010
  %v4035 = vmul.f32 %v3960, %v4010
  %v4036 = vmul.f32 %v3961, %v4010
  %v4037 = vmul.f32 %v3962, %v4010
  %v4038 = vmul.f32 %v3963, %v4010
  %v4039 = vmul.f32 %v3964, %v4010
  %v4040 = vmul.f32 %v3965, %v4010
  %v4041 = vmul.f32 %v3966, %v4010
  %v4042 = vmul.f32 %v3967, %v4010
  %v4043 = vmul.f32 %v3968, %v4010
  %v4044 = vmul.f32 %v3969, %v4010
  %v4045 = vmul.f32 %v3970, %v4010
  %v4046 = vmul.f32 %v3971, %v4010
  %v4047 = vmul.f32 %v3972, %v4010
  %v4048 = vmul.f32 %v3973, %v4010
  %v4049 = vmul.f32 %v3974, %v4010
  %v4050 = vmul.f32 %v3975, %v4010
  %v4051 = vmul.f32 %v3976, %v4010
  %v4052 = vmul.f32 %v3977, %v4010
  %v4053 = vmul.f32 %v3978, %v4010
  %v4054 = vmul.f32 %v3979, %v4010
  %v4055 = vmul.f32 %v3980, %v4010
  %v4056 = vmul.f32 %v3981, %v4010
  %v4057 = vmul.f32 %v3982, %v4010
  %v4058 = vmul.f32 %v3983, %v4010
  %v4059 = vmul.f32 %v3984, %v4010
  %v4060 = vmul.f32 %v3985, %v4010
  %v4061 = vmul.f32 %v3986, %v4010
  %v4062 = vmul.f32 %v3987, %v4010
  %v4063 = vmul.f32 %v3988, %v4010
  %v4064 = vmul.f32 %v3989, %v4010
  %v4065 = vmul.f32 %v3990, %v4010
  %v4066 = vmul.f32 %v3991, %v4010
  %v4067 = vmul.f32 %v3992, %v4010
  %v4068 = vmul.f32 %v3993, %v4010
  %v4069 = vmul.f32 %v3994, %v4010
  %v4070 = vmul.f32 %v3995, %v4010
  %v4071 = vmul.f32 %v3996, %v4010
  %v4072 = vmul.f32 %v3997, %v4010
  %v4073 = vmul.f32 %v3998, %v4010
  %v4074 = vmul.f32 %v3999, %v4010
  %v4076 = vperm.slane %v3599, 0
  %4077 = vrot.lane.b32.xlu0 %v4076, 4
  %v4078 = vpop.permute.xlu0 %4077
  %v4080 = vmul.f32 %v4011, %v4078
  %v4081 = vmul.f32 %v4012, %v4078
  %v4082 = vmul.f32 %v4013, %v4078
  %v4083 = vmul.f32 %v4014, %v4078
  %v4084 = vmul.f32 %v4015, %v4078
  %v4085 = vmul.f32 %v4016, %v4078
  %v4086 = vmul.f32 %v4017, %v4078
  %v4087 = vmul.f32 %v4018, %v4078
  %v4088 = vmul.f32 %v4019, %v4078
  %v4089 = vmul.f32 %v4020, %v4078
  %v4090 = vmul.f32 %v4021, %v4078
  %v4091 = vmul.f32 %v4022, %v4078
  %v4092 = vmul.f32 %v4023, %v4078
  %v4093 = vmul.f32 %v4024, %v4078
  %v4094 = vmul.f32 %v4025, %v4078
  %v4095 = vmul.f32 %v4026, %v4078
  %v4096 = vmul.f32 %v4027, %v4078
  %v4097 = vmul.f32 %v4028, %v4078
  %v4098 = vmul.f32 %v4029, %v4078
  %v4099 = vmul.f32 %v4030, %v4078
  %v4100 = vmul.f32 %v4031, %v4078
  %v4101 = vmul.f32 %v4032, %v4078
  %v4102 = vmul.f32 %v4033, %v4078
  %v4103 = vmul.f32 %v4034, %v4078
  %v4104 = vmul.f32 %v4035, %v4078
  %v4105 = vmul.f32 %v4036, %v4078
  %v4106 = vmul.f32 %v4037, %v4078
  %v4107 = vmul.f32 %v4038, %v4078
  %v4108 = vmul.f32 %v4039, %v4078
  %v4109 = vmul.f32 %v4040, %v4078
  %v4110 = vmul.f32 %v4041, %v4078
  %v4111 = vmul.f32 %v4042, %v4078
  %v4112 = vmul.f32 %v4043, %v4078
  %v4113 = vmul.f32 %v4044, %v4078
  %v4114 = vmul.f32 %v4045, %v4078
  %v4115 = vmul.f32 %v4046, %v4078
  %v4116 = vmul.f32 %v4047, %v4078
  %v4117 = vmul.f32 %v4048, %v4078
  %v4118 = vmul.f32 %v4049, %v4078
  %v4119 = vmul.f32 %v4050, %v4078
  %v4120 = vmul.f32 %v4051, %v4078
  %v4121 = vmul.f32 %v4052, %v4078
  %v4122 = vmul.f32 %v4053, %v4078
  %v4123 = vmul.f32 %v4054, %v4078
  %v4124 = vmul.f32 %v4055, %v4078
  %v4125 = vmul.f32 %v4056, %v4078
  %v4126 = vmul.f32 %v4057, %v4078
  %v4127 = vmul.f32 %v4058, %v4078
  %v4128 = vmul.f32 %v4059, %v4078
  %v4129 = vmul.f32 %v4060, %v4078
  %v4130 = vmul.f32 %v4061, %v4078
  %v4131 = vmul.f32 %v4062, %v4078
  %v4132 = vmul.f32 %v4063, %v4078
  %v4133 = vmul.f32 %v4064, %v4078
  %v4134 = vmul.f32 %v4065, %v4078
  %v4135 = vmul.f32 %v4066, %v4078
  %v4136 = vmul.f32 %v4067, %v4078
  %v4137 = vmul.f32 %v4068, %v4078
  %v4138 = vmul.f32 %v4069, %v4078
  %v4139 = vmul.f32 %v4070, %v4078
  %v4140 = vmul.f32 %v4071, %v4078
  %v4141 = vmul.f32 %v4072, %v4078
  %v4142 = vmul.f32 %v4073, %v4078
  %v4143 = vmul.f32 %v4074, %v4078
  %v4145 = vperm.slane %v3600, 0
  %4146 = vrot.lane.b32.xlu0 %v4145, 4
  %v4147 = vpop.permute.xlu0 %4146
  %v4149 = vadd.f32 %v4080, %v4147
  %v4150 = vadd.f32 %v4081, %v4147
  %v4151 = vadd.f32 %v4082, %v4147
  %v4152 = vadd.f32 %v4083, %v4147
  %v4153 = vadd.f32 %v4084, %v4147
  %v4154 = vadd.f32 %v4085, %v4147
  %v4155 = vadd.f32 %v4086, %v4147
  %v4156 = vadd.f32 %v4087, %v4147
  %v4157 = vadd.f32 %v4088, %v4147
  %v4158 = vadd.f32 %v4089, %v4147
  %v4159 = vadd.f32 %v4090, %v4147
  %v4160 = vadd.f32 %v4091, %v4147
  %v4161 = vadd.f32 %v4092, %v4147
  %v4162 = vadd.f32 %v4093, %v4147
  %v4163 = vadd.f32 %v4094, %v4147
  %v4164 = vadd.f32 %v4095, %v4147
  %v4165 = vadd.f32 %v4096, %v4147
  %v4166 = vadd.f32 %v4097, %v4147
  %v4167 = vadd.f32 %v4098, %v4147
  %v4168 = vadd.f32 %v4099, %v4147
  %v4169 = vadd.f32 %v4100, %v4147
  %v4170 = vadd.f32 %v4101, %v4147
  %v4171 = vadd.f32 %v4102, %v4147
  %v4172 = vadd.f32 %v4103, %v4147
  %v4173 = vadd.f32 %v4104, %v4147
  %v4174 = vadd.f32 %v4105, %v4147
  %v4175 = vadd.f32 %v4106, %v4147
  %v4176 = vadd.f32 %v4107, %v4147
  %v4177 = vadd.f32 %v4108, %v4147
  %v4178 = vadd.f32 %v4109, %v4147
  %v4179 = vadd.f32 %v4110, %v4147
  %v4180 = vadd.f32 %v4111, %v4147
  %v4181 = vadd.f32 %v4112, %v4147
  %v4182 = vadd.f32 %v4113, %v4147
  %v4183 = vadd.f32 %v4114, %v4147
  %v4184 = vadd.f32 %v4115, %v4147
  %v4185 = vadd.f32 %v4116, %v4147
  %v4186 = vadd.f32 %v4117, %v4147
  %v4187 = vadd.f32 %v4118, %v4147
  %v4188 = vadd.f32 %v4119, %v4147
  %v4189 = vadd.f32 %v4120, %v4147
  %v4190 = vadd.f32 %v4121, %v4147
  %v4191 = vadd.f32 %v4122, %v4147
  %v4192 = vadd.f32 %v4123, %v4147
  %v4193 = vadd.f32 %v4124, %v4147
  %v4194 = vadd.f32 %v4125, %v4147
  %v4195 = vadd.f32 %v4126, %v4147
  %v4196 = vadd.f32 %v4127, %v4147
  %v4197 = vadd.f32 %v4128, %v4147
  %v4198 = vadd.f32 %v4129, %v4147
  %v4199 = vadd.f32 %v4130, %v4147
  %v4200 = vadd.f32 %v4131, %v4147
  %v4201 = vadd.f32 %v4132, %v4147
  %v4202 = vadd.f32 %v4133, %v4147
  %v4203 = vadd.f32 %v4134, %v4147
  %v4204 = vadd.f32 %v4135, %v4147
  %v4205 = vadd.f32 %v4136, %v4147
  %v4206 = vadd.f32 %v4137, %v4147
  %v4207 = vadd.f32 %v4138, %v4147
  %v4208 = vadd.f32 %v4139, %v4147
  %v4209 = vadd.f32 %v4140, %v4147
  %v4210 = vadd.f32 %v4141, %v4147
  %v4211 = vadd.f32 %v4142, %v4147
  %v4212 = vadd.f32 %v4143, %v4147
  %vm4213 = vcmp.gt.f32.partialorder %v4149, 0.0
  %vm4214 = vcmp.gt.f32.partialorder %v4150, 0.0
  %vm4215 = vcmp.gt.f32.partialorder %v4151, 0.0
  %vm4216 = vcmp.gt.f32.partialorder %v4152, 0.0
  %vm4217 = vcmp.gt.f32.partialorder %v4153, 0.0
  %vm4218 = vcmp.gt.f32.partialorder %v4154, 0.0
  %vm4219 = vcmp.gt.f32.partialorder %v4155, 0.0
  %vm4220 = vcmp.gt.f32.partialorder %v4156, 0.0
  %vm4221 = vcmp.gt.f32.partialorder %v4157, 0.0
  %vm4222 = vcmp.gt.f32.partialorder %v4158, 0.0
  %vm4223 = vcmp.gt.f32.partialorder %v4159, 0.0
  %vm4224 = vcmp.gt.f32.partialorder %v4160, 0.0
  %vm4225 = vcmp.gt.f32.partialorder %v4161, 0.0
  %vm4226 = vcmp.gt.f32.partialorder %v4162, 0.0
  %vm4227 = vcmp.gt.f32.partialorder %v4163, 0.0
  %vm4228 = vcmp.gt.f32.partialorder %v4164, 0.0
  %vm4229 = vcmp.gt.f32.partialorder %v4165, 0.0
  %vm4230 = vcmp.gt.f32.partialorder %v4166, 0.0
  %vm4231 = vcmp.gt.f32.partialorder %v4167, 0.0
  %vm4232 = vcmp.gt.f32.partialorder %v4168, 0.0
  %vm4233 = vcmp.gt.f32.partialorder %v4169, 0.0
  %vm4234 = vcmp.gt.f32.partialorder %v4170, 0.0
  %vm4235 = vcmp.gt.f32.partialorder %v4171, 0.0
  %vm4236 = vcmp.gt.f32.partialorder %v4172, 0.0
  %vm4237 = vcmp.gt.f32.partialorder %v4173, 0.0
  %vm4238 = vcmp.gt.f32.partialorder %v4174, 0.0
  %vm4239 = vcmp.gt.f32.partialorder %v4175, 0.0
  %vm4240 = vcmp.gt.f32.partialorder %v4176, 0.0
  %vm4241 = vcmp.gt.f32.partialorder %v4177, 0.0
  %vm4242 = vcmp.gt.f32.partialorder %v4178, 0.0
  %vm4243 = vcmp.gt.f32.partialorder %v4179, 0.0
  %vm4244 = vcmp.gt.f32.partialorder %v4180, 0.0
  %vm4245 = vcmp.gt.f32.partialorder %v4181, 0.0
  %vm4246 = vcmp.gt.f32.partialorder %v4182, 0.0
  %vm4247 = vcmp.gt.f32.partialorder %v4183, 0.0
  %vm4248 = vcmp.gt.f32.partialorder %v4184, 0.0
  %vm4249 = vcmp.gt.f32.partialorder %v4185, 0.0
  %vm4250 = vcmp.gt.f32.partialorder %v4186, 0.0
  %vm4251 = vcmp.gt.f32.partialorder %v4187, 0.0
  %vm4252 = vcmp.gt.f32.partialorder %v4188, 0.0
  %vm4253 = vcmp.gt.f32.partialorder %v4189, 0.0
  %vm4254 = vcmp.gt.f32.partialorder %v4190, 0.0
  %vm4255 = vcmp.gt.f32.partialorder %v4191, 0.0
  %vm4256 = vcmp.gt.f32.partialorder %v4192, 0.0
  %vm4257 = vcmp.gt.f32.partialorder %v4193, 0.0
  %vm4258 = vcmp.gt.f32.partialorder %v4194, 0.0
  %vm4259 = vcmp.gt.f32.partialorder %v4195, 0.0
  %vm4260 = vcmp.gt.f32.partialorder %v4196, 0.0
  %vm4261 = vcmp.gt.f32.partialorder %v4197, 0.0
  %vm4262 = vcmp.gt.f32.partialorder %v4198, 0.0
  %vm4263 = vcmp.gt.f32.partialorder %v4199, 0.0
  %vm4264 = vcmp.gt.f32.partialorder %v4200, 0.0
  %vm4265 = vcmp.gt.f32.partialorder %v4201, 0.0
  %vm4266 = vcmp.gt.f32.partialorder %v4202, 0.0
  %vm4267 = vcmp.gt.f32.partialorder %v4203, 0.0
  %vm4268 = vcmp.gt.f32.partialorder %v4204, 0.0
  %vm4269 = vcmp.gt.f32.partialorder %v4205, 0.0
  %vm4270 = vcmp.gt.f32.partialorder %v4206, 0.0
  %vm4271 = vcmp.gt.f32.partialorder %v4207, 0.0
  %vm4272 = vcmp.gt.f32.partialorder %v4208, 0.0
  %vm4273 = vcmp.gt.f32.partialorder %v4209, 0.0
  %vm4274 = vcmp.gt.f32.partialorder %v4210, 0.0
  %vm4275 = vcmp.gt.f32.partialorder %v4211, 0.0
  %vm4276 = vcmp.gt.f32.partialorder %v4212, 0.0
  %v4277 = vmin.f32 %v4149, 0.0
  %v4278 = vmin.f32 %v4150, 0.0
  %v4279 = vmin.f32 %v4151, 0.0
  %v4280 = vmin.f32 %v4152, 0.0
  %v4281 = vmin.f32 %v4153, 0.0
  %v4282 = vmin.f32 %v4154, 0.0
  %v4283 = vmin.f32 %v4155, 0.0
  %v4284 = vmin.f32 %v4156, 0.0
  %v4285 = vmin.f32 %v4157, 0.0
  %v4286 = vmin.f32 %v4158, 0.0
  %v4287 = vmin.f32 %v4159, 0.0
  %v4288 = vmin.f32 %v4160, 0.0
  %v4289 = vmin.f32 %v4161, 0.0
  %v4290 = vmin.f32 %v4162, 0.0
  %v4291 = vmin.f32 %v4163, 0.0
  %v4292 = vmin.f32 %v4164, 0.0
  %v4293 = vmin.f32 %v4165, 0.0
  %v4294 = vmin.f32 %v4166, 0.0
  %v4295 = vmin.f32 %v4167, 0.0
  %v4296 = vmin.f32 %v4168, 0.0
  %v4297 = vmin.f32 %v4169, 0.0
  %v4298 = vmin.f32 %v4170, 0.0
  %v4299 = vmin.f32 %v4171, 0.0
  %v4300 = vmin.f32 %v4172, 0.0
  %v4301 = vmin.f32 %v4173, 0.0
  %v4302 = vmin.f32 %v4174, 0.0
  %v4303 = vmin.f32 %v4175, 0.0
  %v4304 = vmin.f32 %v4176, 0.0
  %v4305 = vmin.f32 %v4177, 0.0
  %v4306 = vmin.f32 %v4178, 0.0
  %v4307 = vmin.f32 %v4179, 0.0
  %v4308 = vmin.f32 %v4180, 0.0
  %v4309 = vmin.f32 %v4181, 0.0
  %v4310 = vmin.f32 %v4182, 0.0
  %v4311 = vmin.f32 %v4183, 0.0
  %v4312 = vmin.f32 %v4184, 0.0
  %v4313 = vmin.f32 %v4185, 0.0
  %v4314 = vmin.f32 %v4186, 0.0
  %v4315 = vmin.f32 %v4187, 0.0
  %v4316 = vmin.f32 %v4188, 0.0
  %v4317 = vmin.f32 %v4189, 0.0
  %v4318 = vmin.f32 %v4190, 0.0
  %v4319 = vmin.f32 %v4191, 0.0
  %v4320 = vmin.f32 %v4192, 0.0
  %v4321 = vmin.f32 %v4193, 0.0
  %v4322 = vmin.f32 %v4194, 0.0
  %v4323 = vmin.f32 %v4195, 0.0
  %v4324 = vmin.f32 %v4196, 0.0
  %v4325 = vmin.f32 %v4197, 0.0
  %v4326 = vmin.f32 %v4198, 0.0
  %v4327 = vmin.f32 %v4199, 0.0
  %v4328 = vmin.f32 %v4200, 0.0
  %v4329 = vmin.f32 %v4201, 0.0
  %v4330 = vmin.f32 %v4202, 0.0
  %v4331 = vmin.f32 %v4203, 0.0
  %v4332 = vmin.f32 %v4204, 0.0
  %v4333 = vmin.f32 %v4205, 0.0
  %v4334 = vmin.f32 %v4206, 0.0
  %v4335 = vmin.f32 %v4207, 0.0
  %v4336 = vmin.f32 %v4208, 0.0
  %v4337 = vmin.f32 %v4209, 0.0
  %v4338 = vmin.f32 %v4210, 0.0
  %v4339 = vmin.f32 %v4211, 0.0
  %v4340 = vmin.f32 %v4212, 0.0
  %v4341 = vmul.f32 %v4277, 1.442695
  %v4342 = vpow.pop %v4341
  %v4343 = vmul.f32 %v4278, 1.442695
  %v4344 = vpow.pop %v4343
  %v4345 = vmul.f32 %v4279, 1.442695
  %v4346 = vpow.pop %v4345
  %v4347 = vmul.f32 %v4280, 1.442695
  %v4348 = vpow.pop %v4347
  %v4349 = vmul.f32 %v4281, 1.442695
  %v4350 = vpow.pop %v4349
  %v4351 = vmul.f32 %v4282, 1.442695
  %v4352 = vpow.pop %v4351
  %v4353 = vmul.f32 %v4283, 1.442695
  %v4354 = vpow.pop %v4353
  %v4355 = vmul.f32 %v4284, 1.442695
  %v4356 = vpow.pop %v4355
  %v4357 = vmul.f32 %v4285, 1.442695
  %v4358 = vpow.pop %v4357
  %v4359 = vmul.f32 %v4286, 1.442695
  %v4360 = vpow.pop %v4359
  %v4361 = vmul.f32 %v4287, 1.442695
  %v4362 = vpow.pop %v4361
  %v4363 = vmul.f32 %v4288, 1.442695
  %v4364 = vpow.pop %v4363
  %v4365 = vmul.f32 %v4289, 1.442695
  %v4366 = vpow.pop %v4365
  %v4367 = vmul.f32 %v4290, 1.442695
  %v4368 = vpow.pop %v4367
  %v4369 = vmul.f32 %v4291, 1.442695
  %v4370 = vpow.pop %v4369
  %v4371 = vmul.f32 %v4292, 1.442695
  %v4372 = vpow.pop %v4371
  %v4373 = vmul.f32 %v4293, 1.442695
  %v4374 = vpow.pop %v4373
  %v4375 = vmul.f32 %v4294, 1.442695
  %v4376 = vpow.pop %v4375
  %v4377 = vmul.f32 %v4295, 1.442695
  %v4378 = vpow.pop %v4377
  %v4379 = vmul.f32 %v4296, 1.442695
  %v4380 = vpow.pop %v4379
  %v4381 = vmul.f32 %v4297, 1.442695
  %v4382 = vpow.pop %v4381
  %v4383 = vmul.f32 %v4298, 1.442695
  %v4384 = vpow.pop %v4383
  %v4385 = vmul.f32 %v4299, 1.442695
  %v4386 = vpow.pop %v4385
  %v4387 = vmul.f32 %v4300, 1.442695
  %v4388 = vpow.pop %v4387
  %v4389 = vmul.f32 %v4301, 1.442695
  %v4390 = vpow.pop %v4389
  %v4391 = vmul.f32 %v4302, 1.442695
  %v4392 = vpow.pop %v4391
  %v4393 = vmul.f32 %v4303, 1.442695
  %v4394 = vpow.pop %v4393
  %v4395 = vmul.f32 %v4304, 1.442695
  %v4396 = vpow.pop %v4395
  %v4397 = vmul.f32 %v4305, 1.442695
  %v4398 = vpow.pop %v4397
  %v4399 = vmul.f32 %v4306, 1.442695
  %v4400 = vpow.pop %v4399
  %v4401 = vmul.f32 %v4307, 1.442695
  %v4402 = vpow.pop %v4401
  %v4403 = vmul.f32 %v4308, 1.442695
  %v4404 = vpow.pop %v4403
  %v4405 = vmul.f32 %v4309, 1.442695
  %v4406 = vpow.pop %v4405
  %v4407 = vmul.f32 %v4310, 1.442695
  %v4408 = vpow.pop %v4407
  %v4409 = vmul.f32 %v4311, 1.442695
  %v4410 = vpow.pop %v4409
  %v4411 = vmul.f32 %v4312, 1.442695
  %v4412 = vpow.pop %v4411
  %v4413 = vmul.f32 %v4313, 1.442695
  %v4414 = vpow.pop %v4413
  %v4415 = vmul.f32 %v4314, 1.442695
  %v4416 = vpow.pop %v4415
  %v4417 = vmul.f32 %v4315, 1.442695
  %v4418 = vpow.pop %v4417
  %v4419 = vmul.f32 %v4316, 1.442695
  %v4420 = vpow.pop %v4419
  %v4421 = vmul.f32 %v4317, 1.442695
  %v4422 = vpow.pop %v4421
  %v4423 = vmul.f32 %v4318, 1.442695
  %v4424 = vpow.pop %v4423
  %v4425 = vmul.f32 %v4319, 1.442695
  %v4426 = vpow.pop %v4425
  %v4427 = vmul.f32 %v4320, 1.442695
  %v4428 = vpow.pop %v4427
  %v4429 = vmul.f32 %v4321, 1.442695
  %v4430 = vpow.pop %v4429
  %v4431 = vmul.f32 %v4322, 1.442695
  %v4432 = vpow.pop %v4431
  %v4433 = vmul.f32 %v4323, 1.442695
  %v4434 = vpow.pop %v4433
  %v4435 = vmul.f32 %v4324, 1.442695
  %v4436 = vpow.pop %v4435
  %v4437 = vmul.f32 %v4325, 1.442695
  %v4438 = vpow.pop %v4437
  %v4439 = vmul.f32 %v4326, 1.442695
  %v4440 = vpow.pop %v4439
  %v4441 = vmul.f32 %v4327, 1.442695
  %v4442 = vpow.pop %v4441
  %v4443 = vmul.f32 %v4328, 1.442695
  %v4444 = vpow.pop %v4443
  %v4445 = vmul.f32 %v4329, 1.442695
  %v4446 = vpow.pop %v4445
  %v4447 = vmul.f32 %v4330, 1.442695
  %v4448 = vpow.pop %v4447
  %v4449 = vmul.f32 %v4331, 1.442695
  %v4450 = vpow.pop %v4449
  %v4451 = vmul.f32 %v4332, 1.442695
  %v4452 = vpow.pop %v4451
  %v4453 = vmul.f32 %v4333, 1.442695
  %v4454 = vpow.pop %v4453
  %v4455 = vmul.f32 %v4334, 1.442695
  %v4456 = vpow.pop %v4455
  %v4457 = vmul.f32 %v4335, 1.442695
  %v4458 = vpow.pop %v4457
  %v4459 = vmul.f32 %v4336, 1.442695
  %v4460 = vpow.pop %v4459
  %v4461 = vmul.f32 %v4337, 1.442695
  %v4462 = vpow.pop %v4461
  %v4463 = vmul.f32 %v4338, 1.442695
  %v4464 = vpow.pop %v4463
  %v4465 = vmul.f32 %v4339, 1.442695
  %v4466 = vpow.pop %v4465
  %v4467 = vmul.f32 %v4340, 1.442695
  %v4468 = vpow.pop %v4467
  %v4469 = vsub.f32 %v4342, 1.0
  %v4470 = vsub.f32 %v4344, 1.0
  %v4471 = vsub.f32 %v4346, 1.0
  %v4472 = vsub.f32 %v4348, 1.0
  %v4473 = vsub.f32 %v4350, 1.0
  %v4474 = vsub.f32 %v4352, 1.0
  %v4475 = vsub.f32 %v4354, 1.0
  %v4476 = vsub.f32 %v4356, 1.0
  %v4477 = vsub.f32 %v4358, 1.0
  %v4478 = vsub.f32 %v4360, 1.0
  %v4479 = vsub.f32 %v4362, 1.0
  %v4480 = vsub.f32 %v4364, 1.0
  %v4481 = vsub.f32 %v4366, 1.0
  %v4482 = vsub.f32 %v4368, 1.0
  %v4483 = vsub.f32 %v4370, 1.0
  %v4484 = vsub.f32 %v4372, 1.0
  %v4485 = vsub.f32 %v4374, 1.0
  %v4486 = vsub.f32 %v4376, 1.0
  %v4487 = vsub.f32 %v4378, 1.0
  %v4488 = vsub.f32 %v4380, 1.0
  %v4489 = vsub.f32 %v4382, 1.0
  %v4490 = vsub.f32 %v4384, 1.0
  %v4491 = vsub.f32 %v4386, 1.0
  %v4492 = vsub.f32 %v4388, 1.0
  %v4493 = vsub.f32 %v4390, 1.0
  %v4494 = vsub.f32 %v4392, 1.0
  %v4495 = vsub.f32 %v4394, 1.0
  %v4496 = vsub.f32 %v4396, 1.0
  %v4497 = vsub.f32 %v4398, 1.0
  %v4498 = vsub.f32 %v4400, 1.0
  %v4499 = vsub.f32 %v4402, 1.0
  %v4500 = vsub.f32 %v4404, 1.0
  %v4501 = vsub.f32 %v4406, 1.0
  %v4502 = vsub.f32 %v4408, 1.0
  %v4503 = vsub.f32 %v4410, 1.0
  %v4504 = vsub.f32 %v4412, 1.0
  %v4505 = vsub.f32 %v4414, 1.0
  %v4506 = vsub.f32 %v4416, 1.0
  %v4507 = vsub.f32 %v4418, 1.0
  %v4508 = vsub.f32 %v4420, 1.0
  %v4509 = vsub.f32 %v4422, 1.0
  %v4510 = vsub.f32 %v4424, 1.0
  %v4511 = vsub.f32 %v4426, 1.0
  %v4512 = vsub.f32 %v4428, 1.0
  %v4513 = vsub.f32 %v4430, 1.0
  %v4514 = vsub.f32 %v4432, 1.0
  %v4515 = vsub.f32 %v4434, 1.0
  %v4516 = vsub.f32 %v4436, 1.0
  %v4517 = vsub.f32 %v4438, 1.0
  %v4518 = vsub.f32 %v4440, 1.0
  %v4519 = vsub.f32 %v4442, 1.0
  %v4520 = vsub.f32 %v4444, 1.0
  %v4521 = vsub.f32 %v4446, 1.0
  %v4522 = vsub.f32 %v4448, 1.0
  %v4523 = vsub.f32 %v4450, 1.0
  %v4524 = vsub.f32 %v4452, 1.0
  %v4525 = vsub.f32 %v4454, 1.0
  %v4526 = vsub.f32 %v4456, 1.0
  %v4527 = vsub.f32 %v4458, 1.0
  %v4528 = vsub.f32 %v4460, 1.0
  %v4529 = vsub.f32 %v4462, 1.0
  %v4530 = vsub.f32 %v4464, 1.0
  %v4531 = vsub.f32 %v4466, 1.0
  %v4532 = vsub.f32 %v4468, 1.0
  %v4533 = vsel %vm4213, %v4149, %v4469
  %v4534 = vsel %vm4214, %v4150, %v4470
  %v4535 = vsel %vm4215, %v4151, %v4471
  %v4536 = vsel %vm4216, %v4152, %v4472
  %v4537 = vsel %vm4217, %v4153, %v4473
  %v4538 = vsel %vm4218, %v4154, %v4474
  %v4539 = vsel %vm4219, %v4155, %v4475
  %v4540 = vsel %vm4220, %v4156, %v4476
  %v4541 = vsel %vm4221, %v4157, %v4477
  %v4542 = vsel %vm4222, %v4158, %v4478
  %v4543 = vsel %vm4223, %v4159, %v4479
  %v4544 = vsel %vm4224, %v4160, %v4480
  %v4545 = vsel %vm4225, %v4161, %v4481
  %v4546 = vsel %vm4226, %v4162, %v4482
  %v4547 = vsel %vm4227, %v4163, %v4483
  %v4548 = vsel %vm4228, %v4164, %v4484
  %v4549 = vsel %vm4229, %v4165, %v4485
  %v4550 = vsel %vm4230, %v4166, %v4486
  %v4551 = vsel %vm4231, %v4167, %v4487
  %v4552 = vsel %vm4232, %v4168, %v4488
  %v4553 = vsel %vm4233, %v4169, %v4489
  %v4554 = vsel %vm4234, %v4170, %v4490
  %v4555 = vsel %vm4235, %v4171, %v4491
  %v4556 = vsel %vm4236, %v4172, %v4492
  %v4557 = vsel %vm4237, %v4173, %v4493
  %v4558 = vsel %vm4238, %v4174, %v4494
  %v4559 = vsel %vm4239, %v4175, %v4495
  %v4560 = vsel %vm4240, %v4176, %v4496
  %v4561 = vsel %vm4241, %v4177, %v4497
  %v4562 = vsel %vm4242, %v4178, %v4498
  %v4563 = vsel %vm4243, %v4179, %v4499
  %v4564 = vsel %vm4244, %v4180, %v4500
  %v4565 = vsel %vm4245, %v4181, %v4501
  %v4566 = vsel %vm4246, %v4182, %v4502
  %v4567 = vsel %vm4247, %v4183, %v4503
  %v4568 = vsel %vm4248, %v4184, %v4504
  %v4569 = vsel %vm4249, %v4185, %v4505
  %v4570 = vsel %vm4250, %v4186, %v4506
  %v4571 = vsel %vm4251, %v4187, %v4507
  %v4572 = vsel %vm4252, %v4188, %v4508
  %v4573 = vsel %vm4253, %v4189, %v4509
  %v4574 = vsel %vm4254, %v4190, %v4510
  %v4575 = vsel %vm4255, %v4191, %v4511
  %v4576 = vsel %vm4256, %v4192, %v4512
  %v4577 = vsel %vm4257, %v4193, %v4513
  %v4578 = vsel %vm4258, %v4194, %v4514
  %v4579 = vsel %vm4259, %v4195, %v4515
  %v4580 = vsel %vm4260, %v4196, %v4516
  %v4581 = vsel %vm4261, %v4197, %v4517
  %v4582 = vsel %vm4262, %v4198, %v4518
  %v4583 = vsel %vm4263, %v4199, %v4519
  %v4584 = vsel %vm4264, %v4200, %v4520
  %v4585 = vsel %vm4265, %v4201, %v4521
  %v4586 = vsel %vm4266, %v4202, %v4522
  %v4587 = vsel %vm4267, %v4203, %v4523
  %v4588 = vsel %vm4268, %v4204, %v4524
  %v4589 = vsel %vm4269, %v4205, %v4525
  %v4590 = vsel %vm4270, %v4206, %v4526
  %v4591 = vsel %vm4271, %v4207, %v4527
  %v4592 = vsel %vm4272, %v4208, %v4528
  %v4593 = vsel %vm4273, %v4209, %v4529
  %v4594 = vsel %vm4274, %v4210, %v4530
  %v4595 = vsel %vm4275, %v4211, %v4531
  %v4596 = vsel %vm4276, %v4212, %v4532
  %vm4597 = vcmask 31744
  %4598 = vst.msk [vmem:[#allocation2] sm:$0xff] %vm4597, 0.0
  %4599 = vst.msk [vmem:[#allocation2 + $0x8] sm:$0xff] %vm4597, 0.0
  %vm4600 = vcmask 25600
  %4601 = vst.msk [vmem:[#allocation2 + $0x10] sm:$0x3] %vm4600, 0.0
  %4602 = vst.msk [vmem:[#allocation2 + $0x18] sm:$0xff] %vm4597, 0.0
  %4603 = vst.msk [vmem:[#allocation2 + $0x20] sm:$0xff] %vm4597, 0.0
  %4604 = vst.msk [vmem:[#allocation2 + $0x28] sm:$0x3] %vm4600, 0.0
  %4605 = vst.msk [vmem:[#allocation2 + $0x30] sm:$0xff] %vm4597, 0.0
  %4606 = vst.msk [vmem:[#allocation2 + $0x38] sm:$0xff] %vm4597, 0.0
  %4607 = vst.msk [vmem:[#allocation2 + $0x40] sm:$0x3] %vm4600, 0.0
  %4608 = vst.msk [vmem:[#allocation2 + $0x48] sm:$0xff] %vm4597, 0.0
  %4609 = vst.msk [vmem:[#allocation2 + $0x50] sm:$0xff] %vm4597, 0.0
  %4610 = vst.msk [vmem:[#allocation2 + $0x58] sm:$0x3] %vm4600, 0.0
  %4611 = vst.msk [vmem:[#allocation2 + $0x60] sm:$0xff] %vm4597, 0.0
  %4612 = vst.msk [vmem:[#allocation2 + $0x68] sm:$0xff] %vm4597, 0.0
  %4613 = vst.msk [vmem:[#allocation2 + $0x70] sm:$0x3] %vm4600, 0.0
  %4614 = vst.msk [vmem:[#allocation2 + $0x78] sm:$0xff] %vm4597, 0.0
  %4615 = vst.msk [vmem:[#allocation2 + $0x80] sm:$0xff] %vm4597, 0.0
  %4616 = vst.msk [vmem:[#allocation2 + $0x88] sm:$0x3] %vm4600, 0.0
  %4617 = vst.msk [vmem:[#allocation2 + $0x90] sm:$0xff] %vm4597, 0.0
  %4618 = vst.msk [vmem:[#allocation2 + $0x98] sm:$0xff] %vm4597, 0.0
  %4619 = vst.msk [vmem:[#allocation2 + $0xa0] sm:$0x3] %vm4600, 0.0
  %4620 = vst.msk [vmem:[#allocation2 + $0xa8] sm:$0xff] %vm4597, 0.0
  %4621 = vst.msk [vmem:[#allocation2 + $0xb0] sm:$0xff] %vm4597, 0.0
  %4622 = vst.msk [vmem:[#allocation2 + $0xb8] sm:$0x3] %vm4600, 0.0
  %4623 = vst.msk [vmem:[#allocation2 + $0xc0] sm:$0xff] %vm4597, 0.0
  %4624 = vst.msk [vmem:[#allocation2 + $0xc8] sm:$0xff] %vm4597, 0.0
  %4625 = vst.msk [vmem:[#allocation2 + $0xd0] sm:$0x3] %vm4600, 0.0
  %4626 = vst.msk [vmem:[#allocation2 + $0xd8] sm:$0xff] %vm4597, 0.0
  %4627 = vst.msk [vmem:[#allocation2 + $0xe0] sm:$0xff] %vm4597, 0.0
  %4628 = vst.msk [vmem:[#allocation2 + $0xe8] sm:$0x3] %vm4600, 0.0
  %4629 = vst.msk [vmem:[#allocation2 + $0xf0] sm:$0xff] %vm4597, 0.0
  %4630 = vst.msk [vmem:[#allocation2 + $0xf8] sm:$0xff] %vm4597, 0.0
  %4631 = vst.msk [vmem:[#allocation2 + $0x100] sm:$0x3] %vm4600, 0.0
  %4632 = vst.msk [vmem:[#allocation2 + $0x108] sm:$0xff] %vm4597, 0.0
  %4633 = vst.msk [vmem:[#allocation2 + $0x110] sm:$0xff] %vm4597, 0.0
  %4634 = vst.msk [vmem:[#allocation2 + $0x118] sm:$0x3] %vm4600, 0.0
  %4635 = vst.msk [vmem:[#allocation2 + $0x120] sm:$0xff] %vm4597, 0.0
  %4636 = vst.msk [vmem:[#allocation2 + $0x128] sm:$0xff] %vm4597, 0.0
  %4637 = vst.msk [vmem:[#allocation2 + $0x130] sm:$0x3] %vm4600, 0.0
  %4638 = vst.msk [vmem:[#allocation2 + $0x138] sm:$0xff] %vm4597, 0.0
  %4639 = vst.msk [vmem:[#allocation2 + $0x140] sm:$0xff] %vm4597, 0.0
  %4640 = vst.msk [vmem:[#allocation2 + $0x148] sm:$0x3] %vm4600, 0.0
  %4641 = vst.msk [vmem:[#allocation2 + $0x150] sm:$0xff] %vm4597, 0.0
  %4642 = vst.msk [vmem:[#allocation2 + $0x158] sm:$0xff] %vm4597, 0.0
  %4643 = vst.msk [vmem:[#allocation2 + $0x160] sm:$0x3] %vm4600, 0.0
  %4644 = vst.msk [vmem:[#allocation2 + $0x168] sm:$0xff] %vm4597, 0.0
  %4645 = vst.msk [vmem:[#allocation2 + $0x170] sm:$0xff] %vm4597, 0.0
  %4646 = vst.msk [vmem:[#allocation2 + $0x178] sm:$0x3] %vm4600, 0.0
  %4647 = vst.msk [vmem:[#allocation2 + $0x180] sm:$0xff] %vm4597, 0.0
  %4648 = vst.msk [vmem:[#allocation2 + $0x188] sm:$0xff] %vm4597, 0.0
  %4649 = vst.msk [vmem:[#allocation2 + $0x190] sm:$0x3] %vm4600, 0.0
  %4650 = vst.msk [vmem:[#allocation2 + $0x198] sm:$0xff] %vm4597, 0.0
  %4651 = vst.msk [vmem:[#allocation2 + $0x1a0] sm:$0xff] %vm4597, 0.0
  %4652 = vst.msk [vmem:[#allocation2 + $0x1a8] sm:$0x3] %vm4600, 0.0
  %4653 = vst.msk [vmem:[#allocation2 + $0x1b0] sm:$0xff] %vm4597, 0.0
  %4654 = vst.msk [vmem:[#allocation2 + $0x1b8] sm:$0xff] %vm4597, 0.0
  %4655 = vst.msk [vmem:[#allocation2 + $0x1c0] sm:$0x3] %vm4600, 0.0
  %4656 = vst.msk [vmem:[#allocation2 + $0x1c8] sm:$0xff] %vm4597, 0.0
  %4657 = vst.msk [vmem:[#allocation2 + $0x1d0] sm:$0xff] %vm4597, 0.0
  %4658 = vst.msk [vmem:[#allocation2 + $0x1d8] sm:$0x3] %vm4600, 0.0
  %4659 = vst.msk [vmem:[#allocation2 + $0x1e0] sm:$0xff] %vm4597, 0.0
  %4660 = vst.msk [vmem:[#allocation2 + $0x1e8] sm:$0xff] %vm4597, 0.0
  %4661 = vst.msk [vmem:[#allocation2 + $0x1f0] sm:$0x3] %vm4600, 0.0
  %4662 = vst.msk [vmem:[#allocation2 + $0x1f8] sm:$0xff] %vm4597, 0.0
  %4663 = vst.msk [vmem:[#allocation2 + $0x200] sm:$0xff] %vm4597, 0.0
  %4664 = vst.msk [vmem:[#allocation2 + $0x208] sm:$0x3] %vm4600, 0.0
  %4665 = vst.msk [vmem:[#allocation2 + $0x210] sm:$0xff] %vm4597, 0.0
  %4666 = vst.msk [vmem:[#allocation2 + $0x218] sm:$0xff] %vm4597, 0.0
  %4667 = vst.msk [vmem:[#allocation2 + $0x220] sm:$0x3] %vm4600, 0.0
  %4668 = vst.msk [vmem:[#allocation2 + $0x228] sm:$0xff] %vm4597, 0.0
  %4669 = vst.msk [vmem:[#allocation2 + $0x230] sm:$0xff] %vm4597, 0.0
  %4670 = vst.msk [vmem:[#allocation2 + $0x238] sm:$0x3] %vm4600, 0.0
  %4671 = vst.msk [vmem:[#allocation2 + $0x240] sm:$0xff] %vm4597, 0.0
  %4672 = vst.msk [vmem:[#allocation2 + $0x248] sm:$0xff] %vm4597, 0.0
  %4673 = vst.msk [vmem:[#allocation2 + $0x250] sm:$0x3] %vm4600, 0.0
  %4674 = vst.msk [vmem:[#allocation2 + $0x258] sm:$0xff] %vm4597, 0.0
  %4675 = vst.msk [vmem:[#allocation2 + $0x260] sm:$0xff] %vm4597, 0.0
  %4676 = vst.msk [vmem:[#allocation2 + $0x268] sm:$0x3] %vm4600, 0.0
  %4677 = vst.msk [vmem:[#allocation2 + $0x270] sm:$0xff] %vm4597, 0.0
  %4678 = vst.msk [vmem:[#allocation2 + $0x278] sm:$0xff] %vm4597, 0.0
  %4679 = vst.msk [vmem:[#allocation2 + $0x280] sm:$0x3] %vm4600, 0.0
  %4680 = vst.msk [vmem:[#allocation2 + $0x288] sm:$0xff] %vm4597, 0.0
  %4681 = vst.msk [vmem:[#allocation2 + $0x290] sm:$0xff] %vm4597, 0.0
  %4682 = vst.msk [vmem:[#allocation2 + $0x298] sm:$0x3] %vm4600, 0.0
  %4683 = vst.msk [vmem:[#allocation2 + $0x2a0] sm:$0xff] %vm4597, 0.0
  %4684 = vst.msk [vmem:[#allocation2 + $0x2a8] sm:$0xff] %vm4597, 0.0
  %4685 = vst.msk [vmem:[#allocation2 + $0x2b0] sm:$0x3] %vm4600, 0.0
  %4686 = vst.msk [vmem:[#allocation2 + $0x2b8] sm:$0xff] %vm4597, 0.0
  %4687 = vst.msk [vmem:[#allocation2 + $0x2c0] sm:$0xff] %vm4597, 0.0
  %4688 = vst.msk [vmem:[#allocation2 + $0x2c8] sm:$0x3] %vm4600, 0.0
  %4689 = vst.msk [vmem:[#allocation2 + $0x2d0] sm:$0xff] %vm4597, 0.0
  %4690 = vst.msk [vmem:[#allocation2 + $0x2d8] sm:$0xff] %vm4597, 0.0
  %4691 = vst.msk [vmem:[#allocation2 + $0x2e0] sm:$0x3] %vm4600, 0.0
  %4692 = vst.msk [vmem:[#allocation2 + $0x2e8] sm:$0xff] %vm4597, 0.0
  %4693 = vst.msk [vmem:[#allocation2 + $0x2f0] sm:$0xff] %vm4597, 0.0
  %4694 = vst.msk [vmem:[#allocation2 + $0x2f8] sm:$0x3] %vm4600, 0.0
  %4695 = vst.msk [vmem:[#allocation2 + $0x300] sm:$0xff] %vm4597, 0.0
  %4696 = vst.msk [vmem:[#allocation2 + $0x308] sm:$0xff] %vm4597, 0.0
  %4697 = vst.msk [vmem:[#allocation2 + $0x310] sm:$0x3] %vm4600, 0.0
  %4698 = vst.msk [vmem:[#allocation2 + $0x318] sm:$0xff] %vm4597, 0.0
  %4699 = vst.msk [vmem:[#allocation2 + $0x320] sm:$0xff] %vm4597, 0.0
  %4700 = vst.msk [vmem:[#allocation2 + $0x328] sm:$0x3] %vm4600, 0.0
  %4701 = vst.msk [vmem:[#allocation2 + $0x330] sm:$0xff] %vm4597, 0.0
  %4702 = vst.msk [vmem:[#allocation2 + $0x338] sm:$0xff] %vm4597, 0.0
  %4703 = vst.msk [vmem:[#allocation2 + $0x340] sm:$0x3] %vm4600, 0.0
  %4704 = vst.msk [vmem:[#allocation2 + $0x348] sm:$0xff] %vm4597, 0.0
  %4705 = vst.msk [vmem:[#allocation2 + $0x350] sm:$0xff] %vm4597, 0.0
  %4706 = vst.msk [vmem:[#allocation2 + $0x358] sm:$0x3] %vm4600, 0.0
  %4771 = vrot.lane.b32.xlu0 %v4533, 124
  %v4772 = vpop.permute.xlu0 %4771
  %4773 = vrot.lane.b32.xlu0 %v4534, 124
  %v4774 = vpop.permute.xlu0 %4773
  %4775 = vrot.lane.b32.xlu0 %v4535, 124
  %v4776 = vpop.permute.xlu0 %4775
  %4777 = vrot.lane.b32.xlu0 %v4536, 124
  %v4778 = vpop.permute.xlu0 %4777
  %4779 = vrot.lane.b32.xlu0 %v4537, 124
  %v4780 = vpop.permute.xlu0 %4779
  %4781 = vrot.lane.b32.xlu0 %v4538, 124
  %v4782 = vpop.permute.xlu0 %4781
  %4783 = vrot.lane.b32.xlu0 %v4539, 124
  %v4784 = vpop.permute.xlu0 %4783
  %4785 = vrot.lane.b32.xlu0 %v4540, 124
  %v4786 = vpop.permute.xlu0 %4785
  %4787 = vrot.lane.b32.xlu0 %v4541, 124
  %v4788 = vpop.permute.xlu0 %4787
  %4789 = vrot.lane.b32.xlu0 %v4542, 124
  %v4790 = vpop.permute.xlu0 %4789
  %4791 = vrot.lane.b32.xlu0 %v4543, 124
  %v4792 = vpop.permute.xlu0 %4791
  %4793 = vrot.lane.b32.xlu0 %v4544, 124
  %v4794 = vpop.permute.xlu0 %4793
  %4795 = vrot.lane.b32.xlu0 %v4545, 124
  %v4796 = vpop.permute.xlu0 %4795
  %4797 = vrot.lane.b32.xlu0 %v4546, 124
  %v4798 = vpop.permute.xlu0 %4797
  %4799 = vrot.lane.b32.xlu0 %v4547, 124
  %v4800 = vpop.permute.xlu0 %4799
  %4801 = vrot.lane.b32.xlu0 %v4548, 124
  %v4802 = vpop.permute.xlu0 %4801
  %4803 = vrot.lane.b32.xlu0 %v4549, 124
  %v4804 = vpop.permute.xlu0 %4803
  %4805 = vrot.lane.b32.xlu0 %v4550, 124
  %v4806 = vpop.permute.xlu0 %4805
  %4807 = vrot.lane.b32.xlu0 %v4551, 124
  %v4808 = vpop.permute.xlu0 %4807
  %4809 = vrot.lane.b32.xlu0 %v4552, 124
  %v4810 = vpop.permute.xlu0 %4809
  %4811 = vrot.lane.b32.xlu0 %v4553, 124
  %v4812 = vpop.permute.xlu0 %4811
  %4813 = vrot.lane.b32.xlu0 %v4554, 124
  %v4814 = vpop.permute.xlu0 %4813
  %4815 = vrot.lane.b32.xlu0 %v4555, 124
  %v4816 = vpop.permute.xlu0 %4815
  %4817 = vrot.lane.b32.xlu0 %v4556, 124
  %v4818 = vpop.permute.xlu0 %4817
  %4819 = vrot.lane.b32.xlu0 %v4557, 124
  %v4820 = vpop.permute.xlu0 %4819
  %4821 = vrot.lane.b32.xlu0 %v4558, 124
  %v4822 = vpop.permute.xlu0 %4821
  %4823 = vrot.lane.b32.xlu0 %v4559, 124
  %v4824 = vpop.permute.xlu0 %4823
  %4825 = vrot.lane.b32.xlu0 %v4560, 124
  %v4826 = vpop.permute.xlu0 %4825
  %4827 = vrot.lane.b32.xlu0 %v4561, 124
  %v4828 = vpop.permute.xlu0 %4827
  %4829 = vrot.lane.b32.xlu0 %v4562, 124
  %v4830 = vpop.permute.xlu0 %4829
  %4831 = vrot.lane.b32.xlu0 %v4563, 124
  %v4832 = vpop.permute.xlu0 %4831
  %4833 = vrot.lane.b32.xlu0 %v4564, 124
  %v4834 = vpop.permute.xlu0 %4833
  %4835 = vrot.lane.b32.xlu0 %v4565, 124
  %v4836 = vpop.permute.xlu0 %4835
  %4837 = vrot.lane.b32.xlu0 %v4566, 124
  %v4838 = vpop.permute.xlu0 %4837
  %4839 = vrot.lane.b32.xlu0 %v4567, 124
  %v4840 = vpop.permute.xlu0 %4839
  %4841 = vrot.lane.b32.xlu0 %v4568, 124
  %v4842 = vpop.permute.xlu0 %4841
  %4843 = vrot.lane.b32.xlu0 %v4569, 124
  %v4844 = vpop.permute.xlu0 %4843
  %4845 = vrot.lane.b32.xlu0 %v4570, 124
  %v4846 = vpop.permute.xlu0 %4845
  %4847 = vrot.lane.b32.xlu0 %v4571, 124
  %v4848 = vpop.permute.xlu0 %4847
  %4849 = vrot.lane.b32.xlu0 %v4572, 124
  %v4850 = vpop.permute.xlu0 %4849
  %4851 = vrot.lane.b32.xlu0 %v4573, 124
  %v4852 = vpop.permute.xlu0 %4851
  %4853 = vrot.lane.b32.xlu0 %v4574, 124
  %v4854 = vpop.permute.xlu0 %4853
  %4855 = vrot.lane.b32.xlu0 %v4575, 124
  %v4856 = vpop.permute.xlu0 %4855
  %4857 = vrot.lane.b32.xlu0 %v4576, 124
  %v4858 = vpop.permute.xlu0 %4857
  %4859 = vrot.lane.b32.xlu0 %v4577, 124
  %v4860 = vpop.permute.xlu0 %4859
  %4861 = vrot.lane.b32.xlu0 %v4578, 124
  %v4862 = vpop.permute.xlu0 %4861
  %4863 = vrot.lane.b32.xlu0 %v4579, 124
  %v4864 = vpop.permute.xlu0 %4863
  %4865 = vrot.lane.b32.xlu0 %v4580, 124
  %v4866 = vpop.permute.xlu0 %4865
  %4867 = vrot.lane.b32.xlu0 %v4581, 124
  %v4868 = vpop.permute.xlu0 %4867
  %4869 = vrot.lane.b32.xlu0 %v4582, 124
  %v4870 = vpop.permute.xlu0 %4869
  %4871 = vrot.lane.b32.xlu0 %v4583, 124
  %v4872 = vpop.permute.xlu0 %4871
  %4873 = vrot.lane.b32.xlu0 %v4584, 124
  %v4874 = vpop.permute.xlu0 %4873
  %4875 = vrot.lane.b32.xlu0 %v4585, 124
  %v4876 = vpop.permute.xlu0 %4875
  %4877 = vrot.lane.b32.xlu0 %v4586, 124
  %v4878 = vpop.permute.xlu0 %4877
  %4879 = vrot.lane.b32.xlu0 %v4587, 124
  %v4880 = vpop.permute.xlu0 %4879
  %4881 = vrot.lane.b32.xlu0 %v4588, 124
  %v4882 = vpop.permute.xlu0 %4881
  %4883 = vrot.lane.b32.xlu0 %v4589, 124
  %v4884 = vpop.permute.xlu0 %4883
  %4885 = vrot.lane.b32.xlu0 %v4590, 124
  %v4886 = vpop.permute.xlu0 %4885
  %4887 = vrot.lane.b32.xlu0 %v4591, 124
  %v4888 = vpop.permute.xlu0 %4887
  %4889 = vrot.lane.b32.xlu0 %v4592, 124
  %v4890 = vpop.permute.xlu0 %4889
  %4891 = vrot.lane.b32.xlu0 %v4593, 124
  %v4892 = vpop.permute.xlu0 %4891
  %4893 = vrot.lane.b32.xlu0 %v4594, 124
  %v4894 = vpop.permute.xlu0 %4893
  %4895 = vrot.lane.b32.xlu0 %v4595, 124
  %v4896 = vpop.permute.xlu0 %4895
  %4897 = vrot.lane.b32.xlu0 %v4596, 124
  %v4898 = vpop.permute.xlu0 %4897
  %s4963 = scalar_lea.vmem [#allocation2], 24
  %4964 = vst.msk [vmem:[%s4963 + $0x1] sm:$0xff] %vm4597, %v4772
  %4965 = vst.msk [vmem:[%s4963 + $0x9] sm:$0xff] %vm4597, %v4774
  %4966 = vst.msk [vmem:[%s4963 + $0x19] sm:$0xff] %vm4597, %v4776
  %4967 = vst.msk [vmem:[%s4963 + $0x21] sm:$0xff] %vm4597, %v4778
  %4968 = vst.msk [vmem:[%s4963 + $0x31] sm:$0xff] %vm4597, %v4780
  %4969 = vst.msk [vmem:[%s4963 + $0x39] sm:$0xff] %vm4597, %v4782
  %4970 = vst.msk [vmem:[%s4963 + $0x49] sm:$0xff] %vm4597, %v4784
  %4971 = vst.msk [vmem:[%s4963 + $0x51] sm:$0xff] %vm4597, %v4786
  %4972 = vst.msk [vmem:[%s4963 + $0x61] sm:$0xff] %vm4597, %v4788
  %4973 = vst.msk [vmem:[%s4963 + $0x69] sm:$0xff] %vm4597, %v4790
  %4974 = vst.msk [vmem:[%s4963 + $0x79] sm:$0xff] %vm4597, %v4792
  %4975 = vst.msk [vmem:[%s4963 + $0x81] sm:$0xff] %vm4597, %v4794
  %4976 = vst.msk [vmem:[%s4963 + $0x91] sm:$0xff] %vm4597, %v4796
  %4977 = vst.msk [vmem:[%s4963 + $0x99] sm:$0xff] %vm4597, %v4798
  %4978 = vst.msk [vmem:[%s4963 + $0xa9] sm:$0xff] %vm4597, %v4800
  %4979 = vst.msk [vmem:[%s4963 + $0xb1] sm:$0xff] %vm4597, %v4802
  %4980 = vst.msk [vmem:[%s4963 + $0xc1] sm:$0xff] %vm4597, %v4804
  %4981 = vst.msk [vmem:[%s4963 + $0xc9] sm:$0xff] %vm4597, %v4806
  %4982 = vst.msk [vmem:[%s4963 + $0xd9] sm:$0xff] %vm4597, %v4808
  %4983 = vst.msk [vmem:[%s4963 + $0xe1] sm:$0xff] %vm4597, %v4810
  %4984 = vst.msk [vmem:[%s4963 + $0xf1] sm:$0xff] %vm4597, %v4812
  %4985 = vst.msk [vmem:[%s4963 + $0xf9] sm:$0xff] %vm4597, %v4814
  %4986 = vst.msk [vmem:[%s4963 + $0x109] sm:$0xff] %vm4597, %v4816
  %4987 = vst.msk [vmem:[%s4963 + $0x111] sm:$0xff] %vm4597, %v4818
  %4988 = vst.msk [vmem:[%s4963 + $0x121] sm:$0xff] %vm4597, %v4820
  %4989 = vst.msk [vmem:[%s4963 + $0x129] sm:$0xff] %vm4597, %v4822
  %4990 = vst.msk [vmem:[%s4963 + $0x139] sm:$0xff] %vm4597, %v4824
  %4991 = vst.msk [vmem:[%s4963 + $0x141] sm:$0xff] %vm4597, %v4826
  %4992 = vst.msk [vmem:[%s4963 + $0x151] sm:$0xff] %vm4597, %v4828
  %4993 = vst.msk [vmem:[%s4963 + $0x159] sm:$0xff] %vm4597, %v4830
  %4994 = vst.msk [vmem:[%s4963 + $0x169] sm:$0xff] %vm4597, %v4832
  %4995 = vst.msk [vmem:[%s4963 + $0x171] sm:$0xff] %vm4597, %v4834
  %4996 = vst.msk [vmem:[%s4963 + $0x1b1] sm:$0xff] %vm4597, %v4836
  %4997 = vst.msk [vmem:[%s4963 + $0x1b9] sm:$0xff] %vm4597, %v4838
  %4998 = vst.msk [vmem:[%s4963 + $0x1c9] sm:$0xff] %vm4597, %v4840
  %4999 = vst.msk [vmem:[%s4963 + $0x1d1] sm:$0xff] %vm4597, %v4842
  %5000 = vst.msk [vmem:[%s4963 + $0x1e1] sm:$0xff] %vm4597, %v4844
  %5001 = vst.msk [vmem:[%s4963 + $0x1e9] sm:$0xff] %vm4597, %v4846
  %5002 = vst.msk [vmem:[%s4963 + $0x1f9] sm:$0xff] %vm4597, %v4848
  %5003 = vst.msk [vmem:[%s4963 + $0x201] sm:$0xff] %vm4597, %v4850
  %5004 = vst.msk [vmem:[%s4963 + $0x211] sm:$0xff] %vm4597, %v4852
  %5005 = vst.msk [vmem:[%s4963 + $0x219] sm:$0xff] %vm4597, %v4854
  %5006 = vst.msk [vmem:[%s4963 + $0x229] sm:$0xff] %vm4597, %v4856
  %5007 = vst.msk [vmem:[%s4963 + $0x231] sm:$0xff] %vm4597, %v4858
  %5008 = vst.msk [vmem:[%s4963 + $0x241] sm:$0xff] %vm4597, %v4860
  %5009 = vst.msk [vmem:[%s4963 + $0x249] sm:$0xff] %vm4597, %v4862
  %5010 = vst.msk [vmem:[%s4963 + $0x259] sm:$0xff] %vm4597, %v4864
  %5011 = vst.msk [vmem:[%s4963 + $0x261] sm:$0xff] %vm4597, %v4866
  %5012 = vst.msk [vmem:[%s4963 + $0x271] sm:$0xff] %vm4597, %v4868
  %5013 = vst.msk [vmem:[%s4963 + $0x279] sm:$0xff] %vm4597, %v4870
  %5014 = vst.msk [vmem:[%s4963 + $0x289] sm:$0xff] %vm4597, %v4872
  %5015 = vst.msk [vmem:[%s4963 + $0x291] sm:$0xff] %vm4597, %v4874
  %5016 = vst.msk [vmem:[%s4963 + $0x2a1] sm:$0xff] %vm4597, %v4876
  %5017 = vst.msk [vmem:[%s4963 + $0x2a9] sm:$0xff] %vm4597, %v4878
  %5018 = vst.msk [vmem:[%s4963 + $0x2b9] sm:$0xff] %vm4597, %v4880
  %5019 = vst.msk [vmem:[%s4963 + $0x2c1] sm:$0xff] %vm4597, %v4882
  %5020 = vst.msk [vmem:[%s4963 + $0x2d1] sm:$0xff] %vm4597, %v4884
  %5021 = vst.msk [vmem:[%s4963 + $0x2d9] sm:$0xff] %vm4597, %v4886
  %5022 = vst.msk [vmem:[%s4963 + $0x2e9] sm:$0xff] %vm4597, %v4888
  %5023 = vst.msk [vmem:[%s4963 + $0x2f1] sm:$0xff] %vm4597, %v4890
  %5024 = vst.msk [vmem:[%s4963 + $0x301] sm:$0xff] %vm4597, %v4892
  %5025 = vst.msk [vmem:[%s4963 + $0x309] sm:$0xff] %vm4597, %v4894
  %5026 = vst.msk [vmem:[%s4963 + $0x319] sm:$0xff] %vm4597, %v4896
  %5027 = vst.msk [vmem:[%s4963 + $0x321] sm:$0xff] %vm4597, %v4898
  %v5028 = vld [vmem:[#allocation2] sm:$0xff]
  %v5029 = vld [vmem:[#allocation2 + $0x8] sm:$0xff]
  %v5030 = vld [vmem:[#allocation2 + $0x18] sm:$0xff]
  %v5031 = vld [vmem:[#allocation2 + $0x20] sm:$0xff]
  %v5032 = vld [vmem:[#allocation2 + $0x30] sm:$0xff]
  %v5033 = vld [vmem:[#allocation2 + $0x38] sm:$0xff]
  %v5034 = vld [vmem:[#allocation2 + $0x48] sm:$0xff]
  %v5035 = vld [vmem:[#allocation2 + $0x50] sm:$0xff]
  %v5036 = vld [vmem:[#allocation2 + $0x60] sm:$0xff]
  %v5037 = vld [vmem:[#allocation2 + $0x68] sm:$0xff]
  %v5038 = vld [vmem:[#allocation2 + $0x78] sm:$0xff]
  %v5039 = vld [vmem:[#allocation2 + $0x80] sm:$0xff]
  %v5040 = vld [vmem:[#allocation2 + $0x90] sm:$0xff]
  %v5041 = vld [vmem:[#allocation2 + $0x98] sm:$0xff]
  %v5042 = vld [vmem:[#allocation2 + $0xa8] sm:$0xff]
  %v5043 = vld [vmem:[#allocation2 + $0xb0] sm:$0xff]
  %v5044 = vld [vmem:[#allocation2 + $0xc0] sm:$0xff]
  %v5045 = vld [vmem:[#allocation2 + $0xc8] sm:$0xff]
  %v5046 = vld [vmem:[#allocation2 + $0xd8] sm:$0xff]
  %v5047 = vld [vmem:[#allocation2 + $0xe0] sm:$0xff]
  %v5048 = vld [vmem:[#allocation2 + $0xf0] sm:$0xff]
  %v5049 = vld [vmem:[#allocation2 + $0xf8] sm:$0xff]
  %v5050 = vld [vmem:[#allocation2 + $0x108] sm:$0xff]
  %v5051 = vld [vmem:[#allocation2 + $0x110] sm:$0xff]
  %v5052 = vld [vmem:[#allocation2 + $0x120] sm:$0xff]
  %v5053 = vld [vmem:[#allocation2 + $0x128] sm:$0xff]
  %v5054 = vld [vmem:[#allocation2 + $0x138] sm:$0xff]
  %v5055 = vld [vmem:[#allocation2 + $0x140] sm:$0xff]
  %v5056 = vld [vmem:[#allocation2 + $0x150] sm:$0xff]
  %v5057 = vld [vmem:[#allocation2 + $0x158] sm:$0xff]
  %v5058 = vld [vmem:[#allocation2 + $0x168] sm:$0xff]
  %v5059 = vld [vmem:[#allocation2 + $0x170] sm:$0xff]
  %v5060 = vld [vmem:[#allocation2 + $0x1b0] sm:$0xff]
  %v5061 = vld [vmem:[#allocation2 + $0x1b8] sm:$0xff]
  %v5062 = vld [vmem:[#allocation2 + $0x1c8] sm:$0xff]
  %v5063 = vld [vmem:[#allocation2 + $0x1d0] sm:$0xff]
  %v5064 = vld [vmem:[#allocation2 + $0x1e0] sm:$0xff]
  %v5065 = vld [vmem:[#allocation2 + $0x1e8] sm:$0xff]
  %v5066 = vld [vmem:[#allocation2 + $0x1f8] sm:$0xff]
  %v5067 = vld [vmem:[#allocation2 + $0x200] sm:$0xff]
  %v5068 = vld [vmem:[#allocation2 + $0x210] sm:$0xff]
  %v5069 = vld [vmem:[#allocation2 + $0x218] sm:$0xff]
  %v5070 = vld [vmem:[#allocation2 + $0x228] sm:$0xff]
  %v5071 = vld [vmem:[#allocation2 + $0x230] sm:$0xff]
  %v5072 = vld [vmem:[#allocation2 + $0x240] sm:$0xff]
  %v5073 = vld [vmem:[#allocation2 + $0x248] sm:$0xff]
  %v5074 = vld [vmem:[#allocation2 + $0x258] sm:$0xff]
  %v5075 = vld [vmem:[#allocation2 + $0x260] sm:$0xff]
  %v5076 = vld [vmem:[#allocation2 + $0x270] sm:$0xff]
  %v5077 = vld [vmem:[#allocation2 + $0x278] sm:$0xff]
  %v5078 = vld [vmem:[#allocation2 + $0x288] sm:$0xff]
  %v5079 = vld [vmem:[#allocation2 + $0x290] sm:$0xff]
  %v5080 = vld [vmem:[#allocation2 + $0x2a0] sm:$0xff]
  %v5081 = vld [vmem:[#allocation2 + $0x2a8] sm:$0xff]
  %v5082 = vld [vmem:[#allocation2 + $0x2b8] sm:$0xff]
  %v5083 = vld [vmem:[#allocation2 + $0x2c0] sm:$0xff]
  %v5084 = vld [vmem:[#allocation2 + $0x2d0] sm:$0xff]
  %v5085 = vld [vmem:[#allocation2 + $0x2d8] sm:$0xff]
  %v5086 = vld [vmem:[#allocation2 + $0x2e8] sm:$0xff]
  %v5087 = vld [vmem:[#allocation2 + $0x2f0] sm:$0xff]
  %v5088 = vld [vmem:[#allocation2 + $0x300] sm:$0xff]
  %v5089 = vld [vmem:[#allocation2 + $0x308] sm:$0xff]
  %v5090 = vld [vmem:[#allocation2 + $0x318] sm:$0xff]
  %v5091 = vld [vmem:[#allocation2 + $0x320] sm:$0xff]
  %v5092 = vld [vmem:[#allocation2 + $0x1] sm:$0xff]
  %v5093 = vld [vmem:[#allocation2 + $0x9] sm:$0xff]
  %v5094 = vld [vmem:[#allocation2 + $0x19] sm:$0xff]
  %v5095 = vld [vmem:[#allocation2 + $0x21] sm:$0xff]
  %v5096 = vld [vmem:[#allocation2 + $0x31] sm:$0xff]
  %v5097 = vld [vmem:[#allocation2 + $0x39] sm:$0xff]
  %v5098 = vld [vmem:[#allocation2 + $0x49] sm:$0xff]
  %v5099 = vld [vmem:[#allocation2 + $0x51] sm:$0xff]
  %v5100 = vld [vmem:[#allocation2 + $0x61] sm:$0xff]
  %v5101 = vld [vmem:[#allocation2 + $0x69] sm:$0xff]
  %v5102 = vld [vmem:[#allocation2 + $0x79] sm:$0xff]
  %v5103 = vld [vmem:[#allocation2 + $0x81] sm:$0xff]
  %v5104 = vld [vmem:[#allocation2 + $0x91] sm:$0xff]
  %v5105 = vld [vmem:[#allocation2 + $0x99] sm:$0xff]
  %v5106 = vld [vmem:[#allocation2 + $0xa9] sm:$0xff]
  %v5107 = vld [vmem:[#allocation2 + $0xb1] sm:$0xff]
  %v5108 = vld [vmem:[#allocation2 + $0xc1] sm:$0xff]
  %v5109 = vld [vmem:[#allocation2 + $0xc9] sm:$0xff]
  %v5110 = vld [vmem:[#allocation2 + $0xd9] sm:$0xff]
  %v5111 = vld [vmem:[#allocation2 + $0xe1] sm:$0xff]
  %v5112 = vld [vmem:[#allocation2 + $0xf1] sm:$0xff]
  %v5113 = vld [vmem:[#allocation2 + $0xf9] sm:$0xff]
  %v5114 = vld [vmem:[#allocation2 + $0x109] sm:$0xff]
  %v5115 = vld [vmem:[#allocation2 + $0x111] sm:$0xff]
  %v5116 = vld [vmem:[#allocation2 + $0x121] sm:$0xff]
  %v5117 = vld [vmem:[#allocation2 + $0x129] sm:$0xff]
  %v5118 = vld [vmem:[#allocation2 + $0x139] sm:$0xff]
  %v5119 = vld [vmem:[#allocation2 + $0x141] sm:$0xff]
  %v5120 = vld [vmem:[#allocation2 + $0x151] sm:$0xff]
  %v5121 = vld [vmem:[#allocation2 + $0x159] sm:$0xff]
  %v5122 = vld [vmem:[#allocation2 + $0x169] sm:$0xff]
  %v5123 = vld [vmem:[#allocation2 + $0x171] sm:$0xff]
  %v5124 = vld [vmem:[#allocation2 + $0x1b1] sm:$0xff]
  %v5125 = vld [vmem:[#allocation2 + $0x1b9] sm:$0xff]
  %v5126 = vld [vmem:[#allocation2 + $0x1c9] sm:$0xff]
  %v5127 = vld [vmem:[#allocation2 + $0x1d1] sm:$0xff]
  %v5128 = vld [vmem:[#allocation2 + $0x1e1] sm:$0xff]
  %v5129 = vld [vmem:[#allocation2 + $0x1e9] sm:$0xff]
  %v5130 = vld [vmem:[#allocation2 + $0x1f9] sm:$0xff]
  %v5131 = vld [vmem:[#allocation2 + $0x201] sm:$0xff]
  %v5132 = vld [vmem:[#allocation2 + $0x211] sm:$0xff]
  %v5133 = vld [vmem:[#allocation2 + $0x219] sm:$0xff]
  %v5134 = vld [vmem:[#allocation2 + $0x229] sm:$0xff]
  %v5135 = vld [vmem:[#allocation2 + $0x231] sm:$0xff]
  %v5136 = vld [vmem:[#allocation2 + $0x241] sm:$0xff]
  %v5137 = vld [vmem:[#allocation2 + $0x249] sm:$0xff]
  %v5138 = vld [vmem:[#allocation2 + $0x259] sm:$0xff]
  %v5139 = vld [vmem:[#allocation2 + $0x261] sm:$0xff]
  %v5140 = vld [vmem:[#allocation2 + $0x271] sm:$0xff]
  %v5141 = vld [vmem:[#allocation2 + $0x279] sm:$0xff]
  %v5142 = vld [vmem:[#allocation2 + $0x289] sm:$0xff]
  %v5143 = vld [vmem:[#allocation2 + $0x291] sm:$0xff]
  %v5144 = vld [vmem:[#allocation2 + $0x2a1] sm:$0xff]
  %v5145 = vld [vmem:[#allocation2 + $0x2a9] sm:$0xff]
  %v5146 = vld [vmem:[#allocation2 + $0x2b9] sm:$0xff]
  %v5147 = vld [vmem:[#allocation2 + $0x2c1] sm:$0xff]
  %v5148 = vld [vmem:[#allocation2 + $0x2d1] sm:$0xff]
  %v5149 = vld [vmem:[#allocation2 + $0x2d9] sm:$0xff]
  %v5150 = vld [vmem:[#allocation2 + $0x2e9] sm:$0xff]
  %v5151 = vld [vmem:[#allocation2 + $0x2f1] sm:$0xff]
  %v5152 = vld [vmem:[#allocation2 + $0x301] sm:$0xff]
  %v5153 = vld [vmem:[#allocation2 + $0x309] sm:$0xff]
  %v5154 = vld [vmem:[#allocation2 + $0x319] sm:$0xff]
  %v5155 = vld [vmem:[#allocation2 + $0x321] sm:$0xff]
  %v5156 = vld [vmem:[#allocation2 + $0x2] sm:$0xff]
  %v5157 = vld [vmem:[#allocation2 + $0xa] sm:$0xff]
  %v5158 = vld [vmem:[#allocation2 + $0x1a] sm:$0xff]
  %v5159 = vld [vmem:[#allocation2 + $0x22] sm:$0xff]
  %v5160 = vld [vmem:[#allocation2 + $0x32] sm:$0xff]
  %v5161 = vld [vmem:[#allocation2 + $0x3a] sm:$0xff]
  %v5162 = vld [vmem:[#allocation2 + $0x4a] sm:$0xff]
  %v5163 = vld [vmem:[#allocation2 + $0x52] sm:$0xff]
  %v5164 = vld [vmem:[#allocation2 + $0x62] sm:$0xff]
  %v5165 = vld [vmem:[#allocation2 + $0x6a] sm:$0xff]
  %v5166 = vld [vmem:[#allocation2 + $0x7a] sm:$0xff]
  %v5167 = vld [vmem:[#allocation2 + $0x82] sm:$0xff]
  %v5168 = vld [vmem:[#allocation2 + $0x92] sm:$0xff]
  %v5169 = vld [vmem:[#allocation2 + $0x9a] sm:$0xff]
  %v5170 = vld [vmem:[#allocation2 + $0xaa] sm:$0xff]
  %v5171 = vld [vmem:[#allocation2 + $0xb2] sm:$0xff]
  %v5172 = vld [vmem:[#allocation2 + $0xc2] sm:$0xff]
  %v5173 = vld [vmem:[#allocation2 + $0xca] sm:$0xff]
  %v5174 = vld [vmem:[#allocation2 + $0xda] sm:$0xff]
  %v5175 = vld [vmem:[#allocation2 + $0xe2] sm:$0xff]
  %v5176 = vld [vmem:[#allocation2 + $0xf2] sm:$0xff]
  %v5177 = vld [vmem:[#allocation2 + $0xfa] sm:$0xff]
  %v5178 = vld [vmem:[#allocation2 + $0x10a] sm:$0xff]
  %v5179 = vld [vmem:[#allocation2 + $0x112] sm:$0xff]
  %v5180 = vld [vmem:[#allocation2 + $0x122] sm:$0xff]
  %v5181 = vld [vmem:[#allocation2 + $0x12a] sm:$0xff]
  %v5182 = vld [vmem:[#allocation2 + $0x13a] sm:$0xff]
  %v5183 = vld [vmem:[#allocation2 + $0x142] sm:$0xff]
  %v5184 = vld [vmem:[#allocation2 + $0x152] sm:$0xff]
  %v5185 = vld [vmem:[#allocation2 + $0x15a] sm:$0xff]
  %v5186 = vld [vmem:[#allocation2 + $0x16a] sm:$0xff]
  %v5187 = vld [vmem:[#allocation2 + $0x172] sm:$0xff]
  %v5188 = vld [vmem:[#allocation2 + $0x1b2] sm:$0xff]
  %v5189 = vld [vmem:[#allocation2 + $0x1ba] sm:$0xff]
  %v5190 = vld [vmem:[#allocation2 + $0x1ca] sm:$0xff]
  %v5191 = vld [vmem:[#allocation2 + $0x1d2] sm:$0xff]
  %v5192 = vld [vmem:[#allocation2 + $0x1e2] sm:$0xff]
  %v5193 = vld [vmem:[#allocation2 + $0x1ea] sm:$0xff]
  %v5194 = vld [vmem:[#allocation2 + $0x1fa] sm:$0xff]
  %v5195 = vld [vmem:[#allocation2 + $0x202] sm:$0xff]
  %v5196 = vld [vmem:[#allocation2 + $0x212] sm:$0xff]
  %v5197 = vld [vmem:[#allocation2 + $0x21a] sm:$0xff]
  %v5198 = vld [vmem:[#allocation2 + $0x22a] sm:$0xff]
  %v5199 = vld [vmem:[#allocation2 + $0x232] sm:$0xff]
  %v5200 = vld [vmem:[#allocation2 + $0x242] sm:$0xff]
  %v5201 = vld [vmem:[#allocation2 + $0x24a] sm:$0xff]
  %v5202 = vld [vmem:[#allocation2 + $0x25a] sm:$0xff]
  %v5203 = vld [vmem:[#allocation2 + $0x262] sm:$0xff]
  %v5204 = vld [vmem:[#allocation2 + $0x272] sm:$0xff]
  %v5205 = vld [vmem:[#allocation2 + $0x27a] sm:$0xff]
  %v5206 = vld [vmem:[#allocation2 + $0x28a] sm:$0xff]
  %v5207 = vld [vmem:[#allocation2 + $0x292] sm:$0xff]
  %v5208 = vld [vmem:[#allocation2 + $0x2a2] sm:$0xff]
  %v5209 = vld [vmem:[#allocation2 + $0x2aa] sm:$0xff]
  %v5210 = vld [vmem:[#allocation2 + $0x2ba] sm:$0xff]
  %v5211 = vld [vmem:[#allocation2 + $0x2c2] sm:$0xff]
  %v5212 = vld [vmem:[#allocation2 + $0x2d2] sm:$0xff]
  %v5213 = vld [vmem:[#allocation2 + $0x2da] sm:$0xff]
  %v5214 = vld [vmem:[#allocation2 + $0x2ea] sm:$0xff]
  %v5215 = vld [vmem:[#allocation2 + $0x2f2] sm:$0xff]
  %v5216 = vld [vmem:[#allocation2 + $0x302] sm:$0xff]
  %v5217 = vld [vmem:[#allocation2 + $0x30a] sm:$0xff]
  %v5218 = vld [vmem:[#allocation2 + $0x31a] sm:$0xff]
  %v5219 = vld [vmem:[#allocation2 + $0x322] sm:$0xff]
  %v5220 = vld [vmem:[%s4963] sm:$0xff]
  %v5221 = vld [vmem:[%s4963 + $0x8] sm:$0xff]
  %v5222 = vld [vmem:[%s4963 + $0x18] sm:$0xff]
  %v5223 = vld [vmem:[%s4963 + $0x20] sm:$0xff]
  %v5224 = vld [vmem:[%s4963 + $0x30] sm:$0xff]
  %v5225 = vld [vmem:[%s4963 + $0x38] sm:$0xff]
  %v5226 = vld [vmem:[%s4963 + $0x48] sm:$0xff]
  %v5227 = vld [vmem:[%s4963 + $0x50] sm:$0xff]
  %v5228 = vld [vmem:[%s4963 + $0x60] sm:$0xff]
  %v5229 = vld [vmem:[%s4963 + $0x68] sm:$0xff]
  %v5230 = vld [vmem:[%s4963 + $0x78] sm:$0xff]
  %v5231 = vld [vmem:[%s4963 + $0x80] sm:$0xff]
  %v5232 = vld [vmem:[%s4963 + $0x90] sm:$0xff]
  %v5233 = vld [vmem:[%s4963 + $0x98] sm:$0xff]
  %v5234 = vld [vmem:[%s4963 + $0xa8] sm:$0xff]
  %v5235 = vld [vmem:[%s4963 + $0xb0] sm:$0xff]
  %v5236 = vld [vmem:[%s4963 + $0xc0] sm:$0xff]
  %v5237 = vld [vmem:[%s4963 + $0xc8] sm:$0xff]
  %v5238 = vld [vmem:[%s4963 + $0xd8] sm:$0xff]
  %v5239 = vld [vmem:[%s4963 + $0xe0] sm:$0xff]
  %v5240 = vld [vmem:[%s4963 + $0xf0] sm:$0xff]
  %v5241 = vld [vmem:[%s4963 + $0xf8] sm:$0xff]
  %v5242 = vld [vmem:[%s4963 + $0x108] sm:$0xff]
  %v5243 = vld [vmem:[%s4963 + $0x110] sm:$0xff]
  %v5244 = vld [vmem:[%s4963 + $0x120] sm:$0xff]
  %v5245 = vld [vmem:[%s4963 + $0x128] sm:$0xff]
  %v5246 = vld [vmem:[%s4963 + $0x138] sm:$0xff]
  %v5247 = vld [vmem:[%s4963 + $0x140] sm:$0xff]
  %v5248 = vld [vmem:[%s4963 + $0x150] sm:$0xff]
  %v5249 = vld [vmem:[%s4963 + $0x158] sm:$0xff]
  %v5250 = vld [vmem:[%s4963 + $0x168] sm:$0xff]
  %v5251 = vld [vmem:[%s4963 + $0x170] sm:$0xff]
  %v5252 = vld [vmem:[%s4963 + $0x1b0] sm:$0xff]
  %v5253 = vld [vmem:[%s4963 + $0x1b8] sm:$0xff]
  %v5254 = vld [vmem:[%s4963 + $0x1c8] sm:$0xff]
  %v5255 = vld [vmem:[%s4963 + $0x1d0] sm:$0xff]
  %v5256 = vld [vmem:[%s4963 + $0x1e0] sm:$0xff]
  %v5257 = vld [vmem:[%s4963 + $0x1e8] sm:$0xff]
  %v5258 = vld [vmem:[%s4963 + $0x1f8] sm:$0xff]
  %v5259 = vld [vmem:[%s4963 + $0x200] sm:$0xff]
  %v5260 = vld [vmem:[%s4963 + $0x210] sm:$0xff]
  %v5261 = vld [vmem:[%s4963 + $0x218] sm:$0xff]
  %v5262 = vld [vmem:[%s4963 + $0x228] sm:$0xff]
  %v5263 = vld [vmem:[%s4963 + $0x230] sm:$0xff]
  %v5264 = vld [vmem:[%s4963 + $0x240] sm:$0xff]
  %v5265 = vld [vmem:[%s4963 + $0x248] sm:$0xff]
  %v5266 = vld [vmem:[%s4963 + $0x258] sm:$0xff]
  %v5267 = vld [vmem:[%s4963 + $0x260] sm:$0xff]
  %v5268 = vld [vmem:[%s4963 + $0x270] sm:$0xff]
  %v5269 = vld [vmem:[%s4963 + $0x278] sm:$0xff]
  %v5270 = vld [vmem:[%s4963 + $0x288] sm:$0xff]
  %v5271 = vld [vmem:[%s4963 + $0x290] sm:$0xff]
  %v5272 = vld [vmem:[%s4963 + $0x2a0] sm:$0xff]
  %v5273 = vld [vmem:[%s4963 + $0x2a8] sm:$0xff]
  %v5274 = vld [vmem:[%s4963 + $0x2b8] sm:$0xff]
  %v5275 = vld [vmem:[%s4963 + $0x2c0] sm:$0xff]
  %v5276 = vld [vmem:[%s4963 + $0x2d0] sm:$0xff]
  %v5277 = vld [vmem:[%s4963 + $0x2d8] sm:$0xff]
  %v5278 = vld [vmem:[%s4963 + $0x2e8] sm:$0xff]
  %v5279 = vld [vmem:[%s4963 + $0x2f0] sm:$0xff]
  %v5280 = vld [vmem:[%s4963 + $0x300] sm:$0xff]
  %v5281 = vld [vmem:[%s4963 + $0x308] sm:$0xff]
  %v5282 = vld [vmem:[%s4963 + $0x318] sm:$0xff]
  %v5283 = vld [vmem:[%s4963 + $0x320] sm:$0xff]
  %v5284 = vld [vmem:[%s4963 + $0x1] sm:$0xff]
  %v5285 = vld [vmem:[%s4963 + $0x9] sm:$0xff]
  %v5286 = vld [vmem:[%s4963 + $0x19] sm:$0xff]
  %v5287 = vld [vmem:[%s4963 + $0x21] sm:$0xff]
  %v5288 = vld [vmem:[%s4963 + $0x31] sm:$0xff]
  %v5289 = vld [vmem:[%s4963 + $0x39] sm:$0xff]
  %v5290 = vld [vmem:[%s4963 + $0x49] sm:$0xff]
  %v5291 = vld [vmem:[%s4963 + $0x51] sm:$0xff]
  %v5292 = vld [vmem:[%s4963 + $0x61] sm:$0xff]
  %v5293 = vld [vmem:[%s4963 + $0x69] sm:$0xff]
  %v5294 = vld [vmem:[%s4963 + $0x79] sm:$0xff]
  %v5295 = vld [vmem:[%s4963 + $0x81] sm:$0xff]
  %v5296 = vld [vmem:[%s4963 + $0x91] sm:$0xff]
  %v5297 = vld [vmem:[%s4963 + $0x99] sm:$0xff]
  %v5298 = vld [vmem:[%s4963 + $0xa9] sm:$0xff]
  %v5299 = vld [vmem:[%s4963 + $0xb1] sm:$0xff]
  %v5300 = vld [vmem:[%s4963 + $0xc1] sm:$0xff]
  %v5301 = vld [vmem:[%s4963 + $0xc9] sm:$0xff]
  %v5302 = vld [vmem:[%s4963 + $0xd9] sm:$0xff]
  %v5303 = vld [vmem:[%s4963 + $0xe1] sm:$0xff]
  %v5304 = vld [vmem:[%s4963 + $0xf1] sm:$0xff]
  %v5305 = vld [vmem:[%s4963 + $0xf9] sm:$0xff]
  %v5306 = vld [vmem:[%s4963 + $0x109] sm:$0xff]
  %v5307 = vld [vmem:[%s4963 + $0x111] sm:$0xff]
  %v5308 = vld [vmem:[%s4963 + $0x121] sm:$0xff]
  %v5309 = vld [vmem:[%s4963 + $0x129] sm:$0xff]
  %v5310 = vld [vmem:[%s4963 + $0x139] sm:$0xff]
  %v5311 = vld [vmem:[%s4963 + $0x141] sm:$0xff]
  %v5312 = vld [vmem:[%s4963 + $0x151] sm:$0xff]
  %v5313 = vld [vmem:[%s4963 + $0x159] sm:$0xff]
  %v5314 = vld [vmem:[%s4963 + $0x169] sm:$0xff]
  %v5315 = vld [vmem:[%s4963 + $0x171] sm:$0xff]
  %v5316 = vld [vmem:[%s4963 + $0x1b1] sm:$0xff]
  %v5317 = vld [vmem:[%s4963 + $0x1b9] sm:$0xff]
  %v5318 = vld [vmem:[%s4963 + $0x1c9] sm:$0xff]
  %v5319 = vld [vmem:[%s4963 + $0x1d1] sm:$0xff]
  %v5320 = vld [vmem:[%s4963 + $0x1e1] sm:$0xff]
  %v5321 = vld [vmem:[%s4963 + $0x1e9] sm:$0xff]
  %v5322 = vld [vmem:[%s4963 + $0x1f9] sm:$0xff]
  %v5323 = vld [vmem:[%s4963 + $0x201] sm:$0xff]
  %v5324 = vld [vmem:[%s4963 + $0x211] sm:$0xff]
  %v5325 = vld [vmem:[%s4963 + $0x219] sm:$0xff]
  %v5326 = vld [vmem:[%s4963 + $0x229] sm:$0xff]
  %v5327 = vld [vmem:[%s4963 + $0x231] sm:$0xff]
  %v5328 = vld [vmem:[%s4963 + $0x241] sm:$0xff]
  %v5329 = vld [vmem:[%s4963 + $0x249] sm:$0xff]
  %v5330 = vld [vmem:[%s4963 + $0x259] sm:$0xff]
  %v5331 = vld [vmem:[%s4963 + $0x261] sm:$0xff]
  %v5332 = vld [vmem:[%s4963 + $0x271] sm:$0xff]
  %v5333 = vld [vmem:[%s4963 + $0x279] sm:$0xff]
  %v5334 = vld [vmem:[%s4963 + $0x289] sm:$0xff]
  %v5335 = vld [vmem:[%s4963 + $0x291] sm:$0xff]
  %v5336 = vld [vmem:[%s4963 + $0x2a1] sm:$0xff]
  %v5337 = vld [vmem:[%s4963 + $0x2a9] sm:$0xff]
  %v5338 = vld [vmem:[%s4963 + $0x2b9] sm:$0xff]
  %v5339 = vld [vmem:[%s4963 + $0x2c1] sm:$0xff]
  %v5340 = vld [vmem:[%s4963 + $0x2d1] sm:$0xff]
  %v5341 = vld [vmem:[%s4963 + $0x2d9] sm:$0xff]
  %v5342 = vld [vmem:[%s4963 + $0x2e9] sm:$0xff]
  %v5343 = vld [vmem:[%s4963 + $0x2f1] sm:$0xff]
  %v5344 = vld [vmem:[%s4963 + $0x301] sm:$0xff]
  %v5345 = vld [vmem:[%s4963 + $0x309] sm:$0xff]
  %v5346 = vld [vmem:[%s4963 + $0x319] sm:$0xff]
  %v5347 = vld [vmem:[%s4963 + $0x321] sm:$0xff]
  %v5348 = vld [vmem:[%s4963 + $0x2] sm:$0xff]
  %v5349 = vld [vmem:[%s4963 + $0xa] sm:$0xff]
  %v5350 = vld [vmem:[%s4963 + $0x1a] sm:$0xff]
  %v5351 = vld [vmem:[%s4963 + $0x22] sm:$0xff]
  %v5352 = vld [vmem:[%s4963 + $0x32] sm:$0xff]
  %v5353 = vld [vmem:[%s4963 + $0x3a] sm:$0xff]
  %v5354 = vld [vmem:[%s4963 + $0x4a] sm:$0xff]
  %v5355 = vld [vmem:[%s4963 + $0x52] sm:$0xff]
  %v5356 = vld [vmem:[%s4963 + $0x62] sm:$0xff]
  %v5357 = vld [vmem:[%s4963 + $0x6a] sm:$0xff]
  %v5358 = vld [vmem:[%s4963 + $0x7a] sm:$0xff]
  %v5359 = vld [vmem:[%s4963 + $0x82] sm:$0xff]
  %v5360 = vld [vmem:[%s4963 + $0x92] sm:$0xff]
  %v5361 = vld [vmem:[%s4963 + $0x9a] sm:$0xff]
  %v5362 = vld [vmem:[%s4963 + $0xaa] sm:$0xff]
  %v5363 = vld [vmem:[%s4963 + $0xb2] sm:$0xff]
  %v5364 = vld [vmem:[%s4963 + $0xc2] sm:$0xff]
  %v5365 = vld [vmem:[%s4963 + $0xca] sm:$0xff]
  %v5366 = vld [vmem:[%s4963 + $0xda] sm:$0xff]
  %v5367 = vld [vmem:[%s4963 + $0xe2] sm:$0xff]
  %v5368 = vld [vmem:[%s4963 + $0xf2] sm:$0xff]
  %v5369 = vld [vmem:[%s4963 + $0xfa] sm:$0xff]
  %v5370 = vld [vmem:[%s4963 + $0x10a] sm:$0xff]
  %v5371 = vld [vmem:[%s4963 + $0x112] sm:$0xff]
  %v5372 = vld [vmem:[%s4963 + $0x122] sm:$0xff]
  %v5373 = vld [vmem:[%s4963 + $0x12a] sm:$0xff]
  %v5374 = vld [vmem:[%s4963 + $0x13a] sm:$0xff]
  %v5375 = vld [vmem:[%s4963 + $0x142] sm:$0xff]
  %v5376 = vld [vmem:[%s4963 + $0x152] sm:$0xff]
  %v5377 = vld [vmem:[%s4963 + $0x15a] sm:$0xff]
  %v5378 = vld [vmem:[%s4963 + $0x16a] sm:$0xff]
  %v5379 = vld [vmem:[%s4963 + $0x172] sm:$0xff]
  %v5380 = vld [vmem:[%s4963 + $0x1b2] sm:$0xff]
  %v5381 = vld [vmem:[%s4963 + $0x1ba] sm:$0xff]
  %v5382 = vld [vmem:[%s4963 + $0x1ca] sm:$0xff]
  %v5383 = vld [vmem:[%s4963 + $0x1d2] sm:$0xff]
  %v5384 = vld [vmem:[%s4963 + $0x1e2] sm:$0xff]
  %v5385 = vld [vmem:[%s4963 + $0x1ea] sm:$0xff]
  %v5386 = vld [vmem:[%s4963 + $0x1fa] sm:$0xff]
  %v5387 = vld [vmem:[%s4963 + $0x202] sm:$0xff]
  %v5388 = vld [vmem:[%s4963 + $0x212] sm:$0xff]
  %v5389 = vld [vmem:[%s4963 + $0x21a] sm:$0xff]
  %v5390 = vld [vmem:[%s4963 + $0x22a] sm:$0xff]
  %v5391 = vld [vmem:[%s4963 + $0x232] sm:$0xff]
  %v5392 = vld [vmem:[%s4963 + $0x242] sm:$0xff]
  %v5393 = vld [vmem:[%s4963 + $0x24a] sm:$0xff]
  %v5394 = vld [vmem:[%s4963 + $0x25a] sm:$0xff]
  %v5395 = vld [vmem:[%s4963 + $0x262] sm:$0xff]
  %v5396 = vld [vmem:[%s4963 + $0x272] sm:$0xff]
  %v5397 = vld [vmem:[%s4963 + $0x27a] sm:$0xff]
  %v5398 = vld [vmem:[%s4963 + $0x28a] sm:$0xff]
  %v5399 = vld [vmem:[%s4963 + $0x292] sm:$0xff]
  %v5400 = vld [vmem:[%s4963 + $0x2a2] sm:$0xff]
  %v5401 = vld [vmem:[%s4963 + $0x2aa] sm:$0xff]
  %v5402 = vld [vmem:[%s4963 + $0x2ba] sm:$0xff]
  %v5403 = vld [vmem:[%s4963 + $0x2c2] sm:$0xff]
  %v5404 = vld [vmem:[%s4963 + $0x2d2] sm:$0xff]
  %v5405 = vld [vmem:[%s4963 + $0x2da] sm:$0xff]
  %v5406 = vld [vmem:[%s4963 + $0x2ea] sm:$0xff]
  %v5407 = vld [vmem:[%s4963 + $0x2f2] sm:$0xff]
  %v5408 = vld [vmem:[%s4963 + $0x302] sm:$0xff]
  %v5409 = vld [vmem:[%s4963 + $0x30a] sm:$0xff]
  %v5410 = vld [vmem:[%s4963 + $0x31a] sm:$0xff]
  %v5411 = vld [vmem:[%s4963 + $0x322] sm:$0xff]
  %s5412 = scalar_lea.vmem [#allocation2], 48
  %v5413 = vld [vmem:[%s5412] sm:$0xff]
  %v5414 = vld [vmem:[%s5412 + $0x8] sm:$0xff]
  %v5415 = vld [vmem:[%s5412 + $0x18] sm:$0xff]
  %v5416 = vld [vmem:[%s5412 + $0x20] sm:$0xff]
  %v5417 = vld [vmem:[%s5412 + $0x30] sm:$0xff]
  %v5418 = vld [vmem:[%s5412 + $0x38] sm:$0xff]
  %v5419 = vld [vmem:[%s5412 + $0x48] sm:$0xff]
  %v5420 = vld [vmem:[%s5412 + $0x50] sm:$0xff]
  %v5421 = vld [vmem:[%s5412 + $0x60] sm:$0xff]
  %v5422 = vld [vmem:[%s5412 + $0x68] sm:$0xff]
  %v5423 = vld [vmem:[%s5412 + $0x78] sm:$0xff]
  %v5424 = vld [vmem:[%s5412 + $0x80] sm:$0xff]
  %v5425 = vld [vmem:[%s5412 + $0x90] sm:$0xff]
  %v5426 = vld [vmem:[%s5412 + $0x98] sm:$0xff]
  %v5427 = vld [vmem:[%s5412 + $0xa8] sm:$0xff]
  %v5428 = vld [vmem:[%s5412 + $0xb0] sm:$0xff]
  %v5429 = vld [vmem:[%s5412 + $0xc0] sm:$0xff]
  %v5430 = vld [vmem:[%s5412 + $0xc8] sm:$0xff]
  %v5431 = vld [vmem:[%s5412 + $0xd8] sm:$0xff]
  %v5432 = vld [vmem:[%s5412 + $0xe0] sm:$0xff]
  %v5433 = vld [vmem:[%s5412 + $0xf0] sm:$0xff]
  %v5434 = vld [vmem:[%s5412 + $0xf8] sm:$0xff]
  %v5435 = vld [vmem:[%s5412 + $0x108] sm:$0xff]
  %v5436 = vld [vmem:[%s5412 + $0x110] sm:$0xff]
  %v5437 = vld [vmem:[%s5412 + $0x120] sm:$0xff]
  %v5438 = vld [vmem:[%s5412 + $0x128] sm:$0xff]
  %v5439 = vld [vmem:[%s5412 + $0x138] sm:$0xff]
  %v5440 = vld [vmem:[%s5412 + $0x140] sm:$0xff]
  %v5441 = vld [vmem:[%s5412 + $0x150] sm:$0xff]
  %v5442 = vld [vmem:[%s5412 + $0x158] sm:$0xff]
  %v5443 = vld [vmem:[%s5412 + $0x168] sm:$0xff]
  %v5444 = vld [vmem:[%s5412 + $0x170] sm:$0xff]
  %v5445 = vld [vmem:[%s5412 + $0x1b0] sm:$0xff]
  %v5446 = vld [vmem:[%s5412 + $0x1b8] sm:$0xff]
  %v5447 = vld [vmem:[%s5412 + $0x1c8] sm:$0xff]
  %v5448 = vld [vmem:[%s5412 + $0x1d0] sm:$0xff]
  %v5449 = vld [vmem:[%s5412 + $0x1e0] sm:$0xff]
  %v5450 = vld [vmem:[%s5412 + $0x1e8] sm:$0xff]
  %v5451 = vld [vmem:[%s5412 + $0x1f8] sm:$0xff]
  %v5452 = vld [vmem:[%s5412 + $0x200] sm:$0xff]
  %v5453 = vld [vmem:[%s5412 + $0x210] sm:$0xff]
  %v5454 = vld [vmem:[%s5412 + $0x218] sm:$0xff]
  %v5455 = vld [vmem:[%s5412 + $0x228] sm:$0xff]
  %v5456 = vld [vmem:[%s5412 + $0x230] sm:$0xff]
  %v5457 = vld [vmem:[%s5412 + $0x240] sm:$0xff]
  %v5458 = vld [vmem:[%s5412 + $0x248] sm:$0xff]
  %v5459 = vld [vmem:[%s5412 + $0x258] sm:$0xff]
  %v5460 = vld [vmem:[%s5412 + $0x260] sm:$0xff]
  %v5461 = vld [vmem:[%s5412 + $0x270] sm:$0xff]
  %v5462 = vld [vmem:[%s5412 + $0x278] sm:$0xff]
  %v5463 = vld [vmem:[%s5412 + $0x288] sm:$0xff]
  %v5464 = vld [vmem:[%s5412 + $0x290] sm:$0xff]
  %v5465 = vld [vmem:[%s5412 + $0x2a0] sm:$0xff]
  %v5466 = vld [vmem:[%s5412 + $0x2a8] sm:$0xff]
  %v5467 = vld [vmem:[%s5412 + $0x2b8] sm:$0xff]
  %v5468 = vld [vmem:[%s5412 + $0x2c0] sm:$0xff]
  %v5469 = vld [vmem:[%s5412 + $0x2d0] sm:$0xff]
  %v5470 = vld [vmem:[%s5412 + $0x2d8] sm:$0xff]
  %v5471 = vld [vmem:[%s5412 + $0x2e8] sm:$0xff]
  %v5472 = vld [vmem:[%s5412 + $0x2f0] sm:$0xff]
  %v5473 = vld [vmem:[%s5412 + $0x300] sm:$0xff]
  %v5474 = vld [vmem:[%s5412 + $0x308] sm:$0xff]
  %v5475 = vld [vmem:[%s5412 + $0x318] sm:$0xff]
  %v5476 = vld [vmem:[%s5412 + $0x320] sm:$0xff]
  %v5477 = vld [vmem:[%s5412 + $0x1] sm:$0xff]
  %v5478 = vld [vmem:[%s5412 + $0x9] sm:$0xff]
  %v5479 = vld [vmem:[%s5412 + $0x19] sm:$0xff]
  %v5480 = vld [vmem:[%s5412 + $0x21] sm:$0xff]
  %v5481 = vld [vmem:[%s5412 + $0x31] sm:$0xff]
  %v5482 = vld [vmem:[%s5412 + $0x39] sm:$0xff]
  %v5483 = vld [vmem:[%s5412 + $0x49] sm:$0xff]
  %v5484 = vld [vmem:[%s5412 + $0x51] sm:$0xff]
  %v5485 = vld [vmem:[%s5412 + $0x61] sm:$0xff]
  %v5486 = vld [vmem:[%s5412 + $0x69] sm:$0xff]
  %v5487 = vld [vmem:[%s5412 + $0x79] sm:$0xff]
  %v5488 = vld [vmem:[%s5412 + $0x81] sm:$0xff]
  %v5489 = vld [vmem:[%s5412 + $0x91] sm:$0xff]
  %v5490 = vld [vmem:[%s5412 + $0x99] sm:$0xff]
  %v5491 = vld [vmem:[%s5412 + $0xa9] sm:$0xff]
  %v5492 = vld [vmem:[%s5412 + $0xb1] sm:$0xff]
  %v5493 = vld [vmem:[%s5412 + $0xc1] sm:$0xff]
  %v5494 = vld [vmem:[%s5412 + $0xc9] sm:$0xff]
  %v5495 = vld [vmem:[%s5412 + $0xd9] sm:$0xff]
  %v5496 = vld [vmem:[%s5412 + $0xe1] sm:$0xff]
  %v5497 = vld [vmem:[%s5412 + $0xf1] sm:$0xff]
  %v5498 = vld [vmem:[%s5412 + $0xf9] sm:$0xff]
  %v5499 = vld [vmem:[%s5412 + $0x109] sm:$0xff]
  %v5500 = vld [vmem:[%s5412 + $0x111] sm:$0xff]
  %v5501 = vld [vmem:[%s5412 + $0x121] sm:$0xff]
  %v5502 = vld [vmem:[%s5412 + $0x129] sm:$0xff]
  %v5503 = vld [vmem:[%s5412 + $0x139] sm:$0xff]
  %v5504 = vld [vmem:[%s5412 + $0x141] sm:$0xff]
  %v5505 = vld [vmem:[%s5412 + $0x151] sm:$0xff]
  %v5506 = vld [vmem:[%s5412 + $0x159] sm:$0xff]
  %v5507 = vld [vmem:[%s5412 + $0x169] sm:$0xff]
  %v5508 = vld [vmem:[%s5412 + $0x171] sm:$0xff]
  %v5509 = vld [vmem:[%s5412 + $0x1b1] sm:$0xff]
  %v5510 = vld [vmem:[%s5412 + $0x1b9] sm:$0xff]
  %v5511 = vld [vmem:[%s5412 + $0x1c9] sm:$0xff]
  %v5512 = vld [vmem:[%s5412 + $0x1d1] sm:$0xff]
  %v5513 = vld [vmem:[%s5412 + $0x1e1] sm:$0xff]
  %v5514 = vld [vmem:[%s5412 + $0x1e9] sm:$0xff]
  %v5515 = vld [vmem:[%s5412 + $0x1f9] sm:$0xff]
  %v5516 = vld [vmem:[%s5412 + $0x201] sm:$0xff]
  %v5517 = vld [vmem:[%s5412 + $0x211] sm:$0xff]
  %v5518 = vld [vmem:[%s5412 + $0x219] sm:$0xff]
  %v5519 = vld [vmem:[%s5412 + $0x229] sm:$0xff]
  %v5520 = vld [vmem:[%s5412 + $0x231] sm:$0xff]
  %v5521 = vld [vmem:[%s5412 + $0x241] sm:$0xff]
  %v5522 = vld [vmem:[%s5412 + $0x249] sm:$0xff]
  %v5523 = vld [vmem:[%s5412 + $0x259] sm:$0xff]
  %v5524 = vld [vmem:[%s5412 + $0x261] sm:$0xff]
  %v5525 = vld [vmem:[%s5412 + $0x271] sm:$0xff]
  %v5526 = vld [vmem:[%s5412 + $0x279] sm:$0xff]
  %v5527 = vld [vmem:[%s5412 + $0x289] sm:$0xff]
  %v5528 = vld [vmem:[%s5412 + $0x291] sm:$0xff]
  %v5529 = vld [vmem:[%s5412 + $0x2a1] sm:$0xff]
  %v5530 = vld [vmem:[%s5412 + $0x2a9] sm:$0xff]
  %v5531 = vld [vmem:[%s5412 + $0x2b9] sm:$0xff]
  %v5532 = vld [vmem:[%s5412 + $0x2c1] sm:$0xff]
  %v5533 = vld [vmem:[%s5412 + $0x2d1] sm:$0xff]
  %v5534 = vld [vmem:[%s5412 + $0x2d9] sm:$0xff]
  %v5535 = vld [vmem:[%s5412 + $0x2e9] sm:$0xff]
  %v5536 = vld [vmem:[%s5412 + $0x2f1] sm:$0xff]
  %v5537 = vld [vmem:[%s5412 + $0x301] sm:$0xff]
  %v5538 = vld [vmem:[%s5412 + $0x309] sm:$0xff]
  %v5539 = vld [vmem:[%s5412 + $0x319] sm:$0xff]
  %v5540 = vld [vmem:[%s5412 + $0x321] sm:$0xff]
  %v5541 = vld [vmem:[%s5412 + $0x2] sm:$0xff]
  %v5542 = vld [vmem:[%s5412 + $0xa] sm:$0xff]
  %v5543 = vld [vmem:[%s5412 + $0x1a] sm:$0xff]
  %v5544 = vld [vmem:[%s5412 + $0x22] sm:$0xff]
  %v5545 = vld [vmem:[%s5412 + $0x32] sm:$0xff]
  %v5546 = vld [vmem:[%s5412 + $0x3a] sm:$0xff]
  %v5547 = vld [vmem:[%s5412 + $0x4a] sm:$0xff]
  %v5548 = vld [vmem:[%s5412 + $0x52] sm:$0xff]
  %v5549 = vld [vmem:[%s5412 + $0x62] sm:$0xff]
  %v5550 = vld [vmem:[%s5412 + $0x6a] sm:$0xff]
  %v5551 = vld [vmem:[%s5412 + $0x7a] sm:$0xff]
  %v5552 = vld [vmem:[%s5412 + $0x82] sm:$0xff]
  %v5553 = vld [vmem:[%s5412 + $0x92] sm:$0xff]
  %v5554 = vld [vmem:[%s5412 + $0x9a] sm:$0xff]
  %v5555 = vld [vmem:[%s5412 + $0xaa] sm:$0xff]
  %v5556 = vld [vmem:[%s5412 + $0xb2] sm:$0xff]
  %v5557 = vld [vmem:[%s5412 + $0xc2] sm:$0xff]
  %v5558 = vld [vmem:[%s5412 + $0xca] sm:$0xff]
  %v5559 = vld [vmem:[%s5412 + $0xda] sm:$0xff]
  %v5560 = vld [vmem:[%s5412 + $0xe2] sm:$0xff]
  %v5561 = vld [vmem:[%s5412 + $0xf2] sm:$0xff]
  %v5562 = vld [vmem:[%s5412 + $0xfa] sm:$0xff]
  %v5563 = vld [vmem:[%s5412 + $0x10a] sm:$0xff]
  %v5564 = vld [vmem:[%s5412 + $0x112] sm:$0xff]
  %v5565 = vld [vmem:[%s5412 + $0x122] sm:$0xff]
  %v5566 = vld [vmem:[%s5412 + $0x12a] sm:$0xff]
  %v5567 = vld [vmem:[%s5412 + $0x13a] sm:$0xff]
  %v5568 = vld [vmem:[%s5412 + $0x142] sm:$0xff]
  %v5569 = vld [vmem:[%s5412 + $0x152] sm:$0xff]
  %v5570 = vld [vmem:[%s5412 + $0x15a] sm:$0xff]
  %v5571 = vld [vmem:[%s5412 + $0x16a] sm:$0xff]
  %v5572 = vld [vmem:[%s5412 + $0x172] sm:$0xff]
  %v5573 = vld [vmem:[%s5412 + $0x1b2] sm:$0xff]
  %v5574 = vld [vmem:[%s5412 + $0x1ba] sm:$0xff]
  %v5575 = vld [vmem:[%s5412 + $0x1ca] sm:$0xff]
  %v5576 = vld [vmem:[%s5412 + $0x1d2] sm:$0xff]
  %v5577 = vld [vmem:[%s5412 + $0x1e2] sm:$0xff]
  %v5578 = vld [vmem:[%s5412 + $0x1ea] sm:$0xff]
  %v5579 = vld [vmem:[%s5412 + $0x1fa] sm:$0xff]
  %v5580 = vld [vmem:[%s5412 + $0x202] sm:$0xff]
  %v5581 = vld [vmem:[%s5412 + $0x212] sm:$0xff]
  %v5582 = vld [vmem:[%s5412 + $0x21a] sm:$0xff]
  %v5583 = vld [vmem:[%s5412 + $0x22a] sm:$0xff]
  %v5584 = vld [vmem:[%s5412 + $0x232] sm:$0xff]
  %v5585 = vld [vmem:[%s5412 + $0x242] sm:$0xff]
  %v5586 = vld [vmem:[%s5412 + $0x24a] sm:$0xff]
  %v5587 = vld [vmem:[%s5412 + $0x25a] sm:$0xff]
  %v5588 = vld [vmem:[%s5412 + $0x262] sm:$0xff]
  %v5589 = vld [vmem:[%s5412 + $0x272] sm:$0xff]
  %v5590 = vld [vmem:[%s5412 + $0x27a] sm:$0xff]
  %v5591 = vld [vmem:[%s5412 + $0x28a] sm:$0xff]
  %v5592 = vld [vmem:[%s5412 + $0x292] sm:$0xff]
  %v5593 = vld [vmem:[%s5412 + $0x2a2] sm:$0xff]
  %v5594 = vld [vmem:[%s5412 + $0x2aa] sm:$0xff]
  %v5595 = vld [vmem:[%s5412 + $0x2ba] sm:$0xff]
  %v5596 = vld [vmem:[%s5412 + $0x2c2] sm:$0xff]
  %v5597 = vld [vmem:[%s5412 + $0x2d2] sm:$0xff]
  %v5598 = vld [vmem:[%s5412 + $0x2da] sm:$0xff]
  %v5599 = vld [vmem:[%s5412 + $0x2ea] sm:$0xff]
  %v5600 = vld [vmem:[%s5412 + $0x2f2] sm:$0xff]
  %v5601 = vld [vmem:[%s5412 + $0x302] sm:$0xff]
  %v5602 = vld [vmem:[%s5412 + $0x30a] sm:$0xff]
  %v5603 = vld [vmem:[%s5412 + $0x31a] sm:$0xff]
  %v5604 = vld [vmem:[%s5412 + $0x322] sm:$0xff]
  %5669 = vrot.lane.b32.xlu0 %v5092, 4
  %v5670 = vpop.permute.xlu0 %5669
  %5671 = vrot.lane.b32.xlu0 %v5093, 4
  %v5672 = vpop.permute.xlu0 %5671
  %5673 = vrot.lane.b32.xlu0 %v5094, 4
  %v5674 = vpop.permute.xlu0 %5673
  %5675 = vrot.lane.b32.xlu0 %v5095, 4
  %v5676 = vpop.permute.xlu0 %5675
  %5677 = vrot.lane.b32.xlu0 %v5096, 4
  %v5678 = vpop.permute.xlu0 %5677
  %5679 = vrot.lane.b32.xlu0 %v5097, 4
  %v5680 = vpop.permute.xlu0 %5679
  %5681 = vrot.lane.b32.xlu0 %v5098, 4
  %v5682 = vpop.permute.xlu0 %5681
  %5683 = vrot.lane.b32.xlu0 %v5099, 4
  %v5684 = vpop.permute.xlu0 %5683
  %5685 = vrot.lane.b32.xlu0 %v5100, 4
  %v5686 = vpop.permute.xlu0 %5685
  %5687 = vrot.lane.b32.xlu0 %v5101, 4
  %v5688 = vpop.permute.xlu0 %5687
  %5689 = vrot.lane.b32.xlu0 %v5102, 4
  %v5690 = vpop.permute.xlu0 %5689
  %5691 = vrot.lane.b32.xlu0 %v5103, 4
  %v5692 = vpop.permute.xlu0 %5691
  %5693 = vrot.lane.b32.xlu0 %v5104, 4
  %v5694 = vpop.permute.xlu0 %5693
  %5695 = vrot.lane.b32.xlu0 %v5105, 4
  %v5696 = vpop.permute.xlu0 %5695
  %5697 = vrot.lane.b32.xlu0 %v5106, 4
  %v5698 = vpop.permute.xlu0 %5697
  %5699 = vrot.lane.b32.xlu0 %v5107, 4
  %v5700 = vpop.permute.xlu0 %5699
  %5701 = vrot.lane.b32.xlu0 %v5108, 4
  %v5702 = vpop.permute.xlu0 %5701
  %5703 = vrot.lane.b32.xlu0 %v5109, 4
  %v5704 = vpop.permute.xlu0 %5703
  %5705 = vrot.lane.b32.xlu0 %v5110, 4
  %v5706 = vpop.permute.xlu0 %5705
  %5707 = vrot.lane.b32.xlu0 %v5111, 4
  %v5708 = vpop.permute.xlu0 %5707
  %5709 = vrot.lane.b32.xlu0 %v5112, 4
  %v5710 = vpop.permute.xlu0 %5709
  %5711 = vrot.lane.b32.xlu0 %v5113, 4
  %v5712 = vpop.permute.xlu0 %5711
  %5713 = vrot.lane.b32.xlu0 %v5114, 4
  %v5714 = vpop.permute.xlu0 %5713
  %5715 = vrot.lane.b32.xlu0 %v5115, 4
  %v5716 = vpop.permute.xlu0 %5715
  %5717 = vrot.lane.b32.xlu0 %v5116, 4
  %v5718 = vpop.permute.xlu0 %5717
  %5719 = vrot.lane.b32.xlu0 %v5117, 4
  %v5720 = vpop.permute.xlu0 %5719
  %5721 = vrot.lane.b32.xlu0 %v5118, 4
  %v5722 = vpop.permute.xlu0 %5721
  %5723 = vrot.lane.b32.xlu0 %v5119, 4
  %v5724 = vpop.permute.xlu0 %5723
  %5725 = vrot.lane.b32.xlu0 %v5120, 4
  %v5726 = vpop.permute.xlu0 %5725
  %5727 = vrot.lane.b32.xlu0 %v5121, 4
  %v5728 = vpop.permute.xlu0 %5727
  %5729 = vrot.lane.b32.xlu0 %v5122, 4
  %v5730 = vpop.permute.xlu0 %5729
  %5731 = vrot.lane.b32.xlu0 %v5123, 4
  %v5732 = vpop.permute.xlu0 %5731
  %5733 = vrot.lane.b32.xlu0 %v5124, 4
  %v5734 = vpop.permute.xlu0 %5733
  %5735 = vrot.lane.b32.xlu0 %v5125, 4
  %v5736 = vpop.permute.xlu0 %5735
  %5737 = vrot.lane.b32.xlu0 %v5126, 4
  %v5738 = vpop.permute.xlu0 %5737
  %5739 = vrot.lane.b32.xlu0 %v5127, 4
  %v5740 = vpop.permute.xlu0 %5739
  %5741 = vrot.lane.b32.xlu0 %v5128, 4
  %v5742 = vpop.permute.xlu0 %5741
  %5743 = vrot.lane.b32.xlu0 %v5129, 4
  %v5744 = vpop.permute.xlu0 %5743
  %5745 = vrot.lane.b32.xlu0 %v5130, 4
  %v5746 = vpop.permute.xlu0 %5745
  %5747 = vrot.lane.b32.xlu0 %v5131, 4
  %v5748 = vpop.permute.xlu0 %5747
  %5749 = vrot.lane.b32.xlu0 %v5132, 4
  %v5750 = vpop.permute.xlu0 %5749
  %5751 = vrot.lane.b32.xlu0 %v5133, 4
  %v5752 = vpop.permute.xlu0 %5751
  %5753 = vrot.lane.b32.xlu0 %v5134, 4
  %v5754 = vpop.permute.xlu0 %5753
  %5755 = vrot.lane.b32.xlu0 %v5135, 4
  %v5756 = vpop.permute.xlu0 %5755
  %5757 = vrot.lane.b32.xlu0 %v5136, 4
  %v5758 = vpop.permute.xlu0 %5757
  %5759 = vrot.lane.b32.xlu0 %v5137, 4
  %v5760 = vpop.permute.xlu0 %5759
  %5761 = vrot.lane.b32.xlu0 %v5138, 4
  %v5762 = vpop.permute.xlu0 %5761
  %5763 = vrot.lane.b32.xlu0 %v5139, 4
  %v5764 = vpop.permute.xlu0 %5763
  %5765 = vrot.lane.b32.xlu0 %v5140, 4
  %v5766 = vpop.permute.xlu0 %5765
  %5767 = vrot.lane.b32.xlu0 %v5141, 4
  %v5768 = vpop.permute.xlu0 %5767
  %5769 = vrot.lane.b32.xlu0 %v5142, 4
  %v5770 = vpop.permute.xlu0 %5769
  %5771 = vrot.lane.b32.xlu0 %v5143, 4
  %v5772 = vpop.permute.xlu0 %5771
  %5773 = vrot.lane.b32.xlu0 %v5144, 4
  %v5774 = vpop.permute.xlu0 %5773
  %5775 = vrot.lane.b32.xlu0 %v5145, 4
  %v5776 = vpop.permute.xlu0 %5775
  %5777 = vrot.lane.b32.xlu0 %v5146, 4
  %v5778 = vpop.permute.xlu0 %5777
  %5779 = vrot.lane.b32.xlu0 %v5147, 4
  %v5780 = vpop.permute.xlu0 %5779
  %5781 = vrot.lane.b32.xlu0 %v5148, 4
  %v5782 = vpop.permute.xlu0 %5781
  %5783 = vrot.lane.b32.xlu0 %v5149, 4
  %v5784 = vpop.permute.xlu0 %5783
  %5785 = vrot.lane.b32.xlu0 %v5150, 4
  %v5786 = vpop.permute.xlu0 %5785
  %5787 = vrot.lane.b32.xlu0 %v5151, 4
  %v5788 = vpop.permute.xlu0 %5787
  %5789 = vrot.lane.b32.xlu0 %v5152, 4
  %v5790 = vpop.permute.xlu0 %5789
  %5791 = vrot.lane.b32.xlu0 %v5153, 4
  %v5792 = vpop.permute.xlu0 %5791
  %5793 = vrot.lane.b32.xlu0 %v5154, 4
  %v5794 = vpop.permute.xlu0 %5793
  %5795 = vrot.lane.b32.xlu0 %v5155, 4
  %v5796 = vpop.permute.xlu0 %5795
  %5925 = vrot.lane.b32.xlu0 %v5156, 8
  %v5926 = vpop.permute.xlu0 %5925
  %5927 = vrot.lane.b32.xlu0 %v5157, 8
  %v5928 = vpop.permute.xlu0 %5927
  %5929 = vrot.lane.b32.xlu0 %v5158, 8
  %v5930 = vpop.permute.xlu0 %5929
  %5931 = vrot.lane.b32.xlu0 %v5159, 8
  %v5932 = vpop.permute.xlu0 %5931
  %5933 = vrot.lane.b32.xlu0 %v5160, 8
  %v5934 = vpop.permute.xlu0 %5933
  %5935 = vrot.lane.b32.xlu0 %v5161, 8
  %v5936 = vpop.permute.xlu0 %5935
  %5937 = vrot.lane.b32.xlu0 %v5162, 8
  %v5938 = vpop.permute.xlu0 %5937
  %5939 = vrot.lane.b32.xlu0 %v5163, 8
  %v5940 = vpop.permute.xlu0 %5939
  %5941 = vrot.lane.b32.xlu0 %v5164, 8
  %v5942 = vpop.permute.xlu0 %5941
  %5943 = vrot.lane.b32.xlu0 %v5165, 8
  %v5944 = vpop.permute.xlu0 %5943
  %5945 = vrot.lane.b32.xlu0 %v5166, 8
  %v5946 = vpop.permute.xlu0 %5945
  %5947 = vrot.lane.b32.xlu0 %v5167, 8
  %v5948 = vpop.permute.xlu0 %5947
  %5949 = vrot.lane.b32.xlu0 %v5168, 8
  %v5950 = vpop.permute.xlu0 %5949
  %5951 = vrot.lane.b32.xlu0 %v5169, 8
  %v5952 = vpop.permute.xlu0 %5951
  %5953 = vrot.lane.b32.xlu0 %v5170, 8
  %v5954 = vpop.permute.xlu0 %5953
  %5955 = vrot.lane.b32.xlu0 %v5171, 8
  %v5956 = vpop.permute.xlu0 %5955
  %5957 = vrot.lane.b32.xlu0 %v5172, 8
  %v5958 = vpop.permute.xlu0 %5957
  %5959 = vrot.lane.b32.xlu0 %v5173, 8
  %v5960 = vpop.permute.xlu0 %5959
  %5961 = vrot.lane.b32.xlu0 %v5174, 8
  %v5962 = vpop.permute.xlu0 %5961
  %5963 = vrot.lane.b32.xlu0 %v5175, 8
  %v5964 = vpop.permute.xlu0 %5963
  %5965 = vrot.lane.b32.xlu0 %v5176, 8
  %v5966 = vpop.permute.xlu0 %5965
  %5967 = vrot.lane.b32.xlu0 %v5177, 8
  %v5968 = vpop.permute.xlu0 %5967
  %5969 = vrot.lane.b32.xlu0 %v5178, 8
  %v5970 = vpop.permute.xlu0 %5969
  %5971 = vrot.lane.b32.xlu0 %v5179, 8
  %v5972 = vpop.permute.xlu0 %5971
  %5973 = vrot.lane.b32.xlu0 %v5180, 8
  %v5974 = vpop.permute.xlu0 %5973
  %5975 = vrot.lane.b32.xlu0 %v5181, 8
  %v5976 = vpop.permute.xlu0 %5975
  %5977 = vrot.lane.b32.xlu0 %v5182, 8
  %v5978 = vpop.permute.xlu0 %5977
  %5979 = vrot.lane.b32.xlu0 %v5183, 8
  %v5980 = vpop.permute.xlu0 %5979
  %5981 = vrot.lane.b32.xlu0 %v5184, 8
  %v5982 = vpop.permute.xlu0 %5981
  %5983 = vrot.lane.b32.xlu0 %v5185, 8
  %v5984 = vpop.permute.xlu0 %5983
  %5985 = vrot.lane.b32.xlu0 %v5186, 8
  %v5986 = vpop.permute.xlu0 %5985
  %5987 = vrot.lane.b32.xlu0 %v5187, 8
  %v5988 = vpop.permute.xlu0 %5987
  %5989 = vrot.lane.b32.xlu0 %v5188, 8
  %v5990 = vpop.permute.xlu0 %5989
  %5991 = vrot.lane.b32.xlu0 %v5189, 8
  %v5992 = vpop.permute.xlu0 %5991
  %5993 = vrot.lane.b32.xlu0 %v5190, 8
  %v5994 = vpop.permute.xlu0 %5993
  %5995 = vrot.lane.b32.xlu0 %v5191, 8
  %v5996 = vpop.permute.xlu0 %5995
  %5997 = vrot.lane.b32.xlu0 %v5192, 8
  %v5998 = vpop.permute.xlu0 %5997
  %5999 = vrot.lane.b32.xlu0 %v5193, 8
  %v6000 = vpop.permute.xlu0 %5999
  %6001 = vrot.lane.b32.xlu0 %v5194, 8
  %v6002 = vpop.permute.xlu0 %6001
  %6003 = vrot.lane.b32.xlu0 %v5195, 8
  %v6004 = vpop.permute.xlu0 %6003
  %6005 = vrot.lane.b32.xlu0 %v5196, 8
  %v6006 = vpop.permute.xlu0 %6005
  %6007 = vrot.lane.b32.xlu0 %v5197, 8
  %v6008 = vpop.permute.xlu0 %6007
  %6009 = vrot.lane.b32.xlu0 %v5198, 8
  %v6010 = vpop.permute.xlu0 %6009
  %6011 = vrot.lane.b32.xlu0 %v5199, 8
  %v6012 = vpop.permute.xlu0 %6011
  %6013 = vrot.lane.b32.xlu0 %v5200, 8
  %v6014 = vpop.permute.xlu0 %6013
  %6015 = vrot.lane.b32.xlu0 %v5201, 8
  %v6016 = vpop.permute.xlu0 %6015
  %6017 = vrot.lane.b32.xlu0 %v5202, 8
  %v6018 = vpop.permute.xlu0 %6017
  %6019 = vrot.lane.b32.xlu0 %v5203, 8
  %v6020 = vpop.permute.xlu0 %6019
  %6021 = vrot.lane.b32.xlu0 %v5204, 8
  %v6022 = vpop.permute.xlu0 %6021
  %6023 = vrot.lane.b32.xlu0 %v5205, 8
  %v6024 = vpop.permute.xlu0 %6023
  %6025 = vrot.lane.b32.xlu0 %v5206, 8
  %v6026 = vpop.permute.xlu0 %6025
  %6027 = vrot.lane.b32.xlu0 %v5207, 8
  %v6028 = vpop.permute.xlu0 %6027
  %6029 = vrot.lane.b32.xlu0 %v5208, 8
  %v6030 = vpop.permute.xlu0 %6029
  %6031 = vrot.lane.b32.xlu0 %v5209, 8
  %v6032 = vpop.permute.xlu0 %6031
  %6033 = vrot.lane.b32.xlu0 %v5210, 8
  %v6034 = vpop.permute.xlu0 %6033
  %6035 = vrot.lane.b32.xlu0 %v5211, 8
  %v6036 = vpop.permute.xlu0 %6035
  %6037 = vrot.lane.b32.xlu0 %v5212, 8
  %v6038 = vpop.permute.xlu0 %6037
  %6039 = vrot.lane.b32.xlu0 %v5213, 8
  %v6040 = vpop.permute.xlu0 %6039
  %6041 = vrot.lane.b32.xlu0 %v5214, 8
  %v6042 = vpop.permute.xlu0 %6041
  %6043 = vrot.lane.b32.xlu0 %v5215, 8
  %v6044 = vpop.permute.xlu0 %6043
  %6045 = vrot.lane.b32.xlu0 %v5216, 8
  %v6046 = vpop.permute.xlu0 %6045
  %6047 = vrot.lane.b32.xlu0 %v5217, 8
  %v6048 = vpop.permute.xlu0 %6047
  %6049 = vrot.lane.b32.xlu0 %v5218, 8
  %v6050 = vpop.permute.xlu0 %6049
  %6051 = vrot.lane.b32.xlu0 %v5219, 8
  %v6052 = vpop.permute.xlu0 %6051
  %6181 = vrot.lane.b32.xlu0 %v5220, 12
  %v6182 = vpop.permute.xlu0 %6181
  %6183 = vrot.lane.b32.xlu0 %v5221, 12
  %v6184 = vpop.permute.xlu0 %6183
  %6185 = vrot.lane.b32.xlu0 %v5222, 12
  %v6186 = vpop.permute.xlu0 %6185
  %6187 = vrot.lane.b32.xlu0 %v5223, 12
  %v6188 = vpop.permute.xlu0 %6187
  %6189 = vrot.lane.b32.xlu0 %v5224, 12
  %v6190 = vpop.permute.xlu0 %6189
  %6191 = vrot.lane.b32.xlu0 %v5225, 12
  %v6192 = vpop.permute.xlu0 %6191
  %6193 = vrot.lane.b32.xlu0 %v5226, 12
  %v6194 = vpop.permute.xlu0 %6193
  %6195 = vrot.lane.b32.xlu0 %v5227, 12
  %v6196 = vpop.permute.xlu0 %6195
  %6197 = vrot.lane.b32.xlu0 %v5228, 12
  %v6198 = vpop.permute.xlu0 %6197
  %6199 = vrot.lane.b32.xlu0 %v5229, 12
  %v6200 = vpop.permute.xlu0 %6199
  %6201 = vrot.lane.b32.xlu0 %v5230, 12
  %v6202 = vpop.permute.xlu0 %6201
  %6203 = vrot.lane.b32.xlu0 %v5231, 12
  %v6204 = vpop.permute.xlu0 %6203
  %6205 = vrot.lane.b32.xlu0 %v5232, 12
  %v6206 = vpop.permute.xlu0 %6205
  %6207 = vrot.lane.b32.xlu0 %v5233, 12
  %v6208 = vpop.permute.xlu0 %6207
  %6209 = vrot.lane.b32.xlu0 %v5234, 12
  %v6210 = vpop.permute.xlu0 %6209
  %6211 = vrot.lane.b32.xlu0 %v5235, 12
  %v6212 = vpop.permute.xlu0 %6211
  %6213 = vrot.lane.b32.xlu0 %v5236, 12
  %v6214 = vpop.permute.xlu0 %6213
  %6215 = vrot.lane.b32.xlu0 %v5237, 12
  %v6216 = vpop.permute.xlu0 %6215
  %6217 = vrot.lane.b32.xlu0 %v5238, 12
  %v6218 = vpop.permute.xlu0 %6217
  %6219 = vrot.lane.b32.xlu0 %v5239, 12
  %v6220 = vpop.permute.xlu0 %6219
  %6221 = vrot.lane.b32.xlu0 %v5240, 12
  %v6222 = vpop.permute.xlu0 %6221
  %6223 = vrot.lane.b32.xlu0 %v5241, 12
  %v6224 = vpop.permute.xlu0 %6223
  %6225 = vrot.lane.b32.xlu0 %v5242, 12
  %v6226 = vpop.permute.xlu0 %6225
  %6227 = vrot.lane.b32.xlu0 %v5243, 12
  %v6228 = vpop.permute.xlu0 %6227
  %6229 = vrot.lane.b32.xlu0 %v5244, 12
  %v6230 = vpop.permute.xlu0 %6229
  %6231 = vrot.lane.b32.xlu0 %v5245, 12
  %v6232 = vpop.permute.xlu0 %6231
  %6233 = vrot.lane.b32.xlu0 %v5246, 12
  %v6234 = vpop.permute.xlu0 %6233
  %6235 = vrot.lane.b32.xlu0 %v5247, 12
  %v6236 = vpop.permute.xlu0 %6235
  %6237 = vrot.lane.b32.xlu0 %v5248, 12
  %v6238 = vpop.permute.xlu0 %6237
  %6239 = vrot.lane.b32.xlu0 %v5249, 12
  %v6240 = vpop.permute.xlu0 %6239
  %6241 = vrot.lane.b32.xlu0 %v5250, 12
  %v6242 = vpop.permute.xlu0 %6241
  %6243 = vrot.lane.b32.xlu0 %v5251, 12
  %v6244 = vpop.permute.xlu0 %6243
  %6245 = vrot.lane.b32.xlu0 %v5252, 12
  %v6246 = vpop.permute.xlu0 %6245
  %6247 = vrot.lane.b32.xlu0 %v5253, 12
  %v6248 = vpop.permute.xlu0 %6247
  %6249 = vrot.lane.b32.xlu0 %v5254, 12
  %v6250 = vpop.permute.xlu0 %6249
  %6251 = vrot.lane.b32.xlu0 %v5255, 12
  %v6252 = vpop.permute.xlu0 %6251
  %6253 = vrot.lane.b32.xlu0 %v5256, 12
  %v6254 = vpop.permute.xlu0 %6253
  %6255 = vrot.lane.b32.xlu0 %v5257, 12
  %v6256 = vpop.permute.xlu0 %6255
  %6257 = vrot.lane.b32.xlu0 %v5258, 12
  %v6258 = vpop.permute.xlu0 %6257
  %6259 = vrot.lane.b32.xlu0 %v5259, 12
  %v6260 = vpop.permute.xlu0 %6259
  %6261 = vrot.lane.b32.xlu0 %v5260, 12
  %v6262 = vpop.permute.xlu0 %6261
  %6263 = vrot.lane.b32.xlu0 %v5261, 12
  %v6264 = vpop.permute.xlu0 %6263
  %6265 = vrot.lane.b32.xlu0 %v5262, 12
  %v6266 = vpop.permute.xlu0 %6265
  %6267 = vrot.lane.b32.xlu0 %v5263, 12
  %v6268 = vpop.permute.xlu0 %6267
  %6269 = vrot.lane.b32.xlu0 %v5264, 12
  %v6270 = vpop.permute.xlu0 %6269
  %6271 = vrot.lane.b32.xlu0 %v5265, 12
  %v6272 = vpop.permute.xlu0 %6271
  %6273 = vrot.lane.b32.xlu0 %v5266, 12
  %v6274 = vpop.permute.xlu0 %6273
  %6275 = vrot.lane.b32.xlu0 %v5267, 12
  %v6276 = vpop.permute.xlu0 %6275
  %6277 = vrot.lane.b32.xlu0 %v5268, 12
  %v6278 = vpop.permute.xlu0 %6277
  %6279 = vrot.lane.b32.xlu0 %v5269, 12
  %v6280 = vpop.permute.xlu0 %6279
  %6281 = vrot.lane.b32.xlu0 %v5270, 12
  %v6282 = vpop.permute.xlu0 %6281
  %6283 = vrot.lane.b32.xlu0 %v5271, 12
  %v6284 = vpop.permute.xlu0 %6283
  %6285 = vrot.lane.b32.xlu0 %v5272, 12
  %v6286 = vpop.permute.xlu0 %6285
  %6287 = vrot.lane.b32.xlu0 %v5273, 12
  %v6288 = vpop.permute.xlu0 %6287
  %6289 = vrot.lane.b32.xlu0 %v5274, 12
  %v6290 = vpop.permute.xlu0 %6289
  %6291 = vrot.lane.b32.xlu0 %v5275, 12
  %v6292 = vpop.permute.xlu0 %6291
  %6293 = vrot.lane.b32.xlu0 %v5276, 12
  %v6294 = vpop.permute.xlu0 %6293
  %6295 = vrot.lane.b32.xlu0 %v5277, 12
  %v6296 = vpop.permute.xlu0 %6295
  %6297 = vrot.lane.b32.xlu0 %v5278, 12
  %v6298 = vpop.permute.xlu0 %6297
  %6299 = vrot.lane.b32.xlu0 %v5279, 12
  %v6300 = vpop.permute.xlu0 %6299
  %6301 = vrot.lane.b32.xlu0 %v5280, 12
  %v6302 = vpop.permute.xlu0 %6301
  %6303 = vrot.lane.b32.xlu0 %v5281, 12
  %v6304 = vpop.permute.xlu0 %6303
  %6305 = vrot.lane.b32.xlu0 %v5282, 12
  %v6306 = vpop.permute.xlu0 %6305
  %6307 = vrot.lane.b32.xlu0 %v5283, 12
  %v6308 = vpop.permute.xlu0 %6307
  %6437 = vrot.lane.b32.xlu0 %v5284, 16
  %v6438 = vpop.permute.xlu0 %6437
  %6439 = vrot.lane.b32.xlu0 %v5285, 16
  %v6440 = vpop.permute.xlu0 %6439
  %6441 = vrot.lane.b32.xlu0 %v5286, 16
  %v6442 = vpop.permute.xlu0 %6441
  %6443 = vrot.lane.b32.xlu0 %v5287, 16
  %v6444 = vpop.permute.xlu0 %6443
  %6445 = vrot.lane.b32.xlu0 %v5288, 16
  %v6446 = vpop.permute.xlu0 %6445
  %6447 = vrot.lane.b32.xlu0 %v5289, 16
  %v6448 = vpop.permute.xlu0 %6447
  %6449 = vrot.lane.b32.xlu0 %v5290, 16
  %v6450 = vpop.permute.xlu0 %6449
  %6451 = vrot.lane.b32.xlu0 %v5291, 16
  %v6452 = vpop.permute.xlu0 %6451
  %6453 = vrot.lane.b32.xlu0 %v5292, 16
  %v6454 = vpop.permute.xlu0 %6453
  %6455 = vrot.lane.b32.xlu0 %v5293, 16
  %v6456 = vpop.permute.xlu0 %6455
  %6457 = vrot.lane.b32.xlu0 %v5294, 16
  %v6458 = vpop.permute.xlu0 %6457
  %6459 = vrot.lane.b32.xlu0 %v5295, 16
  %v6460 = vpop.permute.xlu0 %6459
  %6461 = vrot.lane.b32.xlu0 %v5296, 16
  %v6462 = vpop.permute.xlu0 %6461
  %6463 = vrot.lane.b32.xlu0 %v5297, 16
  %v6464 = vpop.permute.xlu0 %6463
  %6465 = vrot.lane.b32.xlu0 %v5298, 16
  %v6466 = vpop.permute.xlu0 %6465
  %6467 = vrot.lane.b32.xlu0 %v5299, 16
  %v6468 = vpop.permute.xlu0 %6467
  %6469 = vrot.lane.b32.xlu0 %v5300, 16
  %v6470 = vpop.permute.xlu0 %6469
  %6471 = vrot.lane.b32.xlu0 %v5301, 16
  %v6472 = vpop.permute.xlu0 %6471
  %6473 = vrot.lane.b32.xlu0 %v5302, 16
  %v6474 = vpop.permute.xlu0 %6473
  %6475 = vrot.lane.b32.xlu0 %v5303, 16
  %v6476 = vpop.permute.xlu0 %6475
  %6477 = vrot.lane.b32.xlu0 %v5304, 16
  %v6478 = vpop.permute.xlu0 %6477
  %6479 = vrot.lane.b32.xlu0 %v5305, 16
  %v6480 = vpop.permute.xlu0 %6479
  %6481 = vrot.lane.b32.xlu0 %v5306, 16
  %v6482 = vpop.permute.xlu0 %6481
  %6483 = vrot.lane.b32.xlu0 %v5307, 16
  %v6484 = vpop.permute.xlu0 %6483
  %6485 = vrot.lane.b32.xlu0 %v5308, 16
  %v6486 = vpop.permute.xlu0 %6485
  %6487 = vrot.lane.b32.xlu0 %v5309, 16
  %v6488 = vpop.permute.xlu0 %6487
  %6489 = vrot.lane.b32.xlu0 %v5310, 16
  %v6490 = vpop.permute.xlu0 %6489
  %6491 = vrot.lane.b32.xlu0 %v5311, 16
  %v6492 = vpop.permute.xlu0 %6491
  %6493 = vrot.lane.b32.xlu0 %v5312, 16
  %v6494 = vpop.permute.xlu0 %6493
  %6495 = vrot.lane.b32.xlu0 %v5313, 16
  %v6496 = vpop.permute.xlu0 %6495
  %6497 = vrot.lane.b32.xlu0 %v5314, 16
  %v6498 = vpop.permute.xlu0 %6497
  %6499 = vrot.lane.b32.xlu0 %v5315, 16
  %v6500 = vpop.permute.xlu0 %6499
  %6501 = vrot.lane.b32.xlu0 %v5316, 16
  %v6502 = vpop.permute.xlu0 %6501
  %6503 = vrot.lane.b32.xlu0 %v5317, 16
  %v6504 = vpop.permute.xlu0 %6503
  %6505 = vrot.lane.b32.xlu0 %v5318, 16
  %v6506 = vpop.permute.xlu0 %6505
  %6507 = vrot.lane.b32.xlu0 %v5319, 16
  %v6508 = vpop.permute.xlu0 %6507
  %6509 = vrot.lane.b32.xlu0 %v5320, 16
  %v6510 = vpop.permute.xlu0 %6509
  %6511 = vrot.lane.b32.xlu0 %v5321, 16
  %v6512 = vpop.permute.xlu0 %6511
  %6513 = vrot.lane.b32.xlu0 %v5322, 16
  %v6514 = vpop.permute.xlu0 %6513
  %6515 = vrot.lane.b32.xlu0 %v5323, 16
  %v6516 = vpop.permute.xlu0 %6515
  %6517 = vrot.lane.b32.xlu0 %v5324, 16
  %v6518 = vpop.permute.xlu0 %6517
  %6519 = vrot.lane.b32.xlu0 %v5325, 16
  %v6520 = vpop.permute.xlu0 %6519
  %6521 = vrot.lane.b32.xlu0 %v5326, 16
  %v6522 = vpop.permute.xlu0 %6521
  %6523 = vrot.lane.b32.xlu0 %v5327, 16
  %v6524 = vpop.permute.xlu0 %6523
  %6525 = vrot.lane.b32.xlu0 %v5328, 16
  %v6526 = vpop.permute.xlu0 %6525
  %6527 = vrot.lane.b32.xlu0 %v5329, 16
  %v6528 = vpop.permute.xlu0 %6527
  %6529 = vrot.lane.b32.xlu0 %v5330, 16
  %v6530 = vpop.permute.xlu0 %6529
  %6531 = vrot.lane.b32.xlu0 %v5331, 16
  %v6532 = vpop.permute.xlu0 %6531
  %6533 = vrot.lane.b32.xlu0 %v5332, 16
  %v6534 = vpop.permute.xlu0 %6533
  %6535 = vrot.lane.b32.xlu0 %v5333, 16
  %v6536 = vpop.permute.xlu0 %6535
  %6537 = vrot.lane.b32.xlu0 %v5334, 16
  %v6538 = vpop.permute.xlu0 %6537
  %6539 = vrot.lane.b32.xlu0 %v5335, 16
  %v6540 = vpop.permute.xlu0 %6539
  %6541 = vrot.lane.b32.xlu0 %v5336, 16
  %v6542 = vpop.permute.xlu0 %6541
  %6543 = vrot.lane.b32.xlu0 %v5337, 16
  %v6544 = vpop.permute.xlu0 %6543
  %6545 = vrot.lane.b32.xlu0 %v5338, 16
  %v6546 = vpop.permute.xlu0 %6545
  %6547 = vrot.lane.b32.xlu0 %v5339, 16
  %v6548 = vpop.permute.xlu0 %6547
  %6549 = vrot.lane.b32.xlu0 %v5340, 16
  %v6550 = vpop.permute.xlu0 %6549
  %6551 = vrot.lane.b32.xlu0 %v5341, 16
  %v6552 = vpop.permute.xlu0 %6551
  %6553 = vrot.lane.b32.xlu0 %v5342, 16
  %v6554 = vpop.permute.xlu0 %6553
  %6555 = vrot.lane.b32.xlu0 %v5343, 16
  %v6556 = vpop.permute.xlu0 %6555
  %6557 = vrot.lane.b32.xlu0 %v5344, 16
  %v6558 = vpop.permute.xlu0 %6557
  %6559 = vrot.lane.b32.xlu0 %v5345, 16
  %v6560 = vpop.permute.xlu0 %6559
  %6561 = vrot.lane.b32.xlu0 %v5346, 16
  %v6562 = vpop.permute.xlu0 %6561
  %6563 = vrot.lane.b32.xlu0 %v5347, 16
  %v6564 = vpop.permute.xlu0 %6563
  %6693 = vrot.lane.b32.xlu0 %v5348, 20
  %v6694 = vpop.permute.xlu0 %6693
  %6695 = vrot.lane.b32.xlu0 %v5349, 20
  %v6696 = vpop.permute.xlu0 %6695
  %6697 = vrot.lane.b32.xlu0 %v5350, 20
  %v6698 = vpop.permute.xlu0 %6697
  %6699 = vrot.lane.b32.xlu0 %v5351, 20
  %v6700 = vpop.permute.xlu0 %6699
  %6701 = vrot.lane.b32.xlu0 %v5352, 20
  %v6702 = vpop.permute.xlu0 %6701
  %6703 = vrot.lane.b32.xlu0 %v5353, 20
  %v6704 = vpop.permute.xlu0 %6703
  %6705 = vrot.lane.b32.xlu0 %v5354, 20
  %v6706 = vpop.permute.xlu0 %6705
  %6707 = vrot.lane.b32.xlu0 %v5355, 20
  %v6708 = vpop.permute.xlu0 %6707
  %6709 = vrot.lane.b32.xlu0 %v5356, 20
  %v6710 = vpop.permute.xlu0 %6709
  %6711 = vrot.lane.b32.xlu0 %v5357, 20
  %v6712 = vpop.permute.xlu0 %6711
  %6713 = vrot.lane.b32.xlu0 %v5358, 20
  %v6714 = vpop.permute.xlu0 %6713
  %6715 = vrot.lane.b32.xlu0 %v5359, 20
  %v6716 = vpop.permute.xlu0 %6715
  %6717 = vrot.lane.b32.xlu0 %v5360, 20
  %v6718 = vpop.permute.xlu0 %6717
  %6719 = vrot.lane.b32.xlu0 %v5361, 20
  %v6720 = vpop.permute.xlu0 %6719
  %6721 = vrot.lane.b32.xlu0 %v5362, 20
  %v6722 = vpop.permute.xlu0 %6721
  %6723 = vrot.lane.b32.xlu0 %v5363, 20
  %v6724 = vpop.permute.xlu0 %6723
  %6725 = vrot.lane.b32.xlu0 %v5364, 20
  %v6726 = vpop.permute.xlu0 %6725
  %6727 = vrot.lane.b32.xlu0 %v5365, 20
  %v6728 = vpop.permute.xlu0 %6727
  %6729 = vrot.lane.b32.xlu0 %v5366, 20
  %v6730 = vpop.permute.xlu0 %6729
  %6731 = vrot.lane.b32.xlu0 %v5367, 20
  %v6732 = vpop.permute.xlu0 %6731
  %6733 = vrot.lane.b32.xlu0 %v5368, 20
  %v6734 = vpop.permute.xlu0 %6733
  %6735 = vrot.lane.b32.xlu0 %v5369, 20
  %v6736 = vpop.permute.xlu0 %6735
  %6737 = vrot.lane.b32.xlu0 %v5370, 20
  %v6738 = vpop.permute.xlu0 %6737
  %6739 = vrot.lane.b32.xlu0 %v5371, 20
  %v6740 = vpop.permute.xlu0 %6739
  %6741 = vrot.lane.b32.xlu0 %v5372, 20
  %v6742 = vpop.permute.xlu0 %6741
  %6743 = vrot.lane.b32.xlu0 %v5373, 20
  %v6744 = vpop.permute.xlu0 %6743
  %6745 = vrot.lane.b32.xlu0 %v5374, 20
  %v6746 = vpop.permute.xlu0 %6745
  %6747 = vrot.lane.b32.xlu0 %v5375, 20
  %v6748 = vpop.permute.xlu0 %6747
  %6749 = vrot.lane.b32.xlu0 %v5376, 20
  %v6750 = vpop.permute.xlu0 %6749
  %6751 = vrot.lane.b32.xlu0 %v5377, 20
  %v6752 = vpop.permute.xlu0 %6751
  %6753 = vrot.lane.b32.xlu0 %v5378, 20
  %v6754 = vpop.permute.xlu0 %6753
  %6755 = vrot.lane.b32.xlu0 %v5379, 20
  %v6756 = vpop.permute.xlu0 %6755
  %6757 = vrot.lane.b32.xlu0 %v5380, 20
  %v6758 = vpop.permute.xlu0 %6757
  %6759 = vrot.lane.b32.xlu0 %v5381, 20
  %v6760 = vpop.permute.xlu0 %6759
  %6761 = vrot.lane.b32.xlu0 %v5382, 20
  %v6762 = vpop.permute.xlu0 %6761
  %6763 = vrot.lane.b32.xlu0 %v5383, 20
  %v6764 = vpop.permute.xlu0 %6763
  %6765 = vrot.lane.b32.xlu0 %v5384, 20
  %v6766 = vpop.permute.xlu0 %6765
  %6767 = vrot.lane.b32.xlu0 %v5385, 20
  %v6768 = vpop.permute.xlu0 %6767
  %6769 = vrot.lane.b32.xlu0 %v5386, 20
  %v6770 = vpop.permute.xlu0 %6769
  %6771 = vrot.lane.b32.xlu0 %v5387, 20
  %v6772 = vpop.permute.xlu0 %6771
  %6773 = vrot.lane.b32.xlu0 %v5388, 20
  %v6774 = vpop.permute.xlu0 %6773
  %6775 = vrot.lane.b32.xlu0 %v5389, 20
  %v6776 = vpop.permute.xlu0 %6775
  %6777 = vrot.lane.b32.xlu0 %v5390, 20
  %v6778 = vpop.permute.xlu0 %6777
  %6779 = vrot.lane.b32.xlu0 %v5391, 20
  %v6780 = vpop.permute.xlu0 %6779
  %6781 = vrot.lane.b32.xlu0 %v5392, 20
  %v6782 = vpop.permute.xlu0 %6781
  %6783 = vrot.lane.b32.xlu0 %v5393, 20
  %v6784 = vpop.permute.xlu0 %6783
  %6785 = vrot.lane.b32.xlu0 %v5394, 20
  %v6786 = vpop.permute.xlu0 %6785
  %6787 = vrot.lane.b32.xlu0 %v5395, 20
  %v6788 = vpop.permute.xlu0 %6787
  %6789 = vrot.lane.b32.xlu0 %v5396, 20
  %v6790 = vpop.permute.xlu0 %6789
  %6791 = vrot.lane.b32.xlu0 %v5397, 20
  %v6792 = vpop.permute.xlu0 %6791
  %6793 = vrot.lane.b32.xlu0 %v5398, 20
  %v6794 = vpop.permute.xlu0 %6793
  %6795 = vrot.lane.b32.xlu0 %v5399, 20
  %v6796 = vpop.permute.xlu0 %6795
  %6797 = vrot.lane.b32.xlu0 %v5400, 20
  %v6798 = vpop.permute.xlu0 %6797
  %6799 = vrot.lane.b32.xlu0 %v5401, 20
  %v6800 = vpop.permute.xlu0 %6799
  %6801 = vrot.lane.b32.xlu0 %v5402, 20
  %v6802 = vpop.permute.xlu0 %6801
  %6803 = vrot.lane.b32.xlu0 %v5403, 20
  %v6804 = vpop.permute.xlu0 %6803
  %6805 = vrot.lane.b32.xlu0 %v5404, 20
  %v6806 = vpop.permute.xlu0 %6805
  %6807 = vrot.lane.b32.xlu0 %v5405, 20
  %v6808 = vpop.permute.xlu0 %6807
  %6809 = vrot.lane.b32.xlu0 %v5406, 20
  %v6810 = vpop.permute.xlu0 %6809
  %6811 = vrot.lane.b32.xlu0 %v5407, 20
  %v6812 = vpop.permute.xlu0 %6811
  %6813 = vrot.lane.b32.xlu0 %v5408, 20
  %v6814 = vpop.permute.xlu0 %6813
  %6815 = vrot.lane.b32.xlu0 %v5409, 20
  %v6816 = vpop.permute.xlu0 %6815
  %6817 = vrot.lane.b32.xlu0 %v5410, 20
  %v6818 = vpop.permute.xlu0 %6817
  %6819 = vrot.lane.b32.xlu0 %v5411, 20
  %v6820 = vpop.permute.xlu0 %6819
  %6949 = vrot.lane.b32.xlu0 %v5413, 24
  %v6950 = vpop.permute.xlu0 %6949
  %6951 = vrot.lane.b32.xlu0 %v5414, 24
  %v6952 = vpop.permute.xlu0 %6951
  %6953 = vrot.lane.b32.xlu0 %v5415, 24
  %v6954 = vpop.permute.xlu0 %6953
  %6955 = vrot.lane.b32.xlu0 %v5416, 24
  %v6956 = vpop.permute.xlu0 %6955
  %6957 = vrot.lane.b32.xlu0 %v5417, 24
  %v6958 = vpop.permute.xlu0 %6957
  %6959 = vrot.lane.b32.xlu0 %v5418, 24
  %v6960 = vpop.permute.xlu0 %6959
  %6961 = vrot.lane.b32.xlu0 %v5419, 24
  %v6962 = vpop.permute.xlu0 %6961
  %6963 = vrot.lane.b32.xlu0 %v5420, 24
  %v6964 = vpop.permute.xlu0 %6963
  %6965 = vrot.lane.b32.xlu0 %v5421, 24
  %v6966 = vpop.permute.xlu0 %6965
  %6967 = vrot.lane.b32.xlu0 %v5422, 24
  %v6968 = vpop.permute.xlu0 %6967
  %6969 = vrot.lane.b32.xlu0 %v5423, 24
  %v6970 = vpop.permute.xlu0 %6969
  %6971 = vrot.lane.b32.xlu0 %v5424, 24
  %v6972 = vpop.permute.xlu0 %6971
  %6973 = vrot.lane.b32.xlu0 %v5425, 24
  %v6974 = vpop.permute.xlu0 %6973
  %6975 = vrot.lane.b32.xlu0 %v5426, 24
  %v6976 = vpop.permute.xlu0 %6975
  %6977 = vrot.lane.b32.xlu0 %v5427, 24
  %v6978 = vpop.permute.xlu0 %6977
  %6979 = vrot.lane.b32.xlu0 %v5428, 24
  %v6980 = vpop.permute.xlu0 %6979
  %6981 = vrot.lane.b32.xlu0 %v5429, 24
  %v6982 = vpop.permute.xlu0 %6981
  %6983 = vrot.lane.b32.xlu0 %v5430, 24
  %v6984 = vpop.permute.xlu0 %6983
  %6985 = vrot.lane.b32.xlu0 %v5431, 24
  %v6986 = vpop.permute.xlu0 %6985
  %6987 = vrot.lane.b32.xlu0 %v5432, 24
  %v6988 = vpop.permute.xlu0 %6987
  %6989 = vrot.lane.b32.xlu0 %v5433, 24
  %v6990 = vpop.permute.xlu0 %6989
  %6991 = vrot.lane.b32.xlu0 %v5434, 24
  %v6992 = vpop.permute.xlu0 %6991
  %6993 = vrot.lane.b32.xlu0 %v5435, 24
  %v6994 = vpop.permute.xlu0 %6993
  %6995 = vrot.lane.b32.xlu0 %v5436, 24
  %v6996 = vpop.permute.xlu0 %6995
  %6997 = vrot.lane.b32.xlu0 %v5437, 24
  %v6998 = vpop.permute.xlu0 %6997
  %6999 = vrot.lane.b32.xlu0 %v5438, 24
  %v7000 = vpop.permute.xlu0 %6999
  %7001 = vrot.lane.b32.xlu0 %v5439, 24
  %v7002 = vpop.permute.xlu0 %7001
  %7003 = vrot.lane.b32.xlu0 %v5440, 24
  %v7004 = vpop.permute.xlu0 %7003
  %7005 = vrot.lane.b32.xlu0 %v5441, 24
  %v7006 = vpop.permute.xlu0 %7005
  %7007 = vrot.lane.b32.xlu0 %v5442, 24
  %v7008 = vpop.permute.xlu0 %7007
  %7009 = vrot.lane.b32.xlu0 %v5443, 24
  %v7010 = vpop.permute.xlu0 %7009
  %7011 = vrot.lane.b32.xlu0 %v5444, 24
  %v7012 = vpop.permute.xlu0 %7011
  %7013 = vrot.lane.b32.xlu0 %v5445, 24
  %v7014 = vpop.permute.xlu0 %7013
  %7015 = vrot.lane.b32.xlu0 %v5446, 24
  %v7016 = vpop.permute.xlu0 %7015
  %7017 = vrot.lane.b32.xlu0 %v5447, 24
  %v7018 = vpop.permute.xlu0 %7017
  %7019 = vrot.lane.b32.xlu0 %v5448, 24
  %v7020 = vpop.permute.xlu0 %7019
  %7021 = vrot.lane.b32.xlu0 %v5449, 24
  %v7022 = vpop.permute.xlu0 %7021
  %7023 = vrot.lane.b32.xlu0 %v5450, 24
  %v7024 = vpop.permute.xlu0 %7023
  %7025 = vrot.lane.b32.xlu0 %v5451, 24
  %v7026 = vpop.permute.xlu0 %7025
  %7027 = vrot.lane.b32.xlu0 %v5452, 24
  %v7028 = vpop.permute.xlu0 %7027
  %7029 = vrot.lane.b32.xlu0 %v5453, 24
  %v7030 = vpop.permute.xlu0 %7029
  %7031 = vrot.lane.b32.xlu0 %v5454, 24
  %v7032 = vpop.permute.xlu0 %7031
  %7033 = vrot.lane.b32.xlu0 %v5455, 24
  %v7034 = vpop.permute.xlu0 %7033
  %7035 = vrot.lane.b32.xlu0 %v5456, 24
  %v7036 = vpop.permute.xlu0 %7035
  %7037 = vrot.lane.b32.xlu0 %v5457, 24
  %v7038 = vpop.permute.xlu0 %7037
  %7039 = vrot.lane.b32.xlu0 %v5458, 24
  %v7040 = vpop.permute.xlu0 %7039
  %7041 = vrot.lane.b32.xlu0 %v5459, 24
  %v7042 = vpop.permute.xlu0 %7041
  %7043 = vrot.lane.b32.xlu0 %v5460, 24
  %v7044 = vpop.permute.xlu0 %7043
  %7045 = vrot.lane.b32.xlu0 %v5461, 24
  %v7046 = vpop.permute.xlu0 %7045
  %7047 = vrot.lane.b32.xlu0 %v5462, 24
  %v7048 = vpop.permute.xlu0 %7047
  %7049 = vrot.lane.b32.xlu0 %v5463, 24
  %v7050 = vpop.permute.xlu0 %7049
  %7051 = vrot.lane.b32.xlu0 %v5464, 24
  %v7052 = vpop.permute.xlu0 %7051
  %7053 = vrot.lane.b32.xlu0 %v5465, 24
  %v7054 = vpop.permute.xlu0 %7053
  %7055 = vrot.lane.b32.xlu0 %v5466, 24
  %v7056 = vpop.permute.xlu0 %7055
  %7057 = vrot.lane.b32.xlu0 %v5467, 24
  %v7058 = vpop.permute.xlu0 %7057
  %7059 = vrot.lane.b32.xlu0 %v5468, 24
  %v7060 = vpop.permute.xlu0 %7059
  %7061 = vrot.lane.b32.xlu0 %v5469, 24
  %v7062 = vpop.permute.xlu0 %7061
  %7063 = vrot.lane.b32.xlu0 %v5470, 24
  %v7064 = vpop.permute.xlu0 %7063
  %7065 = vrot.lane.b32.xlu0 %v5471, 24
  %v7066 = vpop.permute.xlu0 %7065
  %7067 = vrot.lane.b32.xlu0 %v5472, 24
  %v7068 = vpop.permute.xlu0 %7067
  %7069 = vrot.lane.b32.xlu0 %v5473, 24
  %v7070 = vpop.permute.xlu0 %7069
  %7071 = vrot.lane.b32.xlu0 %v5474, 24
  %v7072 = vpop.permute.xlu0 %7071
  %7073 = vrot.lane.b32.xlu0 %v5475, 24
  %v7074 = vpop.permute.xlu0 %7073
  %7075 = vrot.lane.b32.xlu0 %v5476, 24
  %v7076 = vpop.permute.xlu0 %7075
  %7205 = vrot.lane.b32.xlu0 %v5477, 28
  %v7206 = vpop.permute.xlu0 %7205
  %7207 = vrot.lane.b32.xlu0 %v5478, 28
  %v7208 = vpop.permute.xlu0 %7207
  %7209 = vrot.lane.b32.xlu0 %v5479, 28
  %v7210 = vpop.permute.xlu0 %7209
  %7211 = vrot.lane.b32.xlu0 %v5480, 28
  %v7212 = vpop.permute.xlu0 %7211
  %7213 = vrot.lane.b32.xlu0 %v5481, 28
  %v7214 = vpop.permute.xlu0 %7213
  %7215 = vrot.lane.b32.xlu0 %v5482, 28
  %v7216 = vpop.permute.xlu0 %7215
  %7217 = vrot.lane.b32.xlu0 %v5483, 28
  %v7218 = vpop.permute.xlu0 %7217
  %7219 = vrot.lane.b32.xlu0 %v5484, 28
  %v7220 = vpop.permute.xlu0 %7219
  %7221 = vrot.lane.b32.xlu0 %v5485, 28
  %v7222 = vpop.permute.xlu0 %7221
  %7223 = vrot.lane.b32.xlu0 %v5486, 28
  %v7224 = vpop.permute.xlu0 %7223
  %7225 = vrot.lane.b32.xlu0 %v5487, 28
  %v7226 = vpop.permute.xlu0 %7225
  %7227 = vrot.lane.b32.xlu0 %v5488, 28
  %v7228 = vpop.permute.xlu0 %7227
  %7229 = vrot.lane.b32.xlu0 %v5489, 28
  %v7230 = vpop.permute.xlu0 %7229
  %7231 = vrot.lane.b32.xlu0 %v5490, 28
  %v7232 = vpop.permute.xlu0 %7231
  %7233 = vrot.lane.b32.xlu0 %v5491, 28
  %v7234 = vpop.permute.xlu0 %7233
  %7235 = vrot.lane.b32.xlu0 %v5492, 28
  %v7236 = vpop.permute.xlu0 %7235
  %7237 = vrot.lane.b32.xlu0 %v5493, 28
  %v7238 = vpop.permute.xlu0 %7237
  %7239 = vrot.lane.b32.xlu0 %v5494, 28
  %v7240 = vpop.permute.xlu0 %7239
  %7241 = vrot.lane.b32.xlu0 %v5495, 28
  %v7242 = vpop.permute.xlu0 %7241
  %7243 = vrot.lane.b32.xlu0 %v5496, 28
  %v7244 = vpop.permute.xlu0 %7243
  %7245 = vrot.lane.b32.xlu0 %v5497, 28
  %v7246 = vpop.permute.xlu0 %7245
  %7247 = vrot.lane.b32.xlu0 %v5498, 28
  %v7248 = vpop.permute.xlu0 %7247
  %7249 = vrot.lane.b32.xlu0 %v5499, 28
  %v7250 = vpop.permute.xlu0 %7249
  %7251 = vrot.lane.b32.xlu0 %v5500, 28
  %v7252 = vpop.permute.xlu0 %7251
  %7253 = vrot.lane.b32.xlu0 %v5501, 28
  %v7254 = vpop.permute.xlu0 %7253
  %7255 = vrot.lane.b32.xlu0 %v5502, 28
  %v7256 = vpop.permute.xlu0 %7255
  %7257 = vrot.lane.b32.xlu0 %v5503, 28
  %v7258 = vpop.permute.xlu0 %7257
  %7259 = vrot.lane.b32.xlu0 %v5504, 28
  %v7260 = vpop.permute.xlu0 %7259
  %7261 = vrot.lane.b32.xlu0 %v5505, 28
  %v7262 = vpop.permute.xlu0 %7261
  %7263 = vrot.lane.b32.xlu0 %v5506, 28
  %v7264 = vpop.permute.xlu0 %7263
  %7265 = vrot.lane.b32.xlu0 %v5507, 28
  %v7266 = vpop.permute.xlu0 %7265
  %7267 = vrot.lane.b32.xlu0 %v5508, 28
  %v7268 = vpop.permute.xlu0 %7267
  %7269 = vrot.lane.b32.xlu0 %v5509, 28
  %v7270 = vpop.permute.xlu0 %7269
  %7271 = vrot.lane.b32.xlu0 %v5510, 28
  %v7272 = vpop.permute.xlu0 %7271
  %7273 = vrot.lane.b32.xlu0 %v5511, 28
  %v7274 = vpop.permute.xlu0 %7273
  %7275 = vrot.lane.b32.xlu0 %v5512, 28
  %v7276 = vpop.permute.xlu0 %7275
  %7277 = vrot.lane.b32.xlu0 %v5513, 28
  %v7278 = vpop.permute.xlu0 %7277
  %7279 = vrot.lane.b32.xlu0 %v5514, 28
  %v7280 = vpop.permute.xlu0 %7279
  %7281 = vrot.lane.b32.xlu0 %v5515, 28
  %v7282 = vpop.permute.xlu0 %7281
  %7283 = vrot.lane.b32.xlu0 %v5516, 28
  %v7284 = vpop.permute.xlu0 %7283
  %7285 = vrot.lane.b32.xlu0 %v5517, 28
  %v7286 = vpop.permute.xlu0 %7285
  %7287 = vrot.lane.b32.xlu0 %v5518, 28
  %v7288 = vpop.permute.xlu0 %7287
  %7289 = vrot.lane.b32.xlu0 %v5519, 28
  %v7290 = vpop.permute.xlu0 %7289
  %7291 = vrot.lane.b32.xlu0 %v5520, 28
  %v7292 = vpop.permute.xlu0 %7291
  %7293 = vrot.lane.b32.xlu0 %v5521, 28
  %v7294 = vpop.permute.xlu0 %7293
  %7295 = vrot.lane.b32.xlu0 %v5522, 28
  %v7296 = vpop.permute.xlu0 %7295
  %7297 = vrot.lane.b32.xlu0 %v5523, 28
  %v7298 = vpop.permute.xlu0 %7297
  %7299 = vrot.lane.b32.xlu0 %v5524, 28
  %v7300 = vpop.permute.xlu0 %7299
  %7301 = vrot.lane.b32.xlu0 %v5525, 28
  %v7302 = vpop.permute.xlu0 %7301
  %7303 = vrot.lane.b32.xlu0 %v5526, 28
  %v7304 = vpop.permute.xlu0 %7303
  %7305 = vrot.lane.b32.xlu0 %v5527, 28
  %v7306 = vpop.permute.xlu0 %7305
  %7307 = vrot.lane.b32.xlu0 %v5528, 28
  %v7308 = vpop.permute.xlu0 %7307
  %7309 = vrot.lane.b32.xlu0 %v5529, 28
  %v7310 = vpop.permute.xlu0 %7309
  %7311 = vrot.lane.b32.xlu0 %v5530, 28
  %v7312 = vpop.permute.xlu0 %7311
  %7313 = vrot.lane.b32.xlu0 %v5531, 28
  %v7314 = vpop.permute.xlu0 %7313
  %7315 = vrot.lane.b32.xlu0 %v5532, 28
  %v7316 = vpop.permute.xlu0 %7315
  %7317 = vrot.lane.b32.xlu0 %v5533, 28
  %v7318 = vpop.permute.xlu0 %7317
  %7319 = vrot.lane.b32.xlu0 %v5534, 28
  %v7320 = vpop.permute.xlu0 %7319
  %7321 = vrot.lane.b32.xlu0 %v5535, 28
  %v7322 = vpop.permute.xlu0 %7321
  %7323 = vrot.lane.b32.xlu0 %v5536, 28
  %v7324 = vpop.permute.xlu0 %7323
  %7325 = vrot.lane.b32.xlu0 %v5537, 28
  %v7326 = vpop.permute.xlu0 %7325
  %7327 = vrot.lane.b32.xlu0 %v5538, 28
  %v7328 = vpop.permute.xlu0 %7327
  %7329 = vrot.lane.b32.xlu0 %v5539, 28
  %v7330 = vpop.permute.xlu0 %7329
  %7331 = vrot.lane.b32.xlu0 %v5540, 28
  %v7332 = vpop.permute.xlu0 %7331
  %7461 = vrot.lane.b32.xlu0 %v5541, 32
  %v7462 = vpop.permute.xlu0 %7461
  %7463 = vrot.lane.b32.xlu0 %v5542, 32
  %v7464 = vpop.permute.xlu0 %7463
  %7465 = vrot.lane.b32.xlu0 %v5543, 32
  %v7466 = vpop.permute.xlu0 %7465
  %7467 = vrot.lane.b32.xlu0 %v5544, 32
  %v7468 = vpop.permute.xlu0 %7467
  %7469 = vrot.lane.b32.xlu0 %v5545, 32
  %v7470 = vpop.permute.xlu0 %7469
  %7471 = vrot.lane.b32.xlu0 %v5546, 32
  %v7472 = vpop.permute.xlu0 %7471
  %7473 = vrot.lane.b32.xlu0 %v5547, 32
  %v7474 = vpop.permute.xlu0 %7473
  %7475 = vrot.lane.b32.xlu0 %v5548, 32
  %v7476 = vpop.permute.xlu0 %7475
  %7477 = vrot.lane.b32.xlu0 %v5549, 32
  %v7478 = vpop.permute.xlu0 %7477
  %7479 = vrot.lane.b32.xlu0 %v5550, 32
  %v7480 = vpop.permute.xlu0 %7479
  %7481 = vrot.lane.b32.xlu0 %v5551, 32
  %v7482 = vpop.permute.xlu0 %7481
  %7483 = vrot.lane.b32.xlu0 %v5552, 32
  %v7484 = vpop.permute.xlu0 %7483
  %7485 = vrot.lane.b32.xlu0 %v5553, 32
  %v7486 = vpop.permute.xlu0 %7485
  %7487 = vrot.lane.b32.xlu0 %v5554, 32
  %v7488 = vpop.permute.xlu0 %7487
  %7489 = vrot.lane.b32.xlu0 %v5555, 32
  %v7490 = vpop.permute.xlu0 %7489
  %7491 = vrot.lane.b32.xlu0 %v5556, 32
  %v7492 = vpop.permute.xlu0 %7491
  %7493 = vrot.lane.b32.xlu0 %v5557, 32
  %v7494 = vpop.permute.xlu0 %7493
  %7495 = vrot.lane.b32.xlu0 %v5558, 32
  %v7496 = vpop.permute.xlu0 %7495
  %7497 = vrot.lane.b32.xlu0 %v5559, 32
  %v7498 = vpop.permute.xlu0 %7497
  %7499 = vrot.lane.b32.xlu0 %v5560, 32
  %v7500 = vpop.permute.xlu0 %7499
  %7501 = vrot.lane.b32.xlu0 %v5561, 32
  %v7502 = vpop.permute.xlu0 %7501
  %7503 = vrot.lane.b32.xlu0 %v5562, 32
  %v7504 = vpop.permute.xlu0 %7503
  %7505 = vrot.lane.b32.xlu0 %v5563, 32
  %v7506 = vpop.permute.xlu0 %7505
  %7507 = vrot.lane.b32.xlu0 %v5564, 32
  %v7508 = vpop.permute.xlu0 %7507
  %7509 = vrot.lane.b32.xlu0 %v5565, 32
  %v7510 = vpop.permute.xlu0 %7509
  %7511 = vrot.lane.b32.xlu0 %v5566, 32
  %v7512 = vpop.permute.xlu0 %7511
  %7513 = vrot.lane.b32.xlu0 %v5567, 32
  %v7514 = vpop.permute.xlu0 %7513
  %7515 = vrot.lane.b32.xlu0 %v5568, 32
  %v7516 = vpop.permute.xlu0 %7515
  %7517 = vrot.lane.b32.xlu0 %v5569, 32
  %v7518 = vpop.permute.xlu0 %7517
  %7519 = vrot.lane.b32.xlu0 %v5570, 32
  %v7520 = vpop.permute.xlu0 %7519
  %7521 = vrot.lane.b32.xlu0 %v5571, 32
  %v7522 = vpop.permute.xlu0 %7521
  %7523 = vrot.lane.b32.xlu0 %v5572, 32
  %v7524 = vpop.permute.xlu0 %7523
  %7525 = vrot.lane.b32.xlu0 %v5573, 32
  %v7526 = vpop.permute.xlu0 %7525
  %7527 = vrot.lane.b32.xlu0 %v5574, 32
  %v7528 = vpop.permute.xlu0 %7527
  %7529 = vrot.lane.b32.xlu0 %v5575, 32
  %v7530 = vpop.permute.xlu0 %7529
  %7531 = vrot.lane.b32.xlu0 %v5576, 32
  %v7532 = vpop.permute.xlu0 %7531
  %7533 = vrot.lane.b32.xlu0 %v5577, 32
  %v7534 = vpop.permute.xlu0 %7533
  %7535 = vrot.lane.b32.xlu0 %v5578, 32
  %v7536 = vpop.permute.xlu0 %7535
  %7537 = vrot.lane.b32.xlu0 %v5579, 32
  %v7538 = vpop.permute.xlu0 %7537
  %7539 = vrot.lane.b32.xlu0 %v5580, 32
  %v7540 = vpop.permute.xlu0 %7539
  %7541 = vrot.lane.b32.xlu0 %v5581, 32
  %v7542 = vpop.permute.xlu0 %7541
  %7543 = vrot.lane.b32.xlu0 %v5582, 32
  %v7544 = vpop.permute.xlu0 %7543
  %7545 = vrot.lane.b32.xlu0 %v5583, 32
  %v7546 = vpop.permute.xlu0 %7545
  %7547 = vrot.lane.b32.xlu0 %v5584, 32
  %v7548 = vpop.permute.xlu0 %7547
  %7549 = vrot.lane.b32.xlu0 %v5585, 32
  %v7550 = vpop.permute.xlu0 %7549
  %7551 = vrot.lane.b32.xlu0 %v5586, 32
  %v7552 = vpop.permute.xlu0 %7551
  %7553 = vrot.lane.b32.xlu0 %v5587, 32
  %v7554 = vpop.permute.xlu0 %7553
  %7555 = vrot.lane.b32.xlu0 %v5588, 32
  %v7556 = vpop.permute.xlu0 %7555
  %7557 = vrot.lane.b32.xlu0 %v5589, 32
  %v7558 = vpop.permute.xlu0 %7557
  %7559 = vrot.lane.b32.xlu0 %v5590, 32
  %v7560 = vpop.permute.xlu0 %7559
  %7561 = vrot.lane.b32.xlu0 %v5591, 32
  %v7562 = vpop.permute.xlu0 %7561
  %7563 = vrot.lane.b32.xlu0 %v5592, 32
  %v7564 = vpop.permute.xlu0 %7563
  %7565 = vrot.lane.b32.xlu0 %v5593, 32
  %v7566 = vpop.permute.xlu0 %7565
  %7567 = vrot.lane.b32.xlu0 %v5594, 32
  %v7568 = vpop.permute.xlu0 %7567
  %7569 = vrot.lane.b32.xlu0 %v5595, 32
  %v7570 = vpop.permute.xlu0 %7569
  %7571 = vrot.lane.b32.xlu0 %v5596, 32
  %v7572 = vpop.permute.xlu0 %7571
  %7573 = vrot.lane.b32.xlu0 %v5597, 32
  %v7574 = vpop.permute.xlu0 %7573
  %7575 = vrot.lane.b32.xlu0 %v5598, 32
  %v7576 = vpop.permute.xlu0 %7575
  %7577 = vrot.lane.b32.xlu0 %v5599, 32
  %v7578 = vpop.permute.xlu0 %7577
  %7579 = vrot.lane.b32.xlu0 %v5600, 32
  %v7580 = vpop.permute.xlu0 %7579
  %7581 = vrot.lane.b32.xlu0 %v5601, 32
  %v7582 = vpop.permute.xlu0 %7581
  %7583 = vrot.lane.b32.xlu0 %v5602, 32
  %v7584 = vpop.permute.xlu0 %7583
  %7585 = vrot.lane.b32.xlu0 %v5603, 32
  %v7586 = vpop.permute.xlu0 %7585
  %7587 = vrot.lane.b32.xlu0 %v5604, 32
  %v7588 = vpop.permute.xlu0 %7587
  %v7653 = vsel %vm4597, %v5028, %v5670
  %v7654 = vsel %vm4597, %v5029, %v5672
  %v7655 = vsel %vm4597, %v5030, %v5674
  %v7656 = vsel %vm4597, %v5031, %v5676
  %v7657 = vsel %vm4597, %v5032, %v5678
  %v7658 = vsel %vm4597, %v5033, %v5680
  %v7659 = vsel %vm4597, %v5034, %v5682
  %v7660 = vsel %vm4597, %v5035, %v5684
  %v7661 = vsel %vm4597, %v5036, %v5686
  %v7662 = vsel %vm4597, %v5037, %v5688
  %v7663 = vsel %vm4597, %v5038, %v5690
  %v7664 = vsel %vm4597, %v5039, %v5692
  %v7665 = vsel %vm4597, %v5040, %v5694
  %v7666 = vsel %vm4597, %v5041, %v5696
  %v7667 = vsel %vm4597, %v5042, %v5698
  %v7668 = vsel %vm4597, %v5043, %v5700
  %v7669 = vsel %vm4597, %v5044, %v5702
  %v7670 = vsel %vm4597, %v5045, %v5704
  %v7671 = vsel %vm4597, %v5046, %v5706
  %v7672 = vsel %vm4597, %v5047, %v5708
  %v7673 = vsel %vm4597, %v5048, %v5710
  %v7674 = vsel %vm4597, %v5049, %v5712
  %v7675 = vsel %vm4597, %v5050, %v5714
  %v7676 = vsel %vm4597, %v5051, %v5716
  %v7677 = vsel %vm4597, %v5052, %v5718
  %v7678 = vsel %vm4597, %v5053, %v5720
  %v7679 = vsel %vm4597, %v5054, %v5722
  %v7680 = vsel %vm4597, %v5055, %v5724
  %v7681 = vsel %vm4597, %v5056, %v5726
  %v7682 = vsel %vm4597, %v5057, %v5728
  %v7683 = vsel %vm4597, %v5058, %v5730
  %v7684 = vsel %vm4597, %v5059, %v5732
  %v7685 = vsel %vm4597, %v5060, %v5734
  %v7686 = vsel %vm4597, %v5061, %v5736
  %v7687 = vsel %vm4597, %v5062, %v5738
  %v7688 = vsel %vm4597, %v5063, %v5740
  %v7689 = vsel %vm4597, %v5064, %v5742
  %v7690 = vsel %vm4597, %v5065, %v5744
  %v7691 = vsel %vm4597, %v5066, %v5746
  %v7692 = vsel %vm4597, %v5067, %v5748
  %v7693 = vsel %vm4597, %v5068, %v5750
  %v7694 = vsel %vm4597, %v5069, %v5752
  %v7695 = vsel %vm4597, %v5070, %v5754
  %v7696 = vsel %vm4597, %v5071, %v5756
  %v7697 = vsel %vm4597, %v5072, %v5758
  %v7698 = vsel %vm4597, %v5073, %v5760
  %v7699 = vsel %vm4597, %v5074, %v5762
  %v7700 = vsel %vm4597, %v5075, %v5764
  %v7701 = vsel %vm4597, %v5076, %v5766
  %v7702 = vsel %vm4597, %v5077, %v5768
  %v7703 = vsel %vm4597, %v5078, %v5770
  %v7704 = vsel %vm4597, %v5079, %v5772
  %v7705 = vsel %vm4597, %v5080, %v5774
  %v7706 = vsel %vm4597, %v5081, %v5776
  %v7707 = vsel %vm4597, %v5082, %v5778
  %v7708 = vsel %vm4597, %v5083, %v5780
  %v7709 = vsel %vm4597, %v5084, %v5782
  %v7710 = vsel %vm4597, %v5085, %v5784
  %v7711 = vsel %vm4597, %v5086, %v5786
  %v7712 = vsel %vm4597, %v5087, %v5788
  %v7713 = vsel %vm4597, %v5088, %v5790
  %v7714 = vsel %vm4597, %v5089, %v5792
  %v7715 = vsel %vm4597, %v5090, %v5794
  %v7716 = vsel %vm4597, %v5091, %v5796
  %v7717 = vsel %vm2664, %v7653, %v5926
  %v7718 = vsel %vm2664, %v7654, %v5928
  %v7719 = vsel %vm2664, %v7655, %v5930
  %v7720 = vsel %vm2664, %v7656, %v5932
  %v7721 = vsel %vm2664, %v7657, %v5934
  %v7722 = vsel %vm2664, %v7658, %v5936
  %v7723 = vsel %vm2664, %v7659, %v5938
  %v7724 = vsel %vm2664, %v7660, %v5940
  %v7725 = vsel %vm2664, %v7661, %v5942
  %v7726 = vsel %vm2664, %v7662, %v5944
  %v7727 = vsel %vm2664, %v7663, %v5946
  %v7728 = vsel %vm2664, %v7664, %v5948
  %v7729 = vsel %vm2664, %v7665, %v5950
  %v7730 = vsel %vm2664, %v7666, %v5952
  %v7731 = vsel %vm2664, %v7667, %v5954
  %v7732 = vsel %vm2664, %v7668, %v5956
  %v7733 = vsel %vm2664, %v7669, %v5958
  %v7734 = vsel %vm2664, %v7670, %v5960
  %v7735 = vsel %vm2664, %v7671, %v5962
  %v7736 = vsel %vm2664, %v7672, %v5964
  %v7737 = vsel %vm2664, %v7673, %v5966
  %v7738 = vsel %vm2664, %v7674, %v5968
  %v7739 = vsel %vm2664, %v7675, %v5970
  %v7740 = vsel %vm2664, %v7676, %v5972
  %v7741 = vsel %vm2664, %v7677, %v5974
  %v7742 = vsel %vm2664, %v7678, %v5976
  %v7743 = vsel %vm2664, %v7679, %v5978
  %v7744 = vsel %vm2664, %v7680, %v5980
  %v7745 = vsel %vm2664, %v7681, %v5982
  %v7746 = vsel %vm2664, %v7682, %v5984
  %v7747 = vsel %vm2664, %v7683, %v5986
  %v7748 = vsel %vm2664, %v7684, %v5988
  %v7749 = vsel %vm2664, %v7685, %v5990
  %v7750 = vsel %vm2664, %v7686, %v5992
  %v7751 = vsel %vm2664, %v7687, %v5994
  %v7752 = vsel %vm2664, %v7688, %v5996
  %v7753 = vsel %vm2664, %v7689, %v5998
  %v7754 = vsel %vm2664, %v7690, %v6000
  %v7755 = vsel %vm2664, %v7691, %v6002
  %v7756 = vsel %vm2664, %v7692, %v6004
  %v7757 = vsel %vm2664, %v7693, %v6006
  %v7758 = vsel %vm2664, %v7694, %v6008
  %v7759 = vsel %vm2664, %v7695, %v6010
  %v7760 = vsel %vm2664, %v7696, %v6012
  %v7761 = vsel %vm2664, %v7697, %v6014
  %v7762 = vsel %vm2664, %v7698, %v6016
  %v7763 = vsel %vm2664, %v7699, %v6018
  %v7764 = vsel %vm2664, %v7700, %v6020
  %v7765 = vsel %vm2664, %v7701, %v6022
  %v7766 = vsel %vm2664, %v7702, %v6024
  %v7767 = vsel %vm2664, %v7703, %v6026
  %v7768 = vsel %vm2664, %v7704, %v6028
  %v7769 = vsel %vm2664, %v7705, %v6030
  %v7770 = vsel %vm2664, %v7706, %v6032
  %v7771 = vsel %vm2664, %v7707, %v6034
  %v7772 = vsel %vm2664, %v7708, %v6036
  %v7773 = vsel %vm2664, %v7709, %v6038
  %v7774 = vsel %vm2664, %v7710, %v6040
  %v7775 = vsel %vm2664, %v7711, %v6042
  %v7776 = vsel %vm2664, %v7712, %v6044
  %v7777 = vsel %vm2664, %v7713, %v6046
  %v7778 = vsel %vm2664, %v7714, %v6048
  %v7779 = vsel %vm2664, %v7715, %v6050
  %v7780 = vsel %vm2664, %v7716, %v6052
  %vm7781 = vcmask 97280
  %v7782 = vsel %vm7781, %v7717, %v6182
  %v7783 = vsel %vm7781, %v7718, %v6184
  %v7784 = vsel %vm7781, %v7719, %v6186
  %v7785 = vsel %vm7781, %v7720, %v6188
  %v7786 = vsel %vm7781, %v7721, %v6190
  %v7787 = vsel %vm7781, %v7722, %v6192
  %v7788 = vsel %vm7781, %v7723, %v6194
  %v7789 = vsel %vm7781, %v7724, %v6196
  %v7790 = vsel %vm7781, %v7725, %v6198
  %v7791 = vsel %vm7781, %v7726, %v6200
  %v7792 = vsel %vm7781, %v7727, %v6202
  %v7793 = vsel %vm7781, %v7728, %v6204
  %v7794 = vsel %vm7781, %v7729, %v6206
  %v7795 = vsel %vm7781, %v7730, %v6208
  %v7796 = vsel %vm7781, %v7731, %v6210
  %v7797 = vsel %vm7781, %v7732, %v6212
  %v7798 = vsel %vm7781, %v7733, %v6214
  %v7799 = vsel %vm7781, %v7734, %v6216
  %v7800 = vsel %vm7781, %v7735, %v6218
  %v7801 = vsel %vm7781, %v7736, %v6220
  %v7802 = vsel %vm7781, %v7737, %v6222
  %v7803 = vsel %vm7781, %v7738, %v6224
  %v7804 = vsel %vm7781, %v7739, %v6226
  %v7805 = vsel %vm7781, %v7740, %v6228
  %v7806 = vsel %vm7781, %v7741, %v6230
  %v7807 = vsel %vm7781, %v7742, %v6232
  %v7808 = vsel %vm7781, %v7743, %v6234
  %v7809 = vsel %vm7781, %v7744, %v6236
  %v7810 = vsel %vm7781, %v7745, %v6238
  %v7811 = vsel %vm7781, %v7746, %v6240
  %v7812 = vsel %vm7781, %v7747, %v6242
  %v7813 = vsel %vm7781, %v7748, %v6244
  %v7814 = vsel %vm7781, %v7749, %v6246
  %v7815 = vsel %vm7781, %v7750, %v6248
  %v7816 = vsel %vm7781, %v7751, %v6250
  %v7817 = vsel %vm7781, %v7752, %v6252
  %v7818 = vsel %vm7781, %v7753, %v6254
  %v7819 = vsel %vm7781, %v7754, %v6256
  %v7820 = vsel %vm7781, %v7755, %v6258
  %v7821 = vsel %vm7781, %v7756, %v6260
  %v7822 = vsel %vm7781, %v7757, %v6262
  %v7823 = vsel %vm7781, %v7758, %v6264
  %v7824 = vsel %vm7781, %v7759, %v6266
  %v7825 = vsel %vm7781, %v7760, %v6268
  %v7826 = vsel %vm7781, %v7761, %v6270
  %v7827 = vsel %vm7781, %v7762, %v6272
  %v7828 = vsel %vm7781, %v7763, %v6274
  %v7829 = vsel %vm7781, %v7764, %v6276
  %v7830 = vsel %vm7781, %v7765, %v6278
  %v7831 = vsel %vm7781, %v7766, %v6280
  %v7832 = vsel %vm7781, %v7767, %v6282
  %v7833 = vsel %vm7781, %v7768, %v6284
  %v7834 = vsel %vm7781, %v7769, %v6286
  %v7835 = vsel %vm7781, %v7770, %v6288
  %v7836 = vsel %vm7781, %v7771, %v6290
  %v7837 = vsel %vm7781, %v7772, %v6292
  %v7838 = vsel %vm7781, %v7773, %v6294
  %v7839 = vsel %vm7781, %v7774, %v6296
  %v7840 = vsel %vm7781, %v7775, %v6298
  %v7841 = vsel %vm7781, %v7776, %v6300
  %v7842 = vsel %vm7781, %v7777, %v6302
  %v7843 = vsel %vm7781, %v7778, %v6304
  %v7844 = vsel %vm7781, %v7779, %v6306
  %v7845 = vsel %vm7781, %v7780, %v6308
  %v7846 = vsel %vm2729, %v7782, %v6438
  %v7847 = vsel %vm2729, %v7783, %v6440
  %v7848 = vsel %vm2729, %v7784, %v6442
  %v7849 = vsel %vm2729, %v7785, %v6444
  %v7850 = vsel %vm2729, %v7786, %v6446
  %v7851 = vsel %vm2729, %v7787, %v6448
  %v7852 = vsel %vm2729, %v7788, %v6450
  %v7853 = vsel %vm2729, %v7789, %v6452
  %v7854 = vsel %vm2729, %v7790, %v6454
  %v7855 = vsel %vm2729, %v7791, %v6456
  %v7856 = vsel %vm2729, %v7792, %v6458
  %v7857 = vsel %vm2729, %v7793, %v6460
  %v7858 = vsel %vm2729, %v7794, %v6462
  %v7859 = vsel %vm2729, %v7795, %v6464
  %v7860 = vsel %vm2729, %v7796, %v6466
  %v7861 = vsel %vm2729, %v7797, %v6468
  %v7862 = vsel %vm2729, %v7798, %v6470
  %v7863 = vsel %vm2729, %v7799, %v6472
  %v7864 = vsel %vm2729, %v7800, %v6474
  %v7865 = vsel %vm2729, %v7801, %v6476
  %v7866 = vsel %vm2729, %v7802, %v6478
  %v7867 = vsel %vm2729, %v7803, %v6480
  %v7868 = vsel %vm2729, %v7804, %v6482
  %v7869 = vsel %vm2729, %v7805, %v6484
  %v7870 = vsel %vm2729, %v7806, %v6486
  %v7871 = vsel %vm2729, %v7807, %v6488
  %v7872 = vsel %vm2729, %v7808, %v6490
  %v7873 = vsel %vm2729, %v7809, %v6492
  %v7874 = vsel %vm2729, %v7810, %v6494
  %v7875 = vsel %vm2729, %v7811, %v6496
  %v7876 = vsel %vm2729, %v7812, %v6498
  %v7877 = vsel %vm2729, %v7813, %v6500
  %v7878 = vsel %vm2729, %v7814, %v6502
  %v7879 = vsel %vm2729, %v7815, %v6504
  %v7880 = vsel %vm2729, %v7816, %v6506
  %v7881 = vsel %vm2729, %v7817, %v6508
  %v7882 = vsel %vm2729, %v7818, %v6510
  %v7883 = vsel %vm2729, %v7819, %v6512
  %v7884 = vsel %vm2729, %v7820, %v6514
  %v7885 = vsel %vm2729, %v7821, %v6516
  %v7886 = vsel %vm2729, %v7822, %v6518
  %v7887 = vsel %vm2729, %v7823, %v6520
  %v7888 = vsel %vm2729, %v7824, %v6522
  %v7889 = vsel %vm2729, %v7825, %v6524
  %v7890 = vsel %vm2729, %v7826, %v6526
  %v7891 = vsel %vm2729, %v7827, %v6528
  %v7892 = vsel %vm2729, %v7828, %v6530
  %v7893 = vsel %vm2729, %v7829, %v6532
  %v7894 = vsel %vm2729, %v7830, %v6534
  %v7895 = vsel %vm2729, %v7831, %v6536
  %v7896 = vsel %vm2729, %v7832, %v6538
  %v7897 = vsel %vm2729, %v7833, %v6540
  %v7898 = vsel %vm2729, %v7834, %v6542
  %v7899 = vsel %vm2729, %v7835, %v6544
  %v7900 = vsel %vm2729, %v7836, %v6546
  %v7901 = vsel %vm2729, %v7837, %v6548
  %v7902 = vsel %vm2729, %v7838, %v6550
  %v7903 = vsel %vm2729, %v7839, %v6552
  %v7904 = vsel %vm2729, %v7840, %v6554
  %v7905 = vsel %vm2729, %v7841, %v6556
  %v7906 = vsel %vm2729, %v7842, %v6558
  %v7907 = vsel %vm2729, %v7843, %v6560
  %v7908 = vsel %vm2729, %v7844, %v6562
  %v7909 = vsel %vm2729, %v7845, %v6564
  %vm7910 = vcmask 162816
  %v7911 = vsel %vm7910, %v7846, %v6694
  %v7912 = vsel %vm7910, %v7847, %v6696
  %v7913 = vsel %vm7910, %v7848, %v6698
  %v7914 = vsel %vm7910, %v7849, %v6700
  %v7915 = vsel %vm7910, %v7850, %v6702
  %v7916 = vsel %vm7910, %v7851, %v6704
  %v7917 = vsel %vm7910, %v7852, %v6706
  %v7918 = vsel %vm7910, %v7853, %v6708
  %v7919 = vsel %vm7910, %v7854, %v6710
  %v7920 = vsel %vm7910, %v7855, %v6712
  %v7921 = vsel %vm7910, %v7856, %v6714
  %v7922 = vsel %vm7910, %v7857, %v6716
  %v7923 = vsel %vm7910, %v7858, %v6718
  %v7924 = vsel %vm7910, %v7859, %v6720
  %v7925 = vsel %vm7910, %v7860, %v6722
  %v7926 = vsel %vm7910, %v7861, %v6724
  %v7927 = vsel %vm7910, %v7862, %v6726
  %v7928 = vsel %vm7910, %v7863, %v6728
  %v7929 = vsel %vm7910, %v7864, %v6730
  %v7930 = vsel %vm7910, %v7865, %v6732
  %v7931 = vsel %vm7910, %v7866, %v6734
  %v7932 = vsel %vm7910, %v7867, %v6736
  %v7933 = vsel %vm7910, %v7868, %v6738
  %v7934 = vsel %vm7910, %v7869, %v6740
  %v7935 = vsel %vm7910, %v7870, %v6742
  %v7936 = vsel %vm7910, %v7871, %v6744
  %v7937 = vsel %vm7910, %v7872, %v6746
  %v7938 = vsel %vm7910, %v7873, %v6748
  %v7939 = vsel %vm7910, %v7874, %v6750
  %v7940 = vsel %vm7910, %v7875, %v6752
  %v7941 = vsel %vm7910, %v7876, %v6754
  %v7942 = vsel %vm7910, %v7877, %v6756
  %v7943 = vsel %vm7910, %v7878, %v6758
  %v7944 = vsel %vm7910, %v7879, %v6760
  %v7945 = vsel %vm7910, %v7880, %v6762
  %v7946 = vsel %vm7910, %v7881, %v6764
  %v7947 = vsel %vm7910, %v7882, %v6766
  %v7948 = vsel %vm7910, %v7883, %v6768
  %v7949 = vsel %vm7910, %v7884, %v6770
  %v7950 = vsel %vm7910, %v7885, %v6772
  %v7951 = vsel %vm7910, %v7886, %v6774
  %v7952 = vsel %vm7910, %v7887, %v6776
  %v7953 = vsel %vm7910, %v7888, %v6778
  %v7954 = vsel %vm7910, %v7889, %v6780
  %v7955 = vsel %vm7910, %v7890, %v6782
  %v7956 = vsel %vm7910, %v7891, %v6784
  %v7957 = vsel %vm7910, %v7892, %v6786
  %v7958 = vsel %vm7910, %v7893, %v6788
  %v7959 = vsel %vm7910, %v7894, %v6790
  %v7960 = vsel %vm7910, %v7895, %v6792
  %v7961 = vsel %vm7910, %v7896, %v6794
  %v7962 = vsel %vm7910, %v7897, %v6796
  %v7963 = vsel %vm7910, %v7898, %v6798
  %v7964 = vsel %vm7910, %v7899, %v6800
  %v7965 = vsel %vm7910, %v7900, %v6802
  %v7966 = vsel %vm7910, %v7901, %v6804
  %v7967 = vsel %vm7910, %v7902, %v6806
  %v7968 = vsel %vm7910, %v7903, %v6808
  %v7969 = vsel %vm7910, %v7904, %v6810
  %v7970 = vsel %vm7910, %v7905, %v6812
  %v7971 = vsel %vm7910, %v7906, %v6814
  %v7972 = vsel %vm7910, %v7907, %v6816
  %v7973 = vsel %vm7910, %v7908, %v6818
  %v7974 = vsel %vm7910, %v7909, %v6820
  %v7975 = vsel %vm2794, %v7911, %v6950
  %v7976 = vsel %vm2794, %v7912, %v6952
  %v7977 = vsel %vm2794, %v7913, %v6954
  %v7978 = vsel %vm2794, %v7914, %v6956
  %v7979 = vsel %vm2794, %v7915, %v6958
  %v7980 = vsel %vm2794, %v7916, %v6960
  %v7981 = vsel %vm2794, %v7917, %v6962
  %v7982 = vsel %vm2794, %v7918, %v6964
  %v7983 = vsel %vm2794, %v7919, %v6966
  %v7984 = vsel %vm2794, %v7920, %v6968
  %v7985 = vsel %vm2794, %v7921, %v6970
  %v7986 = vsel %vm2794, %v7922, %v6972
  %v7987 = vsel %vm2794, %v7923, %v6974
  %v7988 = vsel %vm2794, %v7924, %v6976
  %v7989 = vsel %vm2794, %v7925, %v6978
  %v7990 = vsel %vm2794, %v7926, %v6980
  %v7991 = vsel %vm2794, %v7927, %v6982
  %v7992 = vsel %vm2794, %v7928, %v6984
  %v7993 = vsel %vm2794, %v7929, %v6986
  %v7994 = vsel %vm2794, %v7930, %v6988
  %v7995 = vsel %vm2794, %v7931, %v6990
  %v7996 = vsel %vm2794, %v7932, %v6992
  %v7997 = vsel %vm2794, %v7933, %v6994
  %v7998 = vsel %vm2794, %v7934, %v6996
  %v7999 = vsel %vm2794, %v7935, %v6998
  %v8000 = vsel %vm2794, %v7936, %v7000
  %v8001 = vsel %vm2794, %v7937, %v7002
  %v8002 = vsel %vm2794, %v7938, %v7004
  %v8003 = vsel %vm2794, %v7939, %v7006
  %v8004 = vsel %vm2794, %v7940, %v7008
  %v8005 = vsel %vm2794, %v7941, %v7010
  %v8006 = vsel %vm2794, %v7942, %v7012
  %v8007 = vsel %vm2794, %v7943, %v7014
  %v8008 = vsel %vm2794, %v7944, %v7016
  %v8009 = vsel %vm2794, %v7945, %v7018
  %v8010 = vsel %vm2794, %v7946, %v7020
  %v8011 = vsel %vm2794, %v7947, %v7022
  %v8012 = vsel %vm2794, %v7948, %v7024
  %v8013 = vsel %vm2794, %v7949, %v7026
  %v8014 = vsel %vm2794, %v7950, %v7028
  %v8015 = vsel %vm2794, %v7951, %v7030
  %v8016 = vsel %vm2794, %v7952, %v7032
  %v8017 = vsel %vm2794, %v7953, %v7034
  %v8018 = vsel %vm2794, %v7954, %v7036
  %v8019 = vsel %vm2794, %v7955, %v7038
  %v8020 = vsel %vm2794, %v7956, %v7040
  %v8021 = vsel %vm2794, %v7957, %v7042
  %v8022 = vsel %vm2794, %v7958, %v7044
  %v8023 = vsel %vm2794, %v7959, %v7046
  %v8024 = vsel %vm2794, %v7960, %v7048
  %v8025 = vsel %vm2794, %v7961, %v7050
  %v8026 = vsel %vm2794, %v7962, %v7052
  %v8027 = vsel %vm2794, %v7963, %v7054
  %v8028 = vsel %vm2794, %v7964, %v7056
  %v8029 = vsel %vm2794, %v7965, %v7058
  %v8030 = vsel %vm2794, %v7966, %v7060
  %v8031 = vsel %vm2794, %v7967, %v7062
  %v8032 = vsel %vm2794, %v7968, %v7064
  %v8033 = vsel %vm2794, %v7969, %v7066
  %v8034 = vsel %vm2794, %v7970, %v7068
  %v8035 = vsel %vm2794, %v7971, %v7070
  %v8036 = vsel %vm2794, %v7972, %v7072
  %v8037 = vsel %vm2794, %v7973, %v7074
  %v8038 = vsel %vm2794, %v7974, %v7076
  %vm8039 = vcmask 228352
  %v8040 = vsel %vm8039, %v7975, %v7206
  %v8041 = vsel %vm8039, %v7976, %v7208
  %v8042 = vsel %vm8039, %v7977, %v7210
  %v8043 = vsel %vm8039, %v7978, %v7212
  %v8044 = vsel %vm8039, %v7979, %v7214
  %v8045 = vsel %vm8039, %v7980, %v7216
  %v8046 = vsel %vm8039, %v7981, %v7218
  %v8047 = vsel %vm8039, %v7982, %v7220
  %v8048 = vsel %vm8039, %v7983, %v7222
  %v8049 = vsel %vm8039, %v7984, %v7224
  %v8050 = vsel %vm8039, %v7985, %v7226
  %v8051 = vsel %vm8039, %v7986, %v7228
  %v8052 = vsel %vm8039, %v7987, %v7230
  %v8053 = vsel %vm8039, %v7988, %v7232
  %v8054 = vsel %vm8039, %v7989, %v7234
  %v8055 = vsel %vm8039, %v7990, %v7236
  %v8056 = vsel %vm8039, %v7991, %v7238
  %v8057 = vsel %vm8039, %v7992, %v7240
  %v8058 = vsel %vm8039, %v7993, %v7242
  %v8059 = vsel %vm8039, %v7994, %v7244
  %v8060 = vsel %vm8039, %v7995, %v7246
  %v8061 = vsel %vm8039, %v7996, %v7248
  %v8062 = vsel %vm8039, %v7997, %v7250
  %v8063 = vsel %vm8039, %v7998, %v7252
  %v8064 = vsel %vm8039, %v7999, %v7254
  %v8065 = vsel %vm8039, %v8000, %v7256
  %v8066 = vsel %vm8039, %v8001, %v7258
  %v8067 = vsel %vm8039, %v8002, %v7260
  %v8068 = vsel %vm8039, %v8003, %v7262
  %v8069 = vsel %vm8039, %v8004, %v7264
  %v8070 = vsel %vm8039, %v8005, %v7266
  %v8071 = vsel %vm8039, %v8006, %v7268
  %v8072 = vsel %vm8039, %v8007, %v7270
  %v8073 = vsel %vm8039, %v8008, %v7272
  %v8074 = vsel %vm8039, %v8009, %v7274
  %v8075 = vsel %vm8039, %v8010, %v7276
  %v8076 = vsel %vm8039, %v8011, %v7278
  %v8077 = vsel %vm8039, %v8012, %v7280
  %v8078 = vsel %vm8039, %v8013, %v7282
  %v8079 = vsel %vm8039, %v8014, %v7284
  %v8080 = vsel %vm8039, %v8015, %v7286
  %v8081 = vsel %vm8039, %v8016, %v7288
  %v8082 = vsel %vm8039, %v8017, %v7290
  %v8083 = vsel %vm8039, %v8018, %v7292
  %v8084 = vsel %vm8039, %v8019, %v7294
  %v8085 = vsel %vm8039, %v8020, %v7296
  %v8086 = vsel %vm8039, %v8021, %v7298
  %v8087 = vsel %vm8039, %v8022, %v7300
  %v8088 = vsel %vm8039, %v8023, %v7302
  %v8089 = vsel %vm8039, %v8024, %v7304
  %v8090 = vsel %vm8039, %v8025, %v7306
  %v8091 = vsel %vm8039, %v8026, %v7308
  %v8092 = vsel %vm8039, %v8027, %v7310
  %v8093 = vsel %vm8039, %v8028, %v7312
  %v8094 = vsel %vm8039, %v8029, %v7314
  %v8095 = vsel %vm8039, %v8030, %v7316
  %v8096 = vsel %vm8039, %v8031, %v7318
  %v8097 = vsel %vm8039, %v8032, %v7320
  %v8098 = vsel %vm8039, %v8033, %v7322
  %v8099 = vsel %vm8039, %v8034, %v7324
  %v8100 = vsel %vm8039, %v8035, %v7326
  %v8101 = vsel %vm8039, %v8036, %v7328
  %v8102 = vsel %vm8039, %v8037, %v7330
  %v8103 = vsel %vm8039, %v8038, %v7332
  %v8104 = vsel %vm2859, %v8040, %v7462
  %v8105 = vsel %vm2859, %v8041, %v7464
  %v8106 = vsel %vm2859, %v8042, %v7466
  %v8107 = vsel %vm2859, %v8043, %v7468
  %v8108 = vsel %vm2859, %v8044, %v7470
  %v8109 = vsel %vm2859, %v8045, %v7472
  %v8110 = vsel %vm2859, %v8046, %v7474
  %v8111 = vsel %vm2859, %v8047, %v7476
  %v8112 = vsel %vm2859, %v8048, %v7478
  %v8113 = vsel %vm2859, %v8049, %v7480
  %v8114 = vsel %vm2859, %v8050, %v7482
  %v8115 = vsel %vm2859, %v8051, %v7484
  %v8116 = vsel %vm2859, %v8052, %v7486
  %v8117 = vsel %vm2859, %v8053, %v7488
  %v8118 = vsel %vm2859, %v8054, %v7490
  %v8119 = vsel %vm2859, %v8055, %v7492
  %v8120 = vsel %vm2859, %v8056, %v7494
  %v8121 = vsel %vm2859, %v8057, %v7496
  %v8122 = vsel %vm2859, %v8058, %v7498
  %v8123 = vsel %vm2859, %v8059, %v7500
  %v8124 = vsel %vm2859, %v8060, %v7502
  %v8125 = vsel %vm2859, %v8061, %v7504
  %v8126 = vsel %vm2859, %v8062, %v7506
  %v8127 = vsel %vm2859, %v8063, %v7508
  %v8128 = vsel %vm2859, %v8064, %v7510
  %v8129 = vsel %vm2859, %v8065, %v7512
  %v8130 = vsel %vm2859, %v8066, %v7514
  %v8131 = vsel %vm2859, %v8067, %v7516
  %v8132 = vsel %vm2859, %v8068, %v7518
  %v8133 = vsel %vm2859, %v8069, %v7520
  %v8134 = vsel %vm2859, %v8070, %v7522
  %v8135 = vsel %vm2859, %v8071, %v7524
  %v8136 = vsel %vm2859, %v8072, %v7526
  %v8137 = vsel %vm2859, %v8073, %v7528
  %v8138 = vsel %vm2859, %v8074, %v7530
  %v8139 = vsel %vm2859, %v8075, %v7532
  %v8140 = vsel %vm2859, %v8076, %v7534
  %v8141 = vsel %vm2859, %v8077, %v7536
  %v8142 = vsel %vm2859, %v8078, %v7538
  %v8143 = vsel %vm2859, %v8079, %v7540
  %v8144 = vsel %vm2859, %v8080, %v7542
  %v8145 = vsel %vm2859, %v8081, %v7544
  %v8146 = vsel %vm2859, %v8082, %v7546
  %v8147 = vsel %vm2859, %v8083, %v7548
  %v8148 = vsel %vm2859, %v8084, %v7550
  %v8149 = vsel %vm2859, %v8085, %v7552
  %v8150 = vsel %vm2859, %v8086, %v7554
  %v8151 = vsel %vm2859, %v8087, %v7556
  %v8152 = vsel %vm2859, %v8088, %v7558
  %v8153 = vsel %vm2859, %v8089, %v7560
  %v8154 = vsel %vm2859, %v8090, %v7562
  %v8155 = vsel %vm2859, %v8091, %v7564
  %v8156 = vsel %vm2859, %v8092, %v7566
  %v8157 = vsel %vm2859, %v8093, %v7568
  %v8158 = vsel %vm2859, %v8094, %v7570
  %v8159 = vsel %vm2859, %v8095, %v7572
  %v8160 = vsel %vm2859, %v8096, %v7574
  %v8161 = vsel %vm2859, %v8097, %v7576
  %v8162 = vsel %vm2859, %v8098, %v7578
  %v8163 = vsel %vm2859, %v8099, %v7580
  %v8164 = vsel %vm2859, %v8100, %v7582
  %v8165 = vsel %vm2859, %v8101, %v7584
  %v8166 = vsel %vm2859, %v8102, %v7586
  %v8167 = vsel %vm2859, %v8103, %v7588
  %v8168 = vld [vmem:[%s3] sm:$0xff]
  %v8169 = vld [vmem:[%s3 + $0x8] sm:$0xff]
  %v8170 = vld [vmem:[%s3 + $0x10] sm:$0xff]
  %v8171 = vld [vmem:[%s3 + $0x18] sm:$0xff]
  %v8172 = vld [vmem:[%s3 + $0x20] sm:$0xf]
  %v8173 = vld [vmem:[%s4] sm:$0x1]
  %v8175 = vperm.slane %v8173, 0
  %vm8177 = vcmask 293888
  %v8179 = vsel %vm8177, %v8104, 0
  %v8182 = vsel %vm8177, %v8105, 0
  %v8185 = vsel %vm8177, %v8106, 0
  %v8188 = vsel %vm8177, %v8107, 0
  %v8191 = vsel %vm8177, %v8108, 0
  %v8194 = vsel %vm8177, %v8109, 0
  %v8197 = vsel %vm8177, %v8110, 0
  %v8200 = vsel %vm8177, %v8111, 0
  %v8203 = vsel %vm8177, %v8112, 0
  %v8206 = vsel %vm8177, %v8113, 0
  %v8209 = vsel %vm8177, %v8114, 0
  %v8212 = vsel %vm8177, %v8115, 0
  %v8215 = vsel %vm8177, %v8116, 0
  %v8218 = vsel %vm8177, %v8117, 0
  %v8221 = vsel %vm8177, %v8118, 0
  %v8224 = vsel %vm8177, %v8119, 0
  %v8227 = vsel %vm8177, %v8120, 0
  %v8230 = vsel %vm8177, %v8121, 0
  %v8233 = vsel %vm8177, %v8122, 0
  %v8236 = vsel %vm8177, %v8123, 0
  %v8239 = vsel %vm8177, %v8124, 0
  %v8242 = vsel %vm8177, %v8125, 0
  %v8245 = vsel %vm8177, %v8126, 0
  %v8248 = vsel %vm8177, %v8127, 0
  %v8251 = vsel %vm8177, %v8128, 0
  %v8254 = vsel %vm8177, %v8129, 0
  %v8257 = vsel %vm8177, %v8130, 0
  %v8260 = vsel %vm8177, %v8131, 0
  %v8263 = vsel %vm8177, %v8132, 0
  %v8266 = vsel %vm8177, %v8133, 0
  %v8269 = vsel %vm8177, %v8134, 0
  %v8272 = vsel %vm8177, %v8135, 0
  %v8275 = vsel %vm8177, %v8136, 0
  %v8278 = vsel %vm8177, %v8137, 0
  %v8281 = vsel %vm8177, %v8138, 0
  %v8284 = vsel %vm8177, %v8139, 0
  %v8287 = vsel %vm8177, %v8140, 0
  %v8290 = vsel %vm8177, %v8141, 0
  %v8293 = vsel %vm8177, %v8142, 0
  %v8296 = vsel %vm8177, %v8143, 0
  %v8299 = vsel %vm8177, %v8144, 0
  %v8302 = vsel %vm8177, %v8145, 0
  %v8305 = vsel %vm8177, %v8146, 0
  %v8308 = vsel %vm8177, %v8147, 0
  %v8311 = vsel %vm8177, %v8148, 0
  %v8314 = vsel %vm8177, %v8149, 0
  %v8317 = vsel %vm8177, %v8150, 0
  %v8320 = vsel %vm8177, %v8151, 0
  %v8323 = vsel %vm8177, %v8152, 0
  %v8326 = vsel %vm8177, %v8153, 0
  %v8329 = vsel %vm8177, %v8154, 0
  %v8332 = vsel %vm8177, %v8155, 0
  %v8335 = vsel %vm8177, %v8156, 0
  %v8338 = vsel %vm8177, %v8157, 0
  %v8341 = vsel %vm8177, %v8158, 0
  %v8344 = vsel %vm8177, %v8159, 0
  %v8347 = vsel %vm8177, %v8160, 0
  %v8350 = vsel %vm8177, %v8161, 0
  %v8353 = vsel %vm8177, %v8162, 0
  %v8356 = vsel %vm8177, %v8163, 0
  %v8359 = vsel %vm8177, %v8164, 0
  %v8362 = vsel %vm8177, %v8165, 0
  %v8365 = vsel %vm8177, %v8166, 0
  %v8368 = vsel %vm8177, %v8167, 0
  %vm8370 = vcmask 1043456
  %v8372 = vsel %vm8370, %v8172, 0
  %8374 = vmatpush.msra.mxu0 0.0
  %8375 = vmatpush.msra.mxu0 0.0
  %8376 = vmatpush.msra.mxu0 0.0
  %8377 = vmatpush.msra.mxu0 0.0
  %8378 = vmatpush.msra.mxu0 0.0
  %8379 = vmatpush.msra.mxu0 0.0
  %8380 = vmatpush.msra.mxu0 0.0
  %8381 = vmatpush.msra.mxu0 0.0
  %8382 = vmatpush.msra.mxu0 0.0
  %8383 = vmatpush.msra.mxu0 0.0
  %8384 = vmatpush.msra.mxu0 0.0
  %8385 = vmatpush.msra.mxu0 %v8372
  %8386 = vmatpush.msra.mxu0 %v8171
  %8387 = vmatpush.msra.mxu0 %v8170
  %8388 = vmatpush.msra.mxu0 %v8169
  %8389 = vmatpush.msra.mxu0 %v8168
  %8390 = vmatmul.f32.gmra.mxu0 %v8179
  %v8391 = vpop.f32.mrf.mxu0
  %v8392 = vadd.f32 %v8175, %v8391
  %8393 = vmatmul.f32.gmra.mxu0 %v8182
  %v8394 = vpop.f32.mrf.mxu0
  %v8395 = vadd.f32 %v8175, %v8394
  %8396 = vmatmul.f32.gmra.mxu0 %v8185
  %v8397 = vpop.f32.mrf.mxu0
  %v8398 = vadd.f32 %v8175, %v8397
  %8399 = vmatmul.f32.gmra.mxu0 %v8188
  %v8400 = vpop.f32.mrf.mxu0
  %v8401 = vadd.f32 %v8175, %v8400
  %8402 = vmatmul.f32.gmra.mxu0 %v8191
  %v8403 = vpop.f32.mrf.mxu0
  %v8404 = vadd.f32 %v8175, %v8403
  %8405 = vmatmul.f32.gmra.mxu0 %v8194
  %v8406 = vpop.f32.mrf.mxu0
  %v8407 = vadd.f32 %v8175, %v8406
  %8408 = vmatmul.f32.gmra.mxu0 %v8197
  %v8409 = vpop.f32.mrf.mxu0
  %v8410 = vadd.f32 %v8175, %v8409
  %8411 = vmatmul.f32.gmra.mxu0 %v8200
  %v8412 = vpop.f32.mrf.mxu0
  %v8413 = vadd.f32 %v8175, %v8412
  %8414 = vmatmul.f32.gmra.mxu0 %v8203
  %v8415 = vpop.f32.mrf.mxu0
  %v8416 = vadd.f32 %v8175, %v8415
  %8417 = vmatmul.f32.gmra.mxu0 %v8206
  %v8418 = vpop.f32.mrf.mxu0
  %v8419 = vadd.f32 %v8175, %v8418
  %8420 = vmatmul.f32.gmra.mxu0 %v8209
  %v8421 = vpop.f32.mrf.mxu0
  %v8422 = vadd.f32 %v8175, %v8421
  %8423 = vmatmul.f32.gmra.mxu0 %v8212
  %v8424 = vpop.f32.mrf.mxu0
  %v8425 = vadd.f32 %v8175, %v8424
  %8426 = vmatmul.f32.gmra.mxu0 %v8215
  %v8427 = vpop.f32.mrf.mxu0
  %v8428 = vadd.f32 %v8175, %v8427
  %8429 = vmatmul.f32.gmra.mxu0 %v8218
  %v8430 = vpop.f32.mrf.mxu0
  %v8431 = vadd.f32 %v8175, %v8430
  %8432 = vmatmul.f32.gmra.mxu0 %v8221
  %v8433 = vpop.f32.mrf.mxu0
  %v8434 = vadd.f32 %v8175, %v8433
  %8435 = vmatmul.f32.gmra.mxu0 %v8224
  %v8436 = vpop.f32.mrf.mxu0
  %v8437 = vadd.f32 %v8175, %v8436
  %8438 = vmatmul.f32.gmra.mxu0 %v8227
  %v8439 = vpop.f32.mrf.mxu0
  %v8440 = vadd.f32 %v8175, %v8439
  %8441 = vmatmul.f32.gmra.mxu0 %v8230
  %v8442 = vpop.f32.mrf.mxu0
  %v8443 = vadd.f32 %v8175, %v8442
  %8444 = vmatmul.f32.gmra.mxu0 %v8233
  %v8445 = vpop.f32.mrf.mxu0
  %v8446 = vadd.f32 %v8175, %v8445
  %8447 = vmatmul.f32.gmra.mxu0 %v8236
  %v8448 = vpop.f32.mrf.mxu0
  %v8449 = vadd.f32 %v8175, %v8448
  %8450 = vmatmul.f32.gmra.mxu0 %v8239
  %v8451 = vpop.f32.mrf.mxu0
  %v8452 = vadd.f32 %v8175, %v8451
  %8453 = vmatmul.f32.gmra.mxu0 %v8242
  %v8454 = vpop.f32.mrf.mxu0
  %v8455 = vadd.f32 %v8175, %v8454
  %8456 = vmatmul.f32.gmra.mxu0 %v8245
  %v8457 = vpop.f32.mrf.mxu0
  %v8458 = vadd.f32 %v8175, %v8457
  %8459 = vmatmul.f32.gmra.mxu0 %v8248
  %v8460 = vpop.f32.mrf.mxu0
  %v8461 = vadd.f32 %v8175, %v8460
  %8462 = vmatmul.f32.gmra.mxu0 %v8251
  %v8463 = vpop.f32.mrf.mxu0
  %v8464 = vadd.f32 %v8175, %v8463
  %8465 = vmatmul.f32.gmra.mxu0 %v8254
  %v8466 = vpop.f32.mrf.mxu0
  %v8467 = vadd.f32 %v8175, %v8466
  %8468 = vmatmul.f32.gmra.mxu0 %v8257
  %v8469 = vpop.f32.mrf.mxu0
  %v8470 = vadd.f32 %v8175, %v8469
  %8471 = vmatmul.f32.gmra.mxu0 %v8260
  %v8472 = vpop.f32.mrf.mxu0
  %v8473 = vadd.f32 %v8175, %v8472
  %8474 = vmatmul.f32.gmra.mxu0 %v8263
  %v8475 = vpop.f32.mrf.mxu0
  %v8476 = vadd.f32 %v8175, %v8475
  %8477 = vmatmul.f32.gmra.mxu0 %v8266
  %v8478 = vpop.f32.mrf.mxu0
  %v8479 = vadd.f32 %v8175, %v8478
  %8480 = vmatmul.f32.gmra.mxu0 %v8269
  %v8481 = vpop.f32.mrf.mxu0
  %v8482 = vadd.f32 %v8175, %v8481
  %8483 = vmatmul.f32.gmra.mxu0 %v8272
  %v8484 = vpop.f32.mrf.mxu0
  %v8485 = vadd.f32 %v8175, %v8484
  %8486 = vmatmul.f32.gmra.mxu0 %v8275
  %v8487 = vpop.f32.mrf.mxu0
  %v8488 = vadd.f32 %v8175, %v8487
  %8489 = vmatmul.f32.gmra.mxu0 %v8278
  %v8490 = vpop.f32.mrf.mxu0
  %v8491 = vadd.f32 %v8175, %v8490
  %8492 = vmatmul.f32.gmra.mxu0 %v8281
  %v8493 = vpop.f32.mrf.mxu0
  %v8494 = vadd.f32 %v8175, %v8493
  %8495 = vmatmul.f32.gmra.mxu0 %v8284
  %v8496 = vpop.f32.mrf.mxu0
  %v8497 = vadd.f32 %v8175, %v8496
  %8498 = vmatmul.f32.gmra.mxu0 %v8287
  %v8499 = vpop.f32.mrf.mxu0
  %v8500 = vadd.f32 %v8175, %v8499
  %8501 = vmatmul.f32.gmra.mxu0 %v8290
  %v8502 = vpop.f32.mrf.mxu0
  %v8503 = vadd.f32 %v8175, %v8502
  %8504 = vmatmul.f32.gmra.mxu0 %v8293
  %v8505 = vpop.f32.mrf.mxu0
  %v8506 = vadd.f32 %v8175, %v8505
  %8507 = vmatmul.f32.gmra.mxu0 %v8296
  %v8508 = vpop.f32.mrf.mxu0
  %v8509 = vadd.f32 %v8175, %v8508
  %8510 = vmatmul.f32.gmra.mxu0 %v8299
  %v8511 = vpop.f32.mrf.mxu0
  %v8512 = vadd.f32 %v8175, %v8511
  %8513 = vmatmul.f32.gmra.mxu0 %v8302
  %v8514 = vpop.f32.mrf.mxu0
  %v8515 = vadd.f32 %v8175, %v8514
  %8516 = vmatmul.f32.gmra.mxu0 %v8305
  %v8517 = vpop.f32.mrf.mxu0
  %v8518 = vadd.f32 %v8175, %v8517
  %8519 = vmatmul.f32.gmra.mxu0 %v8308
  %v8520 = vpop.f32.mrf.mxu0
  %v8521 = vadd.f32 %v8175, %v8520
  %8522 = vmatmul.f32.gmra.mxu0 %v8311
  %v8523 = vpop.f32.mrf.mxu0
  %v8524 = vadd.f32 %v8175, %v8523
  %8525 = vmatmul.f32.gmra.mxu0 %v8314
  %v8526 = vpop.f32.mrf.mxu0
  %v8527 = vadd.f32 %v8175, %v8526
  %8528 = vmatmul.f32.gmra.mxu0 %v8317
  %v8529 = vpop.f32.mrf.mxu0
  %v8530 = vadd.f32 %v8175, %v8529
  %8531 = vmatmul.f32.gmra.mxu0 %v8320
  %v8532 = vpop.f32.mrf.mxu0
  %v8533 = vadd.f32 %v8175, %v8532
  %8534 = vmatmul.f32.gmra.mxu0 %v8323
  %v8535 = vpop.f32.mrf.mxu0
  %v8536 = vadd.f32 %v8175, %v8535
  %8537 = vmatmul.f32.gmra.mxu0 %v8326
  %v8538 = vpop.f32.mrf.mxu0
  %v8539 = vadd.f32 %v8175, %v8538
  %8540 = vmatmul.f32.gmra.mxu0 %v8329
  %v8541 = vpop.f32.mrf.mxu0
  %v8542 = vadd.f32 %v8175, %v8541
  %8543 = vmatmul.f32.gmra.mxu0 %v8332
  %v8544 = vpop.f32.mrf.mxu0
  %v8545 = vadd.f32 %v8175, %v8544
  %8546 = vmatmul.f32.gmra.mxu0 %v8335
  %v8547 = vpop.f32.mrf.mxu0
  %v8548 = vadd.f32 %v8175, %v8547
  %8549 = vmatmul.f32.gmra.mxu0 %v8338
  %v8550 = vpop.f32.mrf.mxu0
  %v8551 = vadd.f32 %v8175, %v8550
  %8552 = vmatmul.f32.gmra.mxu0 %v8341
  %v8553 = vpop.f32.mrf.mxu0
  %v8554 = vadd.f32 %v8175, %v8553
  %8555 = vmatmul.f32.gmra.mxu0 %v8344
  %v8556 = vpop.f32.mrf.mxu0
  %v8557 = vadd.f32 %v8175, %v8556
  %8558 = vmatmul.f32.gmra.mxu0 %v8347
  %v8559 = vpop.f32.mrf.mxu0
  %v8560 = vadd.f32 %v8175, %v8559
  %8561 = vmatmul.f32.gmra.mxu0 %v8350
  %v8562 = vpop.f32.mrf.mxu0
  %v8563 = vadd.f32 %v8175, %v8562
  %8564 = vmatmul.f32.gmra.mxu0 %v8353
  %v8565 = vpop.f32.mrf.mxu0
  %v8566 = vadd.f32 %v8175, %v8565
  %8567 = vmatmul.f32.gmra.mxu0 %v8356
  %v8568 = vpop.f32.mrf.mxu0
  %v8569 = vadd.f32 %v8175, %v8568
  %8570 = vmatmul.f32.gmra.mxu0 %v8359
  %v8571 = vpop.f32.mrf.mxu0
  %v8572 = vadd.f32 %v8175, %v8571
  %8573 = vmatmul.f32.gmra.mxu0 %v8362
  %v8574 = vpop.f32.mrf.mxu0
  %v8575 = vadd.f32 %v8175, %v8574
  %8576 = vmatmul.f32.gmra.mxu0 %v8365
  %v8577 = vpop.f32.mrf.mxu0
  %v8578 = vadd.f32 %v8175, %v8577
  %8579 = vmatmul.f32.gmra.mxu0 %v8368
  %v8580 = vpop.f32.mrf.mxu0
  %v8581 = vadd.f32 %v8175, %v8580
  %8582 = vdwg.mxu0
  %v8583 = vadd.f32 %v3408, %v8392
  %v8584 = vadd.f32 %v3411, %v8395
  %v8585 = vadd.f32 %v3414, %v8398
  %v8586 = vadd.f32 %v3417, %v8401
  %v8587 = vadd.f32 %v3420, %v8404
  %v8588 = vadd.f32 %v3423, %v8407
  %v8589 = vadd.f32 %v3426, %v8410
  %v8590 = vadd.f32 %v3429, %v8413
  %v8591 = vadd.f32 %v3432, %v8416
  %v8592 = vadd.f32 %v3435, %v8419
  %v8593 = vadd.f32 %v3438, %v8422
  %v8594 = vadd.f32 %v3441, %v8425
  %v8595 = vadd.f32 %v3444, %v8428
  %v8596 = vadd.f32 %v3447, %v8431
  %v8597 = vadd.f32 %v3450, %v8434
  %v8598 = vadd.f32 %v3453, %v8437
  %v8599 = vadd.f32 %v3456, %v8440
  %v8600 = vadd.f32 %v3459, %v8443
  %v8601 = vadd.f32 %v3462, %v8446
  %v8602 = vadd.f32 %v3465, %v8449
  %v8603 = vadd.f32 %v3468, %v8452
  %v8604 = vadd.f32 %v3471, %v8455
  %v8605 = vadd.f32 %v3474, %v8458
  %v8606 = vadd.f32 %v3477, %v8461
  %v8607 = vadd.f32 %v3480, %v8464
  %v8608 = vadd.f32 %v3483, %v8467
  %v8609 = vadd.f32 %v3486, %v8470
  %v8610 = vadd.f32 %v3489, %v8473
  %v8611 = vadd.f32 %v3492, %v8476
  %v8612 = vadd.f32 %v3495, %v8479
  %v8613 = vadd.f32 %v3498, %v8482
  %v8614 = vadd.f32 %v3501, %v8485
  %v8615 = vadd.f32 %v3504, %v8488
  %v8616 = vadd.f32 %v3507, %v8491
  %v8617 = vadd.f32 %v3510, %v8494
  %v8618 = vadd.f32 %v3513, %v8497
  %v8619 = vadd.f32 %v3516, %v8500
  %v8620 = vadd.f32 %v3519, %v8503
  %v8621 = vadd.f32 %v3522, %v8506
  %v8622 = vadd.f32 %v3525, %v8509
  %v8623 = vadd.f32 %v3528, %v8512
  %v8624 = vadd.f32 %v3531, %v8515
  %v8625 = vadd.f32 %v3534, %v8518
  %v8626 = vadd.f32 %v3537, %v8521
  %v8627 = vadd.f32 %v3540, %v8524
  %v8628 = vadd.f32 %v3543, %v8527
  %v8629 = vadd.f32 %v3546, %v8530
  %v8630 = vadd.f32 %v3549, %v8533
  %v8631 = vadd.f32 %v3552, %v8536
  %v8632 = vadd.f32 %v3555, %v8539
  %v8633 = vadd.f32 %v3558, %v8542
  %v8634 = vadd.f32 %v3561, %v8545
  %v8635 = vadd.f32 %v3564, %v8548
  %v8636 = vadd.f32 %v3567, %v8551
  %v8637 = vadd.f32 %v3570, %v8554
  %v8638 = vadd.f32 %v3573, %v8557
  %v8639 = vadd.f32 %v3576, %v8560
  %v8640 = vadd.f32 %v3579, %v8563
  %v8641 = vadd.f32 %v3582, %v8566
  %v8642 = vadd.f32 %v3585, %v8569
  %v8643 = vadd.f32 %v3588, %v8572
  %v8644 = vadd.f32 %v3591, %v8575
  %v8645 = vadd.f32 %v3594, %v8578
  %v8646 = vadd.f32 %v3597, %v8581
  %v8647 = vld [vmem:[%s7] sm:$0x1]
  %v8648 = vld [vmem:[%s8] sm:$0x1]
  %v8649 = vsel %vm4597, %v8583, 0.0
  %v8650 = vsel %vm4597, %v8584, 0.0
  %v8651 = vadd.f32 %v8649, %v8650
  %v8652 = vsel %vm4597, %v8585, 0.0
  %v8653 = vadd.f32 %v8651, %v8652
  %v8654 = vsel %vm4597, %v8586, 0.0
  %v8655 = vadd.f32 %v8653, %v8654
  %v8656 = vsel %vm4597, %v8587, 0.0
  %v8657 = vadd.f32 %v8655, %v8656
  %v8658 = vsel %vm4597, %v8588, 0.0
  %v8659 = vadd.f32 %v8657, %v8658
  %v8660 = vsel %vm4597, %v8589, 0.0
  %v8661 = vadd.f32 %v8659, %v8660
  %v8662 = vsel %vm4597, %v8590, 0.0
  %v8663 = vadd.f32 %v8661, %v8662
  %v8664 = vsel %vm4597, %v8591, 0.0
  %v8665 = vadd.f32 %v8663, %v8664
  %v8666 = vsel %vm4597, %v8592, 0.0
  %v8667 = vadd.f32 %v8665, %v8666
  %v8668 = vsel %vm4597, %v8593, 0.0
  %v8669 = vadd.f32 %v8667, %v8668
  %v8670 = vsel %vm4597, %v8594, 0.0
  %v8671 = vadd.f32 %v8669, %v8670
  %v8672 = vsel %vm4597, %v8595, 0.0
  %v8673 = vadd.f32 %v8671, %v8672
  %v8674 = vsel %vm4597, %v8596, 0.0
  %v8675 = vadd.f32 %v8673, %v8674
  %v8676 = vsel %vm4597, %v8597, 0.0
  %v8677 = vadd.f32 %v8675, %v8676
  %v8678 = vsel %vm4597, %v8598, 0.0
  %v8679 = vadd.f32 %v8677, %v8678
  %v8680 = vsel %vm4597, %v8599, 0.0
  %v8681 = vadd.f32 %v8679, %v8680
  %v8682 = vsel %vm4597, %v8600, 0.0
  %v8683 = vadd.f32 %v8681, %v8682
  %v8684 = vsel %vm4597, %v8601, 0.0
  %v8685 = vadd.f32 %v8683, %v8684
  %v8686 = vsel %vm4597, %v8602, 0.0
  %v8687 = vadd.f32 %v8685, %v8686
  %v8688 = vsel %vm4597, %v8603, 0.0
  %v8689 = vadd.f32 %v8687, %v8688
  %v8690 = vsel %vm4597, %v8604, 0.0
  %v8691 = vadd.f32 %v8689, %v8690
  %v8692 = vsel %vm4597, %v8605, 0.0
  %v8693 = vadd.f32 %v8691, %v8692
  %v8694 = vsel %vm4597, %v8606, 0.0
  %v8695 = vadd.f32 %v8693, %v8694
  %v8696 = vsel %vm4597, %v8607, 0.0
  %v8697 = vadd.f32 %v8695, %v8696
  %v8698 = vsel %vm4597, %v8608, 0.0
  %v8699 = vadd.f32 %v8697, %v8698
  %v8700 = vsel %vm4597, %v8609, 0.0
  %v8701 = vadd.f32 %v8699, %v8700
  %v8702 = vsel %vm4597, %v8610, 0.0
  %v8703 = vadd.f32 %v8701, %v8702
  %v8704 = vsel %vm4597, %v8611, 0.0
  %v8705 = vadd.f32 %v8703, %v8704
  %v8706 = vsel %vm4597, %v8612, 0.0
  %v8707 = vadd.f32 %v8705, %v8706
  %v8708 = vsel %vm4597, %v8613, 0.0
  %v8709 = vadd.f32 %v8707, %v8708
  %v8710 = vsel %vm4597, %v8614, 0.0
  %v8711 = vadd.f32 %v8709, %v8710
  %v8712 = vsel %vm4597, %v8615, 0.0
  %v8713 = vadd.f32 %v8711, %v8712
  %v8714 = vsel %vm4597, %v8616, 0.0
  %v8715 = vadd.f32 %v8713, %v8714
  %v8716 = vsel %vm4597, %v8617, 0.0
  %v8717 = vadd.f32 %v8715, %v8716
  %v8718 = vsel %vm4597, %v8618, 0.0
  %v8719 = vadd.f32 %v8717, %v8718
  %v8720 = vsel %vm4597, %v8619, 0.0
  %v8721 = vadd.f32 %v8719, %v8720
  %v8722 = vsel %vm4597, %v8620, 0.0
  %v8723 = vadd.f32 %v8721, %v8722
  %v8724 = vsel %vm4597, %v8621, 0.0
  %v8725 = vadd.f32 %v8723, %v8724
  %v8726 = vsel %vm4597, %v8622, 0.0
  %v8727 = vadd.f32 %v8725, %v8726
  %v8728 = vsel %vm4597, %v8623, 0.0
  %v8729 = vadd.f32 %v8727, %v8728
  %v8730 = vsel %vm4597, %v8624, 0.0
  %v8731 = vadd.f32 %v8729, %v8730
  %v8732 = vsel %vm4597, %v8625, 0.0
  %v8733 = vadd.f32 %v8731, %v8732
  %v8734 = vsel %vm4597, %v8626, 0.0
  %v8735 = vadd.f32 %v8733, %v8734
  %v8736 = vsel %vm4597, %v8627, 0.0
  %v8737 = vadd.f32 %v8735, %v8736
  %v8738 = vsel %vm4597, %v8628, 0.0
  %v8739 = vadd.f32 %v8737, %v8738
  %v8740 = vsel %vm4597, %v8629, 0.0
  %v8741 = vadd.f32 %v8739, %v8740
  %v8742 = vsel %vm4597, %v8630, 0.0
  %v8743 = vadd.f32 %v8741, %v8742
  %v8744 = vsel %vm4597, %v8631, 0.0
  %v8745 = vadd.f32 %v8743, %v8744
  %v8746 = vsel %vm4597, %v8632, 0.0
  %v8747 = vadd.f32 %v8745, %v8746
  %v8748 = vsel %vm4597, %v8633, 0.0
  %v8749 = vadd.f32 %v8747, %v8748
  %v8750 = vsel %vm4597, %v8634, 0.0
  %v8751 = vadd.f32 %v8749, %v8750
  %v8752 = vsel %vm4597, %v8635, 0.0
  %v8753 = vadd.f32 %v8751, %v8752
  %v8754 = vsel %vm4597, %v8636, 0.0
  %v8755 = vadd.f32 %v8753, %v8754
  %v8756 = vsel %vm4597, %v8637, 0.0
  %v8757 = vadd.f32 %v8755, %v8756
  %v8758 = vsel %vm4597, %v8638, 0.0
  %v8759 = vadd.f32 %v8757, %v8758
  %v8760 = vsel %vm4597, %v8639, 0.0
  %v8761 = vadd.f32 %v8759, %v8760
  %v8762 = vsel %vm4597, %v8640, 0.0
  %v8763 = vadd.f32 %v8761, %v8762
  %v8764 = vsel %vm4597, %v8641, 0.0
  %v8765 = vadd.f32 %v8763, %v8764
  %v8766 = vsel %vm4597, %v8642, 0.0
  %v8767 = vadd.f32 %v8765, %v8766
  %v8768 = vsel %vm4597, %v8643, 0.0
  %v8769 = vadd.f32 %v8767, %v8768
  %v8770 = vsel %vm4597, %v8644, 0.0
  %v8771 = vadd.f32 %v8769, %v8770
  %v8772 = vsel %vm4597, %v8645, 0.0
  %v8773 = vadd.f32 %v8771, %v8772
  %v8774 = vsel %vm4597, %v8646, 0.0
  %v8775 = vadd.f32 %v8773, %v8774
  %v8776 = vrot.slane %v8775, 4
  %v8777 = vadd.f32 %v8775, %v8776
  %v8778 = vrot.slane %v8777, 2
  %v8779 = vadd.f32 %v8777, %v8778
  %v8780 = vrot.slane %v8779, 1
  %v8781 = vadd.f32 %v8779, %v8780
  %v8782 = vmul.f32 %v8583, %v8583
  %v8783 = vmul.f32 %v8584, %v8584
  %v8784 = vmul.f32 %v8585, %v8585
  %v8785 = vmul.f32 %v8586, %v8586
  %v8786 = vmul.f32 %v8587, %v8587
  %v8787 = vmul.f32 %v8588, %v8588
  %v8788 = vmul.f32 %v8589, %v8589
  %v8789 = vmul.f32 %v8590, %v8590
  %v8790 = vmul.f32 %v8591, %v8591
  %v8791 = vmul.f32 %v8592, %v8592
  %v8792 = vmul.f32 %v8593, %v8593
  %v8793 = vmul.f32 %v8594, %v8594
  %v8794 = vmul.f32 %v8595, %v8595
  %v8795 = vmul.f32 %v8596, %v8596
  %v8796 = vmul.f32 %v8597, %v8597
  %v8797 = vmul.f32 %v8598, %v8598
  %v8798 = vmul.f32 %v8599, %v8599
  %v8799 = vmul.f32 %v8600, %v8600
  %v8800 = vmul.f32 %v8601, %v8601
  %v8801 = vmul.f32 %v8602, %v8602
  %v8802 = vmul.f32 %v8603, %v8603
  %v8803 = vmul.f32 %v8604, %v8604
  %v8804 = vmul.f32 %v8605, %v8605
  %v8805 = vmul.f32 %v8606, %v8606
  %v8806 = vmul.f32 %v8607, %v8607
  %v8807 = vmul.f32 %v8608, %v8608
  %v8808 = vmul.f32 %v8609, %v8609
  %v8809 = vmul.f32 %v8610, %v8610
  %v8810 = vmul.f32 %v8611, %v8611
  %v8811 = vmul.f32 %v8612, %v8612
  %v8812 = vmul.f32 %v8613, %v8613
  %v8813 = vmul.f32 %v8614, %v8614
  %v8814 = vmul.f32 %v8615, %v8615
  %v8815 = vmul.f32 %v8616, %v8616
  %v8816 = vmul.f32 %v8617, %v8617
  %v8817 = vmul.f32 %v8618, %v8618
  %v8818 = vmul.f32 %v8619, %v8619
  %v8819 = vmul.f32 %v8620, %v8620
  %v8820 = vmul.f32 %v8621, %v8621
  %v8821 = vmul.f32 %v8622, %v8622
  %v8822 = vmul.f32 %v8623, %v8623
  %v8823 = vmul.f32 %v8624, %v8624
  %v8824 = vmul.f32 %v8625, %v8625
  %v8825 = vmul.f32 %v8626, %v8626
  %v8826 = vmul.f32 %v8627, %v8627
  %v8827 = vmul.f32 %v8628, %v8628
  %v8828 = vmul.f32 %v8629, %v8629
  %v8829 = vmul.f32 %v8630, %v8630
  %v8830 = vmul.f32 %v8631, %v8631
  %v8831 = vmul.f32 %v8632, %v8632
  %v8832 = vmul.f32 %v8633, %v8633
  %v8833 = vmul.f32 %v8634, %v8634
  %v8834 = vmul.f32 %v8635, %v8635
  %v8835 = vmul.f32 %v8636, %v8636
  %v8836 = vmul.f32 %v8637, %v8637
  %v8837 = vmul.f32 %v8638, %v8638
  %v8838 = vmul.f32 %v8639, %v8639
  %v8839 = vmul.f32 %v8640, %v8640
  %v8840 = vmul.f32 %v8641, %v8641
  %v8841 = vmul.f32 %v8642, %v8642
  %v8842 = vmul.f32 %v8643, %v8643
  %v8843 = vmul.f32 %v8644, %v8644
  %v8844 = vmul.f32 %v8645, %v8645
  %v8845 = vmul.f32 %v8646, %v8646
  %v8846 = vsel %vm4597, %v8782, 0.0
  %v8847 = vsel %vm4597, %v8783, 0.0
  %v8848 = vadd.f32 %v8846, %v8847
  %v8849 = vsel %vm4597, %v8784, 0.0
  %v8850 = vadd.f32 %v8848, %v8849
  %v8851 = vsel %vm4597, %v8785, 0.0
  %v8852 = vadd.f32 %v8850, %v8851
  %v8853 = vsel %vm4597, %v8786, 0.0
  %v8854 = vadd.f32 %v8852, %v8853
  %v8855 = vsel %vm4597, %v8787, 0.0
  %v8856 = vadd.f32 %v8854, %v8855
  %v8857 = vsel %vm4597, %v8788, 0.0
  %v8858 = vadd.f32 %v8856, %v8857
  %v8859 = vsel %vm4597, %v8789, 0.0
  %v8860 = vadd.f32 %v8858, %v8859
  %v8861 = vsel %vm4597, %v8790, 0.0
  %v8862 = vadd.f32 %v8860, %v8861
  %v8863 = vsel %vm4597, %v8791, 0.0
  %v8864 = vadd.f32 %v8862, %v8863
  %v8865 = vsel %vm4597, %v8792, 0.0
  %v8866 = vadd.f32 %v8864, %v8865
  %v8867 = vsel %vm4597, %v8793, 0.0
  %v8868 = vadd.f32 %v8866, %v8867
  %v8869 = vsel %vm4597, %v8794, 0.0
  %v8870 = vadd.f32 %v8868, %v8869
  %v8871 = vsel %vm4597, %v8795, 0.0
  %v8872 = vadd.f32 %v8870, %v8871
  %v8873 = vsel %vm4597, %v8796, 0.0
  %v8874 = vadd.f32 %v8872, %v8873
  %v8875 = vsel %vm4597, %v8797, 0.0
  %v8876 = vadd.f32 %v8874, %v8875
  %v8877 = vsel %vm4597, %v8798, 0.0
  %v8878 = vadd.f32 %v8876, %v8877
  %v8879 = vsel %vm4597, %v8799, 0.0
  %v8880 = vadd.f32 %v8878, %v8879
  %v8881 = vsel %vm4597, %v8800, 0.0
  %v8882 = vadd.f32 %v8880, %v8881
  %v8883 = vsel %vm4597, %v8801, 0.0
  %v8884 = vadd.f32 %v8882, %v8883
  %v8885 = vsel %vm4597, %v8802, 0.0
  %v8886 = vadd.f32 %v8884, %v8885
  %v8887 = vsel %vm4597, %v8803, 0.0
  %v8888 = vadd.f32 %v8886, %v8887
  %v8889 = vsel %vm4597, %v8804, 0.0
  %v8890 = vadd.f32 %v8888, %v8889
  %v8891 = vsel %vm4597, %v8805, 0.0
  %v8892 = vadd.f32 %v8890, %v8891
  %v8893 = vsel %vm4597, %v8806, 0.0
  %v8894 = vadd.f32 %v8892, %v8893
  %v8895 = vsel %vm4597, %v8807, 0.0
  %v8896 = vadd.f32 %v8894, %v8895
  %v8897 = vsel %vm4597, %v8808, 0.0
  %v8898 = vadd.f32 %v8896, %v8897
  %v8899 = vsel %vm4597, %v8809, 0.0
  %v8900 = vadd.f32 %v8898, %v8899
  %v8901 = vsel %vm4597, %v8810, 0.0
  %v8902 = vadd.f32 %v8900, %v8901
  %v8903 = vsel %vm4597, %v8811, 0.0
  %v8904 = vadd.f32 %v8902, %v8903
  %v8905 = vsel %vm4597, %v8812, 0.0
  %v8906 = vadd.f32 %v8904, %v8905
  %v8907 = vsel %vm4597, %v8813, 0.0
  %v8908 = vadd.f32 %v8906, %v8907
  %v8909 = vsel %vm4597, %v8814, 0.0
  %v8910 = vadd.f32 %v8908, %v8909
  %v8911 = vsel %vm4597, %v8815, 0.0
  %v8912 = vadd.f32 %v8910, %v8911
  %v8913 = vsel %vm4597, %v8816, 0.0
  %v8914 = vadd.f32 %v8912, %v8913
  %v8915 = vsel %vm4597, %v8817, 0.0
  %v8916 = vadd.f32 %v8914, %v8915
  %v8917 = vsel %vm4597, %v8818, 0.0
  %v8918 = vadd.f32 %v8916, %v8917
  %v8919 = vsel %vm4597, %v8819, 0.0
  %v8920 = vadd.f32 %v8918, %v8919
  %v8921 = vsel %vm4597, %v8820, 0.0
  %v8922 = vadd.f32 %v8920, %v8921
  %v8923 = vsel %vm4597, %v8821, 0.0
  %v8924 = vadd.f32 %v8922, %v8923
  %v8925 = vsel %vm4597, %v8822, 0.0
  %v8926 = vadd.f32 %v8924, %v8925
  %v8927 = vsel %vm4597, %v8823, 0.0
  %v8928 = vadd.f32 %v8926, %v8927
  %v8929 = vsel %vm4597, %v8824, 0.0
  %v8930 = vadd.f32 %v8928, %v8929
  %v8931 = vsel %vm4597, %v8825, 0.0
  %v8932 = vadd.f32 %v8930, %v8931
  %v8933 = vsel %vm4597, %v8826, 0.0
  %v8934 = vadd.f32 %v8932, %v8933
  %v8935 = vsel %vm4597, %v8827, 0.0
  %v8936 = vadd.f32 %v8934, %v8935
  %v8937 = vsel %vm4597, %v8828, 0.0
  %v8938 = vadd.f32 %v8936, %v8937
  %v8939 = vsel %vm4597, %v8829, 0.0
  %v8940 = vadd.f32 %v8938, %v8939
  %v8941 = vsel %vm4597, %v8830, 0.0
  %v8942 = vadd.f32 %v8940, %v8941
  %v8943 = vsel %vm4597, %v8831, 0.0
  %v8944 = vadd.f32 %v8942, %v8943
  %v8945 = vsel %vm4597, %v8832, 0.0
  %v8946 = vadd.f32 %v8944, %v8945
  %v8947 = vsel %vm4597, %v8833, 0.0
  %v8948 = vadd.f32 %v8946, %v8947
  %v8949 = vsel %vm4597, %v8834, 0.0
  %v8950 = vadd.f32 %v8948, %v8949
  %v8951 = vsel %vm4597, %v8835, 0.0
  %v8952 = vadd.f32 %v8950, %v8951
  %v8953 = vsel %vm4597, %v8836, 0.0
  %v8954 = vadd.f32 %v8952, %v8953
  %v8955 = vsel %vm4597, %v8837, 0.0
  %v8956 = vadd.f32 %v8954, %v8955
  %v8957 = vsel %vm4597, %v8838, 0.0
  %v8958 = vadd.f32 %v8956, %v8957
  %v8959 = vsel %vm4597, %v8839, 0.0
  %v8960 = vadd.f32 %v8958, %v8959
  %v8961 = vsel %vm4597, %v8840, 0.0
  %v8962 = vadd.f32 %v8960, %v8961
  %v8963 = vsel %vm4597, %v8841, 0.0
  %v8964 = vadd.f32 %v8962, %v8963
  %v8965 = vsel %vm4597, %v8842, 0.0
  %v8966 = vadd.f32 %v8964, %v8965
  %v8967 = vsel %vm4597, %v8843, 0.0
  %v8968 = vadd.f32 %v8966, %v8967
  %v8969 = vsel %vm4597, %v8844, 0.0
  %v8970 = vadd.f32 %v8968, %v8969
  %v8971 = vsel %vm4597, %v8845, 0.0
  %v8972 = vadd.f32 %v8970, %v8971
  %v8973 = vrot.slane %v8972, 4
  %v8974 = vadd.f32 %v8972, %v8973
  %v8975 = vrot.slane %v8974, 2
  %v8976 = vadd.f32 %v8974, %v8975
  %v8977 = vrot.slane %v8976, 1
  %v8978 = vadd.f32 %v8976, %v8977
  %v8979 = vmul.f32 %v8781, 0.001953125
  %v8980 = vmul.f32 %v8978, 0.001953125
  %v8981 = vmul.f32 %v8979, %v8979
  %v8982 = vsub.f32 %v8980, %v8981
  %v8983 = vsub.f32 %v8583, %v8979
  %v8984 = vsub.f32 %v8584, %v8979
  %v8985 = vsub.f32 %v8585, %v8979
  %v8986 = vsub.f32 %v8586, %v8979
  %v8987 = vsub.f32 %v8587, %v8979
  %v8988 = vsub.f32 %v8588, %v8979
  %v8989 = vsub.f32 %v8589, %v8979
  %v8990 = vsub.f32 %v8590, %v8979
  %v8991 = vsub.f32 %v8591, %v8979
  %v8992 = vsub.f32 %v8592, %v8979
  %v8993 = vsub.f32 %v8593, %v8979
  %v8994 = vsub.f32 %v8594, %v8979
  %v8995 = vsub.f32 %v8595, %v8979
  %v8996 = vsub.f32 %v8596, %v8979
  %v8997 = vsub.f32 %v8597, %v8979
  %v8998 = vsub.f32 %v8598, %v8979
  %v8999 = vsub.f32 %v8599, %v8979
  %v9000 = vsub.f32 %v8600, %v8979
  %v9001 = vsub.f32 %v8601, %v8979
  %v9002 = vsub.f32 %v8602, %v8979
  %v9003 = vsub.f32 %v8603, %v8979
  %v9004 = vsub.f32 %v8604, %v8979
  %v9005 = vsub.f32 %v8605, %v8979
  %v9006 = vsub.f32 %v8606, %v8979
  %v9007 = vsub.f32 %v8607, %v8979
  %v9008 = vsub.f32 %v8608, %v8979
  %v9009 = vsub.f32 %v8609, %v8979
  %v9010 = vsub.f32 %v8610, %v8979
  %v9011 = vsub.f32 %v8611, %v8979
  %v9012 = vsub.f32 %v8612, %v8979
  %v9013 = vsub.f32 %v8613, %v8979
  %v9014 = vsub.f32 %v8614, %v8979
  %v9015 = vsub.f32 %v8615, %v8979
  %v9016 = vsub.f32 %v8616, %v8979
  %v9017 = vsub.f32 %v8617, %v8979
  %v9018 = vsub.f32 %v8618, %v8979
  %v9019 = vsub.f32 %v8619, %v8979
  %v9020 = vsub.f32 %v8620, %v8979
  %v9021 = vsub.f32 %v8621, %v8979
  %v9022 = vsub.f32 %v8622, %v8979
  %v9023 = vsub.f32 %v8623, %v8979
  %v9024 = vsub.f32 %v8624, %v8979
  %v9025 = vsub.f32 %v8625, %v8979
  %v9026 = vsub.f32 %v8626, %v8979
  %v9027 = vsub.f32 %v8627, %v8979
  %v9028 = vsub.f32 %v8628, %v8979
  %v9029 = vsub.f32 %v8629, %v8979
  %v9030 = vsub.f32 %v8630, %v8979
  %v9031 = vsub.f32 %v8631, %v8979
  %v9032 = vsub.f32 %v8632, %v8979
  %v9033 = vsub.f32 %v8633, %v8979
  %v9034 = vsub.f32 %v8634, %v8979
  %v9035 = vsub.f32 %v8635, %v8979
  %v9036 = vsub.f32 %v8636, %v8979
  %v9037 = vsub.f32 %v8637, %v8979
  %v9038 = vsub.f32 %v8638, %v8979
  %v9039 = vsub.f32 %v8639, %v8979
  %v9040 = vsub.f32 %v8640, %v8979
  %v9041 = vsub.f32 %v8641, %v8979
  %v9042 = vsub.f32 %v8642, %v8979
  %v9043 = vsub.f32 %v8643, %v8979
  %v9044 = vsub.f32 %v8644, %v8979
  %v9045 = vsub.f32 %v8645, %v8979
  %v9046 = vsub.f32 %v8646, %v8979
  %v9047 = vadd.f32 %v8982, 1e-05
  %v9048 = vrsqrt.pop %v9047
  %v9049 = vmul.f32 %v9048, %v9047
  %v9050 = vmul.f32 %v9049, %v9048
  %v9051 = vmul.f32 0.5, %v9050
  %v9052 = vsub.f32 1.5, %v9051
  %v9053 = vmul.f32 %v9048, %v9052
  %vm9054 = vweird.f32 %v9047
  %vm9055 = vweird.f32 %v9048
  %vm9056 = vmor %vm9054, %vm9055
  %v9057 = vsel %vm9056, %v9048, %v9053
  %v9058 = vmul.f32 %v8983, %v9057
  %v9059 = vmul.f32 %v8984, %v9057
  %v9060 = vmul.f32 %v8985, %v9057
  %v9061 = vmul.f32 %v8986, %v9057
  %v9062 = vmul.f32 %v8987, %v9057
  %v9063 = vmul.f32 %v8988, %v9057
  %v9064 = vmul.f32 %v8989, %v9057
  %v9065 = vmul.f32 %v8990, %v9057
  %v9066 = vmul.f32 %v8991, %v9057
  %v9067 = vmul.f32 %v8992, %v9057
  %v9068 = vmul.f32 %v8993, %v9057
  %v9069 = vmul.f32 %v8994, %v9057
  %v9070 = vmul.f32 %v8995, %v9057
  %v9071 = vmul.f32 %v8996, %v9057
  %v9072 = vmul.f32 %v8997, %v9057
  %v9073 = vmul.f32 %v8998, %v9057
  %v9074 = vmul.f32 %v8999, %v9057
  %v9075 = vmul.f32 %v9000, %v9057
  %v9076 = vmul.f32 %v9001, %v9057
  %v9077 = vmul.f32 %v9002, %v9057
  %v9078 = vmul.f32 %v9003, %v9057
  %v9079 = vmul.f32 %v9004, %v9057
  %v9080 = vmul.f32 %v9005, %v9057
  %v9081 = vmul.f32 %v9006, %v9057
  %v9082 = vmul.f32 %v9007, %v9057
  %v9083 = vmul.f32 %v9008, %v9057
  %v9084 = vmul.f32 %v9009, %v9057
  %v9085 = vmul.f32 %v9010, %v9057
  %v9086 = vmul.f32 %v9011, %v9057
  %v9087 = vmul.f32 %v9012, %v9057
  %v9088 = vmul.f32 %v9013, %v9057
  %v9089 = vmul.f32 %v9014, %v9057
  %v9090 = vmul.f32 %v9015, %v9057
  %v9091 = vmul.f32 %v9016, %v9057
  %v9092 = vmul.f32 %v9017, %v9057
  %v9093 = vmul.f32 %v9018, %v9057
  %v9094 = vmul.f32 %v9019, %v9057
  %v9095 = vmul.f32 %v9020, %v9057
  %v9096 = vmul.f32 %v9021, %v9057
  %v9097 = vmul.f32 %v9022, %v9057
  %v9098 = vmul.f32 %v9023, %v9057
  %v9099 = vmul.f32 %v9024, %v9057
  %v9100 = vmul.f32 %v9025, %v9057
  %v9101 = vmul.f32 %v9026, %v9057
  %v9102 = vmul.f32 %v9027, %v9057
  %v9103 = vmul.f32 %v9028, %v9057
  %v9104 = vmul.f32 %v9029, %v9057
  %v9105 = vmul.f32 %v9030, %v9057
  %v9106 = vmul.f32 %v9031, %v9057
  %v9107 = vmul.f32 %v9032, %v9057
  %v9108 = vmul.f32 %v9033, %v9057
  %v9109 = vmul.f32 %v9034, %v9057
  %v9110 = vmul.f32 %v9035, %v9057
  %v9111 = vmul.f32 %v9036, %v9057
  %v9112 = vmul.f32 %v9037, %v9057
  %v9113 = vmul.f32 %v9038, %v9057
  %v9114 = vmul.f32 %v9039, %v9057
  %v9115 = vmul.f32 %v9040, %v9057
  %v9116 = vmul.f32 %v9041, %v9057
  %v9117 = vmul.f32 %v9042, %v9057
  %v9118 = vmul.f32 %v9043, %v9057
  %v9119 = vmul.f32 %v9044, %v9057
  %v9120 = vmul.f32 %v9045, %v9057
  %v9121 = vmul.f32 %v9046, %v9057
  %v9123 = vperm.slane %v8647, 0
  %v9125 = vmul.f32 %v9058, %v9123
  %v9126 = vmul.f32 %v9059, %v9123
  %v9127 = vmul.f32 %v9060, %v9123
  %v9128 = vmul.f32 %v9061, %v9123
  %v9129 = vmul.f32 %v9062, %v9123
  %v9130 = vmul.f32 %v9063, %v9123
  %v9131 = vmul.f32 %v9064, %v9123
  %v9132 = vmul.f32 %v9065, %v9123
  %v9133 = vmul.f32 %v9066, %v9123
  %v9134 = vmul.f32 %v9067, %v9123
  %v9135 = vmul.f32 %v9068, %v9123
  %v9136 = vmul.f32 %v9069, %v9123
  %v9137 = vmul.f32 %v9070, %v9123
  %v9138 = vmul.f32 %v9071, %v9123
  %v9139 = vmul.f32 %v9072, %v9123
  %v9140 = vmul.f32 %v9073, %v9123
  %v9141 = vmul.f32 %v9074, %v9123
  %v9142 = vmul.f32 %v9075, %v9123
  %v9143 = vmul.f32 %v9076, %v9123
  %v9144 = vmul.f32 %v9077, %v9123
  %v9145 = vmul.f32 %v9078, %v9123
  %v9146 = vmul.f32 %v9079, %v9123
  %v9147 = vmul.f32 %v9080, %v9123
  %v9148 = vmul.f32 %v9081, %v9123
  %v9149 = vmul.f32 %v9082, %v9123
  %v9150 = vmul.f32 %v9083, %v9123
  %v9151 = vmul.f32 %v9084, %v9123
  %v9152 = vmul.f32 %v9085, %v9123
  %v9153 = vmul.f32 %v9086, %v9123
  %v9154 = vmul.f32 %v9087, %v9123
  %v9155 = vmul.f32 %v9088, %v9123
  %v9156 = vmul.f32 %v9089, %v9123
  %v9157 = vmul.f32 %v9090, %v9123
  %v9158 = vmul.f32 %v9091, %v9123
  %v9159 = vmul.f32 %v9092, %v9123
  %v9160 = vmul.f32 %v9093, %v9123
  %v9161 = vmul.f32 %v9094, %v9123
  %v9162 = vmul.f32 %v9095, %v9123
  %v9163 = vmul.f32 %v9096, %v9123
  %v9164 = vmul.f32 %v9097, %v9123
  %v9165 = vmul.f32 %v9098, %v9123
  %v9166 = vmul.f32 %v9099, %v9123
  %v9167 = vmul.f32 %v9100, %v9123
  %v9168 = vmul.f32 %v9101, %v9123
  %v9169 = vmul.f32 %v9102, %v9123
  %v9170 = vmul.f32 %v9103, %v9123
  %v9171 = vmul.f32 %v9104, %v9123
  %v9172 = vmul.f32 %v9105, %v9123
  %v9173 = vmul.f32 %v9106, %v9123
  %v9174 = vmul.f32 %v9107, %v9123
  %v9175 = vmul.f32 %v9108, %v9123
  %v9176 = vmul.f32 %v9109, %v9123
  %v9177 = vmul.f32 %v9110, %v9123
  %v9178 = vmul.f32 %v9111, %v9123
  %v9179 = vmul.f32 %v9112, %v9123
  %v9180 = vmul.f32 %v9113, %v9123
  %v9181 = vmul.f32 %v9114, %v9123
  %v9182 = vmul.f32 %v9115, %v9123
  %v9183 = vmul.f32 %v9116, %v9123
  %v9184 = vmul.f32 %v9117, %v9123
  %v9185 = vmul.f32 %v9118, %v9123
  %v9186 = vmul.f32 %v9119, %v9123
  %v9187 = vmul.f32 %v9120, %v9123
  %v9188 = vmul.f32 %v9121, %v9123
  %v9190 = vperm.slane %v8648, 0
  %v9192 = vadd.f32 %v9125, %v9190
  %v9193 = vadd.f32 %v9126, %v9190
  %v9194 = vadd.f32 %v9127, %v9190
  %v9195 = vadd.f32 %v9128, %v9190
  %v9196 = vadd.f32 %v9129, %v9190
  %v9197 = vadd.f32 %v9130, %v9190
  %v9198 = vadd.f32 %v9131, %v9190
  %v9199 = vadd.f32 %v9132, %v9190
  %v9200 = vadd.f32 %v9133, %v9190
  %v9201 = vadd.f32 %v9134, %v9190
  %v9202 = vadd.f32 %v9135, %v9190
  %v9203 = vadd.f32 %v9136, %v9190
  %v9204 = vadd.f32 %v9137, %v9190
  %v9205 = vadd.f32 %v9138, %v9190
  %v9206 = vadd.f32 %v9139, %v9190
  %v9207 = vadd.f32 %v9140, %v9190
  %v9208 = vadd.f32 %v9141, %v9190
  %v9209 = vadd.f32 %v9142, %v9190
  %v9210 = vadd.f32 %v9143, %v9190
  %v9211 = vadd.f32 %v9144, %v9190
  %v9212 = vadd.f32 %v9145, %v9190
  %v9213 = vadd.f32 %v9146, %v9190
  %v9214 = vadd.f32 %v9147, %v9190
  %v9215 = vadd.f32 %v9148, %v9190
  %v9216 = vadd.f32 %v9149, %v9190
  %v9217 = vadd.f32 %v9150, %v9190
  %v9218 = vadd.f32 %v9151, %v9190
  %v9219 = vadd.f32 %v9152, %v9190
  %v9220 = vadd.f32 %v9153, %v9190
  %v9221 = vadd.f32 %v9154, %v9190
  %v9222 = vadd.f32 %v9155, %v9190
  %v9223 = vadd.f32 %v9156, %v9190
  %v9224 = vadd.f32 %v9157, %v9190
  %v9225 = vadd.f32 %v9158, %v9190
  %v9226 = vadd.f32 %v9159, %v9190
  %v9227 = vadd.f32 %v9160, %v9190
  %v9228 = vadd.f32 %v9161, %v9190
  %v9229 = vadd.f32 %v9162, %v9190
  %v9230 = vadd.f32 %v9163, %v9190
  %v9231 = vadd.f32 %v9164, %v9190
  %v9232 = vadd.f32 %v9165, %v9190
  %v9233 = vadd.f32 %v9166, %v9190
  %v9234 = vadd.f32 %v9167, %v9190
  %v9235 = vadd.f32 %v9168, %v9190
  %v9236 = vadd.f32 %v9169, %v9190
  %v9237 = vadd.f32 %v9170, %v9190
  %v9238 = vadd.f32 %v9171, %v9190
  %v9239 = vadd.f32 %v9172, %v9190
  %v9240 = vadd.f32 %v9173, %v9190
  %v9241 = vadd.f32 %v9174, %v9190
  %v9242 = vadd.f32 %v9175, %v9190
  %v9243 = vadd.f32 %v9176, %v9190
  %v9244 = vadd.f32 %v9177, %v9190
  %v9245 = vadd.f32 %v9178, %v9190
  %v9246 = vadd.f32 %v9179, %v9190
  %v9247 = vadd.f32 %v9180, %v9190
  %v9248 = vadd.f32 %v9181, %v9190
  %v9249 = vadd.f32 %v9182, %v9190
  %v9250 = vadd.f32 %v9183, %v9190
  %v9251 = vadd.f32 %v9184, %v9190
  %v9252 = vadd.f32 %v9185, %v9190
  %v9253 = vadd.f32 %v9186, %v9190
  %v9254 = vadd.f32 %v9187, %v9190
  %v9255 = vadd.f32 %v9188, %v9190
  %vm9256 = vcmp.gt.f32.partialorder %v9192, 0.0
  %vm9257 = vcmp.gt.f32.partialorder %v9193, 0.0
  %vm9258 = vcmp.gt.f32.partialorder %v9194, 0.0
  %vm9259 = vcmp.gt.f32.partialorder %v9195, 0.0
  %vm9260 = vcmp.gt.f32.partialorder %v9196, 0.0
  %vm9261 = vcmp.gt.f32.partialorder %v9197, 0.0
  %vm9262 = vcmp.gt.f32.partialorder %v9198, 0.0
  %vm9263 = vcmp.gt.f32.partialorder %v9199, 0.0
  %vm9264 = vcmp.gt.f32.partialorder %v9200, 0.0
  %vm9265 = vcmp.gt.f32.partialorder %v9201, 0.0
  %vm9266 = vcmp.gt.f32.partialorder %v9202, 0.0
  %vm9267 = vcmp.gt.f32.partialorder %v9203, 0.0
  %vm9268 = vcmp.gt.f32.partialorder %v9204, 0.0
  %vm9269 = vcmp.gt.f32.partialorder %v9205, 0.0
  %vm9270 = vcmp.gt.f32.partialorder %v9206, 0.0
  %vm9271 = vcmp.gt.f32.partialorder %v9207, 0.0
  %vm9272 = vcmp.gt.f32.partialorder %v9208, 0.0
  %vm9273 = vcmp.gt.f32.partialorder %v9209, 0.0
  %vm9274 = vcmp.gt.f32.partialorder %v9210, 0.0
  %vm9275 = vcmp.gt.f32.partialorder %v9211, 0.0
  %vm9276 = vcmp.gt.f32.partialorder %v9212, 0.0
  %vm9277 = vcmp.gt.f32.partialorder %v9213, 0.0
  %vm9278 = vcmp.gt.f32.partialorder %v9214, 0.0
  %vm9279 = vcmp.gt.f32.partialorder %v9215, 0.0
  %vm9280 = vcmp.gt.f32.partialorder %v9216, 0.0
  %vm9281 = vcmp.gt.f32.partialorder %v9217, 0.0
  %vm9282 = vcmp.gt.f32.partialorder %v9218, 0.0
  %vm9283 = vcmp.gt.f32.partialorder %v9219, 0.0
  %vm9284 = vcmp.gt.f32.partialorder %v9220, 0.0
  %vm9285 = vcmp.gt.f32.partialorder %v9221, 0.0
  %vm9286 = vcmp.gt.f32.partialorder %v9222, 0.0
  %vm9287 = vcmp.gt.f32.partialorder %v9223, 0.0
  %vm9288 = vcmp.gt.f32.partialorder %v9224, 0.0
  %vm9289 = vcmp.gt.f32.partialorder %v9225, 0.0
  %vm9290 = vcmp.gt.f32.partialorder %v9226, 0.0
  %vm9291 = vcmp.gt.f32.partialorder %v9227, 0.0
  %vm9292 = vcmp.gt.f32.partialorder %v9228, 0.0
  %vm9293 = vcmp.gt.f32.partialorder %v9229, 0.0
  %vm9294 = vcmp.gt.f32.partialorder %v9230, 0.0
  %vm9295 = vcmp.gt.f32.partialorder %v9231, 0.0
  %vm9296 = vcmp.gt.f32.partialorder %v9232, 0.0
  %vm9297 = vcmp.gt.f32.partialorder %v9233, 0.0
  %vm9298 = vcmp.gt.f32.partialorder %v9234, 0.0
  %vm9299 = vcmp.gt.f32.partialorder %v9235, 0.0
  %vm9300 = vcmp.gt.f32.partialorder %v9236, 0.0
  %vm9301 = vcmp.gt.f32.partialorder %v9237, 0.0
  %vm9302 = vcmp.gt.f32.partialorder %v9238, 0.0
  %vm9303 = vcmp.gt.f32.partialorder %v9239, 0.0
  %vm9304 = vcmp.gt.f32.partialorder %v9240, 0.0
  %vm9305 = vcmp.gt.f32.partialorder %v9241, 0.0
  %vm9306 = vcmp.gt.f32.partialorder %v9242, 0.0
  %vm9307 = vcmp.gt.f32.partialorder %v9243, 0.0
  %vm9308 = vcmp.gt.f32.partialorder %v9244, 0.0
  %vm9309 = vcmp.gt.f32.partialorder %v9245, 0.0
  %vm9310 = vcmp.gt.f32.partialorder %v9246, 0.0
  %vm9311 = vcmp.gt.f32.partialorder %v9247, 0.0
  %vm9312 = vcmp.gt.f32.partialorder %v9248, 0.0
  %vm9313 = vcmp.gt.f32.partialorder %v9249, 0.0
  %vm9314 = vcmp.gt.f32.partialorder %v9250, 0.0
  %vm9315 = vcmp.gt.f32.partialorder %v9251, 0.0
  %vm9316 = vcmp.gt.f32.partialorder %v9252, 0.0
  %vm9317 = vcmp.gt.f32.partialorder %v9253, 0.0
  %vm9318 = vcmp.gt.f32.partialorder %v9254, 0.0
  %vm9319 = vcmp.gt.f32.partialorder %v9255, 0.0
  %v9320 = vmin.f32 %v9192, 0.0
  %v9321 = vmin.f32 %v9193, 0.0
  %v9322 = vmin.f32 %v9194, 0.0
  %v9323 = vmin.f32 %v9195, 0.0
  %v9324 = vmin.f32 %v9196, 0.0
  %v9325 = vmin.f32 %v9197, 0.0
  %v9326 = vmin.f32 %v9198, 0.0
  %v9327 = vmin.f32 %v9199, 0.0
  %v9328 = vmin.f32 %v9200, 0.0
  %v9329 = vmin.f32 %v9201, 0.0
  %v9330 = vmin.f32 %v9202, 0.0
  %v9331 = vmin.f32 %v9203, 0.0
  %v9332 = vmin.f32 %v9204, 0.0
  %v9333 = vmin.f32 %v9205, 0.0
  %v9334 = vmin.f32 %v9206, 0.0
  %v9335 = vmin.f32 %v9207, 0.0
  %v9336 = vmin.f32 %v9208, 0.0
  %v9337 = vmin.f32 %v9209, 0.0
  %v9338 = vmin.f32 %v9210, 0.0
  %v9339 = vmin.f32 %v9211, 0.0
  %v9340 = vmin.f32 %v9212, 0.0
  %v9341 = vmin.f32 %v9213, 0.0
  %v9342 = vmin.f32 %v9214, 0.0
  %v9343 = vmin.f32 %v9215, 0.0
  %v9344 = vmin.f32 %v9216, 0.0
  %v9345 = vmin.f32 %v9217, 0.0
  %v9346 = vmin.f32 %v9218, 0.0
  %v9347 = vmin.f32 %v9219, 0.0
  %v9348 = vmin.f32 %v9220, 0.0
  %v9349 = vmin.f32 %v9221, 0.0
  %v9350 = vmin.f32 %v9222, 0.0
  %v9351 = vmin.f32 %v9223, 0.0
  %v9352 = vmin.f32 %v9224, 0.0
  %v9353 = vmin.f32 %v9225, 0.0
  %v9354 = vmin.f32 %v9226, 0.0
  %v9355 = vmin.f32 %v9227, 0.0
  %v9356 = vmin.f32 %v9228, 0.0
  %v9357 = vmin.f32 %v9229, 0.0
  %v9358 = vmin.f32 %v9230, 0.0
  %v9359 = vmin.f32 %v9231, 0.0
  %v9360 = vmin.f32 %v9232, 0.0
  %v9361 = vmin.f32 %v9233, 0.0
  %v9362 = vmin.f32 %v9234, 0.0
  %v9363 = vmin.f32 %v9235, 0.0
  %v9364 = vmin.f32 %v9236, 0.0
  %v9365 = vmin.f32 %v9237, 0.0
  %v9366 = vmin.f32 %v9238, 0.0
  %v9367 = vmin.f32 %v9239, 0.0
  %v9368 = vmin.f32 %v9240, 0.0
  %v9369 = vmin.f32 %v9241, 0.0
  %v9370 = vmin.f32 %v9242, 0.0
  %v9371 = vmin.f32 %v9243, 0.0
  %v9372 = vmin.f32 %v9244, 0.0
  %v9373 = vmin.f32 %v9245, 0.0
  %v9374 = vmin.f32 %v9246, 0.0
  %v9375 = vmin.f32 %v9247, 0.0
  %v9376 = vmin.f32 %v9248, 0.0
  %v9377 = vmin.f32 %v9249, 0.0
  %v9378 = vmin.f32 %v9250, 0.0
  %v9379 = vmin.f32 %v9251, 0.0
  %v9380 = vmin.f32 %v9252, 0.0
  %v9381 = vmin.f32 %v9253, 0.0
  %v9382 = vmin.f32 %v9254, 0.0
  %v9383 = vmin.f32 %v9255, 0.0
  %v9384 = vmul.f32 %v9320, 1.442695
  %v9385 = vpow.pop %v9384
  %v9386 = vmul.f32 %v9321, 1.442695
  %v9387 = vpow.pop %v9386
  %v9388 = vmul.f32 %v9322, 1.442695
  %v9389 = vpow.pop %v9388
  %v9390 = vmul.f32 %v9323, 1.442695
  %v9391 = vpow.pop %v9390
  %v9392 = vmul.f32 %v9324, 1.442695
  %v9393 = vpow.pop %v9392
  %v9394 = vmul.f32 %v9325, 1.442695
  %v9395 = vpow.pop %v9394
  %v9396 = vmul.f32 %v9326, 1.442695
  %v9397 = vpow.pop %v9396
  %v9398 = vmul.f32 %v9327, 1.442695
  %v9399 = vpow.pop %v9398
  %v9400 = vmul.f32 %v9328, 1.442695
  %v9401 = vpow.pop %v9400
  %v9402 = vmul.f32 %v9329, 1.442695
  %v9403 = vpow.pop %v9402
  %v9404 = vmul.f32 %v9330, 1.442695
  %v9405 = vpow.pop %v9404
  %v9406 = vmul.f32 %v9331, 1.442695
  %v9407 = vpow.pop %v9406
  %v9408 = vmul.f32 %v9332, 1.442695
  %v9409 = vpow.pop %v9408
  %v9410 = vmul.f32 %v9333, 1.442695
  %v9411 = vpow.pop %v9410
  %v9412 = vmul.f32 %v9334, 1.442695
  %v9413 = vpow.pop %v9412
  %v9414 = vmul.f32 %v9335, 1.442695
  %v9415 = vpow.pop %v9414
  %v9416 = vmul.f32 %v9336, 1.442695
  %v9417 = vpow.pop %v9416
  %v9418 = vmul.f32 %v9337, 1.442695
  %v9419 = vpow.pop %v9418
  %v9420 = vmul.f32 %v9338, 1.442695
  %v9421 = vpow.pop %v9420
  %v9422 = vmul.f32 %v9339, 1.442695
  %v9423 = vpow.pop %v9422
  %v9424 = vmul.f32 %v9340, 1.442695
  %v9425 = vpow.pop %v9424
  %v9426 = vmul.f32 %v9341, 1.442695
  %v9427 = vpow.pop %v9426
  %v9428 = vmul.f32 %v9342, 1.442695
  %v9429 = vpow.pop %v9428
  %v9430 = vmul.f32 %v9343, 1.442695
  %v9431 = vpow.pop %v9430
  %v9432 = vmul.f32 %v9344, 1.442695
  %v9433 = vpow.pop %v9432
  %v9434 = vmul.f32 %v9345, 1.442695
  %v9435 = vpow.pop %v9434
  %v9436 = vmul.f32 %v9346, 1.442695
  %v9437 = vpow.pop %v9436
  %v9438 = vmul.f32 %v9347, 1.442695
  %v9439 = vpow.pop %v9438
  %v9440 = vmul.f32 %v9348, 1.442695
  %v9441 = vpow.pop %v9440
  %v9442 = vmul.f32 %v9349, 1.442695
  %v9443 = vpow.pop %v9442
  %v9444 = vmul.f32 %v9350, 1.442695
  %v9445 = vpow.pop %v9444
  %v9446 = vmul.f32 %v9351, 1.442695
  %v9447 = vpow.pop %v9446
  %v9448 = vmul.f32 %v9352, 1.442695
  %v9449 = vpow.pop %v9448
  %v9450 = vmul.f32 %v9353, 1.442695
  %v9451 = vpow.pop %v9450
  %v9452 = vmul.f32 %v9354, 1.442695
  %v9453 = vpow.pop %v9452
  %v9454 = vmul.f32 %v9355, 1.442695
  %v9455 = vpow.pop %v9454
  %v9456 = vmul.f32 %v9356, 1.442695
  %v9457 = vpow.pop %v9456
  %v9458 = vmul.f32 %v9357, 1.442695
  %v9459 = vpow.pop %v9458
  %v9460 = vmul.f32 %v9358, 1.442695
  %v9461 = vpow.pop %v9460
  %v9462 = vmul.f32 %v9359, 1.442695
  %v9463 = vpow.pop %v9462
  %v9464 = vmul.f32 %v9360, 1.442695
  %v9465 = vpow.pop %v9464
  %v9466 = vmul.f32 %v9361, 1.442695
  %v9467 = vpow.pop %v9466
  %v9468 = vmul.f32 %v9362, 1.442695
  %v9469 = vpow.pop %v9468
  %v9470 = vmul.f32 %v9363, 1.442695
  %v9471 = vpow.pop %v9470
  %v9472 = vmul.f32 %v9364, 1.442695
  %v9473 = vpow.pop %v9472
  %v9474 = vmul.f32 %v9365, 1.442695
  %v9475 = vpow.pop %v9474
  %v9476 = vmul.f32 %v9366, 1.442695
  %v9477 = vpow.pop %v9476
  %v9478 = vmul.f32 %v9367, 1.442695
  %v9479 = vpow.pop %v9478
  %v9480 = vmul.f32 %v9368, 1.442695
  %v9481 = vpow.pop %v9480
  %v9482 = vmul.f32 %v9369, 1.442695
  %v9483 = vpow.pop %v9482
  %v9484 = vmul.f32 %v9370, 1.442695
  %v9485 = vpow.pop %v9484
  %v9486 = vmul.f32 %v9371, 1.442695
  %v9487 = vpow.pop %v9486
  %v9488 = vmul.f32 %v9372, 1.442695
  %v9489 = vpow.pop %v9488
  %v9490 = vmul.f32 %v9373, 1.442695
  %v9491 = vpow.pop %v9490
  %v9492 = vmul.f32 %v9374, 1.442695
  %v9493 = vpow.pop %v9492
  %v9494 = vmul.f32 %v9375, 1.442695
  %v9495 = vpow.pop %v9494
  %v9496 = vmul.f32 %v9376, 1.442695
  %v9497 = vpow.pop %v9496
  %v9498 = vmul.f32 %v9377, 1.442695
  %v9499 = vpow.pop %v9498
  %v9500 = vmul.f32 %v9378, 1.442695
  %v9501 = vpow.pop %v9500
  %v9502 = vmul.f32 %v9379, 1.442695
  %v9503 = vpow.pop %v9502
  %v9504 = vmul.f32 %v9380, 1.442695
  %v9505 = vpow.pop %v9504
  %v9506 = vmul.f32 %v9381, 1.442695
  %v9507 = vpow.pop %v9506
  %v9508 = vmul.f32 %v9382, 1.442695
  %v9509 = vpow.pop %v9508
  %v9510 = vmul.f32 %v9383, 1.442695
  %v9511 = vpow.pop %v9510
  %v9512 = vsub.f32 %v9385, 1.0
  %v9513 = vsub.f32 %v9387, 1.0
  %v9514 = vsub.f32 %v9389, 1.0
  %v9515 = vsub.f32 %v9391, 1.0
  %v9516 = vsub.f32 %v9393, 1.0
  %v9517 = vsub.f32 %v9395, 1.0
  %v9518 = vsub.f32 %v9397, 1.0
  %v9519 = vsub.f32 %v9399, 1.0
  %v9520 = vsub.f32 %v9401, 1.0
  %v9521 = vsub.f32 %v9403, 1.0
  %v9522 = vsub.f32 %v9405, 1.0
  %v9523 = vsub.f32 %v9407, 1.0
  %v9524 = vsub.f32 %v9409, 1.0
  %v9525 = vsub.f32 %v9411, 1.0
  %v9526 = vsub.f32 %v9413, 1.0
  %v9527 = vsub.f32 %v9415, 1.0
  %v9528 = vsub.f32 %v9417, 1.0
  %v9529 = vsub.f32 %v9419, 1.0
  %v9530 = vsub.f32 %v9421, 1.0
  %v9531 = vsub.f32 %v9423, 1.0
  %v9532 = vsub.f32 %v9425, 1.0
  %v9533 = vsub.f32 %v9427, 1.0
  %v9534 = vsub.f32 %v9429, 1.0
  %v9535 = vsub.f32 %v9431, 1.0
  %v9536 = vsub.f32 %v9433, 1.0
  %v9537 = vsub.f32 %v9435, 1.0
  %v9538 = vsub.f32 %v9437, 1.0
  %v9539 = vsub.f32 %v9439, 1.0
  %v9540 = vsub.f32 %v9441, 1.0
  %v9541 = vsub.f32 %v9443, 1.0
  %v9542 = vsub.f32 %v9445, 1.0
  %v9543 = vsub.f32 %v9447, 1.0
  %v9544 = vsub.f32 %v9449, 1.0
  %v9545 = vsub.f32 %v9451, 1.0
  %v9546 = vsub.f32 %v9453, 1.0
  %v9547 = vsub.f32 %v9455, 1.0
  %v9548 = vsub.f32 %v9457, 1.0
  %v9549 = vsub.f32 %v9459, 1.0
  %v9550 = vsub.f32 %v9461, 1.0
  %v9551 = vsub.f32 %v9463, 1.0
  %v9552 = vsub.f32 %v9465, 1.0
  %v9553 = vsub.f32 %v9467, 1.0
  %v9554 = vsub.f32 %v9469, 1.0
  %v9555 = vsub.f32 %v9471, 1.0
  %v9556 = vsub.f32 %v9473, 1.0
  %v9557 = vsub.f32 %v9475, 1.0
  %v9558 = vsub.f32 %v9477, 1.0
  %v9559 = vsub.f32 %v9479, 1.0
  %v9560 = vsub.f32 %v9481, 1.0
  %v9561 = vsub.f32 %v9483, 1.0
  %v9562 = vsub.f32 %v9485, 1.0
  %v9563 = vsub.f32 %v9487, 1.0
  %v9564 = vsub.f32 %v9489, 1.0
  %v9565 = vsub.f32 %v9491, 1.0
  %v9566 = vsub.f32 %v9493, 1.0
  %v9567 = vsub.f32 %v9495, 1.0
  %v9568 = vsub.f32 %v9497, 1.0
  %v9569 = vsub.f32 %v9499, 1.0
  %v9570 = vsub.f32 %v9501, 1.0
  %v9571 = vsub.f32 %v9503, 1.0
  %v9572 = vsub.f32 %v9505, 1.0
  %v9573 = vsub.f32 %v9507, 1.0
  %v9574 = vsub.f32 %v9509, 1.0
  %v9575 = vsub.f32 %v9511, 1.0
  %v9576 = vsel %vm9256, %v9192, %v9512
  %v9577 = vsel %vm9257, %v9193, %v9513
  %v9578 = vsel %vm9258, %v9194, %v9514
  %v9579 = vsel %vm9259, %v9195, %v9515
  %v9580 = vsel %vm9260, %v9196, %v9516
  %v9581 = vsel %vm9261, %v9197, %v9517
  %v9582 = vsel %vm9262, %v9198, %v9518
  %v9583 = vsel %vm9263, %v9199, %v9519
  %v9584 = vsel %vm9264, %v9200, %v9520
  %v9585 = vsel %vm9265, %v9201, %v9521
  %v9586 = vsel %vm9266, %v9202, %v9522
  %v9587 = vsel %vm9267, %v9203, %v9523
  %v9588 = vsel %vm9268, %v9204, %v9524
  %v9589 = vsel %vm9269, %v9205, %v9525
  %v9590 = vsel %vm9270, %v9206, %v9526
  %v9591 = vsel %vm9271, %v9207, %v9527
  %v9592 = vsel %vm9272, %v9208, %v9528
  %v9593 = vsel %vm9273, %v9209, %v9529
  %v9594 = vsel %vm9274, %v9210, %v9530
  %v9595 = vsel %vm9275, %v9211, %v9531
  %v9596 = vsel %vm9276, %v9212, %v9532
  %v9597 = vsel %vm9277, %v9213, %v9533
  %v9598 = vsel %vm9278, %v9214, %v9534
  %v9599 = vsel %vm9279, %v9215, %v9535
  %v9600 = vsel %vm9280, %v9216, %v9536
  %v9601 = vsel %vm9281, %v9217, %v9537
  %v9602 = vsel %vm9282, %v9218, %v9538
  %v9603 = vsel %vm9283, %v9219, %v9539
  %v9604 = vsel %vm9284, %v9220, %v9540
  %v9605 = vsel %vm9285, %v9221, %v9541
  %v9606 = vsel %vm9286, %v9222, %v9542
  %v9607 = vsel %vm9287, %v9223, %v9543
  %v9608 = vsel %vm9288, %v9224, %v9544
  %v9609 = vsel %vm9289, %v9225, %v9545
  %v9610 = vsel %vm9290, %v9226, %v9546
  %v9611 = vsel %vm9291, %v9227, %v9547
  %v9612 = vsel %vm9292, %v9228, %v9548
  %v9613 = vsel %vm9293, %v9229, %v9549
  %v9614 = vsel %vm9294, %v9230, %v9550
  %v9615 = vsel %vm9295, %v9231, %v9551
  %v9616 = vsel %vm9296, %v9232, %v9552
  %v9617 = vsel %vm9297, %v9233, %v9553
  %v9618 = vsel %vm9298, %v9234, %v9554
  %v9619 = vsel %vm9299, %v9235, %v9555
  %v9620 = vsel %vm9300, %v9236, %v9556
  %v9621 = vsel %vm9301, %v9237, %v9557
  %v9622 = vsel %vm9302, %v9238, %v9558
  %v9623 = vsel %vm9303, %v9239, %v9559
  %v9624 = vsel %vm9304, %v9240, %v9560
  %v9625 = vsel %vm9305, %v9241, %v9561
  %v9626 = vsel %vm9306, %v9242, %v9562
  %v9627 = vsel %vm9307, %v9243, %v9563
  %v9628 = vsel %vm9308, %v9244, %v9564
  %v9629 = vsel %vm9309, %v9245, %v9565
  %v9630 = vsel %vm9310, %v9246, %v9566
  %v9631 = vsel %vm9311, %v9247, %v9567
  %v9632 = vsel %vm9312, %v9248, %v9568
  %v9633 = vsel %vm9313, %v9249, %v9569
  %v9634 = vsel %vm9314, %v9250, %v9570
  %v9635 = vsel %vm9315, %v9251, %v9571
  %v9636 = vsel %vm9316, %v9252, %v9572
  %v9637 = vsel %vm9317, %v9253, %v9573
  %v9638 = vsel %vm9318, %v9254, %v9574
  %v9639 = vsel %vm9319, %v9255, %v9575
  %v9640 = vld [vmem:[%s9] sm:$0xf]
  %v9641 = vld [vmem:[%s10] sm:$0x1]
  %v9643 = vperm.slane %v9641, 0
  %v9646 = vsel %vm4597, %v9576, 0
  %v9649 = vsel %vm4597, %v9577, 0
  %v9652 = vsel %vm4597, %v9578, 0
  %v9655 = vsel %vm4597, %v9579, 0
  %v9658 = vsel %vm4597, %v9580, 0
  %v9661 = vsel %vm4597, %v9581, 0
  %v9664 = vsel %vm4597, %v9582, 0
  %v9667 = vsel %vm4597, %v9583, 0
  %v9670 = vsel %vm4597, %v9584, 0
  %v9673 = vsel %vm4597, %v9585, 0
  %v9676 = vsel %vm4597, %v9586, 0
  %v9679 = vsel %vm4597, %v9587, 0
  %v9682 = vsel %vm4597, %v9588, 0
  %v9685 = vsel %vm4597, %v9589, 0
  %v9688 = vsel %vm4597, %v9590, 0
  %v9691 = vsel %vm4597, %v9591, 0
  %v9694 = vsel %vm4597, %v9592, 0
  %v9697 = vsel %vm4597, %v9593, 0
  %v9700 = vsel %vm4597, %v9594, 0
  %v9703 = vsel %vm4597, %v9595, 0
  %v9706 = vsel %vm4597, %v9596, 0
  %v9709 = vsel %vm4597, %v9597, 0
  %v9712 = vsel %vm4597, %v9598, 0
  %v9715 = vsel %vm4597, %v9599, 0
  %v9718 = vsel %vm4597, %v9600, 0
  %v9721 = vsel %vm4597, %v9601, 0
  %v9724 = vsel %vm4597, %v9602, 0
  %v9727 = vsel %vm4597, %v9603, 0
  %v9730 = vsel %vm4597, %v9604, 0
  %v9733 = vsel %vm4597, %v9605, 0
  %v9736 = vsel %vm4597, %v9606, 0
  %v9739 = vsel %vm4597, %v9607, 0
  %v9742 = vsel %vm4597, %v9608, 0
  %v9745 = vsel %vm4597, %v9609, 0
  %v9748 = vsel %vm4597, %v9610, 0
  %v9751 = vsel %vm4597, %v9611, 0
  %v9754 = vsel %vm4597, %v9612, 0
  %v9757 = vsel %vm4597, %v9613, 0
  %v9760 = vsel %vm4597, %v9614, 0
  %v9763 = vsel %vm4597, %v9615, 0
  %v9766 = vsel %vm4597, %v9616, 0
  %v9769 = vsel %vm4597, %v9617, 0
  %v9772 = vsel %vm4597, %v9618, 0
  %v9775 = vsel %vm4597, %v9619, 0
  %v9778 = vsel %vm4597, %v9620, 0
  %v9781 = vsel %vm4597, %v9621, 0
  %v9784 = vsel %vm4597, %v9622, 0
  %v9787 = vsel %vm4597, %v9623, 0
  %v9790 = vsel %vm4597, %v9624, 0
  %v9793 = vsel %vm4597, %v9625, 0
  %v9796 = vsel %vm4597, %v9626, 0
  %v9799 = vsel %vm4597, %v9627, 0
  %v9802 = vsel %vm4597, %v9628, 0
  %v9805 = vsel %vm4597, %v9629, 0
  %v9808 = vsel %vm4597, %v9630, 0
  %v9811 = vsel %vm4597, %v9631, 0
  %v9814 = vsel %vm4597, %v9632, 0
  %v9817 = vsel %vm4597, %v9633, 0
  %v9820 = vsel %vm4597, %v9634, 0
  %v9823 = vsel %vm4597, %v9635, 0
  %v9826 = vsel %vm4597, %v9636, 0
  %v9829 = vsel %vm4597, %v9637, 0
  %v9832 = vsel %vm4597, %v9638, 0
  %v9835 = vsel %vm4597, %v9639, 0
  %v9838 = vsel %vm8370, %v9640, 0
  %9840 = vmatpush.msra.mxu0 0.0
  %9841 = vmatpush.msra.mxu0 0.0
  %9842 = vmatpush.msra.mxu0 0.0
  %9843 = vmatpush.msra.mxu0 0.0
  %9844 = vmatpush.msra.mxu0 0.0
  %9845 = vmatpush.msra.mxu0 0.0
  %9846 = vmatpush.msra.mxu0 0.0
  %9847 = vmatpush.msra.mxu0 0.0
  %9848 = vmatpush.msra.mxu0 0.0
  %9849 = vmatpush.msra.mxu0 0.0
  %9850 = vmatpush.msra.mxu0 0.0
  %9851 = vmatpush.msra.mxu0 0.0
  %9852 = vmatpush.msra.mxu0 0.0
  %9853 = vmatpush.msra.mxu0 0.0
  %9854 = vmatpush.msra.mxu0 0.0
  %9855 = vmatpush.msra.mxu0 %v9838
  %9856 = vmatmul.f32.gmra.mxu0 %v9646
  %v9857 = vpop.f32.mrf.mxu0
  %v9858 = vadd.f32 %v9643, %v9857
  %9859 = vmatmul.f32.gmra.mxu0 %v9649
  %v9860 = vpop.f32.mrf.mxu0
  %v9861 = vadd.f32 %v9643, %v9860
  %9862 = vmatmul.f32.gmra.mxu0 %v9652
  %v9863 = vpop.f32.mrf.mxu0
  %v9864 = vadd.f32 %v9643, %v9863
  %9865 = vmatmul.f32.gmra.mxu0 %v9655
  %v9866 = vpop.f32.mrf.mxu0
  %v9867 = vadd.f32 %v9643, %v9866
  %9868 = vmatmul.f32.gmra.mxu0 %v9658
  %v9869 = vpop.f32.mrf.mxu0
  %v9870 = vadd.f32 %v9643, %v9869
  %9871 = vmatmul.f32.gmra.mxu0 %v9661
  %v9872 = vpop.f32.mrf.mxu0
  %v9873 = vadd.f32 %v9643, %v9872
  %9874 = vmatmul.f32.gmra.mxu0 %v9664
  %v9875 = vpop.f32.mrf.mxu0
  %v9876 = vadd.f32 %v9643, %v9875
  %9877 = vmatmul.f32.gmra.mxu0 %v9667
  %v9878 = vpop.f32.mrf.mxu0
  %v9879 = vadd.f32 %v9643, %v9878
  %9880 = vmatmul.f32.gmra.mxu0 %v9670
  %v9881 = vpop.f32.mrf.mxu0
  %v9882 = vadd.f32 %v9643, %v9881
  %9883 = vmatmul.f32.gmra.mxu0 %v9673
  %v9884 = vpop.f32.mrf.mxu0
  %v9885 = vadd.f32 %v9643, %v9884
  %9886 = vmatmul.f32.gmra.mxu0 %v9676
  %v9887 = vpop.f32.mrf.mxu0
  %v9888 = vadd.f32 %v9643, %v9887
  %9889 = vmatmul.f32.gmra.mxu0 %v9679
  %v9890 = vpop.f32.mrf.mxu0
  %v9891 = vadd.f32 %v9643, %v9890
  %9892 = vmatmul.f32.gmra.mxu0 %v9682
  %v9893 = vpop.f32.mrf.mxu0
  %v9894 = vadd.f32 %v9643, %v9893
  %9895 = vmatmul.f32.gmra.mxu0 %v9685
  %v9896 = vpop.f32.mrf.mxu0
  %v9897 = vadd.f32 %v9643, %v9896
  %9898 = vmatmul.f32.gmra.mxu0 %v9688
  %v9899 = vpop.f32.mrf.mxu0
  %v9900 = vadd.f32 %v9643, %v9899
  %9901 = vmatmul.f32.gmra.mxu0 %v9691
  %v9902 = vpop.f32.mrf.mxu0
  %v9903 = vadd.f32 %v9643, %v9902
  %9904 = vmatmul.f32.gmra.mxu0 %v9694
  %v9905 = vpop.f32.mrf.mxu0
  %v9906 = vadd.f32 %v9643, %v9905
  %9907 = vmatmul.f32.gmra.mxu0 %v9697
  %v9908 = vpop.f32.mrf.mxu0
  %v9909 = vadd.f32 %v9643, %v9908
  %9910 = vmatmul.f32.gmra.mxu0 %v9700
  %v9911 = vpop.f32.mrf.mxu0
  %v9912 = vadd.f32 %v9643, %v9911
  %9913 = vmatmul.f32.gmra.mxu0 %v9703
  %v9914 = vpop.f32.mrf.mxu0
  %v9915 = vadd.f32 %v9643, %v9914
  %9916 = vmatmul.f32.gmra.mxu0 %v9706
  %v9917 = vpop.f32.mrf.mxu0
  %v9918 = vadd.f32 %v9643, %v9917
  %9919 = vmatmul.f32.gmra.mxu0 %v9709
  %v9920 = vpop.f32.mrf.mxu0
  %v9921 = vadd.f32 %v9643, %v9920
  %9922 = vmatmul.f32.gmra.mxu0 %v9712
  %v9923 = vpop.f32.mrf.mxu0
  %v9924 = vadd.f32 %v9643, %v9923
  %9925 = vmatmul.f32.gmra.mxu0 %v9715
  %v9926 = vpop.f32.mrf.mxu0
  %v9927 = vadd.f32 %v9643, %v9926
  %9928 = vmatmul.f32.gmra.mxu0 %v9718
  %v9929 = vpop.f32.mrf.mxu0
  %v9930 = vadd.f32 %v9643, %v9929
  %9931 = vmatmul.f32.gmra.mxu0 %v9721
  %v9932 = vpop.f32.mrf.mxu0
  %v9933 = vadd.f32 %v9643, %v9932
  %9934 = vmatmul.f32.gmra.mxu0 %v9724
  %v9935 = vpop.f32.mrf.mxu0
  %v9936 = vadd.f32 %v9643, %v9935
  %9937 = vmatmul.f32.gmra.mxu0 %v9727
  %v9938 = vpop.f32.mrf.mxu0
  %v9939 = vadd.f32 %v9643, %v9938
  %9940 = vmatmul.f32.gmra.mxu0 %v9730
  %v9941 = vpop.f32.mrf.mxu0
  %v9942 = vadd.f32 %v9643, %v9941
  %9943 = vmatmul.f32.gmra.mxu0 %v9733
  %v9944 = vpop.f32.mrf.mxu0
  %v9945 = vadd.f32 %v9643, %v9944
  %9946 = vmatmul.f32.gmra.mxu0 %v9736
  %v9947 = vpop.f32.mrf.mxu0
  %v9948 = vadd.f32 %v9643, %v9947
  %9949 = vmatmul.f32.gmra.mxu0 %v9739
  %v9950 = vpop.f32.mrf.mxu0
  %v9951 = vadd.f32 %v9643, %v9950
  %9952 = vmatmul.f32.gmra.mxu0 %v9742
  %v9953 = vpop.f32.mrf.mxu0
  %v9954 = vadd.f32 %v9643, %v9953
  %9955 = vmatmul.f32.gmra.mxu0 %v9745
  %v9956 = vpop.f32.mrf.mxu0
  %v9957 = vadd.f32 %v9643, %v9956
  %9958 = vmatmul.f32.gmra.mxu0 %v9748
  %v9959 = vpop.f32.mrf.mxu0
  %v9960 = vadd.f32 %v9643, %v9959
  %9961 = vmatmul.f32.gmra.mxu0 %v9751
  %v9962 = vpop.f32.mrf.mxu0
  %v9963 = vadd.f32 %v9643, %v9962
  %9964 = vmatmul.f32.gmra.mxu0 %v9754
  %v9965 = vpop.f32.mrf.mxu0
  %v9966 = vadd.f32 %v9643, %v9965
  %9967 = vmatmul.f32.gmra.mxu0 %v9757
  %v9968 = vpop.f32.mrf.mxu0
  %v9969 = vadd.f32 %v9643, %v9968
  %9970 = vmatmul.f32.gmra.mxu0 %v9760
  %v9971 = vpop.f32.mrf.mxu0
  %v9972 = vadd.f32 %v9643, %v9971
  %9973 = vmatmul.f32.gmra.mxu0 %v9763
  %v9974 = vpop.f32.mrf.mxu0
  %v9975 = vadd.f32 %v9643, %v9974
  %9976 = vmatmul.f32.gmra.mxu0 %v9766
  %v9977 = vpop.f32.mrf.mxu0
  %v9978 = vadd.f32 %v9643, %v9977
  %9979 = vmatmul.f32.gmra.mxu0 %v9769
  %v9980 = vpop.f32.mrf.mxu0
  %v9981 = vadd.f32 %v9643, %v9980
  %9982 = vmatmul.f32.gmra.mxu0 %v9772
  %v9983 = vpop.f32.mrf.mxu0
  %v9984 = vadd.f32 %v9643, %v9983
  %9985 = vmatmul.f32.gmra.mxu0 %v9775
  %v9986 = vpop.f32.mrf.mxu0
  %v9987 = vadd.f32 %v9643, %v9986
  %9988 = vmatmul.f32.gmra.mxu0 %v9778
  %v9989 = vpop.f32.mrf.mxu0
  %v9990 = vadd.f32 %v9643, %v9989
  %9991 = vmatmul.f32.gmra.mxu0 %v9781
  %v9992 = vpop.f32.mrf.mxu0
  %v9993 = vadd.f32 %v9643, %v9992
  %9994 = vmatmul.f32.gmra.mxu0 %v9784
  %v9995 = vpop.f32.mrf.mxu0
  %v9996 = vadd.f32 %v9643, %v9995
  %9997 = vmatmul.f32.gmra.mxu0 %v9787
  %v9998 = vpop.f32.mrf.mxu0
  %v9999 = vadd.f32 %v9643, %v9998
  %10000 = vmatmul.f32.gmra.mxu0 %v9790
  %v10001 = vpop.f32.mrf.mxu0
  %v10002 = vadd.f32 %v9643, %v10001
  %10003 = vmatmul.f32.gmra.mxu0 %v9793
  %v10004 = vpop.f32.mrf.mxu0
  %v10005 = vadd.f32 %v9643, %v10004
  %10006 = vmatmul.f32.gmra.mxu0 %v9796
  %v10007 = vpop.f32.mrf.mxu0
  %v10008 = vadd.f32 %v9643, %v10007
  %10009 = vmatmul.f32.gmra.mxu0 %v9799
  %v10010 = vpop.f32.mrf.mxu0
  %v10011 = vadd.f32 %v9643, %v10010
  %10012 = vmatmul.f32.gmra.mxu0 %v9802
  %v10013 = vpop.f32.mrf.mxu0
  %v10014 = vadd.f32 %v9643, %v10013
  %10015 = vmatmul.f32.gmra.mxu0 %v9805
  %v10016 = vpop.f32.mrf.mxu0
  %v10017 = vadd.f32 %v9643, %v10016
  %10018 = vmatmul.f32.gmra.mxu0 %v9808
  %v10019 = vpop.f32.mrf.mxu0
  %v10020 = vadd.f32 %v9643, %v10019
  %10021 = vmatmul.f32.gmra.mxu0 %v9811
  %v10022 = vpop.f32.mrf.mxu0
  %v10023 = vadd.f32 %v9643, %v10022
  %10024 = vmatmul.f32.gmra.mxu0 %v9814
  %v10025 = vpop.f32.mrf.mxu0
  %v10026 = vadd.f32 %v9643, %v10025
  %10027 = vmatmul.f32.gmra.mxu0 %v9817
  %v10028 = vpop.f32.mrf.mxu0
  %v10029 = vadd.f32 %v9643, %v10028
  %10030 = vmatmul.f32.gmra.mxu0 %v9820
  %v10031 = vpop.f32.mrf.mxu0
  %v10032 = vadd.f32 %v9643, %v10031
  %10033 = vmatmul.f32.gmra.mxu0 %v9823
  %v10034 = vpop.f32.mrf.mxu0
  %v10035 = vadd.f32 %v9643, %v10034
  %10036 = vmatmul.f32.gmra.mxu0 %v9826
  %v10037 = vpop.f32.mrf.mxu0
  %v10038 = vadd.f32 %v9643, %v10037
  %10039 = vmatmul.f32.gmra.mxu0 %v9829
  %v10040 = vpop.f32.mrf.mxu0
  %v10041 = vadd.f32 %v9643, %v10040
  %10042 = vmatmul.f32.gmra.mxu0 %v9832
  %v10043 = vpop.f32.mrf.mxu0
  %v10044 = vadd.f32 %v9643, %v10043
  %10045 = vmatmul.f32.gmra.mxu0 %v9835
  %v10046 = vpop.f32.mrf.mxu0
  %v10047 = vadd.f32 %v9643, %v10046
  %10048 = vdwg.mxu0
  %v10049 = vtanh.pop %v9858
  %v10050 = vtanh.pop %v9861
  %v10051 = vtanh.pop %v9864
  %v10052 = vtanh.pop %v9867
  %v10053 = vtanh.pop %v9870
  %v10054 = vtanh.pop %v9873
  %v10055 = vtanh.pop %v9876
  %v10056 = vtanh.pop %v9879
  %v10057 = vtanh.pop %v9882
  %v10058 = vtanh.pop %v9885
  %v10059 = vtanh.pop %v9888
  %v10060 = vtanh.pop %v9891
  %v10061 = vtanh.pop %v9894
  %v10062 = vtanh.pop %v9897
  %v10063 = vtanh.pop %v9900
  %v10064 = vtanh.pop %v9903
  %v10065 = vtanh.pop %v9906
  %v10066 = vtanh.pop %v9909
  %v10067 = vtanh.pop %v9912
  %v10068 = vtanh.pop %v9915
  %v10069 = vtanh.pop %v9918
  %v10070 = vtanh.pop %v9921
  %v10071 = vtanh.pop %v9924
  %v10072 = vtanh.pop %v9927
  %v10073 = vtanh.pop %v9930
  %v10074 = vtanh.pop %v9933
  %v10075 = vtanh.pop %v9936
  %v10076 = vtanh.pop %v9939
  %v10077 = vtanh.pop %v9942
  %v10078 = vtanh.pop %v9945
  %v10079 = vtanh.pop %v9948
  %v10080 = vtanh.pop %v9951
  %v10081 = vtanh.pop %v9954
  %v10082 = vtanh.pop %v9957
  %v10083 = vtanh.pop %v9960
  %v10084 = vtanh.pop %v9963
  %v10085 = vtanh.pop %v9966
  %v10086 = vtanh.pop %v9969
  %v10087 = vtanh.pop %v9972
  %v10088 = vtanh.pop %v9975
  %v10089 = vtanh.pop %v9978
  %v10090 = vtanh.pop %v9981
  %v10091 = vtanh.pop %v9984
  %v10092 = vtanh.pop %v9987
  %v10093 = vtanh.pop %v9990
  %v10094 = vtanh.pop %v9993
  %v10095 = vtanh.pop %v9996
  %v10096 = vtanh.pop %v9999
  %v10097 = vtanh.pop %v10002
  %v10098 = vtanh.pop %v10005
  %v10099 = vtanh.pop %v10008
  %v10100 = vtanh.pop %v10011
  %v10101 = vtanh.pop %v10014
  %v10102 = vtanh.pop %v10017
  %v10103 = vtanh.pop %v10020
  %v10104 = vtanh.pop %v10023
  %v10105 = vtanh.pop %v10026
  %v10106 = vtanh.pop %v10029
  %v10107 = vtanh.pop %v10032
  %v10108 = vtanh.pop %v10035
  %v10109 = vtanh.pop %v10038
  %v10110 = vtanh.pop %v10041
  %v10111 = vtanh.pop %v10044
  %v10112 = vtanh.pop %v10047
  %10113 = vst.msk [vmem:[%s11] sm:$0xff] %vm4597, %v10049
  %10114 = vst.msk [vmem:[%s11 + $0x8] sm:$0xff] %vm4597, %v10050
  %10115 = vst.msk [vmem:[%s11 + $0x10] sm:$0xff] %vm4597, %v10051
  %10116 = vst.msk [vmem:[%s11 + $0x18] sm:$0xff] %vm4597, %v10052
  %10117 = vst.msk [vmem:[%s11 + $0x20] sm:$0xff] %vm4597, %v10053
  %10118 = vst.msk [vmem:[%s11 + $0x28] sm:$0xff] %vm4597, %v10054
  %10119 = vst.msk [vmem:[%s11 + $0x30] sm:$0xff] %vm4597, %v10055
  %10120 = vst.msk [vmem:[%s11 + $0x38] sm:$0xff] %vm4597, %v10056
  %10121 = vst.msk [vmem:[%s11 + $0x40] sm:$0xff] %vm4597, %v10057
  %10122 = vst.msk [vmem:[%s11 + $0x48] sm:$0xff] %vm4597, %v10058
  %10123 = vst.msk [vmem:[%s11 + $0x50] sm:$0xff] %vm4597, %v10059
  %10124 = vst.msk [vmem:[%s11 + $0x58] sm:$0xff] %vm4597, %v10060
  %10125 = vst.msk [vmem:[%s11 + $0x60] sm:$0xff] %vm4597, %v10061
  %10126 = vst.msk [vmem:[%s11 + $0x68] sm:$0xff] %vm4597, %v10062
  %10127 = vst.msk [vmem:[%s11 + $0x70] sm:$0xff] %vm4597, %v10063
  %10128 = vst.msk [vmem:[%s11 + $0x78] sm:$0xff] %vm4597, %v10064
  %10129 = vst.msk [vmem:[%s11 + $0x80] sm:$0xff] %vm4597, %v10065
  %10130 = vst.msk [vmem:[%s11 + $0x88] sm:$0xff] %vm4597, %v10066
  %10131 = vst.msk [vmem:[%s11 + $0x90] sm:$0xff] %vm4597, %v10067
  %10132 = vst.msk [vmem:[%s11 + $0x98] sm:$0xff] %vm4597, %v10068
  %10133 = vst.msk [vmem:[%s11 + $0xa0] sm:$0xff] %vm4597, %v10069
  %10134 = vst.msk [vmem:[%s11 + $0xa8] sm:$0xff] %vm4597, %v10070
  %10135 = vst.msk [vmem:[%s11 + $0xb0] sm:$0xff] %vm4597, %v10071
  %10136 = vst.msk [vmem:[%s11 + $0xb8] sm:$0xff] %vm4597, %v10072
  %10137 = vst.msk [vmem:[%s11 + $0xc0] sm:$0xff] %vm4597, %v10073
  %10138 = vst.msk [vmem:[%s11 + $0xc8] sm:$0xff] %vm4597, %v10074
  %10139 = vst.msk [vmem:[%s11 + $0xd0] sm:$0xff] %vm4597, %v10075
  %10140 = vst.msk [vmem:[%s11 + $0xd8] sm:$0xff] %vm4597, %v10076
  %10141 = vst.msk [vmem:[%s11 + $0xe0] sm:$0xff] %vm4597, %v10077
  %10142 = vst.msk [vmem:[%s11 + $0xe8] sm:$0xff] %vm4597, %v10078
  %10143 = vst.msk [vmem:[%s11 + $0xf0] sm:$0xff] %vm4597, %v10079
  %10144 = vst.msk [vmem:[%s11 + $0xf8] sm:$0xff] %vm4597, %v10080
  %10145 = vst.msk [vmem:[%s11 + $0x100] sm:$0xff] %vm4597, %v10081
  %10146 = vst.msk [vmem:[%s11 + $0x108] sm:$0xff] %vm4597, %v10082
  %10147 = vst.msk [vmem:[%s11 + $0x110] sm:$0xff] %vm4597, %v10083
  %10148 = vst.msk [vmem:[%s11 + $0x118] sm:$0xff] %vm4597, %v10084
  %10149 = vst.msk [vmem:[%s11 + $0x120] sm:$0xff] %vm4597, %v10085
  %10150 = vst.msk [vmem:[%s11 + $0x128] sm:$0xff] %vm4597, %v10086
  %10151 = vst.msk [vmem:[%s11 + $0x130] sm:$0xff] %vm4597, %v10087
  %10152 = vst.msk [vmem:[%s11 + $0x138] sm:$0xff] %vm4597, %v10088
  %10153 = vst.msk [vmem:[%s11 + $0x140] sm:$0xff] %vm4597, %v10089
  %10154 = vst.msk [vmem:[%s11 + $0x148] sm:$0xff] %vm4597, %v10090
  %10155 = vst.msk [vmem:[%s11 + $0x150] sm:$0xff] %vm4597, %v10091
  %10156 = vst.msk [vmem:[%s11 + $0x158] sm:$0xff] %vm4597, %v10092
  %10157 = vst.msk [vmem:[%s11 + $0x160] sm:$0xff] %vm4597, %v10093
  %10158 = vst.msk [vmem:[%s11 + $0x168] sm:$0xff] %vm4597, %v10094
  %10159 = vst.msk [vmem:[%s11 + $0x170] sm:$0xff] %vm4597, %v10095
  %10160 = vst.msk [vmem:[%s11 + $0x178] sm:$0xff] %vm4597, %v10096
  %10161 = vst.msk [vmem:[%s11 + $0x180] sm:$0xff] %vm4597, %v10097
  %10162 = vst.msk [vmem:[%s11 + $0x188] sm:$0xff] %vm4597, %v10098
  %10163 = vst.msk [vmem:[%s11 + $0x190] sm:$0xff] %vm4597, %v10099
  %10164 = vst.msk [vmem:[%s11 + $0x198] sm:$0xff] %vm4597, %v10100
  %10165 = vst.msk [vmem:[%s11 + $0x1a0] sm:$0xff] %vm4597, %v10101
  %10166 = vst.msk [vmem:[%s11 + $0x1a8] sm:$0xff] %vm4597, %v10102
  %10167 = vst.msk [vmem:[%s11 + $0x1b0] sm:$0xff] %vm4597, %v10103
  %10168 = vst.msk [vmem:[%s11 + $0x1b8] sm:$0xff] %vm4597, %v10104
  %10169 = vst.msk [vmem:[%s11 + $0x1c0] sm:$0xff] %vm4597, %v10105
  %10170 = vst.msk [vmem:[%s11 + $0x1c8] sm:$0xff] %vm4597, %v10106
  %10171 = vst.msk [vmem:[%s11 + $0x1d0] sm:$0xff] %vm4597, %v10107
  %10172 = vst.msk [vmem:[%s11 + $0x1d8] sm:$0xff] %vm4597, %v10108
  %10173 = vst.msk [vmem:[%s11 + $0x1e0] sm:$0xff] %vm4597, %v10109
  %10174 = vst.msk [vmem:[%s11 + $0x1e8] sm:$0xff] %vm4597, %v10110
  %10175 = vst.msk [vmem:[%s11 + $0x1f0] sm:$0xff] %vm4597, %v10111
  %10176 = vst.msk [vmem:[%s11 + $0x1f8] sm:$0xff] %vm4597, %v10112
  // Predicated region
  $region46: #{_lambda_.5} parent=0 // pred_check
    _
  $region47: #{_lambda_.5} parent=0 // pred_check_branch
    %10178 = sbr.rel (0) target = $region49
  $region48: #{_lambda_.5} parent=0 // pred_region
    _
  $region49: #{_lambda_.5} parent=0 // pred_fallthru
    _
  // Predicated region
  $region50: #{_lambda_.5} parent=0 // pred_check
    _
  $region51: #{_lambda_.5} parent=0 // pred_check_branch
    %10180 = sbr.rel (0) target = $region53
  $region52: #{_lambda_.5} parent=0 // pred_region
    _
  $region53: #{_lambda_.5} parent=0 // pred_fallthru
    _

</llo_original>
